<compile_context>
chip_gen: v5e
topology: v5e:2x2
jax: 0.10.0
libtpu: 0.0.40
codegen_flags: <defaults>
</compile_context>

<pallas_src>
import functools

import jax
import jax.numpy as jnp
from jax.experimental import pallas as pl
from jax.experimental.pallas import tpu as pltpu

BN_EPS = 1e-5


def _round_up(v, m):
    return (v + m - 1) // m * m


# ----------------------------------------------------------------------------
# Fused BasicBlock kernel (G images per grid step)
# ----------------------------------------------------------------------------
def _make_block_kernel(stride, Wp, Wo, Lout, G, B, Lscr, cpl_pad, has_sc_conv):
    s = stride
    # conv1 taps: (tap id, polyphase plane, flat-frame start offset)
    taps1 = [(dh * 3 + dw, (dh % s) * s + (dw % s), (dh // s) * Wp + (dw // s))
             for dh in range(3) for dw in range(3)]
    # conv2 taps: start offsets within the scratch frame (out1 stored at row B)
    taps2 = [(dh * 3 + dw, B - Wp - 1 + dh * Wp + dw)
             for dh in range(3) for dw in range(3)]
    # center tap (dh = dw = 1) of conv1 doubles as the shortcut LHS
    _, c_phase, c_start = taps1[4]
    halo_bot = Lscr - B - Lout

    def kernel(ph_ref, w1_ref, b1_ref, w2_ref, b2_ref, *rest):
        if has_sc_conv:
            wsc_ref, bsc_ref, o_ref, pad_scr = rest
        else:
            o_ref, pad_scr = rest

        # wrap-column mask of the flat frame (built in-kernel, no input stream)
        valid = (jax.lax.broadcasted_iota(jnp.int32, (Lout, 1), 0) % Wp) < Wo

        for g in range(G):
            # ---- conv1 (stride s) + folded bn1 + relu : 9 shifted matmuls ----
            t0, p0, s0 = taps1[0]
            acc1 = jnp.dot(ph_ref[g, p0, pl.ds(s0, Lout), :], w1_ref[t0],
                           preferred_element_type=jnp.float32)
            for t, p, st in taps1[1:]:
                acc1 = acc1 + jnp.dot(ph_ref[g, p, pl.ds(st, Lout), :],
                                      w1_ref[t],
                                      preferred_element_type=jnp.float32)
            # mask zeroes the wrap-around columns that conv2's taps will read
            out1 = jnp.where(valid, jnp.maximum(acc1 + b1_ref[...], 0.0), 0.0)

            # ---- scratch frame: zero halos only, store out1 at aligned row B
            pad_scr[g, pl.ds(0, B), :] = jnp.zeros((B, cpl_pad), pad_scr.dtype)
            pad_scr[g, pl.ds(B + Lout, halo_bot), :] = jnp.zeros(
                (halo_bot, cpl_pad), pad_scr.dtype)
            pad_scr[g, pl.ds(B, Lout), :] = out1

            # ---- conv2 (stride 1) + folded bn2 ----
            t0, s0 = taps2[0]
            acc2 = jnp.dot(pad_scr[g, pl.ds(s0, Lout), :].astype(jnp.bfloat16),
                           w2_ref[t0], preferred_element_type=jnp.float32)
            for t, st in taps2[1:]:
                acc2 = acc2 + jnp.dot(
                    pad_scr[g, pl.ds(st, Lout), :].astype(jnp.bfloat16),
                    w2_ref[t], preferred_element_type=jnp.float32)
            acc2 = acc2 + b2_ref[...]

            # ---- shortcut: reuse conv1's center tap slice (no xs stream) ----
            sc_lhs = ph_ref[g, c_phase, pl.ds(c_start, Lout), :]
            if has_sc_conv:
                sc = jnp.dot(sc_lhs, wsc_ref[...],
                             preferred_element_type=jnp.float32) + bsc_ref[...]
            else:
                sc = sc_lhs.astype(jnp.float32)

            o_ref[g] = jnp.maximum(acc2 + sc, 0.0).astype(o_ref.dtype)

    return kernel


# ----------------------------------------------------------------------------
# Wrapper-side prep: BN folding, weight packing, polyphase planes
# ----------------------------------------------------------------------------
def _fold_bn(bn):
    scale = bn["gamma"] * jax.lax.rsqrt(bn["var"] + BN_EPS)
    bias = bn["beta"] - bn["mean"] * scale
    return scale, bias


def _prep_conv_weight(w_pt, scale, cin_pad, cout_pad):
    """(Cout, Cin, kh, kw) -> (kh*kw, cin_pad, cout_pad) bf16, BN scale folded."""
    cout, cin, kh, kw = w_pt.shape
    w = jnp.transpose(w_pt, (2, 3, 1, 0)) * scale[None, None, None, :]
    w = jnp.pad(w, ((0, 0), (0, 0), (0, cin_pad - cin), (0, cout_pad - cout)))
    return w.reshape(kh * kw, cin_pad, cout_pad).astype(jnp.bfloat16)


def _prep_bias(bias, cout_pad):
    return jnp.pad(bias, (0, cout_pad - bias.shape[0])).reshape(1, cout_pad)


def _build_phases(x_nhwc, stride, Hph, Wp, cin_pad):
    """stride^2 polyphase planes of the zero-padded input, flattened (bf16).

    Plane (a,b)[u,v,c] = x_pad[stride*u + a, stride*v + b, c] (zero outside),
    each padded to (Hph, Wp) so every conv1 tap is a contiguous row-slice of
    the flattened plane.
    """
    N, _, _, C = x_nhwc.shape
    xp = jnp.pad(x_nhwc, ((0, 0), (1, 1), (1, 1), (0, 0)))
    planes = []
    for a in range(stride):
        for b in range(stride):
            ph = xp[:, a::stride, b::stride, :]
            ph = jnp.pad(ph, ((0, 0), (0, Hph - ph.shape[1]),
                              (0, Wp - ph.shape[2]), (0, cin_pad - C)))
            planes.append(ph)
    ph = jnp.stack(planes, axis=1)  # (N, s*s, Hph, Wp, cin_pad)
    return ph.reshape(N, stride * stride, Hph * Wp, cin_pad).astype(jnp.bfloat16)


# ----------------------------------------------------------------------------
# BasicBlock forward
# ----------------------------------------------------------------------------
@functools.partial(jax.jit, static_argnames=("stride",))
def basic_block_forward(x_nchw, params, stride):
    x = jnp.transpose(x_nchw, (0, 2, 3, 1)).astype(jnp.float32)  # NHWC
    N, H, W, Cin = x.shape
    planes = params["conv1_w"].shape[0]

    Ho = (H - 1) // stride + 1
    Wo = (W - 1) // stride + 1
    Wp = _round_up(Wo + 2, 8)          # 8-aligned flat-frame row period
    Hph = Ho + 3
    Lout = Ho * Wp
    Lph = Hph * Wp
    S = stride * stride
    B = _round_up(Wp + 1, 8)           # 8-aligned placement of out1 in scratch
    Lscr = _round_up(B + Lout + Wp + 1, 8)

    cin_pad = _round_up(Cin, 128)      # lane-dense K for conv1 / shortcut
    cpl_pad = _round_up(planes, 128)   # lane-dense output channels
    has_sc_conv = (stride != 1) or (Cin != planes)

    # Group G images per grid step when the per-image M (=Lout) is small, to
    # amortize per-step pipeline overhead (late ResNet stages).
    G = 1
    for cand in (8, 4, 2):
        if N % cand == 0 and cand * Lout <= 1024:
            G = cand
            break

    # BN folded into weights (scale) + bias-only epilogue.
    s1, b1 = _fold_bn(params["bn1"])
    s2, b2 = _fold_bn(params["bn2"])
    w1 = _prep_conv_weight(params["conv1_w"], s1, cin_pad, cpl_pad)
    w2 = _prep_conv_weight(params["conv2_w"], s2, cpl_pad, cpl_pad)
    b1 = _prep_bias(b1, cpl_pad)
    b2 = _prep_bias(b2, cpl_pad)

    phases = _build_phases(x, stride, Hph, Wp, cin_pad)   # bf16 HBM stream

    args = [phases, w1, b1, w2, b2]
    in_specs = [
        pl.BlockSpec((G, S, Lph, cin_pad), lambda n: (n, 0, 0, 0)),
        pl.BlockSpec((9, cin_pad, cpl_pad), lambda n: (0, 0, 0)),
        pl.BlockSpec((1, cpl_pad), lambda n: (0, 0)),
        pl.BlockSpec((9, cpl_pad, cpl_pad), lambda n: (0, 0, 0)),
        pl.BlockSpec((1, cpl_pad), lambda n: (0, 0)),
    ]
    flops = 2 * N * Lout * 9 * (cin_pad + cpl_pad) * cpl_pad
    wbytes = w1.size * 2 + w2.size * 2 + b1.size * 4 + b2.size * 4
    if has_sc_conv:
        ssc, bsc = _fold_bn(params["sc_bn"])
        wsc = _prep_conv_weight(params["sc_w"], ssc, cin_pad, cpl_pad)
        wsc = wsc.reshape(cin_pad, cpl_pad)
        bsc = _prep_bias(bsc, cpl_pad)
        args += [wsc, bsc]
        in_specs += [pl.BlockSpec((cin_pad, cpl_pad), lambda n: (0, 0)),
                     pl.BlockSpec((1, cpl_pad), lambda n: (0, 0))]
        flops += 2 * N * Lout * cin_pad * cpl_pad
        wbytes += wsc.size * 2 + bsc.size * 4

    out_bytes = N * Lout * cpl_pad * 2
    bytes_accessed = int(sum(int(a.size) * a.dtype.itemsize for a in args)
                         + out_bytes)

    # Right-sized VMEM budget from actual block sizes (with generous margin).
    blk_bytes = (2 * G * S * Lph * cin_pad * 2      # phases block, double-buffered
                 + 2 * G * Lout * cpl_pad * 2       # output block, double-buffered
                 + 2 * wbytes                       # weights/biases (x2 buffers)
                 + G * Lscr * cpl_pad * 4           # conv2 scratch frame
                 + 4 * Lout * cpl_pad * 4)          # f32 accumulators / temps
    vmem_limit = int(min(max(2 * blk_bytes + (8 << 20), 24 << 20), 100 << 20))

    kernel = _make_block_kernel(stride, Wp, Wo, Lout, G, B, Lscr, cpl_pad,
                                has_sc_conv)

    out = pl.pallas_call(
        kernel,
        out_shape=jax.ShapeDtypeStruct((N, Lout, cpl_pad), jnp.bfloat16),
        grid=(N // G,),
        in_specs=in_specs,
        out_specs=pl.BlockSpec((G, Lout, cpl_pad), lambda n: (n, 0, 0)),
        scratch_shapes=[pltpu.VMEM((G, Lscr, cpl_pad), jnp.float32)],
        compiler_params=pltpu.CompilerParams(
            dimension_semantics=("parallel",),
            vmem_limit_bytes=vmem_limit),
        cost_estimate=pl.CostEstimate(flops=int(flops), transcendentals=0,
                                      bytes_accessed=bytes_accessed),
    )(*args)

    # Drop flat-frame padding columns and channel-padding lanes; back to NCHW.
    out = out.reshape(N, Ho, Wp, cpl_pad)[:, :, :Wo, :planes]
    return jnp.transpose(out.astype(jnp.float32), (0, 3, 1, 2))


# ----------------------------------------------------------------------------
# Pure-JAX reference (for correctness check)
# ----------------------------------------------------------------------------
def _ref_conv(x_nhwc, w_pt, stride, padding):
    w = jnp.transpose(w_pt, (2, 3, 1, 0))  # HWIO
    return jax.lax.conv_general_dilated(
        x_nhwc, w, (stride, stride),
        ((padding, padding), (padding, padding)),
        dimension_numbers=("NHWC", "HWIO", "NHWC"))


def basic_block_ref(x_nchw, params, stride):
    x = jnp.transpose(x_nchw, (0, 2, 3, 1)).astype(jnp.float32)
    planes = params["conv1_w"].shape[0]

    def bn(v, p):
        s, b = _fold_bn(p)
        return v * s + b

    out = jnp.maximum(bn(_ref_conv(x, params["conv1_w"], stride, 1),
                         params["bn1"]), 0.0)
    out = bn(_ref_conv(out, params["conv2_w"], 1, 1), params["bn2"])
    if stride != 1 or x.shape[-1] != planes:
        sc = bn(_ref_conv(x, params["sc_w"], stride, 0), params["sc_bn"])
    else:
        sc = x
    return jnp.transpose(jnp.maximum(out + sc, 0.0), (0, 3, 1, 2))


# ----------------------------------------------------------------------------
def make_params(key, in_planes, planes, stride):
    ks = jax.random.split(key, 6)

    def bn_params(k, c):
        k1, k2, k3, k4 = jax.random.split(k, 4)
        return {
            "gamma": jax.random.uniform(k1, (c,), jnp.float32, 0.5, 1.5),
            "beta": jax.random.normal(k2, (c,), jnp.float32) * 0.1,
            "mean": jax.random.normal(k3, (c,), jnp.float32) * 0.1,
            "var": jax.random.uniform(k4, (c,), jnp.float32, 0.5, 1.5),
        }

    params = {
        "conv1_w": jax.random.normal(ks[0], (planes, in_planes, 3, 3),
                                     jnp.float32) * 0.1,
        "bn1": bn_params(ks[1], planes),
        "conv2_w": jax.random.normal(ks[2], (planes, planes, 3, 3),
                                     jnp.float32) * 0.1,
        "bn2": bn_params(ks[3], planes),
    }
    if stride != 1 or in_planes != planes:
        params["sc_w"] = jax.random.normal(ks[4], (planes, in_planes, 1, 1),
                                           jnp.float32) * 0.1
        params["sc_bn"] = bn_params(ks[5], planes)
    return params


if __name__ == "__main__":
    key = jax.random.PRNGKey(0)
    k1, k2, k3, k4 = jax.random.split(key, 4)

    # Downsampling block: stride 2, 1x1-conv shortcut (fused in-kernel).
    in_planes, planes, stride = 4, 8, 2
    x = jax.random.normal(k1, (2, in_planes, 16, 16), jnp.float32)  # NCHW
    params = make_params(k2, in_planes, planes, stride)

    out = jax.block_until_ready(basic_block_forward(x, params, stride))
    ref = basic_block_ref(x, params, stride)
    assert out.shape == ref.shape == (2, planes, 8, 8)
    err = float(jnp.max(jnp.abs(out - ref)))
    # bf16 activations/weights with f32 accumulation -> loosened tolerance.
    assert jnp.allclose(out, ref, rtol=5e-2, atol=5e-2), f"max |diff| = {err}"

    # Identity-shortcut block: stride 1, channels preserved.
    x2 = jax.random.normal(k3, (2, planes, 16, 16), jnp.float32)
    params2 = make_params(k4, planes, planes, 1)
    out2 = jax.block_until_ready(basic_block_forward(x2, params2, 1))
    ref2 = basic_block_ref(x2, params2, 1)
    err2 = float(jnp.max(jnp.abs(out2 - ref2)))
    assert jnp.allclose(out2, ref2, rtol=5e-2, atol=5e-2), f"max |diff| = {err2}"

    print("KERNEL_OK")
</pallas_src>

<mosaic_0001>
module attributes {stable_mosaic.version = 11 : i64} {
  func.func @kernel(%arg0: i32, %arg1: memref<2x4x176x128xbf16, #tpu.memory_space<vmem>>, %arg2: memref<9x128x128xbf16, #tpu.memory_space<vmem>>, %arg3: memref<1x128xf32, #tpu.memory_space<vmem>>, %arg4: memref<9x128x128xbf16, #tpu.memory_space<vmem>>, %arg5: memref<1x128xf32, #tpu.memory_space<vmem>>, %arg6: memref<128x128xbf16, #tpu.memory_space<vmem>>, %arg7: memref<1x128xf32, #tpu.memory_space<vmem>>, %arg8: memref<2x128x128xbf16, #tpu.memory_space<vmem>>, %arg9: memref<2x176x128xf32, #tpu.memory_space<vmem>>) attributes {dimension_semantics = [#tpu.dimension_semantics<parallel>], iteration_bounds = array<i64: 1>, scalar_prefetch = 0 : i64, scratch_operands = 1 : i64, tpu.core_type = #tpu.core_type<tc>, window_params = [{transform_indices = @transform_0, window_bounds = array<i64: 2, 4, 176, 128>}, {pipeline_mode = #tpu.pipeline_mode<synchronous>, transform_indices = @transform_1, window_bounds = array<i64: 9, 128, 128>}, {pipeline_mode = #tpu.pipeline_mode<synchronous>, transform_indices = @transform_2, window_bounds = array<i64: 1, 128>}, {pipeline_mode = #tpu.pipeline_mode<synchronous>, transform_indices = @transform_3, window_bounds = array<i64: 9, 128, 128>}, {pipeline_mode = #tpu.pipeline_mode<synchronous>, transform_indices = @transform_4, window_bounds = array<i64: 1, 128>}, {pipeline_mode = #tpu.pipeline_mode<synchronous>, transform_indices = @transform_5, window_bounds = array<i64: 128, 128>}, {pipeline_mode = #tpu.pipeline_mode<synchronous>, transform_indices = @transform_6, window_bounds = array<i64: 1, 128>}, {transform_indices = @transform_7, window_bounds = array<i64: 2, 128, 128>}]} {
    %0 = tpu.iota {dimensions = array<i32: 0>} : vector<128x1xi32>
    %c16_i32 = arith.constant 16 : i32
    %c0_i32 = arith.constant 0 : i32
    %1 = arith.cmpi eq, %c16_i32, %c0_i32 : i32
    %c1_i32 = arith.constant 1 : i32
    %2 = arith.select %1, %c1_i32, %c16_i32 : i32
    %3 = vector.broadcast %2 : i32 to vector<128x1xi32>
    %4 = arith.remsi %0, %3 : vector<128x1xi32>
    %c0_i32_0 = arith.constant 0 : i32
    %5 = vector.broadcast %c0_i32_0 : i32 to vector<128x1xi32>
    %6 = arith.cmpi ne, %4, %5 : vector<128x1xi32>
    %c0_i32_1 = arith.constant 0 : i32
    %7 = vector.broadcast %c0_i32_1 : i32 to vector<128x1xi32>
    %8 = arith.cmpi slt, %4, %7 : vector<128x1xi32>
    %c0_i32_2 = arith.constant 0 : i32
    %9 = arith.cmpi slt, %2, %c0_i32_2 : i32
    %10 = vector.broadcast %9 : i1 to vector<128x1xi1>
    %11 = vector.broadcast %10 : vector<128x1xi1> to vector<128x1xi1>
    %12 = arith.xori %8, %11 : vector<128x1xi1>
    %13 = arith.andi %12, %6 : vector<128x1xi1>
    %14 = vector.broadcast %2 : i32 to vector<128x1xi32>
    %15 = arith.addi %4, %14 : vector<128x1xi32>
    %16 = arith.select %13, %15, %4 : vector<128x1xi1>, vector<128x1xi32>
    %c8_i32 = arith.constant 8 : i32
    %17 = vector.broadcast %c8_i32 : i32 to vector<128x1xi32>
    %18 = arith.cmpi slt, %16, %17 : vector<128x1xi32>
    %c0 = arith.constant 0 : index
    %c0_3 = arith.constant 0 : index
    %c0_4 = arith.constant 0 : index
    %c0_5 = arith.constant 0 : index
    %19 = vector.load %arg1[%c0, %c0_3, %c0_4, %c0_5] : memref<2x4x176x128xbf16, #tpu.memory_space<vmem>>, vector<1x1x128x128xbf16>
    %20 = vector.shape_cast %19 : vector<1x1x128x128xbf16> to vector<128x128xbf16>
    %c0_6 = arith.constant 0 : index
    %c0_7 = arith.constant 0 : index
    %c0_8 = arith.constant 0 : index
    %21 = vector.load %arg2[%c0_6, %c0_7, %c0_8] : memref<9x128x128xbf16, #tpu.memory_space<vmem>>, vector<1x128x128xbf16>
    %22 = vector.shape_cast %21 : vector<1x128x128xbf16> to vector<128x128xbf16>
    %cst = arith.constant dense<0.000000e+00> : vector<128x128xf32>
    %23 = tpu.matmul %20, %22, %cst {dimension_numbers = #tpu.dot_dimension_numbers<[1], [0], [0], [1], [0, 0, 1, 1], [], []>} : vector<128x128xbf16>, vector<128x128xbf16>, vector<128x128xf32> -> vector<128x128xf32>
    %c0_9 = arith.constant 0 : index
    %c1 = arith.constant 1 : index
    %c0_10 = arith.constant 0 : index
    %c0_11 = arith.constant 0 : index
    %24 = vector.load %arg1[%c0_9, %c1, %c0_10, %c0_11] : memref<2x4x176x128xbf16, #tpu.memory_space<vmem>>, vector<1x1x128x128xbf16>
    %25 = vector.shape_cast %24 : vector<1x1x128x128xbf16> to vector<128x128xbf16>
    %c1_12 = arith.constant 1 : index
    %c0_13 = arith.constant 0 : index
    %c0_14 = arith.constant 0 : index
    %26 = vector.load %arg2[%c1_12, %c0_13, %c0_14] : memref<9x128x128xbf16, #tpu.memory_space<vmem>>, vector<1x128x128xbf16>
    %27 = vector.shape_cast %26 : vector<1x128x128xbf16> to vector<128x128xbf16>
    %cst_15 = arith.constant dense<0.000000e+00> : vector<128x128xf32>
    %28 = tpu.matmul %25, %27, %cst_15 {dimension_numbers = #tpu.dot_dimension_numbers<[1], [0], [0], [1], [0, 0, 1, 1], [], []>} : vector<128x128xbf16>, vector<128x128xbf16>, vector<128x128xf32> -> vector<128x128xf32>
    %29 = arith.addf %23, %28 : vector<128x128xf32>
    %c0_16 = arith.constant 0 : index
    %c0_17 = arith.constant 0 : index
    %c1_18 = arith.constant 1 : index
    %c0_19 = arith.constant 0 : index
    %30 = vector.load %arg1[%c0_16, %c0_17, %c1_18, %c0_19] : memref<2x4x176x128xbf16, #tpu.memory_space<vmem>>, vector<1x1x128x128xbf16>
    %31 = vector.shape_cast %30 : vector<1x1x128x128xbf16> to vector<128x128xbf16>
    %c2 = arith.constant 2 : index
    %c0_20 = arith.constant 0 : index
    %c0_21 = arith.constant 0 : index
    %32 = vector.load %arg2[%c2, %c0_20, %c0_21] : memref<9x128x128xbf16, #tpu.memory_space<vmem>>, vector<1x128x128xbf16>
    %33 = vector.shape_cast %32 : vector<1x128x128xbf16> to vector<128x128xbf16>
    %cst_22 = arith.constant dense<0.000000e+00> : vector<128x128xf32>
    %34 = tpu.matmul %31, %33, %cst_22 {dimension_numbers = #tpu.dot_dimension_numbers<[1], [0], [0], [1], [0, 0, 1, 1], [], []>} : vector<128x128xbf16>, vector<128x128xbf16>, vector<128x128xf32> -> vector<128x128xf32>
    %35 = arith.addf %29, %34 : vector<128x128xf32>
    %c0_23 = arith.constant 0 : index
    %c2_24 = arith.constant 2 : index
    %c0_25 = arith.constant 0 : index
    %c0_26 = arith.constant 0 : index
    %36 = vector.load %arg1[%c0_23, %c2_24, %c0_25, %c0_26] : memref<2x4x176x128xbf16, #tpu.memory_space<vmem>>, vector<1x1x128x128xbf16>
    %37 = vector.shape_cast %36 : vector<1x1x128x128xbf16> to vector<128x128xbf16>
    %c3 = arith.constant 3 : index
    %c0_27 = arith.constant 0 : index
    %c0_28 = arith.constant 0 : index
    %38 = vector.load %arg2[%c3, %c0_27, %c0_28] : memref<9x128x128xbf16, #tpu.memory_space<vmem>>, vector<1x128x128xbf16>
    %39 = vector.shape_cast %38 : vector<1x128x128xbf16> to vector<128x128xbf16>
    %cst_29 = arith.constant dense<0.000000e+00> : vector<128x128xf32>
    %40 = tpu.matmul %37, %39, %cst_29 {dimension_numbers = #tpu.dot_dimension_numbers<[1], [0], [0], [1], [0, 0, 1, 1], [], []>} : vector<128x128xbf16>, vector<128x128xbf16>, vector<128x128xf32> -> vector<128x128xf32>
    %41 = arith.addf %35, %40 : vector<128x128xf32>
    %c0_30 = arith.constant 0 : index
    %c3_31 = arith.constant 3 : index
    %c0_32 = arith.constant 0 : index
    %c0_33 = arith.constant 0 : index
    %42 = vector.load %arg1[%c0_30, %c3_31, %c0_32, %c0_33] : memref<2x4x176x128xbf16, #tpu.memory_space<vmem>>, vector<1x1x128x128xbf16>
    %43 = vector.shape_cast %42 : vector<1x1x128x128xbf16> to vector<128x128xbf16>
    %c4 = arith.constant 4 : index
    %c0_34 = arith.constant 0 : index
    %c0_35 = arith.constant 0 : index
    %44 = vector.load %arg2[%c4, %c0_34, %c0_35] : memref<9x128x128xbf16, #tpu.memory_space<vmem>>, vector<1x128x128xbf16>
    %45 = vector.shape_cast %44 : vector<1x128x128xbf16> to vector<128x128xbf16>
    %cst_36 = arith.constant dense<0.000000e+00> : vector<128x128xf32>
    %46 = tpu.matmul %43, %45, %cst_36 {dimension_numbers = #tpu.dot_dimension_numbers<[1], [0], [0], [1], [0, 0, 1, 1], [], []>} : vector<128x128xbf16>, vector<128x128xbf16>, vector<128x128xf32> -> vector<128x128xf32>
    %47 = arith.addf %41, %46 : vector<128x128xf32>
    %c0_37 = arith.constant 0 : index
    %c2_38 = arith.constant 2 : index
    %c1_39 = arith.constant 1 : index
    %c0_40 = arith.constant 0 : index
    %48 = vector.load %arg1[%c0_37, %c2_38, %c1_39, %c0_40] : memref<2x4x176x128xbf16, #tpu.memory_space<vmem>>, vector<1x1x128x128xbf16>
    %49 = vector.shape_cast %48 : vector<1x1x128x128xbf16> to vector<128x128xbf16>
    %c5 = arith.constant 5 : index
    %c0_41 = arith.constant 0 : index
    %c0_42 = arith.constant 0 : index
    %50 = vector.load %arg2[%c5, %c0_41, %c0_42] : memref<9x128x128xbf16, #tpu.memory_space<vmem>>, vector<1x128x128xbf16>
    %51 = vector.shape_cast %50 : vector<1x128x128xbf16> to vector<128x128xbf16>
    %cst_43 = arith.constant dense<0.000000e+00> : vector<128x128xf32>
    %52 = tpu.matmul %49, %51, %cst_43 {dimension_numbers = #tpu.dot_dimension_numbers<[1], [0], [0], [1], [0, 0, 1, 1], [], []>} : vector<128x128xbf16>, vector<128x128xbf16>, vector<128x128xf32> -> vector<128x128xf32>
    %53 = arith.addf %47, %52 : vector<128x128xf32>
    %c0_44 = arith.constant 0 : index
    %c0_45 = arith.constant 0 : index
    %c16 = arith.constant 16 : index
    %c0_46 = arith.constant 0 : index
    %54 = vector.load %arg1[%c0_44, %c0_45, %c16, %c0_46] : memref<2x4x176x128xbf16, #tpu.memory_space<vmem>>, vector<1x1x128x128xbf16>
    %55 = vector.shape_cast %54 : vector<1x1x128x128xbf16> to vector<128x128xbf16>
    %c6 = arith.constant 6 : index
    %c0_47 = arith.constant 0 : index
    %c0_48 = arith.constant 0 : index
    %56 = vector.load %arg2[%c6, %c0_47, %c0_48] : memref<9x128x128xbf16, #tpu.memory_space<vmem>>, vector<1x128x128xbf16>
    %57 = vector.shape_cast %56 : vector<1x128x128xbf16> to vector<128x128xbf16>
    %cst_49 = arith.constant dense<0.000000e+00> : vector<128x128xf32>
    %58 = tpu.matmul %55, %57, %cst_49 {dimension_numbers = #tpu.dot_dimension_numbers<[1], [0], [0], [1], [0, 0, 1, 1], [], []>} : vector<128x128xbf16>, vector<128x128xbf16>, vector<128x128xf32> -> vector<128x128xf32>
    %59 = arith.addf %53, %58 : vector<128x128xf32>
    %c0_50 = arith.constant 0 : index
    %c1_51 = arith.constant 1 : index
    %c16_52 = arith.constant 16 : index
    %c0_53 = arith.constant 0 : index
    %60 = vector.load %arg1[%c0_50, %c1_51, %c16_52, %c0_53] : memref<2x4x176x128xbf16, #tpu.memory_space<vmem>>, vector<1x1x128x128xbf16>
    %61 = vector.shape_cast %60 : vector<1x1x128x128xbf16> to vector<128x128xbf16>
    %c7 = arith.constant 7 : index
    %c0_54 = arith.constant 0 : index
    %c0_55 = arith.constant 0 : index
    %62 = vector.load %arg2[%c7, %c0_54, %c0_55] : memref<9x128x128xbf16, #tpu.memory_space<vmem>>, vector<1x128x128xbf16>
    %63 = vector.shape_cast %62 : vector<1x128x128xbf16> to vector<128x128xbf16>
    %cst_56 = arith.constant dense<0.000000e+00> : vector<128x128xf32>
    %64 = tpu.matmul %61, %63, %cst_56 {dimension_numbers = #tpu.dot_dimension_numbers<[1], [0], [0], [1], [0, 0, 1, 1], [], []>} : vector<128x128xbf16>, vector<128x128xbf16>, vector<128x128xf32> -> vector<128x128xf32>
    %65 = arith.addf %59, %64 : vector<128x128xf32>
    %c0_57 = arith.constant 0 : index
    %c0_58 = arith.constant 0 : index
    %c17 = arith.constant 17 : index
    %c0_59 = arith.constant 0 : index
    %66 = vector.load %arg1[%c0_57, %c0_58, %c17, %c0_59] : memref<2x4x176x128xbf16, #tpu.memory_space<vmem>>, vector<1x1x128x128xbf16>
    %67 = vector.shape_cast %66 : vector<1x1x128x128xbf16> to vector<128x128xbf16>
    %c8 = arith.constant 8 : index
    %c0_60 = arith.constant 0 : index
    %c0_61 = arith.constant 0 : index
    %68 = vector.load %arg2[%c8, %c0_60, %c0_61] : memref<9x128x128xbf16, #tpu.memory_space<vmem>>, vector<1x128x128xbf16>
    %69 = vector.shape_cast %68 : vector<1x128x128xbf16> to vector<128x128xbf16>
    %cst_62 = arith.constant dense<0.000000e+00> : vector<128x128xf32>
    %70 = tpu.matmul %67, %69, %cst_62 {dimension_numbers = #tpu.dot_dimension_numbers<[1], [0], [0], [1], [0, 0, 1, 1], [], []>} : vector<128x128xbf16>, vector<128x128xbf16>, vector<128x128xf32> -> vector<128x128xf32>
    %71 = arith.addf %65, %70 : vector<128x128xf32>
    %c0_63 = arith.constant 0 : index
    %c0_64 = arith.constant 0 : index
    %72 = vector.load %arg3[%c0_63, %c0_64] : memref<1x128xf32, #tpu.memory_space<vmem>>, vector<1x128xf32>
    %73 = vector.broadcast %72 : vector<1x128xf32> to vector<128x128xf32>
    %74 = arith.addf %71, %73 : vector<128x128xf32>
    %cst_65 = arith.constant 0.000000e+00 : f32
    %75 = vector.broadcast %cst_65 : f32 to vector<128x128xf32>
    %76 = arith.maximumf %74, %75 : vector<128x128xf32>
    %cst_66 = arith.constant 0.000000e+00 : f32
    %77 = vector.shape_cast %18 : vector<128x1xi1> to vector<128x1xi1>
    %78 = vector.broadcast %77 : vector<128x1xi1> to vector<128x128xi1>
    %79 = vector.broadcast %cst_66 : f32 to vector<128x128xf32>
    %80 = arith.select %78, %76, %79 : vector<128x128xi1>, vector<128x128xf32>
    %cst_67 = arith.constant 0.000000e+00 : f32
    %81 = vector.broadcast %cst_67 : f32 to vector<24x128xf32>
    %c0_68 = arith.constant 0 : index
    %c0_69 = arith.constant 0 : index
    %c0_70 = arith.constant 0 : index
    %82 = vector.load %arg9[%c0_68, %c0_69, %c0_70] : memref<2x176x128xf32, #tpu.memory_space<vmem>>, vector<1x24x128xf32>
    %83 = vector.shape_cast %82 : vector<1x24x128xf32> to vector<24x128xf32>
    %84 = vector.shape_cast %81 : vector<24x128xf32> to vector<1x24x128xf32>
    tpu.vector_store %arg9[%c0_68, %c0_69, %c0_70], %84 {strides = array<i32>} : memref<2x176x128xf32, #tpu.memory_space<vmem>>, vector<1x24x128xf32>,
    %cst_71 = arith.constant 0.000000e+00 : f32
    %85 = vector.broadcast %cst_71 : f32 to vector<24x128xf32>
    %c0_72 = arith.constant 0 : index
    %c152 = arith.constant 152 : index
    %c0_73 = arith.constant 0 : index
    %86 = vector.load %arg9[%c0_72, %c152, %c0_73] : memref<2x176x128xf32, #tpu.memory_space<vmem>>, vector<1x24x128xf32>
    %87 = vector.shape_cast %86 : vector<1x24x128xf32> to vector<24x128xf32>
    %88 = vector.shape_cast %85 : vector<24x128xf32> to vector<1x24x128xf32>
    tpu.vector_store %arg9[%c0_72, %c152, %c0_73], %88 {strides = array<i32>} : memref<2x176x128xf32, #tpu.memory_space<vmem>>, vector<1x24x128xf32>,
    %c0_74 = arith.constant 0 : index
    %c24 = arith.constant 24 : index
    %c0_75 = arith.constant 0 : index
    %89 = vector.load %arg9[%c0_74, %c24, %c0_75] : memref<2x176x128xf32, #tpu.memory_space<vmem>>, vector<1x128x128xf32>
    %90 = vector.shape_cast %89 : vector<1x128x128xf32> to vector<128x128xf32>
    %91 = vector.shape_cast %80 : vector<128x128xf32> to vector<1x128x128xf32>
    tpu.vector_store %arg9[%c0_74, %c24, %c0_75], %91 {strides = array<i32>} : memref<2x176x128xf32, #tpu.memory_space<vmem>>, vector<1x128x128xf32>,
    %c0_76 = arith.constant 0 : index
    %c7_77 = arith.constant 7 : index
    %c0_78 = arith.constant 0 : index
    %92 = vector.load %arg9[%c0_76, %c7_77, %c0_78] : memref<2x176x128xf32, #tpu.memory_space<vmem>>, vector<1x128x128xf32>
    %93 = vector.shape_cast %92 : vector<1x128x128xf32> to vector<128x128xf32>
    %94 = arith.truncf %93 : vector<128x128xf32> to vector<128x128xbf16>
    %c0_79 = arith.constant 0 : index
    %c0_80 = arith.constant 0 : index
    %c0_81 = arith.constant 0 : index
    %95 = vector.load %arg4[%c0_79, %c0_80, %c0_81] : memref<9x128x128xbf16, #tpu.memory_space<vmem>>, vector<1x128x128xbf16>
    %96 = vector.shape_cast %95 : vector<1x128x128xbf16> to vector<128x128xbf16>
    %cst_82 = arith.constant dense<0.000000e+00> : vector<128x128xf32>
    %97 = tpu.matmul %94, %96, %cst_82 {dimension_numbers = #tpu.dot_dimension_numbers<[1], [0], [0], [1], [0, 0, 1, 1], [], []>} : vector<128x128xbf16>, vector<128x128xbf16>, vector<128x128xf32> -> vector<128x128xf32>
    %c0_83 = arith.constant 0 : index
    %c8_84 = arith.constant 8 : index
    %c0_85 = arith.constant 0 : index
    %98 = vector.load %arg9[%c0_83, %c8_84, %c0_85] : memref<2x176x128xf32, #tpu.memory_space<vmem>>, vector<1x128x128xf32>
    %99 = vector.shape_cast %98 : vector<1x128x128xf32> to vector<128x128xf32>
    %100 = arith.truncf %99 : vector<128x128xf32> to vector<128x128xbf16>
    %c1_86 = arith.constant 1 : index
    %c0_87 = arith.constant 0 : index
    %c0_88 = arith.constant 0 : index
    %101 = vector.load %arg4[%c1_86, %c0_87, %c0_88] : memref<9x128x128xbf16, #tpu.memory_space<vmem>>, vector<1x128x128xbf16>
    %102 = vector.shape_cast %101 : vector<1x128x128xbf16> to vector<128x128xbf16>
    %cst_89 = arith.constant dense<0.000000e+00> : vector<128x128xf32>
    %103 = tpu.matmul %100, %102, %cst_89 {dimension_numbers = #tpu.dot_dimension_numbers<[1], [0], [0], [1], [0, 0, 1, 1], [], []>} : vector<128x128xbf16>, vector<128x128xbf16>, vector<128x128xf32> -> vector<128x128xf32>
    %104 = arith.addf %97, %103 : vector<128x128xf32>
    %c0_90 = arith.constant 0 : index
    %c9 = arith.constant 9 : index
    %c0_91 = arith.constant 0 : index
    %105 = vector.load %arg9[%c0_90, %c9, %c0_91] : memref<2x176x128xf32, #tpu.memory_space<vmem>>, vector<1x128x128xf32>
    %106 = vector.shape_cast %105 : vector<1x128x128xf32> to vector<128x128xf32>
    %107 = arith.truncf %106 : vector<128x128xf32> to vector<128x128xbf16>
    %c2_92 = arith.constant 2 : index
    %c0_93 = arith.constant 0 : index
    %c0_94 = arith.constant 0 : index
    %108 = vector.load %arg4[%c2_92, %c0_93, %c0_94] : memref<9x128x128xbf16, #tpu.memory_space<vmem>>, vector<1x128x128xbf16>
    %109 = vector.shape_cast %108 : vector<1x128x128xbf16> to vector<128x128xbf16>
    %cst_95 = arith.constant dense<0.000000e+00> : vector<128x128xf32>
    %110 = tpu.matmul %107, %109, %cst_95 {dimension_numbers = #tpu.dot_dimension_numbers<[1], [0], [0], [1], [0, 0, 1, 1], [], []>} : vector<128x128xbf16>, vector<128x128xbf16>, vector<128x128xf32> -> vector<128x128xf32>
    %111 = arith.addf %104, %110 : vector<128x128xf32>
    %c0_96 = arith.constant 0 : index
    %c23 = arith.constant 23 : index
    %c0_97 = arith.constant 0 : index
    %112 = vector.load %arg9[%c0_96, %c23, %c0_97] : memref<2x176x128xf32, #tpu.memory_space<vmem>>, vector<1x128x128xf32>
    %113 = vector.shape_cast %112 : vector<1x128x128xf32> to vector<128x128xf32>
    %114 = arith.truncf %113 : vector<128x128xf32> to vector<128x128xbf16>
    %c3_98 = arith.constant 3 : index
    %c0_99 = arith.constant 0 : index
    %c0_100 = arith.constant 0 : index
    %115 = vector.load %arg4[%c3_98, %c0_99, %c0_100] : memref<9x128x128xbf16, #tpu.memory_space<vmem>>, vector<1x128x128xbf16>
    %116 = vector.shape_cast %115 : vector<1x128x128xbf16> to vector<128x128xbf16>
    %cst_101 = arith.constant dense<0.000000e+00> : vector<128x128xf32>
    %117 = tpu.matmul %114, %116, %cst_101 {dimension_numbers = #tpu.dot_dimension_numbers<[1], [0], [0], [1], [0, 0, 1, 1], [], []>} : vector<128x128xbf16>, vector<128x128xbf16>, vector<128x128xf32> -> vector<128x128xf32>
    %118 = arith.addf %111, %117 : vector<128x128xf32>
    %c0_102 = arith.constant 0 : index
    %c24_103 = arith.constant 24 : index
    %c0_104 = arith.constant 0 : index
    %119 = vector.load %arg9[%c0_102, %c24_103, %c0_104] : memref<2x176x128xf32, #tpu.memory_space<vmem>>, vector<1x128x128xf32>
    %120 = vector.shape_cast %119 : vector<1x128x128xf32> to vector<128x128xf32>
    %121 = arith.truncf %120 : vector<128x128xf32> to vector<128x128xbf16>
    %c4_105 = arith.constant 4 : index
    %c0_106 = arith.constant 0 : index
    %c0_107 = arith.constant 0 : index
    %122 = vector.load %arg4[%c4_105, %c0_106, %c0_107] : memref<9x128x128xbf16, #tpu.memory_space<vmem>>, vector<1x128x128xbf16>
    %123 = vector.shape_cast %122 : vector<1x128x128xbf16> to vector<128x128xbf16>
    %cst_108 = arith.constant dense<0.000000e+00> : vector<128x128xf32>
    %124 = tpu.matmul %121, %123, %cst_108 {dimension_numbers = #tpu.dot_dimension_numbers<[1], [0], [0], [1], [0, 0, 1, 1], [], []>} : vector<128x128xbf16>, vector<128x128xbf16>, vector<128x128xf32> -> vector<128x128xf32>
    %125 = arith.addf %118, %124 : vector<128x128xf32>
    %c0_109 = arith.constant 0 : index
    %c25 = arith.constant 25 : index
    %c0_110 = arith.constant 0 : index
    %126 = vector.load %arg9[%c0_109, %c25, %c0_110] : memref<2x176x128xf32, #tpu.memory_space<vmem>>, vector<1x128x128xf32>
    %127 = vector.shape_cast %126 : vector<1x128x128xf32> to vector<128x128xf32>
    %128 = arith.truncf %127 : vector<128x128xf32> to vector<128x128xbf16>
    %c5_111 = arith.constant 5 : index
    %c0_112 = arith.constant 0 : index
    %c0_113 = arith.constant 0 : index
    %129 = vector.load %arg4[%c5_111, %c0_112, %c0_113] : memref<9x128x128xbf16, #tpu.memory_space<vmem>>, vector<1x128x128xbf16>
    %130 = vector.shape_cast %129 : vector<1x128x128xbf16> to vector<128x128xbf16>
    %cst_114 = arith.constant dense<0.000000e+00> : vector<128x128xf32>
    %131 = tpu.matmul %128, %130, %cst_114 {dimension_numbers = #tpu.dot_dimension_numbers<[1], [0], [0], [1], [0, 0, 1, 1], [], []>} : vector<128x128xbf16>, vector<128x128xbf16>, vector<128x128xf32> -> vector<128x128xf32>
    %132 = arith.addf %125, %131 : vector<128x128xf32>
    %c0_115 = arith.constant 0 : index
    %c39 = arith.constant 39 : index
    %c0_116 = arith.constant 0 : index
    %133 = vector.load %arg9[%c0_115, %c39, %c0_116] : memref<2x176x128xf32, #tpu.memory_space<vmem>>, vector<1x128x128xf32>
    %134 = vector.shape_cast %133 : vector<1x128x128xf32> to vector<128x128xf32>
    %135 = arith.truncf %134 : vector<128x128xf32> to vector<128x128xbf16>
    %c6_117 = arith.constant 6 : index
    %c0_118 = arith.constant 0 : index
    %c0_119 = arith.constant 0 : index
    %136 = vector.load %arg4[%c6_117, %c0_118, %c0_119] : memref<9x128x128xbf16, #tpu.memory_space<vmem>>, vector<1x128x128xbf16>
    %137 = vector.shape_cast %136 : vector<1x128x128xbf16> to vector<128x128xbf16>
    %cst_120 = arith.constant dense<0.000000e+00> : vector<128x128xf32>
    %138 = tpu.matmul %135, %137, %cst_120 {dimension_numbers = #tpu.dot_dimension_numbers<[1], [0], [0], [1], [0, 0, 1, 1], [], []>} : vector<128x128xbf16>, vector<128x128xbf16>, vector<128x128xf32> -> vector<128x128xf32>
    %139 = arith.addf %132, %138 : vector<128x128xf32>
    %c0_121 = arith.constant 0 : index
    %c40 = arith.constant 40 : index
    %c0_122 = arith.constant 0 : index
    %140 = vector.load %arg9[%c0_121, %c40, %c0_122] : memref<2x176x128xf32, #tpu.memory_space<vmem>>, vector<1x128x128xf32>
    %141 = vector.shape_cast %140 : vector<1x128x128xf32> to vector<128x128xf32>
    %142 = arith.truncf %141 : vector<128x128xf32> to vector<128x128xbf16>
    %c7_123 = arith.constant 7 : index
    %c0_124 = arith.constant 0 : index
    %c0_125 = arith.constant 0 : index
    %143 = vector.load %arg4[%c7_123, %c0_124, %c0_125] : memref<9x128x128xbf16, #tpu.memory_space<vmem>>, vector<1x128x128xbf16>
    %144 = vector.shape_cast %143 : vector<1x128x128xbf16> to vector<128x128xbf16>
    %cst_126 = arith.constant dense<0.000000e+00> : vector<128x128xf32>
    %145 = tpu.matmul %142, %144, %cst_126 {dimension_numbers = #tpu.dot_dimension_numbers<[1], [0], [0], [1], [0, 0, 1, 1], [], []>} : vector<128x128xbf16>, vector<128x128xbf16>, vector<128x128xf32> -> vector<128x128xf32>
    %146 = arith.addf %139, %145 : vector<128x128xf32>
    %c0_127 = arith.constant 0 : index
    %c41 = arith.constant 41 : index
    %c0_128 = arith.constant 0 : index
    %147 = vector.load %arg9[%c0_127, %c41, %c0_128] : memref<2x176x128xf32, #tpu.memory_space<vmem>>, vector<1x128x128xf32>
    %148 = vector.shape_cast %147 : vector<1x128x128xf32> to vector<128x128xf32>
    %149 = arith.truncf %148 : vector<128x128xf32> to vector<128x128xbf16>
    %c8_129 = arith.constant 8 : index
    %c0_130 = arith.constant 0 : index
    %c0_131 = arith.constant 0 : index
    %150 = vector.load %arg4[%c8_129, %c0_130, %c0_131] : memref<9x128x128xbf16, #tpu.memory_space<vmem>>, vector<1x128x128xbf16>
    %151 = vector.shape_cast %150 : vector<1x128x128xbf16> to vector<128x128xbf16>
    %cst_132 = arith.constant dense<0.000000e+00> : vector<128x128xf32>
    %152 = tpu.matmul %149, %151, %cst_132 {dimension_numbers = #tpu.dot_dimension_numbers<[1], [0], [0], [1], [0, 0, 1, 1], [], []>} : vector<128x128xbf16>, vector<128x128xbf16>, vector<128x128xf32> -> vector<128x128xf32>
    %153 = arith.addf %146, %152 : vector<128x128xf32>
    %c0_133 = arith.constant 0 : index
    %c0_134 = arith.constant 0 : index
    %154 = vector.load %arg5[%c0_133, %c0_134] : memref<1x128xf32, #tpu.memory_space<vmem>>, vector<1x128xf32>
    %155 = vector.broadcast %154 : vector<1x128xf32> to vector<128x128xf32>
    %156 = arith.addf %153, %155 : vector<128x128xf32>
    %c0_135 = arith.constant 0 : index
    %c3_136 = arith.constant 3 : index
    %c0_137 = arith.constant 0 : index
    %c0_138 = arith.constant 0 : index
    %157 = vector.load %arg1[%c0_135, %c3_136, %c0_137, %c0_138] : memref<2x4x176x128xbf16, #tpu.memory_space<vmem>>, vector<1x1x128x128xbf16>
    %158 = vector.shape_cast %157 : vector<1x1x128x128xbf16> to vector<128x128xbf16>
    %c0_139 = arith.constant 0 : index
    %c0_140 = arith.constant 0 : index
    %159 = vector.load %arg6[%c0_139, %c0_140] : memref<128x128xbf16, #tpu.memory_space<vmem>>, vector<128x128xbf16>
    %cst_141 = arith.constant dense<0.000000e+00> : vector<128x128xf32>
    %160 = tpu.matmul %158, %159, %cst_141 {dimension_numbers = #tpu.dot_dimension_numbers<[1], [0], [0], [1], [0, 0, 1, 1], [], []>} : vector<128x128xbf16>, vector<128x128xbf16>, vector<128x128xf32> -> vector<128x128xf32>
    %c0_142 = arith.constant 0 : index
    %c0_143 = arith.constant 0 : index
    %161 = vector.load %arg7[%c0_142, %c0_143] : memref<1x128xf32, #tpu.memory_space<vmem>>, vector<1x128xf32>
    %162 = vector.broadcast %161 : vector<1x128xf32> to vector<128x128xf32>
    %163 = arith.addf %160, %162 : vector<128x128xf32>
    %164 = arith.addf %156, %163 : vector<128x128xf32>
    %cst_144 = arith.constant 0.000000e+00 : f32
    %165 = vector.broadcast %cst_144 : f32 to vector<128x128xf32>
    %166 = arith.maximumf %164, %165 : vector<128x128xf32>
    %167 = arith.truncf %166 : vector<128x128xf32> to vector<128x128xbf16>
    %c0_145 = arith.constant 0 : index
    %c0_146 = arith.constant 0 : index
    %c0_147 = arith.constant 0 : index
    %168 = vector.load %arg8[%c0_145, %c0_146, %c0_147] : memref<2x128x128xbf16, #tpu.memory_space<vmem>>, vector<1x128x128xbf16>
    %169 = vector.shape_cast %168 : vector<1x128x128xbf16> to vector<128x128xbf16>
    %170 = vector.shape_cast %167 : vector<128x128xbf16> to vector<1x128x128xbf16>
    tpu.vector_store %arg8[%c0_145, %c0_146, %c0_147], %170 {strides = array<i32>} : memref<2x128x128xbf16, #tpu.memory_space<vmem>>, vector<1x128x128xbf16>,
    %c1_148 = arith.constant 1 : index
    %c0_149 = arith.constant 0 : index
    %c0_150 = arith.constant 0 : index
    %c0_151 = arith.constant 0 : index
    %171 = vector.load %arg1[%c1_148, %c0_149, %c0_150, %c0_151] : memref<2x4x176x128xbf16, #tpu.memory_space<vmem>>, vector<1x1x128x128xbf16>
    %172 = vector.shape_cast %171 : vector<1x1x128x128xbf16> to vector<128x128xbf16>
    %c0_152 = arith.constant 0 : index
    %c0_153 = arith.constant 0 : index
    %c0_154 = arith.constant 0 : index
    %173 = vector.load %arg2[%c0_152, %c0_153, %c0_154] : memref<9x128x128xbf16, #tpu.memory_space<vmem>>, vector<1x128x128xbf16>
    %174 = vector.shape_cast %173 : vector<1x128x128xbf16> to vector<128x128xbf16>
    %cst_155 = arith.constant dense<0.000000e+00> : vector<128x128xf32>
    %175 = tpu.matmul %172, %174, %cst_155 {dimension_numbers = #tpu.dot_dimension_numbers<[1], [0], [0], [1], [0, 0, 1, 1], [], []>} : vector<128x128xbf16>, vector<128x128xbf16>, vector<128x128xf32> -> vector<128x128xf32>
    %c1_156 = arith.constant 1 : index
    %c1_157 = arith.constant 1 : index
    %c0_158 = arith.constant 0 : index
    %c0_159 = arith.constant 0 : index
    %176 = vector.load %arg1[%c1_156, %c1_157, %c0_158, %c0_159] : memref<2x4x176x128xbf16, #tpu.memory_space<vmem>>, vector<1x1x128x128xbf16>
    %177 = vector.shape_cast %176 : vector<1x1x128x128xbf16> to vector<128x128xbf16>
    %c1_160 = arith.constant 1 : index
    %c0_161 = arith.constant 0 : index
    %c0_162 = arith.constant 0 : index
    %178 = vector.load %arg2[%c1_160, %c0_161, %c0_162] : memref<9x128x128xbf16, #tpu.memory_space<vmem>>, vector<1x128x128xbf16>
    %179 = vector.shape_cast %178 : vector<1x128x128xbf16> to vector<128x128xbf16>
    %cst_163 = arith.constant dense<0.000000e+00> : vector<128x128xf32>
    %180 = tpu.matmul %177, %179, %cst_163 {dimension_numbers = #tpu.dot_dimension_numbers<[1], [0], [0], [1], [0, 0, 1, 1], [], []>} : vector<128x128xbf16>, vector<128x128xbf16>, vector<128x128xf32> -> vector<128x128xf32>
    %181 = arith.addf %175, %180 : vector<128x128xf32>
    %c1_164 = arith.constant 1 : index
    %c0_165 = arith.constant 0 : index
    %c1_166 = arith.constant 1 : index
    %c0_167 = arith.constant 0 : index
    %182 = vector.load %arg1[%c1_164, %c0_165, %c1_166, %c0_167] : memref<2x4x176x128xbf16, #tpu.memory_space<vmem>>, vector<1x1x128x128xbf16>
    %183 = vector.shape_cast %182 : vector<1x1x128x128xbf16> to vector<128x128xbf16>
    %c2_168 = arith.constant 2 : index
    %c0_169 = arith.constant 0 : index
    %c0_170 = arith.constant 0 : index
    %184 = vector.load %arg2[%c2_168, %c0_169, %c0_170] : memref<9x128x128xbf16, #tpu.memory_space<vmem>>, vector<1x128x128xbf16>
    %185 = vector.shape_cast %184 : vector<1x128x128xbf16> to vector<128x128xbf16>
    %cst_171 = arith.constant dense<0.000000e+00> : vector<128x128xf32>
    %186 = tpu.matmul %183, %185, %cst_171 {dimension_numbers = #tpu.dot_dimension_numbers<[1], [0], [0], [1], [0, 0, 1, 1], [], []>} : vector<128x128xbf16>, vector<128x128xbf16>, vector<128x128xf32> -> vector<128x128xf32>
    %187 = arith.addf %181, %186 : vector<128x128xf32>
    %c1_172 = arith.constant 1 : index
    %c2_173 = arith.constant 2 : index
    %c0_174 = arith.constant 0 : index
    %c0_175 = arith.constant 0 : index
    %188 = vector.load %arg1[%c1_172, %c2_173, %c0_174, %c0_175] : memref<2x4x176x128xbf16, #tpu.memory_space<vmem>>, vector<1x1x128x128xbf16>
    %189 = vector.shape_cast %188 : vector<1x1x128x128xbf16> to vector<128x128xbf16>
    %c3_176 = arith.constant 3 : index
    %c0_177 = arith.constant 0 : index
    %c0_178 = arith.constant 0 : index
    %190 = vector.load %arg2[%c3_176, %c0_177, %c0_178] : memref<9x128x128xbf16, #tpu.memory_space<vmem>>, vector<1x128x128xbf16>
    %191 = vector.shape_cast %190 : vector<1x128x128xbf16> to vector<128x128xbf16>
    %cst_179 = arith.constant dense<0.000000e+00> : vector<128x128xf32>
    %192 = tpu.matmul %189, %191, %cst_179 {dimension_numbers = #tpu.dot_dimension_numbers<[1], [0], [0], [1], [0, 0, 1, 1], [], []>} : vector<128x128xbf16>, vector<128x128xbf16>, vector<128x128xf32> -> vector<128x128xf32>
    %193 = arith.addf %187, %192 : vector<128x128xf32>
    %c1_180 = arith.constant 1 : index
    %c3_181 = arith.constant 3 : index
    %c0_182 = arith.constant 0 : index
    %c0_183 = arith.constant 0 : index
    %194 = vector.load %arg1[%c1_180, %c3_181, %c0_182, %c0_183] : memref<2x4x176x128xbf16, #tpu.memory_space<vmem>>, vector<1x1x128x128xbf16>
    %195 = vector.shape_cast %194 : vector<1x1x128x128xbf16> to vector<128x128xbf16>
    %c4_184 = arith.constant 4 : index
    %c0_185 = arith.constant 0 : index
    %c0_186 = arith.constant 0 : index
    %196 = vector.load %arg2[%c4_184, %c0_185, %c0_186] : memref<9x128x128xbf16, #tpu.memory_space<vmem>>, vector<1x128x128xbf16>
    %197 = vector.shape_cast %196 : vector<1x128x128xbf16> to vector<128x128xbf16>
    %cst_187 = arith.constant dense<0.000000e+00> : vector<128x128xf32>
    %198 = tpu.matmul %195, %197, %cst_187 {dimension_numbers = #tpu.dot_dimension_numbers<[1], [0], [0], [1], [0, 0, 1, 1], [], []>} : vector<128x128xbf16>, vector<128x128xbf16>, vector<128x128xf32> -> vector<128x128xf32>
    %199 = arith.addf %193, %198 : vector<128x128xf32>
    %c1_188 = arith.constant 1 : index
    %c2_189 = arith.constant 2 : index
    %c1_190 = arith.constant 1 : index
    %c0_191 = arith.constant 0 : index
    %200 = vector.load %arg1[%c1_188, %c2_189, %c1_190, %c0_191] : memref<2x4x176x128xbf16, #tpu.memory_space<vmem>>, vector<1x1x128x128xbf16>
    %201 = vector.shape_cast %200 : vector<1x1x128x128xbf16> to vector<128x128xbf16>
    %c5_192 = arith.constant 5 : index
    %c0_193 = arith.constant 0 : index
    %c0_194 = arith.constant 0 : index
    %202 = vector.load %arg2[%c5_192, %c0_193, %c0_194] : memref<9x128x128xbf16, #tpu.memory_space<vmem>>, vector<1x128x128xbf16>
    %203 = vector.shape_cast %202 : vector<1x128x128xbf16> to vector<128x128xbf16>
    %cst_195 = arith.constant dense<0.000000e+00> : vector<128x128xf32>
    %204 = tpu.matmul %201, %203, %cst_195 {dimension_numbers = #tpu.dot_dimension_numbers<[1], [0], [0], [1], [0, 0, 1, 1], [], []>} : vector<128x128xbf16>, vector<128x128xbf16>, vector<128x128xf32> -> vector<128x128xf32>
    %205 = arith.addf %199, %204 : vector<128x128xf32>
    %c1_196 = arith.constant 1 : index
    %c0_197 = arith.constant 0 : index
    %c16_198 = arith.constant 16 : index
    %c0_199 = arith.constant 0 : index
    %206 = vector.load %arg1[%c1_196, %c0_197, %c16_198, %c0_199] : memref<2x4x176x128xbf16, #tpu.memory_space<vmem>>, vector<1x1x128x128xbf16>
    %207 = vector.shape_cast %206 : vector<1x1x128x128xbf16> to vector<128x128xbf16>
    %c6_200 = arith.constant 6 : index
    %c0_201 = arith.constant 0 : index
    %c0_202 = arith.constant 0 : index
    %208 = vector.load %arg2[%c6_200, %c0_201, %c0_202] : memref<9x128x128xbf16, #tpu.memory_space<vmem>>, vector<1x128x128xbf16>
    %209 = vector.shape_cast %208 : vector<1x128x128xbf16> to vector<128x128xbf16>
    %cst_203 = arith.constant dense<0.000000e+00> : vector<128x128xf32>
    %210 = tpu.matmul %207, %209, %cst_203 {dimension_numbers = #tpu.dot_dimension_numbers<[1], [0], [0], [1], [0, 0, 1, 1], [], []>} : vector<128x128xbf16>, vector<128x128xbf16>, vector<128x128xf32> -> vector<128x128xf32>
    %211 = arith.addf %205, %210 : vector<128x128xf32>
    %c1_204 = arith.constant 1 : index
    %c1_205 = arith.constant 1 : index
    %c16_206 = arith.constant 16 : index
    %c0_207 = arith.constant 0 : index
    %212 = vector.load %arg1[%c1_204, %c1_205, %c16_206, %c0_207] : memref<2x4x176x128xbf16, #tpu.memory_space<vmem>>, vector<1x1x128x128xbf16>
    %213 = vector.shape_cast %212 : vector<1x1x128x128xbf16> to vector<128x128xbf16>
    %c7_208 = arith.constant 7 : index
    %c0_209 = arith.constant 0 : index
    %c0_210 = arith.constant 0 : index
    %214 = vector.load %arg2[%c7_208, %c0_209, %c0_210] : memref<9x128x128xbf16, #tpu.memory_space<vmem>>, vector<1x128x128xbf16>
    %215 = vector.shape_cast %214 : vector<1x128x128xbf16> to vector<128x128xbf16>
    %cst_211 = arith.constant dense<0.000000e+00> : vector<128x128xf32>
    %216 = tpu.matmul %213, %215, %cst_211 {dimension_numbers = #tpu.dot_dimension_numbers<[1], [0], [0], [1], [0, 0, 1, 1], [], []>} : vector<128x128xbf16>, vector<128x128xbf16>, vector<128x128xf32> -> vector<128x128xf32>
    %217 = arith.addf %211, %216 : vector<128x128xf32>
    %c1_212 = arith.constant 1 : index
    %c0_213 = arith.constant 0 : index
    %c17_214 = arith.constant 17 : index
    %c0_215 = arith.constant 0 : index
    %218 = vector.load %arg1[%c1_212, %c0_213, %c17_214, %c0_215] : memref<2x4x176x128xbf16, #tpu.memory_space<vmem>>, vector<1x1x128x128xbf16>
    %219 = vector.shape_cast %218 : vector<1x1x128x128xbf16> to vector<128x128xbf16>
    %c8_216 = arith.constant 8 : index
    %c0_217 = arith.constant 0 : index
    %c0_218 = arith.constant 0 : index
    %220 = vector.load %arg2[%c8_216, %c0_217, %c0_218] : memref<9x128x128xbf16, #tpu.memory_space<vmem>>, vector<1x128x128xbf16>
    %221 = vector.shape_cast %220 : vector<1x128x128xbf16> to vector<128x128xbf16>
    %cst_219 = arith.constant dense<0.000000e+00> : vector<128x128xf32>
    %222 = tpu.matmul %219, %221, %cst_219 {dimension_numbers = #tpu.dot_dimension_numbers<[1], [0], [0], [1], [0, 0, 1, 1], [], []>} : vector<128x128xbf16>, vector<128x128xbf16>, vector<128x128xf32> -> vector<128x128xf32>
    %223 = arith.addf %217, %222 : vector<128x128xf32>
    %c0_220 = arith.constant 0 : index
    %c0_221 = arith.constant 0 : index
    %224 = vector.load %arg3[%c0_220, %c0_221] : memref<1x128xf32, #tpu.memory_space<vmem>>, vector<1x128xf32>
    %225 = vector.broadcast %224 : vector<1x128xf32> to vector<128x128xf32>
    %226 = arith.addf %223, %225 : vector<128x128xf32>
    %cst_222 = arith.constant 0.000000e+00 : f32
    %227 = vector.broadcast %cst_222 : f32 to vector<128x128xf32>
    %228 = arith.maximumf %226, %227 : vector<128x128xf32>
    %cst_223 = arith.constant 0.000000e+00 : f32
    %229 = vector.shape_cast %18 : vector<128x1xi1> to vector<128x1xi1>
    %230 = vector.broadcast %229 : vector<128x1xi1> to vector<128x128xi1>
    %231 = vector.broadcast %cst_223 : f32 to vector<128x128xf32>
    %232 = arith.select %230, %228, %231 : vector<128x128xi1>, vector<128x128xf32>
    %cst_224 = arith.constant 0.000000e+00 : f32
    %233 = vector.broadcast %cst_224 : f32 to vector<24x128xf32>
    %c1_225 = arith.constant 1 : index
    %c0_226 = arith.constant 0 : index
    %c0_227 = arith.constant 0 : index
    %234 = vector.load %arg9[%c1_225, %c0_226, %c0_227] : memref<2x176x128xf32, #tpu.memory_space<vmem>>, vector<1x24x128xf32>
    %235 = vector.shape_cast %234 : vector<1x24x128xf32> to vector<24x128xf32>
    %236 = vector.shape_cast %233 : vector<24x128xf32> to vector<1x24x128xf32>
    tpu.vector_store %arg9[%c1_225, %c0_226, %c0_227], %236 {strides = array<i32>} : memref<2x176x128xf32, #tpu.memory_space<vmem>>, vector<1x24x128xf32>,
    %cst_228 = arith.constant 0.000000e+00 : f32
    %237 = vector.broadcast %cst_228 : f32 to vector<24x128xf32>
    %c1_229 = arith.constant 1 : index
    %c152_230 = arith.constant 152 : index
    %c0_231 = arith.constant 0 : index
    %238 = vector.load %arg9[%c1_229, %c152_230, %c0_231] : memref<2x176x128xf32, #tpu.memory_space<vmem>>, vector<1x24x128xf32>
    %239 = vector.shape_cast %238 : vector<1x24x128xf32> to vector<24x128xf32>
    %240 = vector.shape_cast %237 : vector<24x128xf32> to vector<1x24x128xf32>
    tpu.vector_store %arg9[%c1_229, %c152_230, %c0_231], %240 {strides = array<i32>} : memref<2x176x128xf32, #tpu.memory_space<vmem>>, vector<1x24x128xf32>,
    %c1_232 = arith.constant 1 : index
    %c24_233 = arith.constant 24 : index
    %c0_234 = arith.constant 0 : index
    %241 = vector.load %arg9[%c1_232, %c24_233, %c0_234] : memref<2x176x128xf32, #tpu.memory_space<vmem>>, vector<1x128x128xf32>
    %242 = vector.shape_cast %241 : vector<1x128x128xf32> to vector<128x128xf32>
    %243 = vector.shape_cast %232 : vector<128x128xf32> to vector<1x128x128xf32>
    tpu.vector_store %arg9[%c1_232, %c24_233, %c0_234], %243 {strides = array<i32>} : memref<2x176x128xf32, #tpu.memory_space<vmem>>, vector<1x128x128xf32>,
    %c1_235 = arith.constant 1 : index
    %c7_236 = arith.constant 7 : index
    %c0_237 = arith.constant 0 : index
    %244 = vector.load %arg9[%c1_235, %c7_236, %c0_237] : memref<2x176x128xf32, #tpu.memory_space<vmem>>, vector<1x128x128xf32>
    %245 = vector.shape_cast %244 : vector<1x128x128xf32> to vector<128x128xf32>
    %246 = arith.truncf %245 : vector<128x128xf32> to vector<128x128xbf16>
    %c0_238 = arith.constant 0 : index
    %c0_239 = arith.constant 0 : index
    %c0_240 = arith.constant 0 : index
    %247 = vector.load %arg4[%c0_238, %c0_239, %c0_240] : memref<9x128x128xbf16, #tpu.memory_space<vmem>>, vector<1x128x128xbf16>
    %248 = vector.shape_cast %247 : vector<1x128x128xbf16> to vector<128x128xbf16>
    %cst_241 = arith.constant dense<0.000000e+00> : vector<128x128xf32>
    %249 = tpu.matmul %246, %248, %cst_241 {dimension_numbers = #tpu.dot_dimension_numbers<[1], [0], [0], [1], [0, 0, 1, 1], [], []>} : vector<128x128xbf16>, vector<128x128xbf16>, vector<128x128xf32> -> vector<128x128xf32>
    %c1_242 = arith.constant 1 : index
    %c8_243 = arith.constant 8 : index
    %c0_244 = arith.constant 0 : index
    %250 = vector.load %arg9[%c1_242, %c8_243, %c0_244] : memref<2x176x128xf32, #tpu.memory_space<vmem>>, vector<1x128x128xf32>
    %251 = vector.shape_cast %250 : vector<1x128x128xf32> to vector<128x128xf32>
    %252 = arith.truncf %251 : vector<128x128xf32> to vector<128x128xbf16>
    %c1_245 = arith.constant 1 : index
    %c0_246 = arith.constant 0 : index
    %c0_247 = arith.constant 0 : index
    %253 = vector.load %arg4[%c1_245, %c0_246, %c0_247] : memref<9x128x128xbf16, #tpu.memory_space<vmem>>, vector<1x128x128xbf16>
    %254 = vector.shape_cast %253 : vector<1x128x128xbf16> to vector<128x128xbf16>
    %cst_248 = arith.constant dense<0.000000e+00> : vector<128x128xf32>
    %255 = tpu.matmul %252, %254, %cst_248 {dimension_numbers = #tpu.dot_dimension_numbers<[1], [0], [0], [1], [0, 0, 1, 1], [], []>} : vector<128x128xbf16>, vector<128x128xbf16>, vector<128x128xf32> -> vector<128x128xf32>
    %256 = arith.addf %249, %255 : vector<128x128xf32>
    %c1_249 = arith.constant 1 : index
    %c9_250 = arith.constant 9 : index
    %c0_251 = arith.constant 0 : index
    %257 = vector.load %arg9[%c1_249, %c9_250, %c0_251] : memref<2x176x128xf32, #tpu.memory_space<vmem>>, vector<1x128x128xf32>
    %258 = vector.shape_cast %257 : vector<1x128x128xf32> to vector<128x128xf32>
    %259 = arith.truncf %258 : vector<128x128xf32> to vector<128x128xbf16>
    %c2_252 = arith.constant 2 : index
    %c0_253 = arith.constant 0 : index
    %c0_254 = arith.constant 0 : index
    %260 = vector.load %arg4[%c2_252, %c0_253, %c0_254] : memref<9x128x128xbf16, #tpu.memory_space<vmem>>, vector<1x128x128xbf16>
    %261 = vector.shape_cast %260 : vector<1x128x128xbf16> to vector<128x128xbf16>
    %cst_255 = arith.constant dense<0.000000e+00> : vector<128x128xf32>
    %262 = tpu.matmul %259, %261, %cst_255 {dimension_numbers = #tpu.dot_dimension_numbers<[1], [0], [0], [1], [0, 0, 1, 1], [], []>} : vector<128x128xbf16>, vector<128x128xbf16>, vector<128x128xf32> -> vector<128x128xf32>
    %263 = arith.addf %256, %262 : vector<128x128xf32>
    %c1_256 = arith.constant 1 : index
    %c23_257 = arith.constant 23 : index
    %c0_258 = arith.constant 0 : index
    %264 = vector.load %arg9[%c1_256, %c23_257, %c0_258] : memref<2x176x128xf32, #tpu.memory_space<vmem>>, vector<1x128x128xf32>
    %265 = vector.shape_cast %264 : vector<1x128x128xf32> to vector<128x128xf32>
    %266 = arith.truncf %265 : vector<128x128xf32> to vector<128x128xbf16>
    %c3_259 = arith.constant 3 : index
    %c0_260 = arith.constant 0 : index
    %c0_261 = arith.constant 0 : index
    %267 = vector.load %arg4[%c3_259, %c0_260, %c0_261] : memref<9x128x128xbf16, #tpu.memory_space<vmem>>, vector<1x128x128xbf16>
    %268 = vector.shape_cast %267 : vector<1x128x128xbf16> to vector<128x128xbf16>
    %cst_262 = arith.constant dense<0.000000e+00> : vector<128x128xf32>
    %269 = tpu.matmul %266, %268, %cst_262 {dimension_numbers = #tpu.dot_dimension_numbers<[1], [0], [0], [1], [0, 0, 1, 1], [], []>} : vector<128x128xbf16>, vector<128x128xbf16>, vector<128x128xf32> -> vector<128x128xf32>
    %270 = arith.addf %263, %269 : vector<128x128xf32>
    %c1_263 = arith.constant 1 : index
    %c24_264 = arith.constant 24 : index
    %c0_265 = arith.constant 0 : index
    %271 = vector.load %arg9[%c1_263, %c24_264, %c0_265] : memref<2x176x128xf32, #tpu.memory_space<vmem>>, vector<1x128x128xf32>
    %272 = vector.shape_cast %271 : vector<1x128x128xf32> to vector<128x128xf32>
    %273 = arith.truncf %272 : vector<128x128xf32> to vector<128x128xbf16>
    %c4_266 = arith.constant 4 : index
    %c0_267 = arith.constant 0 : index
    %c0_268 = arith.constant 0 : index
    %274 = vector.load %arg4[%c4_266, %c0_267, %c0_268] : memref<9x128x128xbf16, #tpu.memory_space<vmem>>, vector<1x128x128xbf16>
    %275 = vector.shape_cast %274 : vector<1x128x128xbf16> to vector<128x128xbf16>
    %cst_269 = arith.constant dense<0.000000e+00> : vector<128x128xf32>
    %276 = tpu.matmul %273, %275, %cst_269 {dimension_numbers = #tpu.dot_dimension_numbers<[1], [0], [0], [1], [0, 0, 1, 1], [], []>} : vector<128x128xbf16>, vector<128x128xbf16>, vector<128x128xf32> -> vector<128x128xf32>
    %277 = arith.addf %270, %276 : vector<128x128xf32>
    %c1_270 = arith.constant 1 : index
    %c25_271 = arith.constant 25 : index
    %c0_272 = arith.constant 0 : index
    %278 = vector.load %arg9[%c1_270, %c25_271, %c0_272] : memref<2x176x128xf32, #tpu.memory_space<vmem>>, vector<1x128x128xf32>
    %279 = vector.shape_cast %278 : vector<1x128x128xf32> to vector<128x128xf32>
    %280 = arith.truncf %279 : vector<128x128xf32> to vector<128x128xbf16>
    %c5_273 = arith.constant 5 : index
    %c0_274 = arith.constant 0 : index
    %c0_275 = arith.constant 0 : index
    %281 = vector.load %arg4[%c5_273, %c0_274, %c0_275] : memref<9x128x128xbf16, #tpu.memory_space<vmem>>, vector<1x128x128xbf16>
    %282 = vector.shape_cast %281 : vector<1x128x128xbf16> to vector<128x128xbf16>
    %cst_276 = arith.constant dense<0.000000e+00> : vector<128x128xf32>
    %283 = tpu.matmul %280, %282, %cst_276 {dimension_numbers = #tpu.dot_dimension_numbers<[1], [0], [0], [1], [0, 0, 1, 1], [], []>} : vector<128x128xbf16>, vector<128x128xbf16>, vector<128x128xf32> -> vector<128x128xf32>
    %284 = arith.addf %277, %283 : vector<128x128xf32>
    %c1_277 = arith.constant 1 : index
    %c39_278 = arith.constant 39 : index
    %c0_279 = arith.constant 0 : index
    %285 = vector.load %arg9[%c1_277, %c39_278, %c0_279] : memref<2x176x128xf32, #tpu.memory_space<vmem>>, vector<1x128x128xf32>
    %286 = vector.shape_cast %285 : vector<1x128x128xf32> to vector<128x128xf32>
    %287 = arith.truncf %286 : vector<128x128xf32> to vector<128x128xbf16>
    %c6_280 = arith.constant 6 : index
    %c0_281 = arith.constant 0 : index
    %c0_282 = arith.constant 0 : index
    %288 = vector.load %arg4[%c6_280, %c0_281, %c0_282] : memref<9x128x128xbf16, #tpu.memory_space<vmem>>, vector<1x128x128xbf16>
    %289 = vector.shape_cast %288 : vector<1x128x128xbf16> to vector<128x128xbf16>
    %cst_283 = arith.constant dense<0.000000e+00> : vector<128x128xf32>
    %290 = tpu.matmul %287, %289, %cst_283 {dimension_numbers = #tpu.dot_dimension_numbers<[1], [0], [0], [1], [0, 0, 1, 1], [], []>} : vector<128x128xbf16>, vector<128x128xbf16>, vector<128x128xf32> -> vector<128x128xf32>
    %291 = arith.addf %284, %290 : vector<128x128xf32>
    %c1_284 = arith.constant 1 : index
    %c40_285 = arith.constant 40 : index
    %c0_286 = arith.constant 0 : index
    %292 = vector.load %arg9[%c1_284, %c40_285, %c0_286] : memref<2x176x128xf32, #tpu.memory_space<vmem>>, vector<1x128x128xf32>
    %293 = vector.shape_cast %292 : vector<1x128x128xf32> to vector<128x128xf32>
    %294 = arith.truncf %293 : vector<128x128xf32> to vector<128x128xbf16>
    %c7_287 = arith.constant 7 : index
    %c0_288 = arith.constant 0 : index
    %c0_289 = arith.constant 0 : index
    %295 = vector.load %arg4[%c7_287, %c0_288, %c0_289] : memref<9x128x128xbf16, #tpu.memory_space<vmem>>, vector<1x128x128xbf16>
    %296 = vector.shape_cast %295 : vector<1x128x128xbf16> to vector<128x128xbf16>
    %cst_290 = arith.constant dense<0.000000e+00> : vector<128x128xf32>
    %297 = tpu.matmul %294, %296, %cst_290 {dimension_numbers = #tpu.dot_dimension_numbers<[1], [0], [0], [1], [0, 0, 1, 1], [], []>} : vector<128x128xbf16>, vector<128x128xbf16>, vector<128x128xf32> -> vector<128x128xf32>
    %298 = arith.addf %291, %297 : vector<128x128xf32>
    %c1_291 = arith.constant 1 : index
    %c41_292 = arith.constant 41 : index
    %c0_293 = arith.constant 0 : index
    %299 = vector.load %arg9[%c1_291, %c41_292, %c0_293] : memref<2x176x128xf32, #tpu.memory_space<vmem>>, vector<1x128x128xf32>
    %300 = vector.shape_cast %299 : vector<1x128x128xf32> to vector<128x128xf32>
    %301 = arith.truncf %300 : vector<128x128xf32> to vector<128x128xbf16>
    %c8_294 = arith.constant 8 : index
    %c0_295 = arith.constant 0 : index
    %c0_296 = arith.constant 0 : index
    %302 = vector.load %arg4[%c8_294, %c0_295, %c0_296] : memref<9x128x128xbf16, #tpu.memory_space<vmem>>, vector<1x128x128xbf16>
    %303 = vector.shape_cast %302 : vector<1x128x128xbf16> to vector<128x128xbf16>
    %cst_297 = arith.constant dense<0.000000e+00> : vector<128x128xf32>
    %304 = tpu.matmul %301, %303, %cst_297 {dimension_numbers = #tpu.dot_dimension_numbers<[1], [0], [0], [1], [0, 0, 1, 1], [], []>} : vector<128x128xbf16>, vector<128x128xbf16>, vector<128x128xf32> -> vector<128x128xf32>
    %305 = arith.addf %298, %304 : vector<128x128xf32>
    %c0_298 = arith.constant 0 : index
    %c0_299 = arith.constant 0 : index
    %306 = vector.load %arg5[%c0_298, %c0_299] : memref<1x128xf32, #tpu.memory_space<vmem>>, vector<1x128xf32>
    %307 = vector.broadcast %306 : vector<1x128xf32> to vector<128x128xf32>
    %308 = arith.addf %305, %307 : vector<128x128xf32>
    %c1_300 = arith.constant 1 : index
    %c3_301 = arith.constant 3 : index
    %c0_302 = arith.constant 0 : index
    %c0_303 = arith.constant 0 : index
    %309 = vector.load %arg1[%c1_300, %c3_301, %c0_302, %c0_303] : memref<2x4x176x128xbf16, #tpu.memory_space<vmem>>, vector<1x1x128x128xbf16>
    %310 = vector.shape_cast %309 : vector<1x1x128x128xbf16> to vector<128x128xbf16>
    %c0_304 = arith.constant 0 : index
    %c0_305 = arith.constant 0 : index
    %311 = vector.load %arg6[%c0_304, %c0_305] : memref<128x128xbf16, #tpu.memory_space<vmem>>, vector<128x128xbf16>
    %cst_306 = arith.constant dense<0.000000e+00> : vector<128x128xf32>
    %312 = tpu.matmul %310, %311, %cst_306 {dimension_numbers = #tpu.dot_dimension_numbers<[1], [0], [0], [1], [0, 0, 1, 1], [], []>} : vector<128x128xbf16>, vector<128x128xbf16>, vector<128x128xf32> -> vector<128x128xf32>
    %c0_307 = arith.constant 0 : index
    %c0_308 = arith.constant 0 : index
    %313 = vector.load %arg7[%c0_307, %c0_308] : memref<1x128xf32, #tpu.memory_space<vmem>>, vector<1x128xf32>
    %314 = vector.broadcast %313 : vector<1x128xf32> to vector<128x128xf32>
    %315 = arith.addf %312, %314 : vector<128x128xf32>
    %316 = arith.addf %308, %315 : vector<128x128xf32>
    %cst_309 = arith.constant 0.000000e+00 : f32
    %317 = vector.broadcast %cst_309 : f32 to vector<128x128xf32>
    %318 = arith.maximumf %316, %317 : vector<128x128xf32>
    %319 = arith.truncf %318 : vector<128x128xf32> to vector<128x128xbf16>
    %c1_310 = arith.constant 1 : index
    %c0_311 = arith.constant 0 : index
    %c0_312 = arith.constant 0 : index
    %320 = vector.load %arg8[%c1_310, %c0_311, %c0_312] : memref<2x128x128xbf16, #tpu.memory_space<vmem>>, vector<1x128x128xbf16>
    %321 = vector.shape_cast %320 : vector<1x128x128xbf16> to vector<128x128xbf16>
    %322 = vector.shape_cast %319 : vector<128x128xbf16> to vector<1x128x128xbf16>
    tpu.vector_store %arg8[%c1_310, %c0_311, %c0_312], %322 {strides = array<i32>} : memref<2x128x128xbf16, #tpu.memory_space<vmem>>, vector<1x128x128xbf16>,
    return
  }
  func.func @transform_0(%arg0: i32) -> (i32, i32, i32, i32) {
    %c0_i32 = arith.constant 0 : i32
    %c0_i32_0 = arith.constant 0 : i32
    %c0_i32_1 = arith.constant 0 : i32
    %c0_i32_2 = arith.constant 0 : i32
    return %arg0, %c0_i32, %c0_i32_0, %c0_i32_1 : i32, i32, i32, i32
  }
  func.func @transform_1(%arg0: i32) -> (i32, i32, i32) {
    %c0_i32 = arith.constant 0 : i32
    %c0_i32_0 = arith.constant 0 : i32
    %c0_i32_1 = arith.constant 0 : i32
    %c0_i32_2 = arith.constant 0 : i32
    return %c0_i32, %c0_i32_0, %c0_i32_1 : i32, i32, i32
  }
  func.func @transform_2(%arg0: i32) -> (i32, i32) {
    %c0_i32 = arith.constant 0 : i32
    %c0_i32_0 = arith.constant 0 : i32
    %c0_i32_1 = arith.constant 0 : i32
    return %c0_i32, %c0_i32_0 : i32, i32
  }
  func.func @transform_3(%arg0: i32) -> (i32, i32, i32) {
    %c0_i32 = arith.constant 0 : i32
    %c0_i32_0 = arith.constant 0 : i32
    %c0_i32_1 = arith.constant 0 : i32
    %c0_i32_2 = arith.constant 0 : i32
    return %c0_i32, %c0_i32_0, %c0_i32_1 : i32, i32, i32
  }
  func.func @transform_4(%arg0: i32) -> (i32, i32) {
    %c0_i32 = arith.constant 0 : i32
    %c0_i32_0 = arith.constant 0 : i32
    %c0_i32_1 = arith.constant 0 : i32
    return %c0_i32, %c0_i32_0 : i32, i32
  }
  func.func @transform_5(%arg0: i32) -> (i32, i32) {
    %c0_i32 = arith.constant 0 : i32
    %c0_i32_0 = arith.constant 0 : i32
    %c0_i32_1 = arith.constant 0 : i32
    return %c0_i32, %c0_i32_0 : i32, i32
  }
  func.func @transform_6(%arg0: i32) -> (i32, i32) {
    %c0_i32 = arith.constant 0 : i32
    %c0_i32_0 = arith.constant 0 : i32
    %c0_i32_1 = arith.constant 0 : i32
    return %c0_i32, %c0_i32_0 : i32, i32
  }
  func.func @transform_7(%arg0: i32) -> (i32, i32, i32) {
    %c0_i32 = arith.constant 0 : i32
    %c0_i32_0 = arith.constant 0 : i32
    %c0_i32_1 = arith.constant 0 : i32
    return %arg0, %c0_i32, %c0_i32_0 : i32, i32, i32
  }
}

</mosaic_0001>

<llo_original>
// kernel: basic_block_forward.1
$region0: #{basic_block_forward.1}
  #allocation0 [shape = 'u32[]', space=smem, size = 0x4, offset = 0x4, fixed_abs, tag = 'smem constant byte address 0x4 - core index']
  #allocation1 [shape = 'u32[72,128]{1,0:T(1,128)}', space=vmem, size = 0x9000, scoped, tag = 'internal scratch']
  #allocation2 [shape = 'f32[2,176,128]{2,1,0:T(8,128)}', space=vmem, size = 0x2c000, scoped, tag = 'scratch operand']
  %s0 = inlined_call_operand.vmem [shape: bf16[2,4,176,128], index: 0, kind: input, shape index: {}]
  %s1 = inlined_call_operand.vmem [shape: bf16[9,128,128], index: 1, kind: input, shape index: {}]
  %s2 = inlined_call_operand.vmem [shape: f32[1,128], index: 2, kind: input, shape index: {}]
  %s3 = inlined_call_operand.vmem [shape: bf16[9,128,128], index: 3, kind: input, shape index: {}]
  %s4 = inlined_call_operand.vmem [shape: f32[1,128], index: 4, kind: input, shape index: {}]
  %s5 = inlined_call_operand.vmem [shape: bf16[128,128], index: 5, kind: input, shape index: {}]
  %s6 = inlined_call_operand.vmem [shape: f32[1,128], index: 6, kind: input, shape index: {}]
  %s7 = inlined_call_operand.vmem [shape: bf16[2,128,128], index: 7, kind: output, shape index: {}]
  %s8 = sld [smem:[#allocation0]]
  $region38: #{basic_block_forward.1} parent=0
    _
  %s10 = ssub.s32 1, %s8
  %s11 = scalar_select 0, %s10, %s8
  // Predicated region
  $region2: #{basic_block_forward.1} parent=0 // pred_check
    _
  $region3: #{basic_block_forward.1} parent=0 // pred_check_branch
    %13 = sbr.rel (0) target = $region5
  $region4: #{basic_block_forward.1} parent=0 // pred_region
    _
  $region5: #{basic_block_forward.1} parent=0 // pred_fallthru
    _
  // Predicated region
  $region6: #{basic_block_forward.1} parent=0 // pred_check
    _
  $region7: #{basic_block_forward.1} parent=0 // pred_check_branch
    %15 = sbr.rel (0) target = $region9
  $region8: #{basic_block_forward.1} parent=0 // pred_region
    _
  $region9: #{basic_block_forward.1} parent=0 // pred_fallthru
    _
  // Predicated region
  $region10: #{basic_block_forward.1} parent=0 // pred_check
    _
  $region11: #{basic_block_forward.1} parent=0 // pred_check_branch
    %17 = sbr.rel (0) target = $region13
  $region12: #{basic_block_forward.1} parent=0 // pred_region
    _
  $region13: #{basic_block_forward.1} parent=0 // pred_fallthru
    _
  // Predicated region
  $region14: #{basic_block_forward.1} parent=0 // pred_check
    _
  $region15: #{basic_block_forward.1} parent=0 // pred_check_branch
    %19 = sbr.rel (0) target = $region17
  $region16: #{basic_block_forward.1} parent=0 // pred_region
    _
  $region17: #{basic_block_forward.1} parent=0 // pred_fallthru
    _
  // Predicated region
  $region18: #{basic_block_forward.1} parent=0 // pred_check
    _
  $region19: #{basic_block_forward.1} parent=0 // pred_check_branch
    %21 = sbr.rel (0) target = $region21
  $region20: #{basic_block_forward.1} parent=0 // pred_region
    _
  $region21: #{basic_block_forward.1} parent=0 // pred_fallthru
    _
  // Predicated region
  $region22: #{basic_block_forward.1} parent=0 // pred_check
    _
  $region23: #{basic_block_forward.1} parent=0 // pred_check_branch
    %23 = sbr.rel (0) target = $region25
  $region24: #{basic_block_forward.1} parent=0 // pred_region
    _
  $region25: #{basic_block_forward.1} parent=0 // pred_fallthru
    _
  // Predicated region
  $region26: #{basic_block_forward.1} parent=0 // pred_check
    _
  $region27: #{basic_block_forward.1} parent=0 // pred_check_branch
    %25 = sbr.rel (0) target = $region29
  $region28: #{basic_block_forward.1} parent=0 // pred_region
    _
  $region29: #{basic_block_forward.1} parent=0 // pred_fallthru
    _
  %v26 = vlaneseq
  %v27 = vshrl.u32 %v26, 7
  %v28 = vadd.s32 %v27, 8
  %v29 = vadd.s32 %v27, 16
  %v30 = vadd.s32 %v27, 24
  %v31 = vadd.s32 %v27, 32
  %v32 = vadd.s32 %v27, 40
  %v33 = vadd.s32 %v27, 48
  %v34 = vadd.s32 %v27, 56
  %v35 = vadd.s32 %v27, 64
  %v36 = vadd.s32 %v27, 72
  %v37 = vadd.s32 %v27, 80
  %v38 = vadd.s32 %v27, 88
  %v39 = vadd.s32 %v27, 96
  %v40 = vadd.s32 %v27, 104
  %v41 = vadd.s32 %v27, 112
  %v42 = vadd.s32 %v27, 120
  %vm43 = vcmp.lt.s32.totalorder %v27, 0
  %v44 = vsub.s32 0, %v27
  %v45 = vsel %vm43, %v44, %v27
  %v46 = vshrl.u32 %v45, 4
  %v47 = vand.u32 %v45, 15
  %v48 = vsub.s32 0, %v47
  %v49 = vsel %vm43, %v48, %v47
  %vm50 = vcmp.lt.s32.totalorder %v28, 0
  %v51 = vsub.s32 0, %v28
  %v52 = vsel %vm50, %v51, %v28
  %v53 = vshrl.u32 %v52, 4
  %v54 = vand.u32 %v52, 15
  %v55 = vsub.s32 0, %v54
  %v56 = vsel %vm50, %v55, %v54
  %vm57 = vcmp.lt.s32.totalorder %v29, 0
  %v58 = vsub.s32 0, %v29
  %v59 = vsel %vm57, %v58, %v29
  %v60 = vshrl.u32 %v59, 4
  %v61 = vand.u32 %v59, 15
  %v62 = vsub.s32 0, %v61
  %v63 = vsel %vm57, %v62, %v61
  %vm64 = vcmp.lt.s32.totalorder %v30, 0
  %v65 = vsub.s32 0, %v30
  %v66 = vsel %vm64, %v65, %v30
  %v67 = vshrl.u32 %v66, 4
  %v68 = vand.u32 %v66, 15
  %v69 = vsub.s32 0, %v68
  %v70 = vsel %vm64, %v69, %v68
  %vm71 = vcmp.lt.s32.totalorder %v31, 0
  %v72 = vsub.s32 0, %v31
  %v73 = vsel %vm71, %v72, %v31
  %v74 = vshrl.u32 %v73, 4
  %v75 = vand.u32 %v73, 15
  %v76 = vsub.s32 0, %v75
  %v77 = vsel %vm71, %v76, %v75
  %vm78 = vcmp.lt.s32.totalorder %v32, 0
  %v79 = vsub.s32 0, %v32
  %v80 = vsel %vm78, %v79, %v32
  %v81 = vshrl.u32 %v80, 4
  %v82 = vand.u32 %v80, 15
  %v83 = vsub.s32 0, %v82
  %v84 = vsel %vm78, %v83, %v82
  %vm85 = vcmp.lt.s32.totalorder %v33, 0
  %v86 = vsub.s32 0, %v33
  %v87 = vsel %vm85, %v86, %v33
  %v88 = vshrl.u32 %v87, 4
  %v89 = vand.u32 %v87, 15
  %v90 = vsub.s32 0, %v89
  %v91 = vsel %vm85, %v90, %v89
  %vm92 = vcmp.lt.s32.totalorder %v34, 0
  %v93 = vsub.s32 0, %v34
  %v94 = vsel %vm92, %v93, %v34
  %v95 = vshrl.u32 %v94, 4
  %v96 = vand.u32 %v94, 15
  %v97 = vsub.s32 0, %v96
  %v98 = vsel %vm92, %v97, %v96
  %vm99 = vcmp.lt.s32.totalorder %v35, 0
  %v100 = vsub.s32 0, %v35
  %v101 = vsel %vm99, %v100, %v35
  %v102 = vshrl.u32 %v101, 4
  %v103 = vand.u32 %v101, 15
  %v104 = vsub.s32 0, %v103
  %v105 = vsel %vm99, %v104, %v103
  %vm106 = vcmp.lt.s32.totalorder %v36, 0
  %v107 = vsub.s32 0, %v36
  %v108 = vsel %vm106, %v107, %v36
  %v109 = vshrl.u32 %v108, 4
  %v110 = vand.u32 %v108, 15
  %v111 = vsub.s32 0, %v110
  %v112 = vsel %vm106, %v111, %v110
  %vm113 = vcmp.lt.s32.totalorder %v37, 0
  %v114 = vsub.s32 0, %v37
  %v115 = vsel %vm113, %v114, %v37
  %v116 = vshrl.u32 %v115, 4
  %v117 = vand.u32 %v115, 15
  %v118 = vsub.s32 0, %v117
  %v119 = vsel %vm113, %v118, %v117
  %vm120 = vcmp.lt.s32.totalorder %v38, 0
  %v121 = vsub.s32 0, %v38
  %v122 = vsel %vm120, %v121, %v38
  %v123 = vshrl.u32 %v122, 4
  %v124 = vand.u32 %v122, 15
  %v125 = vsub.s32 0, %v124
  %v126 = vsel %vm120, %v125, %v124
  %vm127 = vcmp.lt.s32.totalorder %v39, 0
  %v128 = vsub.s32 0, %v39
  %v129 = vsel %vm127, %v128, %v39
  %v130 = vshrl.u32 %v129, 4
  %v131 = vand.u32 %v129, 15
  %v132 = vsub.s32 0, %v131
  %v133 = vsel %vm127, %v132, %v131
  %vm134 = vcmp.lt.s32.totalorder %v40, 0
  %v135 = vsub.s32 0, %v40
  %v136 = vsel %vm134, %v135, %v40
  %v137 = vshrl.u32 %v136, 4
  %v138 = vand.u32 %v136, 15
  %v139 = vsub.s32 0, %v138
  %v140 = vsel %vm134, %v139, %v138
  %vm141 = vcmp.lt.s32.totalorder %v41, 0
  %v142 = vsub.s32 0, %v41
  %v143 = vsel %vm141, %v142, %v41
  %v144 = vshrl.u32 %v143, 4
  %v145 = vand.u32 %v143, 15
  %v146 = vsub.s32 0, %v145
  %v147 = vsel %vm141, %v146, %v145
  %vm148 = vcmp.lt.s32.totalorder %v42, 0
  %v149 = vsub.s32 0, %v42
  %v150 = vsel %vm148, %v149, %v42
  %v151 = vshrl.u32 %v150, 4
  %v152 = vand.u32 %v150, 15
  %v153 = vsub.s32 0, %v152
  %v154 = vsel %vm148, %v153, %v152
  %vm155 = vcmp.ne.s32.totalorder %v49, 0
  %vm156 = vcmp.ne.s32.totalorder %v56, 0
  %vm157 = vcmp.ne.s32.totalorder %v63, 0
  %vm158 = vcmp.ne.s32.totalorder %v70, 0
  %vm159 = vcmp.ne.s32.totalorder %v77, 0
  %vm160 = vcmp.ne.s32.totalorder %v84, 0
  %vm161 = vcmp.ne.s32.totalorder %v91, 0
  %vm162 = vcmp.ne.s32.totalorder %v98, 0
  %vm163 = vcmp.ne.s32.totalorder %v105, 0
  %vm164 = vcmp.ne.s32.totalorder %v112, 0
  %vm165 = vcmp.ne.s32.totalorder %v119, 0
  %vm166 = vcmp.ne.s32.totalorder %v126, 0
  %vm167 = vcmp.ne.s32.totalorder %v133, 0
  %vm168 = vcmp.ne.s32.totalorder %v140, 0
  %vm169 = vcmp.ne.s32.totalorder %v147, 0
  %vm170 = vcmp.ne.s32.totalorder %v154, 0
  %vm171 = vcmp.lt.s32.totalorder %v49, 0
  %vm172 = vcmp.lt.s32.totalorder %v56, 0
  %vm173 = vcmp.lt.s32.totalorder %v63, 0
  %vm174 = vcmp.lt.s32.totalorder %v70, 0
  %vm175 = vcmp.lt.s32.totalorder %v77, 0
  %vm176 = vcmp.lt.s32.totalorder %v84, 0
  %vm177 = vcmp.lt.s32.totalorder %v91, 0
  %vm178 = vcmp.lt.s32.totalorder %v98, 0
  %vm179 = vcmp.lt.s32.totalorder %v105, 0
  %vm180 = vcmp.lt.s32.totalorder %v112, 0
  %vm181 = vcmp.lt.s32.totalorder %v119, 0
  %vm182 = vcmp.lt.s32.totalorder %v126, 0
  %vm183 = vcmp.lt.s32.totalorder %v133, 0
  %vm184 = vcmp.lt.s32.totalorder %v140, 0
  %vm185 = vcmp.lt.s32.totalorder %v147, 0
  %vm186 = vcmp.lt.s32.totalorder %v154, 0
  %vm187 = vmand %vm171, %vm155
  %vm188 = vmand %vm172, %vm156
  %vm189 = vmand %vm173, %vm157
  %vm190 = vmand %vm174, %vm158
  %vm191 = vmand %vm175, %vm159
  %vm192 = vmand %vm176, %vm160
  %vm193 = vmand %vm177, %vm161
  %vm194 = vmand %vm178, %vm162
  %vm195 = vmand %vm179, %vm163
  %vm196 = vmand %vm180, %vm164
  %vm197 = vmand %vm181, %vm165
  %vm198 = vmand %vm182, %vm166
  %vm199 = vmand %vm183, %vm167
  %vm200 = vmand %vm184, %vm168
  %vm201 = vmand %vm185, %vm169
  %vm202 = vmand %vm186, %vm170
  %v203 = vadd.s32 %v49, 16
  %v204 = vadd.s32 %v56, 16
  %v205 = vadd.s32 %v63, 16
  %v206 = vadd.s32 %v70, 16
  %v207 = vadd.s32 %v77, 16
  %v208 = vadd.s32 %v84, 16
  %v209 = vadd.s32 %v91, 16
  %v210 = vadd.s32 %v98, 16
  %v211 = vadd.s32 %v105, 16
  %v212 = vadd.s32 %v112, 16
  %v213 = vadd.s32 %v119, 16
  %v214 = vadd.s32 %v126, 16
  %v215 = vadd.s32 %v133, 16
  %v216 = vadd.s32 %v140, 16
  %v217 = vadd.s32 %v147, 16
  %v218 = vadd.s32 %v154, 16
  %v219 = vsel %vm187, %v203, %v49
  %v220 = vsel %vm188, %v204, %v56
  %v221 = vsel %vm189, %v205, %v63
  %v222 = vsel %vm190, %v206, %v70
  %v223 = vsel %vm191, %v207, %v77
  %v224 = vsel %vm192, %v208, %v84
  %v225 = vsel %vm193, %v209, %v91
  %v226 = vsel %vm194, %v210, %v98
  %v227 = vsel %vm195, %v211, %v105
  %v228 = vsel %vm196, %v212, %v112
  %v229 = vsel %vm197, %v213, %v119
  %v230 = vsel %vm198, %v214, %v126
  %v231 = vsel %vm199, %v215, %v133
  %v232 = vsel %vm200, %v216, %v140
  %v233 = vsel %vm201, %v217, %v147
  %v234 = vsel %vm202, %v218, %v154
  %vm235 = vcmp.lt.s32.totalorder %v219, 8
  %vm236 = vcmp.lt.s32.totalorder %v220, 8
  %vm237 = vcmp.lt.s32.totalorder %v221, 8
  %vm238 = vcmp.lt.s32.totalorder %v222, 8
  %vm239 = vcmp.lt.s32.totalorder %v223, 8
  %vm240 = vcmp.lt.s32.totalorder %v224, 8
  %vm241 = vcmp.lt.s32.totalorder %v225, 8
  %vm242 = vcmp.lt.s32.totalorder %v226, 8
  %vm243 = vcmp.lt.s32.totalorder %v227, 8
  %vm244 = vcmp.lt.s32.totalorder %v228, 8
  %vm245 = vcmp.lt.s32.totalorder %v229, 8
  %vm246 = vcmp.lt.s32.totalorder %v230, 8
  %vm247 = vcmp.lt.s32.totalorder %v231, 8
  %vm248 = vcmp.lt.s32.totalorder %v232, 8
  %vm249 = vcmp.lt.s32.totalorder %v233, 8
  %vm250 = vcmp.lt.s32.totalorder %v234, 8
  %v251 = vld [vmem:[%s0] sm:$0xf]
  %v252 = vld [vmem:[%s0 + $0x4] sm:$0xf]
  %v253 = vld [vmem:[%s0 + $0x8] sm:$0xf]
  %v254 = vld [vmem:[%s0 + $0xc] sm:$0xf]
  %v255 = vld [vmem:[%s0 + $0x10] sm:$0xf]
  %v256 = vld [vmem:[%s0 + $0x14] sm:$0xf]
  %v257 = vld [vmem:[%s0 + $0x18] sm:$0xf]
  %v258 = vld [vmem:[%s0 + $0x1c] sm:$0xf]
  %v259 = vld [vmem:[%s0 + $0x20] sm:$0xf]
  %v260 = vld [vmem:[%s0 + $0x24] sm:$0xf]
  %v261 = vld [vmem:[%s0 + $0x28] sm:$0xf]
  %v262 = vld [vmem:[%s0 + $0x2c] sm:$0xf]
  %v263 = vld [vmem:[%s0 + $0x30] sm:$0xf]
  %v264 = vld [vmem:[%s0 + $0x34] sm:$0xf]
  %v265 = vld [vmem:[%s0 + $0x38] sm:$0xf]
  %v266 = vld [vmem:[%s0 + $0x3c] sm:$0xf]
  %v267 = vld [vmem:[%s1] sm:$0xf]
  %v268 = vld [vmem:[%s1 + $0x4] sm:$0xf]
  %v269 = vld [vmem:[%s1 + $0x8] sm:$0xf]
  %v270 = vld [vmem:[%s1 + $0xc] sm:$0xf]
  %v271 = vld [vmem:[%s1 + $0x10] sm:$0xf]
  %v272 = vld [vmem:[%s1 + $0x14] sm:$0xf]
  %v273 = vld [vmem:[%s1 + $0x18] sm:$0xf]
  %v274 = vld [vmem:[%s1 + $0x1c] sm:$0xf]
  %v275 = vld [vmem:[%s1 + $0x20] sm:$0xf]
  %v276 = vld [vmem:[%s1 + $0x24] sm:$0xf]
  %v277 = vld [vmem:[%s1 + $0x28] sm:$0xf]
  %v278 = vld [vmem:[%s1 + $0x2c] sm:$0xf]
  %v279 = vld [vmem:[%s1 + $0x30] sm:$0xf]
  %v280 = vld [vmem:[%s1 + $0x34] sm:$0xf]
  %v281 = vld [vmem:[%s1 + $0x38] sm:$0xf]
  %v282 = vld [vmem:[%s1 + $0x3c] sm:$0xf]
  %s283 = scalar_lea.vmem %s0, 88
  %v284 = vld [vmem:[%s283] sm:$0xf]
  %v285 = vld [vmem:[%s283 + $0x4] sm:$0xf]
  %v286 = vld [vmem:[%s283 + $0x8] sm:$0xf]
  %v287 = vld [vmem:[%s283 + $0xc] sm:$0xf]
  %v288 = vld [vmem:[%s283 + $0x10] sm:$0xf]
  %v289 = vld [vmem:[%s283 + $0x14] sm:$0xf]
  %v290 = vld [vmem:[%s283 + $0x18] sm:$0xf]
  %v291 = vld [vmem:[%s283 + $0x1c] sm:$0xf]
  %v292 = vld [vmem:[%s283 + $0x20] sm:$0xf]
  %v293 = vld [vmem:[%s283 + $0x24] sm:$0xf]
  %v294 = vld [vmem:[%s283 + $0x28] sm:$0xf]
  %v295 = vld [vmem:[%s283 + $0x2c] sm:$0xf]
  %v296 = vld [vmem:[%s283 + $0x30] sm:$0xf]
  %v297 = vld [vmem:[%s283 + $0x34] sm:$0xf]
  %v298 = vld [vmem:[%s283 + $0x38] sm:$0xf]
  %v299 = vld [vmem:[%s283 + $0x3c] sm:$0xf]
  %s300 = scalar_lea.vmem %s1, 64
  %v301 = vld [vmem:[%s300] sm:$0xf]
  %v302 = vld [vmem:[%s300 + $0x4] sm:$0xf]
  %v303 = vld [vmem:[%s300 + $0x8] sm:$0xf]
  %v304 = vld [vmem:[%s300 + $0xc] sm:$0xf]
  %v305 = vld [vmem:[%s300 + $0x10] sm:$0xf]
  %v306 = vld [vmem:[%s300 + $0x14] sm:$0xf]
  %v307 = vld [vmem:[%s300 + $0x18] sm:$0xf]
  %v308 = vld [vmem:[%s300 + $0x1c] sm:$0xf]
  %v309 = vld [vmem:[%s300 + $0x20] sm:$0xf]
  %v310 = vld [vmem:[%s300 + $0x24] sm:$0xf]
  %v311 = vld [vmem:[%s300 + $0x28] sm:$0xf]
  %v312 = vld [vmem:[%s300 + $0x2c] sm:$0xf]
  %v313 = vld [vmem:[%s300 + $0x30] sm:$0xf]
  %v314 = vld [vmem:[%s300 + $0x34] sm:$0xf]
  %v315 = vld [vmem:[%s300 + $0x38] sm:$0xf]
  %v316 = vld [vmem:[%s300 + $0x3c] sm:$0xf]
  %v333 = vunpack.c.l.b16 %v284
  %v334 = vunpack.c.l.b16 %v285
  %v335 = vunpack.c.l.b16 %v286
  %v336 = vunpack.c.l.b16 %v287
  %v337 = vunpack.c.l.b16 %v288
  %v338 = vunpack.c.l.b16 %v289
  %v339 = vunpack.c.l.b16 %v290
  %v340 = vunpack.c.l.b16 %v291
  %v341 = vunpack.c.l.b16 %v292
  %v342 = vunpack.c.l.b16 %v293
  %v343 = vunpack.c.l.b16 %v294
  %v344 = vunpack.c.l.b16 %v295
  %v345 = vunpack.c.l.b16 %v296
  %v346 = vunpack.c.l.b16 %v297
  %v347 = vunpack.c.l.b16 %v298
  %v348 = vunpack.c.l.b16 %v299
  %v349 = vpack.c.b16 %v334, %v333
  %v350 = vpack.c.b16 %v336, %v335
  %v351 = vpack.c.b16 %v338, %v337
  %v352 = vpack.c.b16 %v340, %v339
  %v353 = vpack.c.b16 %v342, %v341
  %v354 = vpack.c.b16 %v344, %v343
  %v355 = vpack.c.b16 %v346, %v345
  %v356 = vpack.c.b16 %v348, %v347
  %v381 = vunpack.c.l.b16 %v301
  %v382 = vunpack.c.l.b16 %v302
  %v383 = vunpack.c.l.b16 %v303
  %v384 = vunpack.c.l.b16 %v304
  %v385 = vunpack.c.l.b16 %v305
  %v386 = vunpack.c.l.b16 %v306
  %v387 = vunpack.c.l.b16 %v307
  %v388 = vunpack.c.l.b16 %v308
  %v389 = vunpack.c.l.b16 %v309
  %v390 = vunpack.c.l.b16 %v310
  %v391 = vunpack.c.l.b16 %v311
  %v392 = vunpack.c.l.b16 %v312
  %v393 = vunpack.c.l.b16 %v313
  %v394 = vunpack.c.l.b16 %v314
  %v395 = vunpack.c.l.b16 %v315
  %v396 = vunpack.c.l.b16 %v316
  %v397 = vpack.c.b16 %v382, %v381
  %v398 = vpack.c.b16 %v384, %v383
  %v399 = vpack.c.b16 %v386, %v385
  %v400 = vpack.c.b16 %v388, %v387
  %v401 = vpack.c.b16 %v390, %v389
  %v402 = vpack.c.b16 %v392, %v391
  %v403 = vpack.c.b16 %v394, %v393
  %v404 = vpack.c.b16 %v396, %v395
  %413 = vmatpush.bf16.msra.mxu0 %v404
  %414 = vmatpush.bf16.msra.mxu0 %v403
  %415 = vmatpush.bf16.msra.mxu0 %v402
  %416 = vmatpush.bf16.msra.mxu0 %v401
  %417 = vmatpush.bf16.msra.mxu0 %v400
  %418 = vmatpush.bf16.msra.mxu0 %v399
  %419 = vmatpush.bf16.msra.mxu0 %v398
  %420 = vmatpush.bf16.msra.mxu0 %v397
  %421 = vmatmul.bf16.gmra.mxu0 %v349
  %v422 = vpop.f32.mrf.mxu0
  %v423 = vadd.f32 0.0, %v422
  %v424 = vpop.f32.mrf.mxu0
  %v425 = vadd.f32 0.0, %v424
  %426 = vmatmul.bf16.gmra.mxu0 %v350
  %v427 = vpop.f32.mrf.mxu0
  %v428 = vadd.f32 0.0, %v427
  %v429 = vpop.f32.mrf.mxu0
  %v430 = vadd.f32 0.0, %v429
  %431 = vmatmul.bf16.gmra.mxu0 %v351
  %v432 = vpop.f32.mrf.mxu0
  %v433 = vadd.f32 0.0, %v432
  %v434 = vpop.f32.mrf.mxu0
  %v435 = vadd.f32 0.0, %v434
  %436 = vmatmul.bf16.gmra.mxu0 %v352
  %v437 = vpop.f32.mrf.mxu0
  %v438 = vadd.f32 0.0, %v437
  %v439 = vpop.f32.mrf.mxu0
  %v440 = vadd.f32 0.0, %v439
  %441 = vmatmul.bf16.gmra.mxu0 %v353
  %v442 = vpop.f32.mrf.mxu0
  %v443 = vadd.f32 0.0, %v442
  %v444 = vpop.f32.mrf.mxu0
  %v445 = vadd.f32 0.0, %v444
  %446 = vmatmul.bf16.gmra.mxu0 %v354
  %v447 = vpop.f32.mrf.mxu0
  %v448 = vadd.f32 0.0, %v447
  %v449 = vpop.f32.mrf.mxu0
  %v450 = vadd.f32 0.0, %v449
  %451 = vmatmul.bf16.gmra.mxu0 %v355
  %v452 = vpop.f32.mrf.mxu0
  %v453 = vadd.f32 0.0, %v452
  %v454 = vpop.f32.mrf.mxu0
  %v455 = vadd.f32 0.0, %v454
  %456 = vmatmul.bf16.gmra.mxu0 %v356
  %v457 = vpop.f32.mrf.mxu0
  %v458 = vadd.f32 0.0, %v457
  %v459 = vpop.f32.mrf.mxu0
  %v460 = vadd.f32 0.0, %v459
  %461 = vdwg.mxu0
  %v478 = vunpack.c.l.b16 %v251
  %v479 = vunpack.c.l.b16 %v252
  %v480 = vunpack.c.l.b16 %v253
  %v481 = vunpack.c.l.b16 %v254
  %v482 = vunpack.c.l.b16 %v255
  %v483 = vunpack.c.l.b16 %v256
  %v484 = vunpack.c.l.b16 %v257
  %v485 = vunpack.c.l.b16 %v258
  %v486 = vunpack.c.l.b16 %v259
  %v487 = vunpack.c.l.b16 %v260
  %v488 = vunpack.c.l.b16 %v261
  %v489 = vunpack.c.l.b16 %v262
  %v490 = vunpack.c.l.b16 %v263
  %v491 = vunpack.c.l.b16 %v264
  %v492 = vunpack.c.l.b16 %v265
  %v493 = vunpack.c.l.b16 %v266
  %v494 = vpack.c.b16 %v479, %v478
  %v495 = vpack.c.b16 %v481, %v480
  %v496 = vpack.c.b16 %v483, %v482
  %v497 = vpack.c.b16 %v485, %v484
  %v498 = vpack.c.b16 %v487, %v486
  %v499 = vpack.c.b16 %v489, %v488
  %v500 = vpack.c.b16 %v491, %v490
  %v501 = vpack.c.b16 %v493, %v492
  %v526 = vunpack.c.l.b16 %v267
  %v527 = vunpack.c.l.b16 %v268
  %v528 = vunpack.c.l.b16 %v269
  %v529 = vunpack.c.l.b16 %v270
  %v530 = vunpack.c.l.b16 %v271
  %v531 = vunpack.c.l.b16 %v272
  %v532 = vunpack.c.l.b16 %v273
  %v533 = vunpack.c.l.b16 %v274
  %v534 = vunpack.c.l.b16 %v275
  %v535 = vunpack.c.l.b16 %v276
  %v536 = vunpack.c.l.b16 %v277
  %v537 = vunpack.c.l.b16 %v278
  %v538 = vunpack.c.l.b16 %v279
  %v539 = vunpack.c.l.b16 %v280
  %v540 = vunpack.c.l.b16 %v281
  %v541 = vunpack.c.l.b16 %v282
  %v542 = vpack.c.b16 %v527, %v526
  %v543 = vpack.c.b16 %v529, %v528
  %v544 = vpack.c.b16 %v531, %v530
  %v545 = vpack.c.b16 %v533, %v532
  %v546 = vpack.c.b16 %v535, %v534
  %v547 = vpack.c.b16 %v537, %v536
  %v548 = vpack.c.b16 %v539, %v538
  %v549 = vpack.c.b16 %v541, %v540
  %558 = vmatpush.bf16.msra.mxu0 %v549
  %559 = vmatpush.bf16.msra.mxu0 %v548
  %560 = vmatpush.bf16.msra.mxu0 %v547
  %561 = vmatpush.bf16.msra.mxu0 %v546
  %562 = vmatpush.bf16.msra.mxu0 %v545
  %563 = vmatpush.bf16.msra.mxu0 %v544
  %564 = vmatpush.bf16.msra.mxu0 %v543
  %565 = vmatpush.bf16.msra.mxu0 %v542
  %566 = vmatmul.bf16.gmra.mxu0 %v494
  %v567 = vpop.f32.mrf.mxu0
  %v568 = vadd.f32 %v423, %v567
  %v569 = vpop.f32.mrf.mxu0
  %v570 = vadd.f32 %v425, %v569
  %571 = vmatmul.bf16.gmra.mxu0 %v495
  %v572 = vpop.f32.mrf.mxu0
  %v573 = vadd.f32 %v428, %v572
  %v574 = vpop.f32.mrf.mxu0
  %v575 = vadd.f32 %v430, %v574
  %576 = vmatmul.bf16.gmra.mxu0 %v496
  %v577 = vpop.f32.mrf.mxu0
  %v578 = vadd.f32 %v433, %v577
  %v579 = vpop.f32.mrf.mxu0
  %v580 = vadd.f32 %v435, %v579
  %581 = vmatmul.bf16.gmra.mxu0 %v497
  %v582 = vpop.f32.mrf.mxu0
  %v583 = vadd.f32 %v438, %v582
  %v584 = vpop.f32.mrf.mxu0
  %v585 = vadd.f32 %v440, %v584
  %586 = vmatmul.bf16.gmra.mxu0 %v498
  %v587 = vpop.f32.mrf.mxu0
  %v588 = vadd.f32 %v443, %v587
  %v589 = vpop.f32.mrf.mxu0
  %v590 = vadd.f32 %v445, %v589
  %591 = vmatmul.bf16.gmra.mxu0 %v499
  %v592 = vpop.f32.mrf.mxu0
  %v593 = vadd.f32 %v448, %v592
  %v594 = vpop.f32.mrf.mxu0
  %v595 = vadd.f32 %v450, %v594
  %596 = vmatmul.bf16.gmra.mxu0 %v500
  %v597 = vpop.f32.mrf.mxu0
  %v598 = vadd.f32 %v453, %v597
  %v599 = vpop.f32.mrf.mxu0
  %v600 = vadd.f32 %v455, %v599
  %601 = vmatmul.bf16.gmra.mxu0 %v501
  %v602 = vpop.f32.mrf.mxu0
  %v603 = vadd.f32 %v458, %v602
  %v604 = vpop.f32.mrf.mxu0
  %v605 = vadd.f32 %v460, %v604
  %606 = vdwg.mxu0
  %v607 = vld [vmem:[%s0] sm:$0xf]
  %v608 = vld [vmem:[%s0 + $0x4] sm:$0xf]
  %v609 = vld [vmem:[%s0 + $0x8] sm:$0xf]
  %v610 = vld [vmem:[%s0 + $0xc] sm:$0xf]
  %v611 = vld [vmem:[%s0 + $0x10] sm:$0xf]
  %v612 = vld [vmem:[%s0 + $0x14] sm:$0xf]
  %v613 = vld [vmem:[%s0 + $0x18] sm:$0xf]
  %v614 = vld [vmem:[%s0 + $0x1c] sm:$0xf]
  %v615 = vld [vmem:[%s0 + $0x20] sm:$0xf]
  %v616 = vld [vmem:[%s0 + $0x24] sm:$0xf]
  %v617 = vld [vmem:[%s0 + $0x28] sm:$0xf]
  %v618 = vld [vmem:[%s0 + $0x2c] sm:$0xf]
  %v619 = vld [vmem:[%s0 + $0x30] sm:$0xf]
  %v620 = vld [vmem:[%s0 + $0x34] sm:$0xf]
  %v621 = vld [vmem:[%s0 + $0x38] sm:$0xf]
  %v622 = vld [vmem:[%s0 + $0x3c] sm:$0xf]
  %v623 = vld [vmem:[%s0 + $0x40] sm:$0x1]
  %s624 = scalar_lea.vmem %s1, 128
  %v625 = vld [vmem:[%s624] sm:$0xf]
  %v626 = vld [vmem:[%s624 + $0x4] sm:$0xf]
  %v627 = vld [vmem:[%s624 + $0x8] sm:$0xf]
  %v628 = vld [vmem:[%s624 + $0xc] sm:$0xf]
  %v629 = vld [vmem:[%s624 + $0x10] sm:$0xf]
  %v630 = vld [vmem:[%s624 + $0x14] sm:$0xf]
  %v631 = vld [vmem:[%s624 + $0x18] sm:$0xf]
  %v632 = vld [vmem:[%s624 + $0x1c] sm:$0xf]
  %v633 = vld [vmem:[%s624 + $0x20] sm:$0xf]
  %v634 = vld [vmem:[%s624 + $0x24] sm:$0xf]
  %v635 = vld [vmem:[%s624 + $0x28] sm:$0xf]
  %v636 = vld [vmem:[%s624 + $0x2c] sm:$0xf]
  %v637 = vld [vmem:[%s624 + $0x30] sm:$0xf]
  %v638 = vld [vmem:[%s624 + $0x34] sm:$0xf]
  %v639 = vld [vmem:[%s624 + $0x38] sm:$0xf]
  %v640 = vld [vmem:[%s624 + $0x3c] sm:$0xf]
  %v658 = vunpack.c.l.b16 %v607
  %v659 = vunpack.c.l.b16 %v608
  %v660 = vunpack.c.l.b16 %v609
  %v661 = vunpack.c.l.b16 %v610
  %v662 = vunpack.c.l.b16 %v611
  %v663 = vunpack.c.l.b16 %v612
  %v664 = vunpack.c.l.b16 %v613
  %v665 = vunpack.c.l.b16 %v614
  %v666 = vunpack.c.l.b16 %v615
  %v667 = vunpack.c.l.b16 %v616
  %v668 = vunpack.c.l.b16 %v617
  %v669 = vunpack.c.l.b16 %v618
  %v670 = vunpack.c.l.b16 %v619
  %v671 = vunpack.c.l.b16 %v620
  %v672 = vunpack.c.l.b16 %v621
  %v673 = vunpack.c.l.b16 %v622
  %v674 = vunpack.c.l.b16 %v623
  %v675 = vpack.c.b16 %v659, %v658
  %v676 = vpack.c.b16 %v661, %v660
  %v677 = vpack.c.b16 %v663, %v662
  %v678 = vpack.c.b16 %v665, %v664
  %v679 = vpack.c.b16 %v667, %v666
  %v680 = vpack.c.b16 %v669, %v668
  %v681 = vpack.c.b16 %v671, %v670
  %v682 = vpack.c.b16 %v673, %v672
  %v683 = vpack.c.b16 %v674, %v674
  %vm684 = vsmask.f32 7424
  %v686 = vshrl.u32 %v675, 16
  %v688 = vshll.u32 %v675, 16
  %v690 = vrot.slane %v688, 1
  %v691 = vor.u32 %v686, %v690
  %v693 = vshll.u32 %v676, 16
  %v695 = vrot.slane %v693, 1
  %v696 = vsel %vm684, %v691, %v695
  %v697 = vshrl.u32 %v676, 16
  %v699 = vor.u32 %v697, %v695
  %v701 = vshll.u32 %v677, 16
  %v703 = vrot.slane %v701, 1
  %v704 = vsel %vm684, %v699, %v703
  %v705 = vshrl.u32 %v677, 16
  %v707 = vor.u32 %v705, %v703
  %v709 = vshll.u32 %v678, 16
  %v711 = vrot.slane %v709, 1
  %v712 = vsel %vm684, %v707, %v711
  %v713 = vshrl.u32 %v678, 16
  %v715 = vor.u32 %v713, %v711
  %v717 = vshll.u32 %v679, 16
  %v719 = vrot.slane %v717, 1
  %v720 = vsel %vm684, %v715, %v719
  %v721 = vshrl.u32 %v679, 16
  %v723 = vor.u32 %v721, %v719
  %v725 = vshll.u32 %v680, 16
  %v727 = vrot.slane %v725, 1
  %v728 = vsel %vm684, %v723, %v727
  %v729 = vshrl.u32 %v680, 16
  %v731 = vor.u32 %v729, %v727
  %v733 = vshll.u32 %v681, 16
  %v735 = vrot.slane %v733, 1
  %v736 = vsel %vm684, %v731, %v735
  %v737 = vshrl.u32 %v681, 16
  %v739 = vor.u32 %v737, %v735
  %v741 = vshll.u32 %v682, 16
  %v743 = vrot.slane %v741, 1
  %v744 = vsel %vm684, %v739, %v743
  %v745 = vshrl.u32 %v682, 16
  %v747 = vor.u32 %v745, %v743
  %v749 = vshll.u32 %v683, 16
  %v751 = vrot.slane %v749, 1
  %v752 = vsel %vm684, %v747, %v751
  %v777 = vunpack.c.l.b16 %v625
  %v778 = vunpack.c.l.b16 %v626
  %v779 = vunpack.c.l.b16 %v627
  %v780 = vunpack.c.l.b16 %v628
  %v781 = vunpack.c.l.b16 %v629
  %v782 = vunpack.c.l.b16 %v630
  %v783 = vunpack.c.l.b16 %v631
  %v784 = vunpack.c.l.b16 %v632
  %v785 = vunpack.c.l.b16 %v633
  %v786 = vunpack.c.l.b16 %v634
  %v787 = vunpack.c.l.b16 %v635
  %v788 = vunpack.c.l.b16 %v636
  %v789 = vunpack.c.l.b16 %v637
  %v790 = vunpack.c.l.b16 %v638
  %v791 = vunpack.c.l.b16 %v639
  %v792 = vunpack.c.l.b16 %v640
  %v793 = vpack.c.b16 %v778, %v777
  %v794 = vpack.c.b16 %v780, %v779
  %v795 = vpack.c.b16 %v782, %v781
  %v796 = vpack.c.b16 %v784, %v783
  %v797 = vpack.c.b16 %v786, %v785
  %v798 = vpack.c.b16 %v788, %v787
  %v799 = vpack.c.b16 %v790, %v789
  %v800 = vpack.c.b16 %v792, %v791
  %809 = vmatpush.bf16.msra.mxu0 %v800
  %810 = vmatpush.bf16.msra.mxu0 %v799
  %811 = vmatpush.bf16.msra.mxu0 %v798
  %812 = vmatpush.bf16.msra.mxu0 %v797
  %813 = vmatpush.bf16.msra.mxu0 %v796
  %814 = vmatpush.bf16.msra.mxu0 %v795
  %815 = vmatpush.bf16.msra.mxu0 %v794
  %816 = vmatpush.bf16.msra.mxu0 %v793
  %817 = vmatmul.bf16.gmra.mxu0 %v696
  %v818 = vpop.f32.mrf.mxu0
  %v819 = vadd.f32 0.0, %v818
  %v820 = vpop.f32.mrf.mxu0
  %v821 = vadd.f32 0.0, %v820
  %822 = vmatmul.bf16.gmra.mxu0 %v704
  %v823 = vpop.f32.mrf.mxu0
  %v824 = vadd.f32 0.0, %v823
  %v825 = vpop.f32.mrf.mxu0
  %v826 = vadd.f32 0.0, %v825
  %827 = vmatmul.bf16.gmra.mxu0 %v712
  %v828 = vpop.f32.mrf.mxu0
  %v829 = vadd.f32 0.0, %v828
  %v830 = vpop.f32.mrf.mxu0
  %v831 = vadd.f32 0.0, %v830
  %832 = vmatmul.bf16.gmra.mxu0 %v720
  %v833 = vpop.f32.mrf.mxu0
  %v834 = vadd.f32 0.0, %v833
  %v835 = vpop.f32.mrf.mxu0
  %v836 = vadd.f32 0.0, %v835
  %837 = vmatmul.bf16.gmra.mxu0 %v728
  %v838 = vpop.f32.mrf.mxu0
  %v839 = vadd.f32 0.0, %v838
  %v840 = vpop.f32.mrf.mxu0
  %v841 = vadd.f32 0.0, %v840
  %842 = vmatmul.bf16.gmra.mxu0 %v736
  %v843 = vpop.f32.mrf.mxu0
  %v844 = vadd.f32 0.0, %v843
  %v845 = vpop.f32.mrf.mxu0
  %v846 = vadd.f32 0.0, %v845
  %847 = vmatmul.bf16.gmra.mxu0 %v744
  %v848 = vpop.f32.mrf.mxu0
  %v849 = vadd.f32 0.0, %v848
  %v850 = vpop.f32.mrf.mxu0
  %v851 = vadd.f32 0.0, %v850
  %852 = vmatmul.bf16.gmra.mxu0 %v752
  %v853 = vpop.f32.mrf.mxu0
  %v854 = vadd.f32 0.0, %v853
  %v855 = vpop.f32.mrf.mxu0
  %v856 = vadd.f32 0.0, %v855
  %857 = vdwg.mxu0
  %v858 = vadd.f32 %v568, %v819
  %v859 = vadd.f32 %v570, %v821
  %v860 = vadd.f32 %v573, %v824
  %v861 = vadd.f32 %v575, %v826
  %v862 = vadd.f32 %v578, %v829
  %v863 = vadd.f32 %v580, %v831
  %v864 = vadd.f32 %v583, %v834
  %v865 = vadd.f32 %v585, %v836
  %v866 = vadd.f32 %v588, %v839
  %v867 = vadd.f32 %v590, %v841
  %v868 = vadd.f32 %v593, %v844
  %v869 = vadd.f32 %v595, %v846
  %v870 = vadd.f32 %v598, %v849
  %v871 = vadd.f32 %v600, %v851
  %v872 = vadd.f32 %v603, %v854
  %v873 = vadd.f32 %v605, %v856
  %s874 = scalar_lea.vmem %s0, 176
  %v875 = vld [vmem:[%s874] sm:$0xf]
  %v876 = vld [vmem:[%s874 + $0x4] sm:$0xf]
  %v877 = vld [vmem:[%s874 + $0x8] sm:$0xf]
  %v878 = vld [vmem:[%s874 + $0xc] sm:$0xf]
  %v879 = vld [vmem:[%s874 + $0x10] sm:$0xf]
  %v880 = vld [vmem:[%s874 + $0x14] sm:$0xf]
  %v881 = vld [vmem:[%s874 + $0x18] sm:$0xf]
  %v882 = vld [vmem:[%s874 + $0x1c] sm:$0xf]
  %v883 = vld [vmem:[%s874 + $0x20] sm:$0xf]
  %v884 = vld [vmem:[%s874 + $0x24] sm:$0xf]
  %v885 = vld [vmem:[%s874 + $0x28] sm:$0xf]
  %v886 = vld [vmem:[%s874 + $0x2c] sm:$0xf]
  %v887 = vld [vmem:[%s874 + $0x30] sm:$0xf]
  %v888 = vld [vmem:[%s874 + $0x34] sm:$0xf]
  %v889 = vld [vmem:[%s874 + $0x38] sm:$0xf]
  %v890 = vld [vmem:[%s874 + $0x3c] sm:$0xf]
  %s891 = scalar_lea.vmem %s1, 192
  %v892 = vld [vmem:[%s891] sm:$0xf]
  %v893 = vld [vmem:[%s891 + $0x4] sm:$0xf]
  %v894 = vld [vmem:[%s891 + $0x8] sm:$0xf]
  %v895 = vld [vmem:[%s891 + $0xc] sm:$0xf]
  %v896 = vld [vmem:[%s891 + $0x10] sm:$0xf]
  %v897 = vld [vmem:[%s891 + $0x14] sm:$0xf]
  %v898 = vld [vmem:[%s891 + $0x18] sm:$0xf]
  %v899 = vld [vmem:[%s891 + $0x1c] sm:$0xf]
  %v900 = vld [vmem:[%s891 + $0x20] sm:$0xf]
  %v901 = vld [vmem:[%s891 + $0x24] sm:$0xf]
  %v902 = vld [vmem:[%s891 + $0x28] sm:$0xf]
  %v903 = vld [vmem:[%s891 + $0x2c] sm:$0xf]
  %v904 = vld [vmem:[%s891 + $0x30] sm:$0xf]
  %v905 = vld [vmem:[%s891 + $0x34] sm:$0xf]
  %v906 = vld [vmem:[%s891 + $0x38] sm:$0xf]
  %v907 = vld [vmem:[%s891 + $0x3c] sm:$0xf]
  %v924 = vunpack.c.l.b16 %v875
  %v925 = vunpack.c.l.b16 %v876
  %v926 = vunpack.c.l.b16 %v877
  %v927 = vunpack.c.l.b16 %v878
  %v928 = vunpack.c.l.b16 %v879
  %v929 = vunpack.c.l.b16 %v880
  %v930 = vunpack.c.l.b16 %v881
  %v931 = vunpack.c.l.b16 %v882
  %v932 = vunpack.c.l.b16 %v883
  %v933 = vunpack.c.l.b16 %v884
  %v934 = vunpack.c.l.b16 %v885
  %v935 = vunpack.c.l.b16 %v886
  %v936 = vunpack.c.l.b16 %v887
  %v937 = vunpack.c.l.b16 %v888
  %v938 = vunpack.c.l.b16 %v889
  %v939 = vunpack.c.l.b16 %v890
  %v940 = vpack.c.b16 %v925, %v924
  %v941 = vpack.c.b16 %v927, %v926
  %v942 = vpack.c.b16 %v929, %v928
  %v943 = vpack.c.b16 %v931, %v930
  %v944 = vpack.c.b16 %v933, %v932
  %v945 = vpack.c.b16 %v935, %v934
  %v946 = vpack.c.b16 %v937, %v936
  %v947 = vpack.c.b16 %v939, %v938
  %v972 = vunpack.c.l.b16 %v892
  %v973 = vunpack.c.l.b16 %v893
  %v974 = vunpack.c.l.b16 %v894
  %v975 = vunpack.c.l.b16 %v895
  %v976 = vunpack.c.l.b16 %v896
  %v977 = vunpack.c.l.b16 %v897
  %v978 = vunpack.c.l.b16 %v898
  %v979 = vunpack.c.l.b16 %v899
  %v980 = vunpack.c.l.b16 %v900
  %v981 = vunpack.c.l.b16 %v901
  %v982 = vunpack.c.l.b16 %v902
  %v983 = vunpack.c.l.b16 %v903
  %v984 = vunpack.c.l.b16 %v904
  %v985 = vunpack.c.l.b16 %v905
  %v986 = vunpack.c.l.b16 %v906
  %v987 = vunpack.c.l.b16 %v907
  %v988 = vpack.c.b16 %v973, %v972
  %v989 = vpack.c.b16 %v975, %v974
  %v990 = vpack.c.b16 %v977, %v976
  %v991 = vpack.c.b16 %v979, %v978
  %v992 = vpack.c.b16 %v981, %v980
  %v993 = vpack.c.b16 %v983, %v982
  %v994 = vpack.c.b16 %v985, %v984
  %v995 = vpack.c.b16 %v987, %v986
  %1004 = vmatpush.bf16.msra.mxu0 %v995
  %1005 = vmatpush.bf16.msra.mxu0 %v994
  %1006 = vmatpush.bf16.msra.mxu0 %v993
  %1007 = vmatpush.bf16.msra.mxu0 %v992
  %1008 = vmatpush.bf16.msra.mxu0 %v991
  %1009 = vmatpush.bf16.msra.mxu0 %v990
  %1010 = vmatpush.bf16.msra.mxu0 %v989
  %1011 = vmatpush.bf16.msra.mxu0 %v988
  %1012 = vmatmul.bf16.gmra.mxu0 %v940
  %v1013 = vpop.f32.mrf.mxu0
  %v1014 = vadd.f32 0.0, %v1013
  %v1015 = vpop.f32.mrf.mxu0
  %v1016 = vadd.f32 0.0, %v1015
  %1017 = vmatmul.bf16.gmra.mxu0 %v941
  %v1018 = vpop.f32.mrf.mxu0
  %v1019 = vadd.f32 0.0, %v1018
  %v1020 = vpop.f32.mrf.mxu0
  %v1021 = vadd.f32 0.0, %v1020
  %1022 = vmatmul.bf16.gmra.mxu0 %v942
  %v1023 = vpop.f32.mrf.mxu0
  %v1024 = vadd.f32 0.0, %v1023
  %v1025 = vpop.f32.mrf.mxu0
  %v1026 = vadd.f32 0.0, %v1025
  %1027 = vmatmul.bf16.gmra.mxu0 %v943
  %v1028 = vpop.f32.mrf.mxu0
  %v1029 = vadd.f32 0.0, %v1028
  %v1030 = vpop.f32.mrf.mxu0
  %v1031 = vadd.f32 0.0, %v1030
  %1032 = vmatmul.bf16.gmra.mxu0 %v944
  %v1033 = vpop.f32.mrf.mxu0
  %v1034 = vadd.f32 0.0, %v1033
  %v1035 = vpop.f32.mrf.mxu0
  %v1036 = vadd.f32 0.0, %v1035
  %1037 = vmatmul.bf16.gmra.mxu0 %v945
  %v1038 = vpop.f32.mrf.mxu0
  %v1039 = vadd.f32 0.0, %v1038
  %v1040 = vpop.f32.mrf.mxu0
  %v1041 = vadd.f32 0.0, %v1040
  %1042 = vmatmul.bf16.gmra.mxu0 %v946
  %v1043 = vpop.f32.mrf.mxu0
  %v1044 = vadd.f32 0.0, %v1043
  %v1045 = vpop.f32.mrf.mxu0
  %v1046 = vadd.f32 0.0, %v1045
  %1047 = vmatmul.bf16.gmra.mxu0 %v947
  %v1048 = vpop.f32.mrf.mxu0
  %v1049 = vadd.f32 0.0, %v1048
  %v1050 = vpop.f32.mrf.mxu0
  %v1051 = vadd.f32 0.0, %v1050
  %1052 = vdwg.mxu0
  %v1053 = vadd.f32 %v858, %v1014
  %v1054 = vadd.f32 %v859, %v1016
  %v1055 = vadd.f32 %v860, %v1019
  %v1056 = vadd.f32 %v861, %v1021
  %v1057 = vadd.f32 %v862, %v1024
  %v1058 = vadd.f32 %v863, %v1026
  %v1059 = vadd.f32 %v864, %v1029
  %v1060 = vadd.f32 %v865, %v1031
  %v1061 = vadd.f32 %v866, %v1034
  %v1062 = vadd.f32 %v867, %v1036
  %v1063 = vadd.f32 %v868, %v1039
  %v1064 = vadd.f32 %v869, %v1041
  %v1065 = vadd.f32 %v870, %v1044
  %v1066 = vadd.f32 %v871, %v1046
  %v1067 = vadd.f32 %v872, %v1049
  %v1068 = vadd.f32 %v873, %v1051
  %s1069 = scalar_lea.vmem %s0, 264
  %v1070 = vld [vmem:[%s1069] sm:$0xf]
  %v1071 = vld [vmem:[%s1069 + $0x4] sm:$0xf]
  %v1072 = vld [vmem:[%s1069 + $0x8] sm:$0xf]
  %v1073 = vld [vmem:[%s1069 + $0xc] sm:$0xf]
  %v1074 = vld [vmem:[%s1069 + $0x10] sm:$0xf]
  %v1075 = vld [vmem:[%s1069 + $0x14] sm:$0xf]
  %v1076 = vld [vmem:[%s1069 + $0x18] sm:$0xf]
  %v1077 = vld [vmem:[%s1069 + $0x1c] sm:$0xf]
  %v1078 = vld [vmem:[%s1069 + $0x20] sm:$0xf]
  %v1079 = vld [vmem:[%s1069 + $0x24] sm:$0xf]
  %v1080 = vld [vmem:[%s1069 + $0x28] sm:$0xf]
  %v1081 = vld [vmem:[%s1069 + $0x2c] sm:$0xf]
  %v1082 = vld [vmem:[%s1069 + $0x30] sm:$0xf]
  %v1083 = vld [vmem:[%s1069 + $0x34] sm:$0xf]
  %v1084 = vld [vmem:[%s1069 + $0x38] sm:$0xf]
  %v1085 = vld [vmem:[%s1069 + $0x3c] sm:$0xf]
  %s1086 = scalar_lea.vmem %s1, 256
  %v1087 = vld [vmem:[%s1086] sm:$0xf]
  %v1088 = vld [vmem:[%s1086 + $0x4] sm:$0xf]
  %v1089 = vld [vmem:[%s1086 + $0x8] sm:$0xf]
  %v1090 = vld [vmem:[%s1086 + $0xc] sm:$0xf]
  %v1091 = vld [vmem:[%s1086 + $0x10] sm:$0xf]
  %v1092 = vld [vmem:[%s1086 + $0x14] sm:$0xf]
  %v1093 = vld [vmem:[%s1086 + $0x18] sm:$0xf]
  %v1094 = vld [vmem:[%s1086 + $0x1c] sm:$0xf]
  %v1095 = vld [vmem:[%s1086 + $0x20] sm:$0xf]
  %v1096 = vld [vmem:[%s1086 + $0x24] sm:$0xf]
  %v1097 = vld [vmem:[%s1086 + $0x28] sm:$0xf]
  %v1098 = vld [vmem:[%s1086 + $0x2c] sm:$0xf]
  %v1099 = vld [vmem:[%s1086 + $0x30] sm:$0xf]
  %v1100 = vld [vmem:[%s1086 + $0x34] sm:$0xf]
  %v1101 = vld [vmem:[%s1086 + $0x38] sm:$0xf]
  %v1102 = vld [vmem:[%s1086 + $0x3c] sm:$0xf]
  %v1119 = vunpack.c.l.b16 %v1070
  %v1120 = vunpack.c.l.b16 %v1071
  %v1121 = vunpack.c.l.b16 %v1072
  %v1122 = vunpack.c.l.b16 %v1073
  %v1123 = vunpack.c.l.b16 %v1074
  %v1124 = vunpack.c.l.b16 %v1075
  %v1125 = vunpack.c.l.b16 %v1076
  %v1126 = vunpack.c.l.b16 %v1077
  %v1127 = vunpack.c.l.b16 %v1078
  %v1128 = vunpack.c.l.b16 %v1079
  %v1129 = vunpack.c.l.b16 %v1080
  %v1130 = vunpack.c.l.b16 %v1081
  %v1131 = vunpack.c.l.b16 %v1082
  %v1132 = vunpack.c.l.b16 %v1083
  %v1133 = vunpack.c.l.b16 %v1084
  %v1134 = vunpack.c.l.b16 %v1085
  %v1135 = vpack.c.b16 %v1120, %v1119
  %v1136 = vpack.c.b16 %v1122, %v1121
  %v1137 = vpack.c.b16 %v1124, %v1123
  %v1138 = vpack.c.b16 %v1126, %v1125
  %v1139 = vpack.c.b16 %v1128, %v1127
  %v1140 = vpack.c.b16 %v1130, %v1129
  %v1141 = vpack.c.b16 %v1132, %v1131
  %v1142 = vpack.c.b16 %v1134, %v1133
  %v1167 = vunpack.c.l.b16 %v1087
  %v1168 = vunpack.c.l.b16 %v1088
  %v1169 = vunpack.c.l.b16 %v1089
  %v1170 = vunpack.c.l.b16 %v1090
  %v1171 = vunpack.c.l.b16 %v1091
  %v1172 = vunpack.c.l.b16 %v1092
  %v1173 = vunpack.c.l.b16 %v1093
  %v1174 = vunpack.c.l.b16 %v1094
  %v1175 = vunpack.c.l.b16 %v1095
  %v1176 = vunpack.c.l.b16 %v1096
  %v1177 = vunpack.c.l.b16 %v1097
  %v1178 = vunpack.c.l.b16 %v1098
  %v1179 = vunpack.c.l.b16 %v1099
  %v1180 = vunpack.c.l.b16 %v1100
  %v1181 = vunpack.c.l.b16 %v1101
  %v1182 = vunpack.c.l.b16 %v1102
  %v1183 = vpack.c.b16 %v1168, %v1167
  %v1184 = vpack.c.b16 %v1170, %v1169
  %v1185 = vpack.c.b16 %v1172, %v1171
  %v1186 = vpack.c.b16 %v1174, %v1173
  %v1187 = vpack.c.b16 %v1176, %v1175
  %v1188 = vpack.c.b16 %v1178, %v1177
  %v1189 = vpack.c.b16 %v1180, %v1179
  %v1190 = vpack.c.b16 %v1182, %v1181
  %1199 = vmatpush.bf16.msra.mxu0 %v1190
  %1200 = vmatpush.bf16.msra.mxu0 %v1189
  %1201 = vmatpush.bf16.msra.mxu0 %v1188
  %1202 = vmatpush.bf16.msra.mxu0 %v1187
  %1203 = vmatpush.bf16.msra.mxu0 %v1186
  %1204 = vmatpush.bf16.msra.mxu0 %v1185
  %1205 = vmatpush.bf16.msra.mxu0 %v1184
  %1206 = vmatpush.bf16.msra.mxu0 %v1183
  %1207 = vmatmul.bf16.gmra.mxu0 %v1135
  %v1208 = vpop.f32.mrf.mxu0
  %v1209 = vadd.f32 0.0, %v1208
  %v1210 = vpop.f32.mrf.mxu0
  %v1211 = vadd.f32 0.0, %v1210
  %1212 = vmatmul.bf16.gmra.mxu0 %v1136
  %v1213 = vpop.f32.mrf.mxu0
  %v1214 = vadd.f32 0.0, %v1213
  %v1215 = vpop.f32.mrf.mxu0
  %v1216 = vadd.f32 0.0, %v1215
  %1217 = vmatmul.bf16.gmra.mxu0 %v1137
  %v1218 = vpop.f32.mrf.mxu0
  %v1219 = vadd.f32 0.0, %v1218
  %v1220 = vpop.f32.mrf.mxu0
  %v1221 = vadd.f32 0.0, %v1220
  %1222 = vmatmul.bf16.gmra.mxu0 %v1138
  %v1223 = vpop.f32.mrf.mxu0
  %v1224 = vadd.f32 0.0, %v1223
  %v1225 = vpop.f32.mrf.mxu0
  %v1226 = vadd.f32 0.0, %v1225
  %1227 = vmatmul.bf16.gmra.mxu0 %v1139
  %v1228 = vpop.f32.mrf.mxu0
  %v1229 = vadd.f32 0.0, %v1228
  %v1230 = vpop.f32.mrf.mxu0
  %v1231 = vadd.f32 0.0, %v1230
  %1232 = vmatmul.bf16.gmra.mxu0 %v1140
  %v1233 = vpop.f32.mrf.mxu0
  %v1234 = vadd.f32 0.0, %v1233
  %v1235 = vpop.f32.mrf.mxu0
  %v1236 = vadd.f32 0.0, %v1235
  %1237 = vmatmul.bf16.gmra.mxu0 %v1141
  %v1238 = vpop.f32.mrf.mxu0
  %v1239 = vadd.f32 0.0, %v1238
  %v1240 = vpop.f32.mrf.mxu0
  %v1241 = vadd.f32 0.0, %v1240
  %1242 = vmatmul.bf16.gmra.mxu0 %v1142
  %v1243 = vpop.f32.mrf.mxu0
  %v1244 = vadd.f32 0.0, %v1243
  %v1245 = vpop.f32.mrf.mxu0
  %v1246 = vadd.f32 0.0, %v1245
  %1247 = vdwg.mxu0
  %v1248 = vadd.f32 %v1053, %v1209
  %v1249 = vadd.f32 %v1054, %v1211
  %v1250 = vadd.f32 %v1055, %v1214
  %v1251 = vadd.f32 %v1056, %v1216
  %v1252 = vadd.f32 %v1057, %v1219
  %v1253 = vadd.f32 %v1058, %v1221
  %v1254 = vadd.f32 %v1059, %v1224
  %v1255 = vadd.f32 %v1060, %v1226
  %v1256 = vadd.f32 %v1061, %v1229
  %v1257 = vadd.f32 %v1062, %v1231
  %v1258 = vadd.f32 %v1063, %v1234
  %v1259 = vadd.f32 %v1064, %v1236
  %v1260 = vadd.f32 %v1065, %v1239
  %v1261 = vadd.f32 %v1066, %v1241
  %v1262 = vadd.f32 %v1067, %v1244
  %v1263 = vadd.f32 %v1068, %v1246
  %v1264 = vld [vmem:[%s874] sm:$0xf]
  %v1265 = vld [vmem:[%s874 + $0x4] sm:$0xf]
  %v1266 = vld [vmem:[%s874 + $0x8] sm:$0xf]
  %v1267 = vld [vmem:[%s874 + $0xc] sm:$0xf]
  %v1268 = vld [vmem:[%s874 + $0x10] sm:$0xf]
  %v1269 = vld [vmem:[%s874 + $0x14] sm:$0xf]
  %v1270 = vld [vmem:[%s874 + $0x18] sm:$0xf]
  %v1271 = vld [vmem:[%s874 + $0x1c] sm:$0xf]
  %v1272 = vld [vmem:[%s874 + $0x20] sm:$0xf]
  %v1273 = vld [vmem:[%s874 + $0x24] sm:$0xf]
  %v1274 = vld [vmem:[%s874 + $0x28] sm:$0xf]
  %v1275 = vld [vmem:[%s874 + $0x2c] sm:$0xf]
  %v1276 = vld [vmem:[%s874 + $0x30] sm:$0xf]
  %v1277 = vld [vmem:[%s874 + $0x34] sm:$0xf]
  %v1278 = vld [vmem:[%s874 + $0x38] sm:$0xf]
  %v1279 = vld [vmem:[%s874 + $0x3c] sm:$0xf]
  %v1280 = vld [vmem:[%s874 + $0x40] sm:$0x1]
  %s1281 = scalar_lea.vmem %s1, 320
  %v1282 = vld [vmem:[%s1281] sm:$0xf]
  %v1283 = vld [vmem:[%s1281 + $0x4] sm:$0xf]
  %v1284 = vld [vmem:[%s1281 + $0x8] sm:$0xf]
  %v1285 = vld [vmem:[%s1281 + $0xc] sm:$0xf]
  %v1286 = vld [vmem:[%s1281 + $0x10] sm:$0xf]
  %v1287 = vld [vmem:[%s1281 + $0x14] sm:$0xf]
  %v1288 = vld [vmem:[%s1281 + $0x18] sm:$0xf]
  %v1289 = vld [vmem:[%s1281 + $0x1c] sm:$0xf]
  %v1290 = vld [vmem:[%s1281 + $0x20] sm:$0xf]
  %v1291 = vld [vmem:[%s1281 + $0x24] sm:$0xf]
  %v1292 = vld [vmem:[%s1281 + $0x28] sm:$0xf]
  %v1293 = vld [vmem:[%s1281 + $0x2c] sm:$0xf]
  %v1294 = vld [vmem:[%s1281 + $0x30] sm:$0xf]
  %v1295 = vld [vmem:[%s1281 + $0x34] sm:$0xf]
  %v1296 = vld [vmem:[%s1281 + $0x38] sm:$0xf]
  %v1297 = vld [vmem:[%s1281 + $0x3c] sm:$0xf]
  %v1315 = vunpack.c.l.b16 %v1264
  %v1316 = vunpack.c.l.b16 %v1265
  %v1317 = vunpack.c.l.b16 %v1266
  %v1318 = vunpack.c.l.b16 %v1267
  %v1319 = vunpack.c.l.b16 %v1268
  %v1320 = vunpack.c.l.b16 %v1269
  %v1321 = vunpack.c.l.b16 %v1270
  %v1322 = vunpack.c.l.b16 %v1271
  %v1323 = vunpack.c.l.b16 %v1272
  %v1324 = vunpack.c.l.b16 %v1273
  %v1325 = vunpack.c.l.b16 %v1274
  %v1326 = vunpack.c.l.b16 %v1275
  %v1327 = vunpack.c.l.b16 %v1276
  %v1328 = vunpack.c.l.b16 %v1277
  %v1329 = vunpack.c.l.b16 %v1278
  %v1330 = vunpack.c.l.b16 %v1279
  %v1331 = vunpack.c.l.b16 %v1280
  %v1332 = vpack.c.b16 %v1316, %v1315
  %v1333 = vpack.c.b16 %v1318, %v1317
  %v1334 = vpack.c.b16 %v1320, %v1319
  %v1335 = vpack.c.b16 %v1322, %v1321
  %v1336 = vpack.c.b16 %v1324, %v1323
  %v1337 = vpack.c.b16 %v1326, %v1325
  %v1338 = vpack.c.b16 %v1328, %v1327
  %v1339 = vpack.c.b16 %v1330, %v1329
  %v1340 = vpack.c.b16 %v1331, %v1331
  %v1342 = vshrl.u32 %v1332, 16
  %v1344 = vshll.u32 %v1332, 16
  %v1346 = vrot.slane %v1344, 1
  %v1347 = vor.u32 %v1342, %v1346
  %v1349 = vshll.u32 %v1333, 16
  %v1351 = vrot.slane %v1349, 1
  %v1352 = vsel %vm684, %v1347, %v1351
  %v1353 = vshrl.u32 %v1333, 16
  %v1355 = vor.u32 %v1353, %v1351
  %v1357 = vshll.u32 %v1334, 16
  %v1359 = vrot.slane %v1357, 1
  %v1360 = vsel %vm684, %v1355, %v1359
  %v1361 = vshrl.u32 %v1334, 16
  %v1363 = vor.u32 %v1361, %v1359
  %v1365 = vshll.u32 %v1335, 16
  %v1367 = vrot.slane %v1365, 1
  %v1368 = vsel %vm684, %v1363, %v1367
  %v1369 = vshrl.u32 %v1335, 16
  %v1371 = vor.u32 %v1369, %v1367
  %v1373 = vshll.u32 %v1336, 16
  %v1375 = vrot.slane %v1373, 1
  %v1376 = vsel %vm684, %v1371, %v1375
  %v1377 = vshrl.u32 %v1336, 16
  %v1379 = vor.u32 %v1377, %v1375
  %v1381 = vshll.u32 %v1337, 16
  %v1383 = vrot.slane %v1381, 1
  %v1384 = vsel %vm684, %v1379, %v1383
  %v1385 = vshrl.u32 %v1337, 16
  %v1387 = vor.u32 %v1385, %v1383
  %v1389 = vshll.u32 %v1338, 16
  %v1391 = vrot.slane %v1389, 1
  %v1392 = vsel %vm684, %v1387, %v1391
  %v1393 = vshrl.u32 %v1338, 16
  %v1395 = vor.u32 %v1393, %v1391
  %v1397 = vshll.u32 %v1339, 16
  %v1399 = vrot.slane %v1397, 1
  %v1400 = vsel %vm684, %v1395, %v1399
  %v1401 = vshrl.u32 %v1339, 16
  %v1403 = vor.u32 %v1401, %v1399
  %v1405 = vshll.u32 %v1340, 16
  %v1407 = vrot.slane %v1405, 1
  %v1408 = vsel %vm684, %v1403, %v1407
  %v1433 = vunpack.c.l.b16 %v1282
  %v1434 = vunpack.c.l.b16 %v1283
  %v1435 = vunpack.c.l.b16 %v1284
  %v1436 = vunpack.c.l.b16 %v1285
  %v1437 = vunpack.c.l.b16 %v1286
  %v1438 = vunpack.c.l.b16 %v1287
  %v1439 = vunpack.c.l.b16 %v1288
  %v1440 = vunpack.c.l.b16 %v1289
  %v1441 = vunpack.c.l.b16 %v1290
  %v1442 = vunpack.c.l.b16 %v1291
  %v1443 = vunpack.c.l.b16 %v1292
  %v1444 = vunpack.c.l.b16 %v1293
  %v1445 = vunpack.c.l.b16 %v1294
  %v1446 = vunpack.c.l.b16 %v1295
  %v1447 = vunpack.c.l.b16 %v1296
  %v1448 = vunpack.c.l.b16 %v1297
  %v1449 = vpack.c.b16 %v1434, %v1433
  %v1450 = vpack.c.b16 %v1436, %v1435
  %v1451 = vpack.c.b16 %v1438, %v1437
  %v1452 = vpack.c.b16 %v1440, %v1439
  %v1453 = vpack.c.b16 %v1442, %v1441
  %v1454 = vpack.c.b16 %v1444, %v1443
  %v1455 = vpack.c.b16 %v1446, %v1445
  %v1456 = vpack.c.b16 %v1448, %v1447
  %1465 = vmatpush.bf16.msra.mxu0 %v1456
  %1466 = vmatpush.bf16.msra.mxu0 %v1455
  %1467 = vmatpush.bf16.msra.mxu0 %v1454
  %1468 = vmatpush.bf16.msra.mxu0 %v1453
  %1469 = vmatpush.bf16.msra.mxu0 %v1452
  %1470 = vmatpush.bf16.msra.mxu0 %v1451
  %1471 = vmatpush.bf16.msra.mxu0 %v1450
  %1472 = vmatpush.bf16.msra.mxu0 %v1449
  %1473 = vmatmul.bf16.gmra.mxu0 %v1352
  %v1474 = vpop.f32.mrf.mxu0
  %v1475 = vadd.f32 0.0, %v1474
  %v1476 = vpop.f32.mrf.mxu0
  %v1477 = vadd.f32 0.0, %v1476
  %1478 = vmatmul.bf16.gmra.mxu0 %v1360
  %v1479 = vpop.f32.mrf.mxu0
  %v1480 = vadd.f32 0.0, %v1479
  %v1481 = vpop.f32.mrf.mxu0
  %v1482 = vadd.f32 0.0, %v1481
  %1483 = vmatmul.bf16.gmra.mxu0 %v1368
  %v1484 = vpop.f32.mrf.mxu0
  %v1485 = vadd.f32 0.0, %v1484
  %v1486 = vpop.f32.mrf.mxu0
  %v1487 = vadd.f32 0.0, %v1486
  %1488 = vmatmul.bf16.gmra.mxu0 %v1376
  %v1489 = vpop.f32.mrf.mxu0
  %v1490 = vadd.f32 0.0, %v1489
  %v1491 = vpop.f32.mrf.mxu0
  %v1492 = vadd.f32 0.0, %v1491
  %1493 = vmatmul.bf16.gmra.mxu0 %v1384
  %v1494 = vpop.f32.mrf.mxu0
  %v1495 = vadd.f32 0.0, %v1494
  %v1496 = vpop.f32.mrf.mxu0
  %v1497 = vadd.f32 0.0, %v1496
  %1498 = vmatmul.bf16.gmra.mxu0 %v1392
  %v1499 = vpop.f32.mrf.mxu0
  %v1500 = vadd.f32 0.0, %v1499
  %v1501 = vpop.f32.mrf.mxu0
  %v1502 = vadd.f32 0.0, %v1501
  %1503 = vmatmul.bf16.gmra.mxu0 %v1400
  %v1504 = vpop.f32.mrf.mxu0
  %v1505 = vadd.f32 0.0, %v1504
  %v1506 = vpop.f32.mrf.mxu0
  %v1507 = vadd.f32 0.0, %v1506
  %1508 = vmatmul.bf16.gmra.mxu0 %v1408
  %v1509 = vpop.f32.mrf.mxu0
  %v1510 = vadd.f32 0.0, %v1509
  %v1511 = vpop.f32.mrf.mxu0
  %v1512 = vadd.f32 0.0, %v1511
  %1513 = vdwg.mxu0
  %v1514 = vadd.f32 %v1248, %v1475
  %v1515 = vadd.f32 %v1249, %v1477
  %v1516 = vadd.f32 %v1250, %v1480
  %v1517 = vadd.f32 %v1251, %v1482
  %v1518 = vadd.f32 %v1252, %v1485
  %v1519 = vadd.f32 %v1253, %v1487
  %v1520 = vadd.f32 %v1254, %v1490
  %v1521 = vadd.f32 %v1255, %v1492
  %v1522 = vadd.f32 %v1256, %v1495
  %v1523 = vadd.f32 %v1257, %v1497
  %v1524 = vadd.f32 %v1258, %v1500
  %v1525 = vadd.f32 %v1259, %v1502
  %v1526 = vadd.f32 %v1260, %v1505
  %v1527 = vadd.f32 %v1261, %v1507
  %v1528 = vadd.f32 %v1262, %v1510
  %v1529 = vadd.f32 %v1263, %v1512
  %v1530 = vld [vmem:[%s0 + $0x8] sm:$0xf]
  %v1531 = vld [vmem:[%s0 + $0xc] sm:$0xf]
  %v1532 = vld [vmem:[%s0 + $0x10] sm:$0xf]
  %v1533 = vld [vmem:[%s0 + $0x14] sm:$0xf]
  %v1534 = vld [vmem:[%s0 + $0x18] sm:$0xf]
  %v1535 = vld [vmem:[%s0 + $0x1c] sm:$0xf]
  %v1536 = vld [vmem:[%s0 + $0x20] sm:$0xf]
  %v1537 = vld [vmem:[%s0 + $0x24] sm:$0xf]
  %v1538 = vld [vmem:[%s0 + $0x28] sm:$0xf]
  %v1539 = vld [vmem:[%s0 + $0x2c] sm:$0xf]
  %v1540 = vld [vmem:[%s0 + $0x30] sm:$0xf]
  %v1541 = vld [vmem:[%s0 + $0x34] sm:$0xf]
  %v1542 = vld [vmem:[%s0 + $0x38] sm:$0xf]
  %v1543 = vld [vmem:[%s0 + $0x3c] sm:$0xf]
  %v1544 = vld [vmem:[%s0 + $0x40] sm:$0xf]
  %v1545 = vld [vmem:[%s0 + $0x44] sm:$0xf]
  %s1546 = scalar_lea.vmem %s1, 384
  %v1547 = vld [vmem:[%s1546] sm:$0xf]
  %v1548 = vld [vmem:[%s1546 + $0x4] sm:$0xf]
  %v1549 = vld [vmem:[%s1546 + $0x8] sm:$0xf]
  %v1550 = vld [vmem:[%s1546 + $0xc] sm:$0xf]
  %v1551 = vld [vmem:[%s1546 + $0x10] sm:$0xf]
  %v1552 = vld [vmem:[%s1546 + $0x14] sm:$0xf]
  %v1553 = vld [vmem:[%s1546 + $0x18] sm:$0xf]
  %v1554 = vld [vmem:[%s1546 + $0x1c] sm:$0xf]
  %v1555 = vld [vmem:[%s1546 + $0x20] sm:$0xf]
  %v1556 = vld [vmem:[%s1546 + $0x24] sm:$0xf]
  %v1557 = vld [vmem:[%s1546 + $0x28] sm:$0xf]
  %v1558 = vld [vmem:[%s1546 + $0x2c] sm:$0xf]
  %v1559 = vld [vmem:[%s1546 + $0x30] sm:$0xf]
  %v1560 = vld [vmem:[%s1546 + $0x34] sm:$0xf]
  %v1561 = vld [vmem:[%s1546 + $0x38] sm:$0xf]
  %v1562 = vld [vmem:[%s1546 + $0x3c] sm:$0xf]
  %v1579 = vunpack.c.l.b16 %v1530
  %v1580 = vunpack.c.l.b16 %v1531
  %v1581 = vunpack.c.l.b16 %v1532
  %v1582 = vunpack.c.l.b16 %v1533
  %v1583 = vunpack.c.l.b16 %v1534
  %v1584 = vunpack.c.l.b16 %v1535
  %v1585 = vunpack.c.l.b16 %v1536
  %v1586 = vunpack.c.l.b16 %v1537
  %v1587 = vunpack.c.l.b16 %v1538
  %v1588 = vunpack.c.l.b16 %v1539
  %v1589 = vunpack.c.l.b16 %v1540
  %v1590 = vunpack.c.l.b16 %v1541
  %v1591 = vunpack.c.l.b16 %v1542
  %v1592 = vunpack.c.l.b16 %v1543
  %v1593 = vunpack.c.l.b16 %v1544
  %v1594 = vunpack.c.l.b16 %v1545
  %v1595 = vpack.c.b16 %v1580, %v1579
  %v1596 = vpack.c.b16 %v1582, %v1581
  %v1597 = vpack.c.b16 %v1584, %v1583
  %v1598 = vpack.c.b16 %v1586, %v1585
  %v1599 = vpack.c.b16 %v1588, %v1587
  %v1600 = vpack.c.b16 %v1590, %v1589
  %v1601 = vpack.c.b16 %v1592, %v1591
  %v1602 = vpack.c.b16 %v1594, %v1593
  %v1627 = vunpack.c.l.b16 %v1547
  %v1628 = vunpack.c.l.b16 %v1548
  %v1629 = vunpack.c.l.b16 %v1549
  %v1630 = vunpack.c.l.b16 %v1550
  %v1631 = vunpack.c.l.b16 %v1551
  %v1632 = vunpack.c.l.b16 %v1552
  %v1633 = vunpack.c.l.b16 %v1553
  %v1634 = vunpack.c.l.b16 %v1554
  %v1635 = vunpack.c.l.b16 %v1555
  %v1636 = vunpack.c.l.b16 %v1556
  %v1637 = vunpack.c.l.b16 %v1557
  %v1638 = vunpack.c.l.b16 %v1558
  %v1639 = vunpack.c.l.b16 %v1559
  %v1640 = vunpack.c.l.b16 %v1560
  %v1641 = vunpack.c.l.b16 %v1561
  %v1642 = vunpack.c.l.b16 %v1562
  %v1643 = vpack.c.b16 %v1628, %v1627
  %v1644 = vpack.c.b16 %v1630, %v1629
  %v1645 = vpack.c.b16 %v1632, %v1631
  %v1646 = vpack.c.b16 %v1634, %v1633
  %v1647 = vpack.c.b16 %v1636, %v1635
  %v1648 = vpack.c.b16 %v1638, %v1637
  %v1649 = vpack.c.b16 %v1640, %v1639
  %v1650 = vpack.c.b16 %v1642, %v1641
  %1659 = vmatpush.bf16.msra.mxu0 %v1650
  %1660 = vmatpush.bf16.msra.mxu0 %v1649
  %1661 = vmatpush.bf16.msra.mxu0 %v1648
  %1662 = vmatpush.bf16.msra.mxu0 %v1647
  %1663 = vmatpush.bf16.msra.mxu0 %v1646
  %1664 = vmatpush.bf16.msra.mxu0 %v1645
  %1665 = vmatpush.bf16.msra.mxu0 %v1644
  %1666 = vmatpush.bf16.msra.mxu0 %v1643
  %1667 = vmatmul.bf16.gmra.mxu0 %v1595
  %v1668 = vpop.f32.mrf.mxu0
  %v1669 = vadd.f32 0.0, %v1668
  %v1670 = vpop.f32.mrf.mxu0
  %v1671 = vadd.f32 0.0, %v1670
  %1672 = vmatmul.bf16.gmra.mxu0 %v1596
  %v1673 = vpop.f32.mrf.mxu0
  %v1674 = vadd.f32 0.0, %v1673
  %v1675 = vpop.f32.mrf.mxu0
  %v1676 = vadd.f32 0.0, %v1675
  %1677 = vmatmul.bf16.gmra.mxu0 %v1597
  %v1678 = vpop.f32.mrf.mxu0
  %v1679 = vadd.f32 0.0, %v1678
  %v1680 = vpop.f32.mrf.mxu0
  %v1681 = vadd.f32 0.0, %v1680
  %1682 = vmatmul.bf16.gmra.mxu0 %v1598
  %v1683 = vpop.f32.mrf.mxu0
  %v1684 = vadd.f32 0.0, %v1683
  %v1685 = vpop.f32.mrf.mxu0
  %v1686 = vadd.f32 0.0, %v1685
  %1687 = vmatmul.bf16.gmra.mxu0 %v1599
  %v1688 = vpop.f32.mrf.mxu0
  %v1689 = vadd.f32 0.0, %v1688
  %v1690 = vpop.f32.mrf.mxu0
  %v1691 = vadd.f32 0.0, %v1690
  %1692 = vmatmul.bf16.gmra.mxu0 %v1600
  %v1693 = vpop.f32.mrf.mxu0
  %v1694 = vadd.f32 0.0, %v1693
  %v1695 = vpop.f32.mrf.mxu0
  %v1696 = vadd.f32 0.0, %v1695
  %1697 = vmatmul.bf16.gmra.mxu0 %v1601
  %v1698 = vpop.f32.mrf.mxu0
  %v1699 = vadd.f32 0.0, %v1698
  %v1700 = vpop.f32.mrf.mxu0
  %v1701 = vadd.f32 0.0, %v1700
  %1702 = vmatmul.bf16.gmra.mxu0 %v1602
  %v1703 = vpop.f32.mrf.mxu0
  %v1704 = vadd.f32 0.0, %v1703
  %v1705 = vpop.f32.mrf.mxu0
  %v1706 = vadd.f32 0.0, %v1705
  %1707 = vdwg.mxu0
  %v1708 = vadd.f32 %v1514, %v1669
  %v1709 = vadd.f32 %v1515, %v1671
  %v1710 = vadd.f32 %v1516, %v1674
  %v1711 = vadd.f32 %v1517, %v1676
  %v1712 = vadd.f32 %v1518, %v1679
  %v1713 = vadd.f32 %v1519, %v1681
  %v1714 = vadd.f32 %v1520, %v1684
  %v1715 = vadd.f32 %v1521, %v1686
  %v1716 = vadd.f32 %v1522, %v1689
  %v1717 = vadd.f32 %v1523, %v1691
  %v1718 = vadd.f32 %v1524, %v1694
  %v1719 = vadd.f32 %v1525, %v1696
  %v1720 = vadd.f32 %v1526, %v1699
  %v1721 = vadd.f32 %v1527, %v1701
  %v1722 = vadd.f32 %v1528, %v1704
  %v1723 = vadd.f32 %v1529, %v1706
  %v1724 = vld [vmem:[%s283 + $0x8] sm:$0xf]
  %v1725 = vld [vmem:[%s283 + $0xc] sm:$0xf]
  %v1726 = vld [vmem:[%s283 + $0x10] sm:$0xf]
  %v1727 = vld [vmem:[%s283 + $0x14] sm:$0xf]
  %v1728 = vld [vmem:[%s283 + $0x18] sm:$0xf]
  %v1729 = vld [vmem:[%s283 + $0x1c] sm:$0xf]
  %v1730 = vld [vmem:[%s283 + $0x20] sm:$0xf]
  %v1731 = vld [vmem:[%s283 + $0x24] sm:$0xf]
  %v1732 = vld [vmem:[%s283 + $0x28] sm:$0xf]
  %v1733 = vld [vmem:[%s283 + $0x2c] sm:$0xf]
  %v1734 = vld [vmem:[%s283 + $0x30] sm:$0xf]
  %v1735 = vld [vmem:[%s283 + $0x34] sm:$0xf]
  %v1736 = vld [vmem:[%s283 + $0x38] sm:$0xf]
  %v1737 = vld [vmem:[%s283 + $0x3c] sm:$0xf]
  %v1738 = vld [vmem:[%s283 + $0x40] sm:$0xf]
  %v1739 = vld [vmem:[%s283 + $0x44] sm:$0xf]
  %s1740 = scalar_lea.vmem %s1, 448
  %v1741 = vld [vmem:[%s1740] sm:$0xf]
  %v1742 = vld [vmem:[%s1740 + $0x4] sm:$0xf]
  %v1743 = vld [vmem:[%s1740 + $0x8] sm:$0xf]
  %v1744 = vld [vmem:[%s1740 + $0xc] sm:$0xf]
  %v1745 = vld [vmem:[%s1740 + $0x10] sm:$0xf]
  %v1746 = vld [vmem:[%s1740 + $0x14] sm:$0xf]
  %v1747 = vld [vmem:[%s1740 + $0x18] sm:$0xf]
  %v1748 = vld [vmem:[%s1740 + $0x1c] sm:$0xf]
  %v1749 = vld [vmem:[%s1740 + $0x20] sm:$0xf]
  %v1750 = vld [vmem:[%s1740 + $0x24] sm:$0xf]
  %v1751 = vld [vmem:[%s1740 + $0x28] sm:$0xf]
  %v1752 = vld [vmem:[%s1740 + $0x2c] sm:$0xf]
  %v1753 = vld [vmem:[%s1740 + $0x30] sm:$0xf]
  %v1754 = vld [vmem:[%s1740 + $0x34] sm:$0xf]
  %v1755 = vld [vmem:[%s1740 + $0x38] sm:$0xf]
  %v1756 = vld [vmem:[%s1740 + $0x3c] sm:$0xf]
  %v1773 = vunpack.c.l.b16 %v1724
  %v1774 = vunpack.c.l.b16 %v1725
  %v1775 = vunpack.c.l.b16 %v1726
  %v1776 = vunpack.c.l.b16 %v1727
  %v1777 = vunpack.c.l.b16 %v1728
  %v1778 = vunpack.c.l.b16 %v1729
  %v1779 = vunpack.c.l.b16 %v1730
  %v1780 = vunpack.c.l.b16 %v1731
  %v1781 = vunpack.c.l.b16 %v1732
  %v1782 = vunpack.c.l.b16 %v1733
  %v1783 = vunpack.c.l.b16 %v1734
  %v1784 = vunpack.c.l.b16 %v1735
  %v1785 = vunpack.c.l.b16 %v1736
  %v1786 = vunpack.c.l.b16 %v1737
  %v1787 = vunpack.c.l.b16 %v1738
  %v1788 = vunpack.c.l.b16 %v1739
  %v1789 = vpack.c.b16 %v1774, %v1773
  %v1790 = vpack.c.b16 %v1776, %v1775
  %v1791 = vpack.c.b16 %v1778, %v1777
  %v1792 = vpack.c.b16 %v1780, %v1779
  %v1793 = vpack.c.b16 %v1782, %v1781
  %v1794 = vpack.c.b16 %v1784, %v1783
  %v1795 = vpack.c.b16 %v1786, %v1785
  %v1796 = vpack.c.b16 %v1788, %v1787
  %v1821 = vunpack.c.l.b16 %v1741
  %v1822 = vunpack.c.l.b16 %v1742
  %v1823 = vunpack.c.l.b16 %v1743
  %v1824 = vunpack.c.l.b16 %v1744
  %v1825 = vunpack.c.l.b16 %v1745
  %v1826 = vunpack.c.l.b16 %v1746
  %v1827 = vunpack.c.l.b16 %v1747
  %v1828 = vunpack.c.l.b16 %v1748
  %v1829 = vunpack.c.l.b16 %v1749
  %v1830 = vunpack.c.l.b16 %v1750
  %v1831 = vunpack.c.l.b16 %v1751
  %v1832 = vunpack.c.l.b16 %v1752
  %v1833 = vunpack.c.l.b16 %v1753
  %v1834 = vunpack.c.l.b16 %v1754
  %v1835 = vunpack.c.l.b16 %v1755
  %v1836 = vunpack.c.l.b16 %v1756
  %v1837 = vpack.c.b16 %v1822, %v1821
  %v1838 = vpack.c.b16 %v1824, %v1823
  %v1839 = vpack.c.b16 %v1826, %v1825
  %v1840 = vpack.c.b16 %v1828, %v1827
  %v1841 = vpack.c.b16 %v1830, %v1829
  %v1842 = vpack.c.b16 %v1832, %v1831
  %v1843 = vpack.c.b16 %v1834, %v1833
  %v1844 = vpack.c.b16 %v1836, %v1835
  %1853 = vmatpush.bf16.msra.mxu0 %v1844
  %1854 = vmatpush.bf16.msra.mxu0 %v1843
  %1855 = vmatpush.bf16.msra.mxu0 %v1842
  %1856 = vmatpush.bf16.msra.mxu0 %v1841
  %1857 = vmatpush.bf16.msra.mxu0 %v1840
  %1858 = vmatpush.bf16.msra.mxu0 %v1839
  %1859 = vmatpush.bf16.msra.mxu0 %v1838
  %1860 = vmatpush.bf16.msra.mxu0 %v1837
  %1861 = vmatmul.bf16.gmra.mxu0 %v1789
  %v1862 = vpop.f32.mrf.mxu0
  %v1863 = vadd.f32 0.0, %v1862
  %v1864 = vpop.f32.mrf.mxu0
  %v1865 = vadd.f32 0.0, %v1864
  %1866 = vmatmul.bf16.gmra.mxu0 %v1790
  %v1867 = vpop.f32.mrf.mxu0
  %v1868 = vadd.f32 0.0, %v1867
  %v1869 = vpop.f32.mrf.mxu0
  %v1870 = vadd.f32 0.0, %v1869
  %1871 = vmatmul.bf16.gmra.mxu0 %v1791
  %v1872 = vpop.f32.mrf.mxu0
  %v1873 = vadd.f32 0.0, %v1872
  %v1874 = vpop.f32.mrf.mxu0
  %v1875 = vadd.f32 0.0, %v1874
  %1876 = vmatmul.bf16.gmra.mxu0 %v1792
  %v1877 = vpop.f32.mrf.mxu0
  %v1878 = vadd.f32 0.0, %v1877
  %v1879 = vpop.f32.mrf.mxu0
  %v1880 = vadd.f32 0.0, %v1879
  %1881 = vmatmul.bf16.gmra.mxu0 %v1793
  %v1882 = vpop.f32.mrf.mxu0
  %v1883 = vadd.f32 0.0, %v1882
  %v1884 = vpop.f32.mrf.mxu0
  %v1885 = vadd.f32 0.0, %v1884
  %1886 = vmatmul.bf16.gmra.mxu0 %v1794
  %v1887 = vpop.f32.mrf.mxu0
  %v1888 = vadd.f32 0.0, %v1887
  %v1889 = vpop.f32.mrf.mxu0
  %v1890 = vadd.f32 0.0, %v1889
  %1891 = vmatmul.bf16.gmra.mxu0 %v1795
  %v1892 = vpop.f32.mrf.mxu0
  %v1893 = vadd.f32 0.0, %v1892
  %v1894 = vpop.f32.mrf.mxu0
  %v1895 = vadd.f32 0.0, %v1894
  %1896 = vmatmul.bf16.gmra.mxu0 %v1796
  %v1897 = vpop.f32.mrf.mxu0
  %v1898 = vadd.f32 0.0, %v1897
  %v1899 = vpop.f32.mrf.mxu0
  %v1900 = vadd.f32 0.0, %v1899
  %1901 = vdwg.mxu0
  %v1902 = vadd.f32 %v1708, %v1863
  %v1903 = vadd.f32 %v1709, %v1865
  %v1904 = vadd.f32 %v1710, %v1868
  %v1905 = vadd.f32 %v1711, %v1870
  %v1906 = vadd.f32 %v1712, %v1873
  %v1907 = vadd.f32 %v1713, %v1875
  %v1908 = vadd.f32 %v1714, %v1878
  %v1909 = vadd.f32 %v1715, %v1880
  %v1910 = vadd.f32 %v1716, %v1883
  %v1911 = vadd.f32 %v1717, %v1885
  %v1912 = vadd.f32 %v1718, %v1888
  %v1913 = vadd.f32 %v1719, %v1890
  %v1914 = vadd.f32 %v1720, %v1893
  %v1915 = vadd.f32 %v1721, %v1895
  %v1916 = vadd.f32 %v1722, %v1898
  %v1917 = vadd.f32 %v1723, %v1900
  %v1918 = vld [vmem:[%s0 + $0x8] sm:$0xf]
  %v1919 = vld [vmem:[%s0 + $0xc] sm:$0xf]
  %v1920 = vld [vmem:[%s0 + $0x10] sm:$0xf]
  %v1921 = vld [vmem:[%s0 + $0x14] sm:$0xf]
  %v1922 = vld [vmem:[%s0 + $0x18] sm:$0xf]
  %v1923 = vld [vmem:[%s0 + $0x1c] sm:$0xf]
  %v1924 = vld [vmem:[%s0 + $0x20] sm:$0xf]
  %v1925 = vld [vmem:[%s0 + $0x24] sm:$0xf]
  %v1926 = vld [vmem:[%s0 + $0x28] sm:$0xf]
  %v1927 = vld [vmem:[%s0 + $0x2c] sm:$0xf]
  %v1928 = vld [vmem:[%s0 + $0x30] sm:$0xf]
  %v1929 = vld [vmem:[%s0 + $0x34] sm:$0xf]
  %v1930 = vld [vmem:[%s0 + $0x38] sm:$0xf]
  %v1931 = vld [vmem:[%s0 + $0x3c] sm:$0xf]
  %v1932 = vld [vmem:[%s0 + $0x40] sm:$0xf]
  %v1933 = vld [vmem:[%s0 + $0x44] sm:$0xf]
  %v1934 = vld [vmem:[%s0 + $0x48] sm:$0x1]
  %s1935 = scalar_lea.vmem %s1, 512
  %v1936 = vld [vmem:[%s1935] sm:$0xf]
  %v1937 = vld [vmem:[%s1935 + $0x4] sm:$0xf]
  %v1938 = vld [vmem:[%s1935 + $0x8] sm:$0xf]
  %v1939 = vld [vmem:[%s1935 + $0xc] sm:$0xf]
  %v1940 = vld [vmem:[%s1935 + $0x10] sm:$0xf]
  %v1941 = vld [vmem:[%s1935 + $0x14] sm:$0xf]
  %v1942 = vld [vmem:[%s1935 + $0x18] sm:$0xf]
  %v1943 = vld [vmem:[%s1935 + $0x1c] sm:$0xf]
  %v1944 = vld [vmem:[%s1935 + $0x20] sm:$0xf]
  %v1945 = vld [vmem:[%s1935 + $0x24] sm:$0xf]
  %v1946 = vld [vmem:[%s1935 + $0x28] sm:$0xf]
  %v1947 = vld [vmem:[%s1935 + $0x2c] sm:$0xf]
  %v1948 = vld [vmem:[%s1935 + $0x30] sm:$0xf]
  %v1949 = vld [vmem:[%s1935 + $0x34] sm:$0xf]
  %v1950 = vld [vmem:[%s1935 + $0x38] sm:$0xf]
  %v1951 = vld [vmem:[%s1935 + $0x3c] sm:$0xf]
  %v1969 = vunpack.c.l.b16 %v1918
  %v1970 = vunpack.c.l.b16 %v1919
  %v1971 = vunpack.c.l.b16 %v1920
  %v1972 = vunpack.c.l.b16 %v1921
  %v1973 = vunpack.c.l.b16 %v1922
  %v1974 = vunpack.c.l.b16 %v1923
  %v1975 = vunpack.c.l.b16 %v1924
  %v1976 = vunpack.c.l.b16 %v1925
  %v1977 = vunpack.c.l.b16 %v1926
  %v1978 = vunpack.c.l.b16 %v1927
  %v1979 = vunpack.c.l.b16 %v1928
  %v1980 = vunpack.c.l.b16 %v1929
  %v1981 = vunpack.c.l.b16 %v1930
  %v1982 = vunpack.c.l.b16 %v1931
  %v1983 = vunpack.c.l.b16 %v1932
  %v1984 = vunpack.c.l.b16 %v1933
  %v1985 = vunpack.c.l.b16 %v1934
  %v1986 = vpack.c.b16 %v1970, %v1969
  %v1987 = vpack.c.b16 %v1972, %v1971
  %v1988 = vpack.c.b16 %v1974, %v1973
  %v1989 = vpack.c.b16 %v1976, %v1975
  %v1990 = vpack.c.b16 %v1978, %v1977
  %v1991 = vpack.c.b16 %v1980, %v1979
  %v1992 = vpack.c.b16 %v1982, %v1981
  %v1993 = vpack.c.b16 %v1984, %v1983
  %v1994 = vpack.c.b16 %v1985, %v1985
  %v1996 = vshrl.u32 %v1986, 16
  %v1998 = vshll.u32 %v1986, 16
  %v2000 = vrot.slane %v1998, 1
  %v2001 = vor.u32 %v1996, %v2000
  %v2003 = vshll.u32 %v1987, 16
  %v2005 = vrot.slane %v2003, 1
  %v2006 = vsel %vm684, %v2001, %v2005
  %v2007 = vshrl.u32 %v1987, 16
  %v2009 = vor.u32 %v2007, %v2005
  %v2011 = vshll.u32 %v1988, 16
  %v2013 = vrot.slane %v2011, 1
  %v2014 = vsel %vm684, %v2009, %v2013
  %v2015 = vshrl.u32 %v1988, 16
  %v2017 = vor.u32 %v2015, %v2013
  %v2019 = vshll.u32 %v1989, 16
  %v2021 = vrot.slane %v2019, 1
  %v2022 = vsel %vm684, %v2017, %v2021
  %v2023 = vshrl.u32 %v1989, 16
  %v2025 = vor.u32 %v2023, %v2021
  %v2027 = vshll.u32 %v1990, 16
  %v2029 = vrot.slane %v2027, 1
  %v2030 = vsel %vm684, %v2025, %v2029
  %v2031 = vshrl.u32 %v1990, 16
  %v2033 = vor.u32 %v2031, %v2029
  %v2035 = vshll.u32 %v1991, 16
  %v2037 = vrot.slane %v2035, 1
  %v2038 = vsel %vm684, %v2033, %v2037
  %v2039 = vshrl.u32 %v1991, 16
  %v2041 = vor.u32 %v2039, %v2037
  %v2043 = vshll.u32 %v1992, 16
  %v2045 = vrot.slane %v2043, 1
  %v2046 = vsel %vm684, %v2041, %v2045
  %v2047 = vshrl.u32 %v1992, 16
  %v2049 = vor.u32 %v2047, %v2045
  %v2051 = vshll.u32 %v1993, 16
  %v2053 = vrot.slane %v2051, 1
  %v2054 = vsel %vm684, %v2049, %v2053
  %v2055 = vshrl.u32 %v1993, 16
  %v2057 = vor.u32 %v2055, %v2053
  %v2059 = vshll.u32 %v1994, 16
  %v2061 = vrot.slane %v2059, 1
  %v2062 = vsel %vm684, %v2057, %v2061
  %v2087 = vunpack.c.l.b16 %v1936
  %v2088 = vunpack.c.l.b16 %v1937
  %v2089 = vunpack.c.l.b16 %v1938
  %v2090 = vunpack.c.l.b16 %v1939
  %v2091 = vunpack.c.l.b16 %v1940
  %v2092 = vunpack.c.l.b16 %v1941
  %v2093 = vunpack.c.l.b16 %v1942
  %v2094 = vunpack.c.l.b16 %v1943
  %v2095 = vunpack.c.l.b16 %v1944
  %v2096 = vunpack.c.l.b16 %v1945
  %v2097 = vunpack.c.l.b16 %v1946
  %v2098 = vunpack.c.l.b16 %v1947
  %v2099 = vunpack.c.l.b16 %v1948
  %v2100 = vunpack.c.l.b16 %v1949
  %v2101 = vunpack.c.l.b16 %v1950
  %v2102 = vunpack.c.l.b16 %v1951
  %v2103 = vpack.c.b16 %v2088, %v2087
  %v2104 = vpack.c.b16 %v2090, %v2089
  %v2105 = vpack.c.b16 %v2092, %v2091
  %v2106 = vpack.c.b16 %v2094, %v2093
  %v2107 = vpack.c.b16 %v2096, %v2095
  %v2108 = vpack.c.b16 %v2098, %v2097
  %v2109 = vpack.c.b16 %v2100, %v2099
  %v2110 = vpack.c.b16 %v2102, %v2101
  %2119 = vmatpush.bf16.msra.mxu0 %v2110
  %2120 = vmatpush.bf16.msra.mxu0 %v2109
  %2121 = vmatpush.bf16.msra.mxu0 %v2108
  %2122 = vmatpush.bf16.msra.mxu0 %v2107
  %2123 = vmatpush.bf16.msra.mxu0 %v2106
  %2124 = vmatpush.bf16.msra.mxu0 %v2105
  %2125 = vmatpush.bf16.msra.mxu0 %v2104
  %2126 = vmatpush.bf16.msra.mxu0 %v2103
  %2127 = vmatmul.bf16.gmra.mxu0 %v2006
  %v2128 = vpop.f32.mrf.mxu0
  %v2129 = vadd.f32 0.0, %v2128
  %v2130 = vpop.f32.mrf.mxu0
  %v2131 = vadd.f32 0.0, %v2130
  %2132 = vmatmul.bf16.gmra.mxu0 %v2014
  %v2133 = vpop.f32.mrf.mxu0
  %v2134 = vadd.f32 0.0, %v2133
  %v2135 = vpop.f32.mrf.mxu0
  %v2136 = vadd.f32 0.0, %v2135
  %2137 = vmatmul.bf16.gmra.mxu0 %v2022
  %v2138 = vpop.f32.mrf.mxu0
  %v2139 = vadd.f32 0.0, %v2138
  %v2140 = vpop.f32.mrf.mxu0
  %v2141 = vadd.f32 0.0, %v2140
  %2142 = vmatmul.bf16.gmra.mxu0 %v2030
  %v2143 = vpop.f32.mrf.mxu0
  %v2144 = vadd.f32 0.0, %v2143
  %v2145 = vpop.f32.mrf.mxu0
  %v2146 = vadd.f32 0.0, %v2145
  %2147 = vmatmul.bf16.gmra.mxu0 %v2038
  %v2148 = vpop.f32.mrf.mxu0
  %v2149 = vadd.f32 0.0, %v2148
  %v2150 = vpop.f32.mrf.mxu0
  %v2151 = vadd.f32 0.0, %v2150
  %2152 = vmatmul.bf16.gmra.mxu0 %v2046
  %v2153 = vpop.f32.mrf.mxu0
  %v2154 = vadd.f32 0.0, %v2153
  %v2155 = vpop.f32.mrf.mxu0
  %v2156 = vadd.f32 0.0, %v2155
  %2157 = vmatmul.bf16.gmra.mxu0 %v2054
  %v2158 = vpop.f32.mrf.mxu0
  %v2159 = vadd.f32 0.0, %v2158
  %v2160 = vpop.f32.mrf.mxu0
  %v2161 = vadd.f32 0.0, %v2160
  %2162 = vmatmul.bf16.gmra.mxu0 %v2062
  %v2163 = vpop.f32.mrf.mxu0
  %v2164 = vadd.f32 0.0, %v2163
  %v2165 = vpop.f32.mrf.mxu0
  %v2166 = vadd.f32 0.0, %v2165
  %2167 = vdwg.mxu0
  %v2168 = vadd.f32 %v1902, %v2129
  %v2169 = vadd.f32 %v1903, %v2131
  %v2170 = vadd.f32 %v1904, %v2134
  %v2171 = vadd.f32 %v1905, %v2136
  %v2172 = vadd.f32 %v1906, %v2139
  %v2173 = vadd.f32 %v1907, %v2141
  %v2174 = vadd.f32 %v1908, %v2144
  %v2175 = vadd.f32 %v1909, %v2146
  %v2176 = vadd.f32 %v1910, %v2149
  %v2177 = vadd.f32 %v1911, %v2151
  %v2178 = vadd.f32 %v1912, %v2154
  %v2179 = vadd.f32 %v1913, %v2156
  %v2180 = vadd.f32 %v1914, %v2159
  %v2181 = vadd.f32 %v1915, %v2161
  %v2182 = vadd.f32 %v1916, %v2164
  %v2183 = vadd.f32 %v1917, %v2166
  %v2184 = vld [vmem:[%s2] sm:$0x1]
  %v2186 = vperm.slane %v2184, 0
  %v2188 = vadd.f32 %v2168, %v2186
  %v2189 = vadd.f32 %v2169, %v2186
  %v2190 = vadd.f32 %v2170, %v2186
  %v2191 = vadd.f32 %v2171, %v2186
  %v2192 = vadd.f32 %v2172, %v2186
  %v2193 = vadd.f32 %v2173, %v2186
  %v2194 = vadd.f32 %v2174, %v2186
  %v2195 = vadd.f32 %v2175, %v2186
  %v2196 = vadd.f32 %v2176, %v2186
  %v2197 = vadd.f32 %v2177, %v2186
  %v2198 = vadd.f32 %v2178, %v2186
  %v2199 = vadd.f32 %v2179, %v2186
  %v2200 = vadd.f32 %v2180, %v2186
  %v2201 = vadd.f32 %v2181, %v2186
  %v2202 = vadd.f32 %v2182, %v2186
  %v2203 = vadd.f32 %v2183, %v2186
  %v2204 = vmax.f32 %v2188, 0.0
  %v2205 = vmax.f32 %v2189, 0.0
  %v2206 = vmax.f32 %v2190, 0.0
  %v2207 = vmax.f32 %v2191, 0.0
  %v2208 = vmax.f32 %v2192, 0.0
  %v2209 = vmax.f32 %v2193, 0.0
  %v2210 = vmax.f32 %v2194, 0.0
  %v2211 = vmax.f32 %v2195, 0.0
  %v2212 = vmax.f32 %v2196, 0.0
  %v2213 = vmax.f32 %v2197, 0.0
  %v2214 = vmax.f32 %v2198, 0.0
  %v2215 = vmax.f32 %v2199, 0.0
  %v2216 = vmax.f32 %v2200, 0.0
  %v2217 = vmax.f32 %v2201, 0.0
  %v2218 = vmax.f32 %v2202, 0.0
  %v2219 = vmax.f32 %v2203, 0.0
  %v2220 = vsel %vm235, 1, 0
  %v2221 = vsel %vm236, 1, 0
  %v2222 = vsel %vm237, 1, 0
  %v2223 = vsel %vm238, 1, 0
  %v2224 = vsel %vm239, 1, 0
  %v2225 = vsel %vm240, 1, 0
  %v2226 = vsel %vm241, 1, 0
  %v2227 = vsel %vm242, 1, 0
  %v2228 = vsel %vm243, 1, 0
  %v2229 = vsel %vm244, 1, 0
  %v2230 = vsel %vm245, 1, 0
  %v2231 = vsel %vm246, 1, 0
  %v2232 = vsel %vm247, 1, 0
  %v2233 = vsel %vm248, 1, 0
  %v2234 = vsel %vm249, 1, 0
  %v2235 = vsel %vm250, 1, 0
  %vm2236 = vcmp.eq.s32.totalorder %v2220, 1
  %vm2237 = vcmp.eq.s32.totalorder %v2221, 1
  %vm2238 = vcmp.eq.s32.totalorder %v2222, 1
  %vm2239 = vcmp.eq.s32.totalorder %v2223, 1
  %vm2240 = vcmp.eq.s32.totalorder %v2224, 1
  %vm2241 = vcmp.eq.s32.totalorder %v2225, 1
  %vm2242 = vcmp.eq.s32.totalorder %v2226, 1
  %vm2243 = vcmp.eq.s32.totalorder %v2227, 1
  %vm2244 = vcmp.eq.s32.totalorder %v2228, 1
  %vm2245 = vcmp.eq.s32.totalorder %v2229, 1
  %vm2246 = vcmp.eq.s32.totalorder %v2230, 1
  %vm2247 = vcmp.eq.s32.totalorder %v2231, 1
  %vm2248 = vcmp.eq.s32.totalorder %v2232, 1
  %vm2249 = vcmp.eq.s32.totalorder %v2233, 1
  %vm2250 = vcmp.eq.s32.totalorder %v2234, 1
  %vm2251 = vcmp.eq.s32.totalorder %v2235, 1
  %v2252 = vsel %vm2236, %v2204, 0.0
  %v2253 = vsel %vm2237, %v2205, 0.0
  %v2254 = vsel %vm2238, %v2206, 0.0
  %v2255 = vsel %vm2239, %v2207, 0.0
  %v2256 = vsel %vm2240, %v2208, 0.0
  %v2257 = vsel %vm2241, %v2209, 0.0
  %v2258 = vsel %vm2242, %v2210, 0.0
  %v2259 = vsel %vm2243, %v2211, 0.0
  %v2260 = vsel %vm2244, %v2212, 0.0
  %v2261 = vsel %vm2245, %v2213, 0.0
  %v2262 = vsel %vm2246, %v2214, 0.0
  %v2263 = vsel %vm2247, %v2215, 0.0
  %v2264 = vsel %vm2248, %v2216, 0.0
  %v2265 = vsel %vm2249, %v2217, 0.0
  %v2266 = vsel %vm2250, %v2218, 0.0
  %v2267 = vsel %vm2251, %v2219, 0.0
  %2268 = vst [vmem:[#allocation2] sm:$0xff] 0.0
  %2269 = vst [vmem:[#allocation2 + $0x8] sm:$0xff] 0.0
  %2270 = vst [vmem:[#allocation2 + $0x10] sm:$0xff] 0.0
  %2271 = vst [vmem:[#allocation2 + $0x98] sm:$0xff] 0.0
  %2272 = vst [vmem:[#allocation2 + $0xa0] sm:$0xff] 0.0
  %2273 = vst [vmem:[#allocation2 + $0xa8] sm:$0xff] 0.0
  %2274 = vst [vmem:[#allocation2 + $0x18] sm:$0xff] %v2252
  %2275 = vst [vmem:[#allocation2 + $0x20] sm:$0xff] %v2253
  %2276 = vst [vmem:[#allocation2 + $0x28] sm:$0xff] %v2254
  %2277 = vst [vmem:[#allocation2 + $0x30] sm:$0xff] %v2255
  %2278 = vst [vmem:[#allocation2 + $0x38] sm:$0xff] %v2256
  %2279 = vst [vmem:[#allocation2 + $0x40] sm:$0xff] %v2257
  %2280 = vst [vmem:[#allocation2 + $0x48] sm:$0xff] %v2258
  %2281 = vst [vmem:[#allocation2 + $0x50] sm:$0xff] %v2259
  %2282 = vst [vmem:[#allocation2 + $0x58] sm:$0xff] %v2260
  %2283 = vst [vmem:[#allocation2 + $0x60] sm:$0xff] %v2261
  %2284 = vst [vmem:[#allocation2 + $0x68] sm:$0xff] %v2262
  %2285 = vst [vmem:[#allocation2 + $0x70] sm:$0xff] %v2263
  %2286 = vst [vmem:[#allocation2 + $0x78] sm:$0xff] %v2264
  %2287 = vst [vmem:[#allocation2 + $0x80] sm:$0xff] %v2265
  %2288 = vst [vmem:[#allocation2 + $0x88] sm:$0xff] %v2266
  %2289 = vst [vmem:[#allocation2 + $0x90] sm:$0xff] %v2267
  %v2290 = vld [vmem:[#allocation2 + $0x7] sm:$0xff]
  %v2291 = vld [vmem:[#allocation2 + $0xf] sm:$0xff]
  %v2292 = vld [vmem:[#allocation2 + $0x17] sm:$0xff]
  %v2293 = vld [vmem:[#allocation2 + $0x1f] sm:$0xff]
  %v2294 = vld [vmem:[#allocation2 + $0x27] sm:$0xff]
  %v2295 = vld [vmem:[#allocation2 + $0x2f] sm:$0xff]
  %v2296 = vld [vmem:[#allocation2 + $0x37] sm:$0xff]
  %v2297 = vld [vmem:[#allocation2 + $0x3f] sm:$0xff]
  %v2298 = vld [vmem:[#allocation2 + $0x47] sm:$0xff]
  %v2299 = vld [vmem:[#allocation2 + $0x4f] sm:$0xff]
  %v2300 = vld [vmem:[#allocation2 + $0x57] sm:$0xff]
  %v2301 = vld [vmem:[#allocation2 + $0x5f] sm:$0xff]
  %v2302 = vld [vmem:[#allocation2 + $0x67] sm:$0xff]
  %v2303 = vld [vmem:[#allocation2 + $0x6f] sm:$0xff]
  %v2304 = vld [vmem:[#allocation2 + $0x77] sm:$0xff]
  %v2305 = vld [vmem:[#allocation2 + $0x7f] sm:$0xff]
  %v2306 = vpack.c.bf16 %v2291, %v2290
  %v2307 = vpack.c.bf16 %v2293, %v2292
  %v2308 = vpack.c.bf16 %v2295, %v2294
  %v2309 = vpack.c.bf16 %v2297, %v2296
  %v2310 = vpack.c.bf16 %v2299, %v2298
  %v2311 = vpack.c.bf16 %v2301, %v2300
  %v2312 = vpack.c.bf16 %v2303, %v2302
  %v2313 = vpack.c.bf16 %v2305, %v2304
  %v2314 = vld [vmem:[%s3] sm:$0xf]
  %v2315 = vld [vmem:[%s3 + $0x4] sm:$0xf]
  %v2316 = vld [vmem:[%s3 + $0x8] sm:$0xf]
  %v2317 = vld [vmem:[%s3 + $0xc] sm:$0xf]
  %v2318 = vld [vmem:[%s3 + $0x10] sm:$0xf]
  %v2319 = vld [vmem:[%s3 + $0x14] sm:$0xf]
  %v2320 = vld [vmem:[%s3 + $0x18] sm:$0xf]
  %v2321 = vld [vmem:[%s3 + $0x1c] sm:$0xf]
  %v2322 = vld [vmem:[%s3 + $0x20] sm:$0xf]
  %v2323 = vld [vmem:[%s3 + $0x24] sm:$0xf]
  %v2324 = vld [vmem:[%s3 + $0x28] sm:$0xf]
  %v2325 = vld [vmem:[%s3 + $0x2c] sm:$0xf]
  %v2326 = vld [vmem:[%s3 + $0x30] sm:$0xf]
  %v2327 = vld [vmem:[%s3 + $0x34] sm:$0xf]
  %v2328 = vld [vmem:[%s3 + $0x38] sm:$0xf]
  %v2329 = vld [vmem:[%s3 + $0x3c] sm:$0xf]
  %v2330 = vld [vmem:[#allocation2 + $0x8] sm:$0xff]
  %v2331 = vld [vmem:[#allocation2 + $0x10] sm:$0xff]
  %v2332 = vld [vmem:[#allocation2 + $0x18] sm:$0xff]
  %v2333 = vld [vmem:[#allocation2 + $0x20] sm:$0xff]
  %v2334 = vld [vmem:[#allocation2 + $0x28] sm:$0xff]
  %v2335 = vld [vmem:[#allocation2 + $0x30] sm:$0xff]
  %v2336 = vld [vmem:[#allocation2 + $0x38] sm:$0xff]
  %v2337 = vld [vmem:[#allocation2 + $0x40] sm:$0xff]
  %v2338 = vld [vmem:[#allocation2 + $0x48] sm:$0xff]
  %v2339 = vld [vmem:[#allocation2 + $0x50] sm:$0xff]
  %v2340 = vld [vmem:[#allocation2 + $0x58] sm:$0xff]
  %v2341 = vld [vmem:[#allocation2 + $0x60] sm:$0xff]
  %v2342 = vld [vmem:[#allocation2 + $0x68] sm:$0xff]
  %v2343 = vld [vmem:[#allocation2 + $0x70] sm:$0xff]
  %v2344 = vld [vmem:[#allocation2 + $0x78] sm:$0xff]
  %v2345 = vld [vmem:[#allocation2 + $0x80] sm:$0xff]
  %v2346 = vpack.c.bf16 %v2331, %v2330
  %v2347 = vpack.c.bf16 %v2333, %v2332
  %v2348 = vpack.c.bf16 %v2335, %v2334
  %v2349 = vpack.c.bf16 %v2337, %v2336
  %v2350 = vpack.c.bf16 %v2339, %v2338
  %v2351 = vpack.c.bf16 %v2341, %v2340
  %v2352 = vpack.c.bf16 %v2343, %v2342
  %v2353 = vpack.c.bf16 %v2345, %v2344
  %s2354 = scalar_lea.vmem %s3, 64
  %v2355 = vld [vmem:[%s2354] sm:$0xf]
  %v2356 = vld [vmem:[%s2354 + $0x4] sm:$0xf]
  %v2357 = vld [vmem:[%s2354 + $0x8] sm:$0xf]
  %v2358 = vld [vmem:[%s2354 + $0xc] sm:$0xf]
  %v2359 = vld [vmem:[%s2354 + $0x10] sm:$0xf]
  %v2360 = vld [vmem:[%s2354 + $0x14] sm:$0xf]
  %v2361 = vld [vmem:[%s2354 + $0x18] sm:$0xf]
  %v2362 = vld [vmem:[%s2354 + $0x1c] sm:$0xf]
  %v2363 = vld [vmem:[%s2354 + $0x20] sm:$0xf]
  %v2364 = vld [vmem:[%s2354 + $0x24] sm:$0xf]
  %v2365 = vld [vmem:[%s2354 + $0x28] sm:$0xf]
  %v2366 = vld [vmem:[%s2354 + $0x2c] sm:$0xf]
  %v2367 = vld [vmem:[%s2354 + $0x30] sm:$0xf]
  %v2368 = vld [vmem:[%s2354 + $0x34] sm:$0xf]
  %v2369 = vld [vmem:[%s2354 + $0x38] sm:$0xf]
  %v2370 = vld [vmem:[%s2354 + $0x3c] sm:$0xf]
  %v2387 = vunpack.c.l.b16 %v2355
  %v2388 = vunpack.c.l.b16 %v2356
  %v2389 = vunpack.c.l.b16 %v2357
  %v2390 = vunpack.c.l.b16 %v2358
  %v2391 = vunpack.c.l.b16 %v2359
  %v2392 = vunpack.c.l.b16 %v2360
  %v2393 = vunpack.c.l.b16 %v2361
  %v2394 = vunpack.c.l.b16 %v2362
  %v2395 = vunpack.c.l.b16 %v2363
  %v2396 = vunpack.c.l.b16 %v2364
  %v2397 = vunpack.c.l.b16 %v2365
  %v2398 = vunpack.c.l.b16 %v2366
  %v2399 = vunpack.c.l.b16 %v2367
  %v2400 = vunpack.c.l.b16 %v2368
  %v2401 = vunpack.c.l.b16 %v2369
  %v2402 = vunpack.c.l.b16 %v2370
  %v2403 = vpack.c.b16 %v2388, %v2387
  %v2404 = vpack.c.b16 %v2390, %v2389
  %v2405 = vpack.c.b16 %v2392, %v2391
  %v2406 = vpack.c.b16 %v2394, %v2393
  %v2407 = vpack.c.b16 %v2396, %v2395
  %v2408 = vpack.c.b16 %v2398, %v2397
  %v2409 = vpack.c.b16 %v2400, %v2399
  %v2410 = vpack.c.b16 %v2402, %v2401
  %2419 = vmatpush.bf16.msra.mxu0 %v2410
  %2420 = vmatpush.bf16.msra.mxu0 %v2409
  %2421 = vmatpush.bf16.msra.mxu0 %v2408
  %2422 = vmatpush.bf16.msra.mxu0 %v2407
  %2423 = vmatpush.bf16.msra.mxu0 %v2406
  %2424 = vmatpush.bf16.msra.mxu0 %v2405
  %2425 = vmatpush.bf16.msra.mxu0 %v2404
  %2426 = vmatpush.bf16.msra.mxu0 %v2403
  %2427 = vmatmul.bf16.gmra.mxu0 %v2346
  %v2428 = vpop.f32.mrf.mxu0
  %v2429 = vadd.f32 0.0, %v2428
  %v2430 = vpop.f32.mrf.mxu0
  %v2431 = vadd.f32 0.0, %v2430
  %2432 = vmatmul.bf16.gmra.mxu0 %v2347
  %v2433 = vpop.f32.mrf.mxu0
  %v2434 = vadd.f32 0.0, %v2433
  %v2435 = vpop.f32.mrf.mxu0
  %v2436 = vadd.f32 0.0, %v2435
  %2437 = vmatmul.bf16.gmra.mxu0 %v2348
  %v2438 = vpop.f32.mrf.mxu0
  %v2439 = vadd.f32 0.0, %v2438
  %v2440 = vpop.f32.mrf.mxu0
  %v2441 = vadd.f32 0.0, %v2440
  %2442 = vmatmul.bf16.gmra.mxu0 %v2349
  %v2443 = vpop.f32.mrf.mxu0
  %v2444 = vadd.f32 0.0, %v2443
  %v2445 = vpop.f32.mrf.mxu0
  %v2446 = vadd.f32 0.0, %v2445
  %2447 = vmatmul.bf16.gmra.mxu0 %v2350
  %v2448 = vpop.f32.mrf.mxu0
  %v2449 = vadd.f32 0.0, %v2448
  %v2450 = vpop.f32.mrf.mxu0
  %v2451 = vadd.f32 0.0, %v2450
  %2452 = vmatmul.bf16.gmra.mxu0 %v2351
  %v2453 = vpop.f32.mrf.mxu0
  %v2454 = vadd.f32 0.0, %v2453
  %v2455 = vpop.f32.mrf.mxu0
  %v2456 = vadd.f32 0.0, %v2455
  %2457 = vmatmul.bf16.gmra.mxu0 %v2352
  %v2458 = vpop.f32.mrf.mxu0
  %v2459 = vadd.f32 0.0, %v2458
  %v2460 = vpop.f32.mrf.mxu0
  %v2461 = vadd.f32 0.0, %v2460
  %2462 = vmatmul.bf16.gmra.mxu0 %v2353
  %v2463 = vpop.f32.mrf.mxu0
  %v2464 = vadd.f32 0.0, %v2463
  %v2465 = vpop.f32.mrf.mxu0
  %v2466 = vadd.f32 0.0, %v2465
  %2467 = vdwg.mxu0
  %v2484 = vunpack.c.l.b16 %v2314
  %v2485 = vunpack.c.l.b16 %v2315
  %v2486 = vunpack.c.l.b16 %v2316
  %v2487 = vunpack.c.l.b16 %v2317
  %v2488 = vunpack.c.l.b16 %v2318
  %v2489 = vunpack.c.l.b16 %v2319
  %v2490 = vunpack.c.l.b16 %v2320
  %v2491 = vunpack.c.l.b16 %v2321
  %v2492 = vunpack.c.l.b16 %v2322
  %v2493 = vunpack.c.l.b16 %v2323
  %v2494 = vunpack.c.l.b16 %v2324
  %v2495 = vunpack.c.l.b16 %v2325
  %v2496 = vunpack.c.l.b16 %v2326
  %v2497 = vunpack.c.l.b16 %v2327
  %v2498 = vunpack.c.l.b16 %v2328
  %v2499 = vunpack.c.l.b16 %v2329
  %v2500 = vpack.c.b16 %v2485, %v2484
  %v2501 = vpack.c.b16 %v2487, %v2486
  %v2502 = vpack.c.b16 %v2489, %v2488
  %v2503 = vpack.c.b16 %v2491, %v2490
  %v2504 = vpack.c.b16 %v2493, %v2492
  %v2505 = vpack.c.b16 %v2495, %v2494
  %v2506 = vpack.c.b16 %v2497, %v2496
  %v2507 = vpack.c.b16 %v2499, %v2498
  %2516 = vmatpush.bf16.msra.mxu0 %v2507
  %2517 = vmatpush.bf16.msra.mxu0 %v2506
  %2518 = vmatpush.bf16.msra.mxu0 %v2505
  %2519 = vmatpush.bf16.msra.mxu0 %v2504
  %2520 = vmatpush.bf16.msra.mxu0 %v2503
  %2521 = vmatpush.bf16.msra.mxu0 %v2502
  %2522 = vmatpush.bf16.msra.mxu0 %v2501
  %2523 = vmatpush.bf16.msra.mxu0 %v2500
  %2524 = vmatmul.bf16.gmra.mxu0 %v2306
  %v2525 = vpop.f32.mrf.mxu0
  %v2526 = vadd.f32 %v2429, %v2525
  %v2527 = vpop.f32.mrf.mxu0
  %v2528 = vadd.f32 %v2431, %v2527
  %2529 = vmatmul.bf16.gmra.mxu0 %v2307
  %v2530 = vpop.f32.mrf.mxu0
  %v2531 = vadd.f32 %v2434, %v2530
  %v2532 = vpop.f32.mrf.mxu0
  %v2533 = vadd.f32 %v2436, %v2532
  %2534 = vmatmul.bf16.gmra.mxu0 %v2308
  %v2535 = vpop.f32.mrf.mxu0
  %v2536 = vadd.f32 %v2439, %v2535
  %v2537 = vpop.f32.mrf.mxu0
  %v2538 = vadd.f32 %v2441, %v2537
  %2539 = vmatmul.bf16.gmra.mxu0 %v2309
  %v2540 = vpop.f32.mrf.mxu0
  %v2541 = vadd.f32 %v2444, %v2540
  %v2542 = vpop.f32.mrf.mxu0
  %v2543 = vadd.f32 %v2446, %v2542
  %2544 = vmatmul.bf16.gmra.mxu0 %v2310
  %v2545 = vpop.f32.mrf.mxu0
  %v2546 = vadd.f32 %v2449, %v2545
  %v2547 = vpop.f32.mrf.mxu0
  %v2548 = vadd.f32 %v2451, %v2547
  %2549 = vmatmul.bf16.gmra.mxu0 %v2311
  %v2550 = vpop.f32.mrf.mxu0
  %v2551 = vadd.f32 %v2454, %v2550
  %v2552 = vpop.f32.mrf.mxu0
  %v2553 = vadd.f32 %v2456, %v2552
  %2554 = vmatmul.bf16.gmra.mxu0 %v2312
  %v2555 = vpop.f32.mrf.mxu0
  %v2556 = vadd.f32 %v2459, %v2555
  %v2557 = vpop.f32.mrf.mxu0
  %v2558 = vadd.f32 %v2461, %v2557
  %2559 = vmatmul.bf16.gmra.mxu0 %v2313
  %v2560 = vpop.f32.mrf.mxu0
  %v2561 = vadd.f32 %v2464, %v2560
  %v2562 = vpop.f32.mrf.mxu0
  %v2563 = vadd.f32 %v2466, %v2562
  %2564 = vdwg.mxu0
  %v2565 = vld [vmem:[#allocation2 + $0x9] sm:$0xff]
  %v2566 = vld [vmem:[#allocation2 + $0x11] sm:$0xff]
  %v2567 = vld [vmem:[#allocation2 + $0x19] sm:$0xff]
  %v2568 = vld [vmem:[#allocation2 + $0x21] sm:$0xff]
  %v2569 = vld [vmem:[#allocation2 + $0x29] sm:$0xff]
  %v2570 = vld [vmem:[#allocation2 + $0x31] sm:$0xff]
  %v2571 = vld [vmem:[#allocation2 + $0x39] sm:$0xff]
  %v2572 = vld [vmem:[#allocation2 + $0x41] sm:$0xff]
  %v2573 = vld [vmem:[#allocation2 + $0x49] sm:$0xff]
  %v2574 = vld [vmem:[#allocation2 + $0x51] sm:$0xff]
  %v2575 = vld [vmem:[#allocation2 + $0x59] sm:$0xff]
  %v2576 = vld [vmem:[#allocation2 + $0x61] sm:$0xff]
  %v2577 = vld [vmem:[#allocation2 + $0x69] sm:$0xff]
  %v2578 = vld [vmem:[#allocation2 + $0x71] sm:$0xff]
  %v2579 = vld [vmem:[#allocation2 + $0x79] sm:$0xff]
  %v2580 = vld [vmem:[#allocation2 + $0x81] sm:$0xff]
  %v2581 = vpack.c.bf16 %v2566, %v2565
  %v2582 = vpack.c.bf16 %v2568, %v2567
  %v2583 = vpack.c.bf16 %v2570, %v2569
  %v2584 = vpack.c.bf16 %v2572, %v2571
  %v2585 = vpack.c.bf16 %v2574, %v2573
  %v2586 = vpack.c.bf16 %v2576, %v2575
  %v2587 = vpack.c.bf16 %v2578, %v2577
  %v2588 = vpack.c.bf16 %v2580, %v2579
  %s2589 = scalar_lea.vmem %s3, 128
  %v2590 = vld [vmem:[%s2589] sm:$0xf]
  %v2591 = vld [vmem:[%s2589 + $0x4] sm:$0xf]
  %v2592 = vld [vmem:[%s2589 + $0x8] sm:$0xf]
  %v2593 = vld [vmem:[%s2589 + $0xc] sm:$0xf]
  %v2594 = vld [vmem:[%s2589 + $0x10] sm:$0xf]
  %v2595 = vld [vmem:[%s2589 + $0x14] sm:$0xf]
  %v2596 = vld [vmem:[%s2589 + $0x18] sm:$0xf]
  %v2597 = vld [vmem:[%s2589 + $0x1c] sm:$0xf]
  %v2598 = vld [vmem:[%s2589 + $0x20] sm:$0xf]
  %v2599 = vld [vmem:[%s2589 + $0x24] sm:$0xf]
  %v2600 = vld [vmem:[%s2589 + $0x28] sm:$0xf]
  %v2601 = vld [vmem:[%s2589 + $0x2c] sm:$0xf]
  %v2602 = vld [vmem:[%s2589 + $0x30] sm:$0xf]
  %v2603 = vld [vmem:[%s2589 + $0x34] sm:$0xf]
  %v2604 = vld [vmem:[%s2589 + $0x38] sm:$0xf]
  %v2605 = vld [vmem:[%s2589 + $0x3c] sm:$0xf]
  %v2622 = vunpack.c.l.b16 %v2590
  %v2623 = vunpack.c.l.b16 %v2591
  %v2624 = vunpack.c.l.b16 %v2592
  %v2625 = vunpack.c.l.b16 %v2593
  %v2626 = vunpack.c.l.b16 %v2594
  %v2627 = vunpack.c.l.b16 %v2595
  %v2628 = vunpack.c.l.b16 %v2596
  %v2629 = vunpack.c.l.b16 %v2597
  %v2630 = vunpack.c.l.b16 %v2598
  %v2631 = vunpack.c.l.b16 %v2599
  %v2632 = vunpack.c.l.b16 %v2600
  %v2633 = vunpack.c.l.b16 %v2601
  %v2634 = vunpack.c.l.b16 %v2602
  %v2635 = vunpack.c.l.b16 %v2603
  %v2636 = vunpack.c.l.b16 %v2604
  %v2637 = vunpack.c.l.b16 %v2605
  %v2638 = vpack.c.b16 %v2623, %v2622
  %v2639 = vpack.c.b16 %v2625, %v2624
  %v2640 = vpack.c.b16 %v2627, %v2626
  %v2641 = vpack.c.b16 %v2629, %v2628
  %v2642 = vpack.c.b16 %v2631, %v2630
  %v2643 = vpack.c.b16 %v2633, %v2632
  %v2644 = vpack.c.b16 %v2635, %v2634
  %v2645 = vpack.c.b16 %v2637, %v2636
  %2654 = vmatpush.bf16.msra.mxu0 %v2645
  %2655 = vmatpush.bf16.msra.mxu0 %v2644
  %2656 = vmatpush.bf16.msra.mxu0 %v2643
  %2657 = vmatpush.bf16.msra.mxu0 %v2642
  %2658 = vmatpush.bf16.msra.mxu0 %v2641
  %2659 = vmatpush.bf16.msra.mxu0 %v2640
  %2660 = vmatpush.bf16.msra.mxu0 %v2639
  %2661 = vmatpush.bf16.msra.mxu0 %v2638
  %2662 = vmatmul.bf16.gmra.mxu0 %v2581
  %v2663 = vpop.f32.mrf.mxu0
  %v2664 = vadd.f32 0.0, %v2663
  %v2665 = vpop.f32.mrf.mxu0
  %v2666 = vadd.f32 0.0, %v2665
  %2667 = vmatmul.bf16.gmra.mxu0 %v2582
  %v2668 = vpop.f32.mrf.mxu0
  %v2669 = vadd.f32 0.0, %v2668
  %v2670 = vpop.f32.mrf.mxu0
  %v2671 = vadd.f32 0.0, %v2670
  %2672 = vmatmul.bf16.gmra.mxu0 %v2583
  %v2673 = vpop.f32.mrf.mxu0
  %v2674 = vadd.f32 0.0, %v2673
  %v2675 = vpop.f32.mrf.mxu0
  %v2676 = vadd.f32 0.0, %v2675
  %2677 = vmatmul.bf16.gmra.mxu0 %v2584
  %v2678 = vpop.f32.mrf.mxu0
  %v2679 = vadd.f32 0.0, %v2678
  %v2680 = vpop.f32.mrf.mxu0
  %v2681 = vadd.f32 0.0, %v2680
  %2682 = vmatmul.bf16.gmra.mxu0 %v2585
  %v2683 = vpop.f32.mrf.mxu0
  %v2684 = vadd.f32 0.0, %v2683
  %v2685 = vpop.f32.mrf.mxu0
  %v2686 = vadd.f32 0.0, %v2685
  %2687 = vmatmul.bf16.gmra.mxu0 %v2586
  %v2688 = vpop.f32.mrf.mxu0
  %v2689 = vadd.f32 0.0, %v2688
  %v2690 = vpop.f32.mrf.mxu0
  %v2691 = vadd.f32 0.0, %v2690
  %2692 = vmatmul.bf16.gmra.mxu0 %v2587
  %v2693 = vpop.f32.mrf.mxu0
  %v2694 = vadd.f32 0.0, %v2693
  %v2695 = vpop.f32.mrf.mxu0
  %v2696 = vadd.f32 0.0, %v2695
  %2697 = vmatmul.bf16.gmra.mxu0 %v2588
  %v2698 = vpop.f32.mrf.mxu0
  %v2699 = vadd.f32 0.0, %v2698
  %v2700 = vpop.f32.mrf.mxu0
  %v2701 = vadd.f32 0.0, %v2700
  %2702 = vdwg.mxu0
  %v2703 = vadd.f32 %v2526, %v2664
  %v2704 = vadd.f32 %v2528, %v2666
  %v2705 = vadd.f32 %v2531, %v2669
  %v2706 = vadd.f32 %v2533, %v2671
  %v2707 = vadd.f32 %v2536, %v2674
  %v2708 = vadd.f32 %v2538, %v2676
  %v2709 = vadd.f32 %v2541, %v2679
  %v2710 = vadd.f32 %v2543, %v2681
  %v2711 = vadd.f32 %v2546, %v2684
  %v2712 = vadd.f32 %v2548, %v2686
  %v2713 = vadd.f32 %v2551, %v2689
  %v2714 = vadd.f32 %v2553, %v2691
  %v2715 = vadd.f32 %v2556, %v2694
  %v2716 = vadd.f32 %v2558, %v2696
  %v2717 = vadd.f32 %v2561, %v2699
  %v2718 = vadd.f32 %v2563, %v2701
  %v2719 = vld [vmem:[#allocation2 + $0x17] sm:$0xff]
  %v2720 = vld [vmem:[#allocation2 + $0x1f] sm:$0xff]
  %v2721 = vld [vmem:[#allocation2 + $0x27] sm:$0xff]
  %v2722 = vld [vmem:[#allocation2 + $0x2f] sm:$0xff]
  %v2723 = vld [vmem:[#allocation2 + $0x37] sm:$0xff]
  %v2724 = vld [vmem:[#allocation2 + $0x3f] sm:$0xff]
  %v2725 = vld [vmem:[#allocation2 + $0x47] sm:$0xff]
  %v2726 = vld [vmem:[#allocation2 + $0x4f] sm:$0xff]
  %v2727 = vld [vmem:[#allocation2 + $0x57] sm:$0xff]
  %v2728 = vld [vmem:[#allocation2 + $0x5f] sm:$0xff]
  %v2729 = vld [vmem:[#allocation2 + $0x67] sm:$0xff]
  %v2730 = vld [vmem:[#allocation2 + $0x6f] sm:$0xff]
  %v2731 = vld [vmem:[#allocation2 + $0x77] sm:$0xff]
  %v2732 = vld [vmem:[#allocation2 + $0x7f] sm:$0xff]
  %v2733 = vld [vmem:[#allocation2 + $0x87] sm:$0xff]
  %v2734 = vld [vmem:[#allocation2 + $0x8f] sm:$0xff]
  %v2735 = vpack.c.bf16 %v2720, %v2719
  %v2736 = vpack.c.bf16 %v2722, %v2721
  %v2737 = vpack.c.bf16 %v2724, %v2723
  %v2738 = vpack.c.bf16 %v2726, %v2725
  %v2739 = vpack.c.bf16 %v2728, %v2727
  %v2740 = vpack.c.bf16 %v2730, %v2729
  %v2741 = vpack.c.bf16 %v2732, %v2731
  %v2742 = vpack.c.bf16 %v2734, %v2733
  %s2743 = scalar_lea.vmem %s3, 192
  %v2744 = vld [vmem:[%s2743] sm:$0xf]
  %v2745 = vld [vmem:[%s2743 + $0x4] sm:$0xf]
  %v2746 = vld [vmem:[%s2743 + $0x8] sm:$0xf]
  %v2747 = vld [vmem:[%s2743 + $0xc] sm:$0xf]
  %v2748 = vld [vmem:[%s2743 + $0x10] sm:$0xf]
  %v2749 = vld [vmem:[%s2743 + $0x14] sm:$0xf]
  %v2750 = vld [vmem:[%s2743 + $0x18] sm:$0xf]
  %v2751 = vld [vmem:[%s2743 + $0x1c] sm:$0xf]
  %v2752 = vld [vmem:[%s2743 + $0x20] sm:$0xf]
  %v2753 = vld [vmem:[%s2743 + $0x24] sm:$0xf]
  %v2754 = vld [vmem:[%s2743 + $0x28] sm:$0xf]
  %v2755 = vld [vmem:[%s2743 + $0x2c] sm:$0xf]
  %v2756 = vld [vmem:[%s2743 + $0x30] sm:$0xf]
  %v2757 = vld [vmem:[%s2743 + $0x34] sm:$0xf]
  %v2758 = vld [vmem:[%s2743 + $0x38] sm:$0xf]
  %v2759 = vld [vmem:[%s2743 + $0x3c] sm:$0xf]
  %v2776 = vunpack.c.l.b16 %v2744
  %v2777 = vunpack.c.l.b16 %v2745
  %v2778 = vunpack.c.l.b16 %v2746
  %v2779 = vunpack.c.l.b16 %v2747
  %v2780 = vunpack.c.l.b16 %v2748
  %v2781 = vunpack.c.l.b16 %v2749
  %v2782 = vunpack.c.l.b16 %v2750
  %v2783 = vunpack.c.l.b16 %v2751
  %v2784 = vunpack.c.l.b16 %v2752
  %v2785 = vunpack.c.l.b16 %v2753
  %v2786 = vunpack.c.l.b16 %v2754
  %v2787 = vunpack.c.l.b16 %v2755
  %v2788 = vunpack.c.l.b16 %v2756
  %v2789 = vunpack.c.l.b16 %v2757
  %v2790 = vunpack.c.l.b16 %v2758
  %v2791 = vunpack.c.l.b16 %v2759
  %v2792 = vpack.c.b16 %v2777, %v2776
  %v2793 = vpack.c.b16 %v2779, %v2778
  %v2794 = vpack.c.b16 %v2781, %v2780
  %v2795 = vpack.c.b16 %v2783, %v2782
  %v2796 = vpack.c.b16 %v2785, %v2784
  %v2797 = vpack.c.b16 %v2787, %v2786
  %v2798 = vpack.c.b16 %v2789, %v2788
  %v2799 = vpack.c.b16 %v2791, %v2790
  %2808 = vmatpush.bf16.msra.mxu0 %v2799
  %2809 = vmatpush.bf16.msra.mxu0 %v2798
  %2810 = vmatpush.bf16.msra.mxu0 %v2797
  %2811 = vmatpush.bf16.msra.mxu0 %v2796
  %2812 = vmatpush.bf16.msra.mxu0 %v2795
  %2813 = vmatpush.bf16.msra.mxu0 %v2794
  %2814 = vmatpush.bf16.msra.mxu0 %v2793
  %2815 = vmatpush.bf16.msra.mxu0 %v2792
  %2816 = vmatmul.bf16.gmra.mxu0 %v2735
  %v2817 = vpop.f32.mrf.mxu0
  %v2818 = vadd.f32 0.0, %v2817
  %v2819 = vpop.f32.mrf.mxu0
  %v2820 = vadd.f32 0.0, %v2819
  %2821 = vmatmul.bf16.gmra.mxu0 %v2736
  %v2822 = vpop.f32.mrf.mxu0
  %v2823 = vadd.f32 0.0, %v2822
  %v2824 = vpop.f32.mrf.mxu0
  %v2825 = vadd.f32 0.0, %v2824
  %2826 = vmatmul.bf16.gmra.mxu0 %v2737
  %v2827 = vpop.f32.mrf.mxu0
  %v2828 = vadd.f32 0.0, %v2827
  %v2829 = vpop.f32.mrf.mxu0
  %v2830 = vadd.f32 0.0, %v2829
  %2831 = vmatmul.bf16.gmra.mxu0 %v2738
  %v2832 = vpop.f32.mrf.mxu0
  %v2833 = vadd.f32 0.0, %v2832
  %v2834 = vpop.f32.mrf.mxu0
  %v2835 = vadd.f32 0.0, %v2834
  %2836 = vmatmul.bf16.gmra.mxu0 %v2739
  %v2837 = vpop.f32.mrf.mxu0
  %v2838 = vadd.f32 0.0, %v2837
  %v2839 = vpop.f32.mrf.mxu0
  %v2840 = vadd.f32 0.0, %v2839
  %2841 = vmatmul.bf16.gmra.mxu0 %v2740
  %v2842 = vpop.f32.mrf.mxu0
  %v2843 = vadd.f32 0.0, %v2842
  %v2844 = vpop.f32.mrf.mxu0
  %v2845 = vadd.f32 0.0, %v2844
  %2846 = vmatmul.bf16.gmra.mxu0 %v2741
  %v2847 = vpop.f32.mrf.mxu0
  %v2848 = vadd.f32 0.0, %v2847
  %v2849 = vpop.f32.mrf.mxu0
  %v2850 = vadd.f32 0.0, %v2849
  %2851 = vmatmul.bf16.gmra.mxu0 %v2742
  %v2852 = vpop.f32.mrf.mxu0
  %v2853 = vadd.f32 0.0, %v2852
  %v2854 = vpop.f32.mrf.mxu0
  %v2855 = vadd.f32 0.0, %v2854
  %2856 = vdwg.mxu0
  %v2857 = vadd.f32 %v2703, %v2818
  %v2858 = vadd.f32 %v2704, %v2820
  %v2859 = vadd.f32 %v2705, %v2823
  %v2860 = vadd.f32 %v2706, %v2825
  %v2861 = vadd.f32 %v2707, %v2828
  %v2862 = vadd.f32 %v2708, %v2830
  %v2863 = vadd.f32 %v2709, %v2833
  %v2864 = vadd.f32 %v2710, %v2835
  %v2865 = vadd.f32 %v2711, %v2838
  %v2866 = vadd.f32 %v2712, %v2840
  %v2867 = vadd.f32 %v2713, %v2843
  %v2868 = vadd.f32 %v2714, %v2845
  %v2869 = vadd.f32 %v2715, %v2848
  %v2870 = vadd.f32 %v2716, %v2850
  %v2871 = vadd.f32 %v2717, %v2853
  %v2872 = vadd.f32 %v2718, %v2855
  %v2873 = vld [vmem:[#allocation2 + $0x18] sm:$0xff]
  %v2874 = vld [vmem:[#allocation2 + $0x20] sm:$0xff]
  %v2875 = vld [vmem:[#allocation2 + $0x28] sm:$0xff]
  %v2876 = vld [vmem:[#allocation2 + $0x30] sm:$0xff]
  %v2877 = vld [vmem:[#allocation2 + $0x38] sm:$0xff]
  %v2878 = vld [vmem:[#allocation2 + $0x40] sm:$0xff]
  %v2879 = vld [vmem:[#allocation2 + $0x48] sm:$0xff]
  %v2880 = vld [vmem:[#allocation2 + $0x50] sm:$0xff]
  %v2881 = vld [vmem:[#allocation2 + $0x58] sm:$0xff]
  %v2882 = vld [vmem:[#allocation2 + $0x60] sm:$0xff]
  %v2883 = vld [vmem:[#allocation2 + $0x68] sm:$0xff]
  %v2884 = vld [vmem:[#allocation2 + $0x70] sm:$0xff]
  %v2885 = vld [vmem:[#allocation2 + $0x78] sm:$0xff]
  %v2886 = vld [vmem:[#allocation2 + $0x80] sm:$0xff]
  %v2887 = vld [vmem:[#allocation2 + $0x88] sm:$0xff]
  %v2888 = vld [vmem:[#allocation2 + $0x90] sm:$0xff]
  %v2889 = vpack.c.bf16 %v2874, %v2873
  %v2890 = vpack.c.bf16 %v2876, %v2875
  %v2891 = vpack.c.bf16 %v2878, %v2877
  %v2892 = vpack.c.bf16 %v2880, %v2879
  %v2893 = vpack.c.bf16 %v2882, %v2881
  %v2894 = vpack.c.bf16 %v2884, %v2883
  %v2895 = vpack.c.bf16 %v2886, %v2885
  %v2896 = vpack.c.bf16 %v2888, %v2887
  %s2897 = scalar_lea.vmem %s3, 256
  %v2898 = vld [vmem:[%s2897] sm:$0xf]
  %v2899 = vld [vmem:[%s2897 + $0x4] sm:$0xf]
  %v2900 = vld [vmem:[%s2897 + $0x8] sm:$0xf]
  %v2901 = vld [vmem:[%s2897 + $0xc] sm:$0xf]
  %v2902 = vld [vmem:[%s2897 + $0x10] sm:$0xf]
  %v2903 = vld [vmem:[%s2897 + $0x14] sm:$0xf]
  %v2904 = vld [vmem:[%s2897 + $0x18] sm:$0xf]
  %v2905 = vld [vmem:[%s2897 + $0x1c] sm:$0xf]
  %v2906 = vld [vmem:[%s2897 + $0x20] sm:$0xf]
  %v2907 = vld [vmem:[%s2897 + $0x24] sm:$0xf]
  %v2908 = vld [vmem:[%s2897 + $0x28] sm:$0xf]
  %v2909 = vld [vmem:[%s2897 + $0x2c] sm:$0xf]
  %v2910 = vld [vmem:[%s2897 + $0x30] sm:$0xf]
  %v2911 = vld [vmem:[%s2897 + $0x34] sm:$0xf]
  %v2912 = vld [vmem:[%s2897 + $0x38] sm:$0xf]
  %v2913 = vld [vmem:[%s2897 + $0x3c] sm:$0xf]
  %v2930 = vunpack.c.l.b16 %v2898
  %v2931 = vunpack.c.l.b16 %v2899
  %v2932 = vunpack.c.l.b16 %v2900
  %v2933 = vunpack.c.l.b16 %v2901
  %v2934 = vunpack.c.l.b16 %v2902
  %v2935 = vunpack.c.l.b16 %v2903
  %v2936 = vunpack.c.l.b16 %v2904
  %v2937 = vunpack.c.l.b16 %v2905
  %v2938 = vunpack.c.l.b16 %v2906
  %v2939 = vunpack.c.l.b16 %v2907
  %v2940 = vunpack.c.l.b16 %v2908
  %v2941 = vunpack.c.l.b16 %v2909
  %v2942 = vunpack.c.l.b16 %v2910
  %v2943 = vunpack.c.l.b16 %v2911
  %v2944 = vunpack.c.l.b16 %v2912
  %v2945 = vunpack.c.l.b16 %v2913
  %v2946 = vpack.c.b16 %v2931, %v2930
  %v2947 = vpack.c.b16 %v2933, %v2932
  %v2948 = vpack.c.b16 %v2935, %v2934
  %v2949 = vpack.c.b16 %v2937, %v2936
  %v2950 = vpack.c.b16 %v2939, %v2938
  %v2951 = vpack.c.b16 %v2941, %v2940
  %v2952 = vpack.c.b16 %v2943, %v2942
  %v2953 = vpack.c.b16 %v2945, %v2944
  %2962 = vmatpush.bf16.msra.mxu0 %v2953
  %2963 = vmatpush.bf16.msra.mxu0 %v2952
  %2964 = vmatpush.bf16.msra.mxu0 %v2951
  %2965 = vmatpush.bf16.msra.mxu0 %v2950
  %2966 = vmatpush.bf16.msra.mxu0 %v2949
  %2967 = vmatpush.bf16.msra.mxu0 %v2948
  %2968 = vmatpush.bf16.msra.mxu0 %v2947
  %2969 = vmatpush.bf16.msra.mxu0 %v2946
  %2970 = vmatmul.bf16.gmra.mxu0 %v2889
  %v2971 = vpop.f32.mrf.mxu0
  %v2972 = vadd.f32 0.0, %v2971
  %v2973 = vpop.f32.mrf.mxu0
  %v2974 = vadd.f32 0.0, %v2973
  %2975 = vmatmul.bf16.gmra.mxu0 %v2890
  %v2976 = vpop.f32.mrf.mxu0
  %v2977 = vadd.f32 0.0, %v2976
  %v2978 = vpop.f32.mrf.mxu0
  %v2979 = vadd.f32 0.0, %v2978
  %2980 = vmatmul.bf16.gmra.mxu0 %v2891
  %v2981 = vpop.f32.mrf.mxu0
  %v2982 = vadd.f32 0.0, %v2981
  %v2983 = vpop.f32.mrf.mxu0
  %v2984 = vadd.f32 0.0, %v2983
  %2985 = vmatmul.bf16.gmra.mxu0 %v2892
  %v2986 = vpop.f32.mrf.mxu0
  %v2987 = vadd.f32 0.0, %v2986
  %v2988 = vpop.f32.mrf.mxu0
  %v2989 = vadd.f32 0.0, %v2988
  %2990 = vmatmul.bf16.gmra.mxu0 %v2893
  %v2991 = vpop.f32.mrf.mxu0
  %v2992 = vadd.f32 0.0, %v2991
  %v2993 = vpop.f32.mrf.mxu0
  %v2994 = vadd.f32 0.0, %v2993
  %2995 = vmatmul.bf16.gmra.mxu0 %v2894
  %v2996 = vpop.f32.mrf.mxu0
  %v2997 = vadd.f32 0.0, %v2996
  %v2998 = vpop.f32.mrf.mxu0
  %v2999 = vadd.f32 0.0, %v2998
  %3000 = vmatmul.bf16.gmra.mxu0 %v2895
  %v3001 = vpop.f32.mrf.mxu0
  %v3002 = vadd.f32 0.0, %v3001
  %v3003 = vpop.f32.mrf.mxu0
  %v3004 = vadd.f32 0.0, %v3003
  %3005 = vmatmul.bf16.gmra.mxu0 %v2896
  %v3006 = vpop.f32.mrf.mxu0
  %v3007 = vadd.f32 0.0, %v3006
  %v3008 = vpop.f32.mrf.mxu0
  %v3009 = vadd.f32 0.0, %v3008
  %3010 = vdwg.mxu0
  %v3011 = vadd.f32 %v2857, %v2972
  %v3012 = vadd.f32 %v2858, %v2974
  %v3013 = vadd.f32 %v2859, %v2977
  %v3014 = vadd.f32 %v2860, %v2979
  %v3015 = vadd.f32 %v2861, %v2982
  %v3016 = vadd.f32 %v2862, %v2984
  %v3017 = vadd.f32 %v2863, %v2987
  %v3018 = vadd.f32 %v2864, %v2989
  %v3019 = vadd.f32 %v2865, %v2992
  %v3020 = vadd.f32 %v2866, %v2994
  %v3021 = vadd.f32 %v2867, %v2997
  %v3022 = vadd.f32 %v2868, %v2999
  %v3023 = vadd.f32 %v2869, %v3002
  %v3024 = vadd.f32 %v2870, %v3004
  %v3025 = vadd.f32 %v2871, %v3007
  %v3026 = vadd.f32 %v2872, %v3009
  %v3027 = vld [vmem:[#allocation2 + $0x19] sm:$0xff]
  %v3028 = vld [vmem:[#allocation2 + $0x21] sm:$0xff]
  %v3029 = vld [vmem:[#allocation2 + $0x29] sm:$0xff]
  %v3030 = vld [vmem:[#allocation2 + $0x31] sm:$0xff]
  %v3031 = vld [vmem:[#allocation2 + $0x39] sm:$0xff]
  %v3032 = vld [vmem:[#allocation2 + $0x41] sm:$0xff]
  %v3033 = vld [vmem:[#allocation2 + $0x49] sm:$0xff]
  %v3034 = vld [vmem:[#allocation2 + $0x51] sm:$0xff]
  %v3035 = vld [vmem:[#allocation2 + $0x59] sm:$0xff]
  %v3036 = vld [vmem:[#allocation2 + $0x61] sm:$0xff]
  %v3037 = vld [vmem:[#allocation2 + $0x69] sm:$0xff]
  %v3038 = vld [vmem:[#allocation2 + $0x71] sm:$0xff]
  %v3039 = vld [vmem:[#allocation2 + $0x79] sm:$0xff]
  %v3040 = vld [vmem:[#allocation2 + $0x81] sm:$0xff]
  %v3041 = vld [vmem:[#allocation2 + $0x89] sm:$0xff]
  %v3042 = vld [vmem:[#allocation2 + $0x91] sm:$0xff]
  %v3043 = vpack.c.bf16 %v3028, %v3027
  %v3044 = vpack.c.bf16 %v3030, %v3029
  %v3045 = vpack.c.bf16 %v3032, %v3031
  %v3046 = vpack.c.bf16 %v3034, %v3033
  %v3047 = vpack.c.bf16 %v3036, %v3035
  %v3048 = vpack.c.bf16 %v3038, %v3037
  %v3049 = vpack.c.bf16 %v3040, %v3039
  %v3050 = vpack.c.bf16 %v3042, %v3041
  %s3051 = scalar_lea.vmem %s3, 320
  %v3052 = vld [vmem:[%s3051] sm:$0xf]
  %v3053 = vld [vmem:[%s3051 + $0x4] sm:$0xf]
  %v3054 = vld [vmem:[%s3051 + $0x8] sm:$0xf]
  %v3055 = vld [vmem:[%s3051 + $0xc] sm:$0xf]
  %v3056 = vld [vmem:[%s3051 + $0x10] sm:$0xf]
  %v3057 = vld [vmem:[%s3051 + $0x14] sm:$0xf]
  %v3058 = vld [vmem:[%s3051 + $0x18] sm:$0xf]
  %v3059 = vld [vmem:[%s3051 + $0x1c] sm:$0xf]
  %v3060 = vld [vmem:[%s3051 + $0x20] sm:$0xf]
  %v3061 = vld [vmem:[%s3051 + $0x24] sm:$0xf]
  %v3062 = vld [vmem:[%s3051 + $0x28] sm:$0xf]
  %v3063 = vld [vmem:[%s3051 + $0x2c] sm:$0xf]
  %v3064 = vld [vmem:[%s3051 + $0x30] sm:$0xf]
  %v3065 = vld [vmem:[%s3051 + $0x34] sm:$0xf]
  %v3066 = vld [vmem:[%s3051 + $0x38] sm:$0xf]
  %v3067 = vld [vmem:[%s3051 + $0x3c] sm:$0xf]
  %v3084 = vunpack.c.l.b16 %v3052
  %v3085 = vunpack.c.l.b16 %v3053
  %v3086 = vunpack.c.l.b16 %v3054
  %v3087 = vunpack.c.l.b16 %v3055
  %v3088 = vunpack.c.l.b16 %v3056
  %v3089 = vunpack.c.l.b16 %v3057
  %v3090 = vunpack.c.l.b16 %v3058
  %v3091 = vunpack.c.l.b16 %v3059
  %v3092 = vunpack.c.l.b16 %v3060
  %v3093 = vunpack.c.l.b16 %v3061
  %v3094 = vunpack.c.l.b16 %v3062
  %v3095 = vunpack.c.l.b16 %v3063
  %v3096 = vunpack.c.l.b16 %v3064
  %v3097 = vunpack.c.l.b16 %v3065
  %v3098 = vunpack.c.l.b16 %v3066
  %v3099 = vunpack.c.l.b16 %v3067
  %v3100 = vpack.c.b16 %v3085, %v3084
  %v3101 = vpack.c.b16 %v3087, %v3086
  %v3102 = vpack.c.b16 %v3089, %v3088
  %v3103 = vpack.c.b16 %v3091, %v3090
  %v3104 = vpack.c.b16 %v3093, %v3092
  %v3105 = vpack.c.b16 %v3095, %v3094
  %v3106 = vpack.c.b16 %v3097, %v3096
  %v3107 = vpack.c.b16 %v3099, %v3098
  %3116 = vmatpush.bf16.msra.mxu0 %v3107
  %3117 = vmatpush.bf16.msra.mxu0 %v3106
  %3118 = vmatpush.bf16.msra.mxu0 %v3105
  %3119 = vmatpush.bf16.msra.mxu0 %v3104
  %3120 = vmatpush.bf16.msra.mxu0 %v3103
  %3121 = vmatpush.bf16.msra.mxu0 %v3102
  %3122 = vmatpush.bf16.msra.mxu0 %v3101
  %3123 = vmatpush.bf16.msra.mxu0 %v3100
  %3124 = vmatmul.bf16.gmra.mxu0 %v3043
  %v3125 = vpop.f32.mrf.mxu0
  %v3126 = vadd.f32 0.0, %v3125
  %v3127 = vpop.f32.mrf.mxu0
  %v3128 = vadd.f32 0.0, %v3127
  %3129 = vmatmul.bf16.gmra.mxu0 %v3044
  %v3130 = vpop.f32.mrf.mxu0
  %v3131 = vadd.f32 0.0, %v3130
  %v3132 = vpop.f32.mrf.mxu0
  %v3133 = vadd.f32 0.0, %v3132
  %3134 = vmatmul.bf16.gmra.mxu0 %v3045
  %v3135 = vpop.f32.mrf.mxu0
  %v3136 = vadd.f32 0.0, %v3135
  %v3137 = vpop.f32.mrf.mxu0
  %v3138 = vadd.f32 0.0, %v3137
  %3139 = vmatmul.bf16.gmra.mxu0 %v3046
  %v3140 = vpop.f32.mrf.mxu0
  %v3141 = vadd.f32 0.0, %v3140
  %v3142 = vpop.f32.mrf.mxu0
  %v3143 = vadd.f32 0.0, %v3142
  %3144 = vmatmul.bf16.gmra.mxu0 %v3047
  %v3145 = vpop.f32.mrf.mxu0
  %v3146 = vadd.f32 0.0, %v3145
  %v3147 = vpop.f32.mrf.mxu0
  %v3148 = vadd.f32 0.0, %v3147
  %3149 = vmatmul.bf16.gmra.mxu0 %v3048
  %v3150 = vpop.f32.mrf.mxu0
  %v3151 = vadd.f32 0.0, %v3150
  %v3152 = vpop.f32.mrf.mxu0
  %v3153 = vadd.f32 0.0, %v3152
  %3154 = vmatmul.bf16.gmra.mxu0 %v3049
  %v3155 = vpop.f32.mrf.mxu0
  %v3156 = vadd.f32 0.0, %v3155
  %v3157 = vpop.f32.mrf.mxu0
  %v3158 = vadd.f32 0.0, %v3157
  %3159 = vmatmul.bf16.gmra.mxu0 %v3050
  %v3160 = vpop.f32.mrf.mxu0
  %v3161 = vadd.f32 0.0, %v3160
  %v3162 = vpop.f32.mrf.mxu0
  %v3163 = vadd.f32 0.0, %v3162
  %3164 = vdwg.mxu0
  %v3165 = vadd.f32 %v3011, %v3126
  %v3166 = vadd.f32 %v3012, %v3128
  %v3167 = vadd.f32 %v3013, %v3131
  %v3168 = vadd.f32 %v3014, %v3133
  %v3169 = vadd.f32 %v3015, %v3136
  %v3170 = vadd.f32 %v3016, %v3138
  %v3171 = vadd.f32 %v3017, %v3141
  %v3172 = vadd.f32 %v3018, %v3143
  %v3173 = vadd.f32 %v3019, %v3146
  %v3174 = vadd.f32 %v3020, %v3148
  %v3175 = vadd.f32 %v3021, %v3151
  %v3176 = vadd.f32 %v3022, %v3153
  %v3177 = vadd.f32 %v3023, %v3156
  %v3178 = vadd.f32 %v3024, %v3158
  %v3179 = vadd.f32 %v3025, %v3161
  %v3180 = vadd.f32 %v3026, %v3163
  %v3181 = vld [vmem:[#allocation2 + $0x27] sm:$0xff]
  %v3182 = vld [vmem:[#allocation2 + $0x2f] sm:$0xff]
  %v3183 = vld [vmem:[#allocation2 + $0x37] sm:$0xff]
  %v3184 = vld [vmem:[#allocation2 + $0x3f] sm:$0xff]
  %v3185 = vld [vmem:[#allocation2 + $0x47] sm:$0xff]
  %v3186 = vld [vmem:[#allocation2 + $0x4f] sm:$0xff]
  %v3187 = vld [vmem:[#allocation2 + $0x57] sm:$0xff]
  %v3188 = vld [vmem:[#allocation2 + $0x5f] sm:$0xff]
  %v3189 = vld [vmem:[#allocation2 + $0x67] sm:$0xff]
  %v3190 = vld [vmem:[#allocation2 + $0x6f] sm:$0xff]
  %v3191 = vld [vmem:[#allocation2 + $0x77] sm:$0xff]
  %v3192 = vld [vmem:[#allocation2 + $0x7f] sm:$0xff]
  %v3193 = vld [vmem:[#allocation2 + $0x87] sm:$0xff]
  %v3194 = vld [vmem:[#allocation2 + $0x8f] sm:$0xff]
  %v3195 = vld [vmem:[#allocation2 + $0x97] sm:$0xff]
  %v3196 = vld [vmem:[#allocation2 + $0x9f] sm:$0xff]
  %v3197 = vpack.c.bf16 %v3182, %v3181
  %v3198 = vpack.c.bf16 %v3184, %v3183
  %v3199 = vpack.c.bf16 %v3186, %v3185
  %v3200 = vpack.c.bf16 %v3188, %v3187
  %v3201 = vpack.c.bf16 %v3190, %v3189
  %v3202 = vpack.c.bf16 %v3192, %v3191
  %v3203 = vpack.c.bf16 %v3194, %v3193
  %v3204 = vpack.c.bf16 %v3196, %v3195
  %s3205 = scalar_lea.vmem %s3, 384
  %v3206 = vld [vmem:[%s3205] sm:$0xf]
  %v3207 = vld [vmem:[%s3205 + $0x4] sm:$0xf]
  %v3208 = vld [vmem:[%s3205 + $0x8] sm:$0xf]
  %v3209 = vld [vmem:[%s3205 + $0xc] sm:$0xf]
  %v3210 = vld [vmem:[%s3205 + $0x10] sm:$0xf]
  %v3211 = vld [vmem:[%s3205 + $0x14] sm:$0xf]
  %v3212 = vld [vmem:[%s3205 + $0x18] sm:$0xf]
  %v3213 = vld [vmem:[%s3205 + $0x1c] sm:$0xf]
  %v3214 = vld [vmem:[%s3205 + $0x20] sm:$0xf]
  %v3215 = vld [vmem:[%s3205 + $0x24] sm:$0xf]
  %v3216 = vld [vmem:[%s3205 + $0x28] sm:$0xf]
  %v3217 = vld [vmem:[%s3205 + $0x2c] sm:$0xf]
  %v3218 = vld [vmem:[%s3205 + $0x30] sm:$0xf]
  %v3219 = vld [vmem:[%s3205 + $0x34] sm:$0xf]
  %v3220 = vld [vmem:[%s3205 + $0x38] sm:$0xf]
  %v3221 = vld [vmem:[%s3205 + $0x3c] sm:$0xf]
  %v3238 = vunpack.c.l.b16 %v3206
  %v3239 = vunpack.c.l.b16 %v3207
  %v3240 = vunpack.c.l.b16 %v3208
  %v3241 = vunpack.c.l.b16 %v3209
  %v3242 = vunpack.c.l.b16 %v3210
  %v3243 = vunpack.c.l.b16 %v3211
  %v3244 = vunpack.c.l.b16 %v3212
  %v3245 = vunpack.c.l.b16 %v3213
  %v3246 = vunpack.c.l.b16 %v3214
  %v3247 = vunpack.c.l.b16 %v3215
  %v3248 = vunpack.c.l.b16 %v3216
  %v3249 = vunpack.c.l.b16 %v3217
  %v3250 = vunpack.c.l.b16 %v3218
  %v3251 = vunpack.c.l.b16 %v3219
  %v3252 = vunpack.c.l.b16 %v3220
  %v3253 = vunpack.c.l.b16 %v3221
  %v3254 = vpack.c.b16 %v3239, %v3238
  %v3255 = vpack.c.b16 %v3241, %v3240
  %v3256 = vpack.c.b16 %v3243, %v3242
  %v3257 = vpack.c.b16 %v3245, %v3244
  %v3258 = vpack.c.b16 %v3247, %v3246
  %v3259 = vpack.c.b16 %v3249, %v3248
  %v3260 = vpack.c.b16 %v3251, %v3250
  %v3261 = vpack.c.b16 %v3253, %v3252
  %3270 = vmatpush.bf16.msra.mxu0 %v3261
  %3271 = vmatpush.bf16.msra.mxu0 %v3260
  %3272 = vmatpush.bf16.msra.mxu0 %v3259
  %3273 = vmatpush.bf16.msra.mxu0 %v3258
  %3274 = vmatpush.bf16.msra.mxu0 %v3257
  %3275 = vmatpush.bf16.msra.mxu0 %v3256
  %3276 = vmatpush.bf16.msra.mxu0 %v3255
  %3277 = vmatpush.bf16.msra.mxu0 %v3254
  %3278 = vmatmul.bf16.gmra.mxu0 %v3197
  %v3279 = vpop.f32.mrf.mxu0
  %v3280 = vadd.f32 0.0, %v3279
  %v3281 = vpop.f32.mrf.mxu0
  %v3282 = vadd.f32 0.0, %v3281
  %3283 = vmatmul.bf16.gmra.mxu0 %v3198
  %v3284 = vpop.f32.mrf.mxu0
  %v3285 = vadd.f32 0.0, %v3284
  %v3286 = vpop.f32.mrf.mxu0
  %v3287 = vadd.f32 0.0, %v3286
  %3288 = vmatmul.bf16.gmra.mxu0 %v3199
  %v3289 = vpop.f32.mrf.mxu0
  %v3290 = vadd.f32 0.0, %v3289
  %v3291 = vpop.f32.mrf.mxu0
  %v3292 = vadd.f32 0.0, %v3291
  %3293 = vmatmul.bf16.gmra.mxu0 %v3200
  %v3294 = vpop.f32.mrf.mxu0
  %v3295 = vadd.f32 0.0, %v3294
  %v3296 = vpop.f32.mrf.mxu0
  %v3297 = vadd.f32 0.0, %v3296
  %3298 = vmatmul.bf16.gmra.mxu0 %v3201
  %v3299 = vpop.f32.mrf.mxu0
  %v3300 = vadd.f32 0.0, %v3299
  %v3301 = vpop.f32.mrf.mxu0
  %v3302 = vadd.f32 0.0, %v3301
  %3303 = vmatmul.bf16.gmra.mxu0 %v3202
  %v3304 = vpop.f32.mrf.mxu0
  %v3305 = vadd.f32 0.0, %v3304
  %v3306 = vpop.f32.mrf.mxu0
  %v3307 = vadd.f32 0.0, %v3306
  %3308 = vmatmul.bf16.gmra.mxu0 %v3203
  %v3309 = vpop.f32.mrf.mxu0
  %v3310 = vadd.f32 0.0, %v3309
  %v3311 = vpop.f32.mrf.mxu0
  %v3312 = vadd.f32 0.0, %v3311
  %3313 = vmatmul.bf16.gmra.mxu0 %v3204
  %v3314 = vpop.f32.mrf.mxu0
  %v3315 = vadd.f32 0.0, %v3314
  %v3316 = vpop.f32.mrf.mxu0
  %v3317 = vadd.f32 0.0, %v3316
  %3318 = vdwg.mxu0
  %v3319 = vadd.f32 %v3165, %v3280
  %v3320 = vadd.f32 %v3166, %v3282
  %v3321 = vadd.f32 %v3167, %v3285
  %v3322 = vadd.f32 %v3168, %v3287
  %v3323 = vadd.f32 %v3169, %v3290
  %v3324 = vadd.f32 %v3170, %v3292
  %v3325 = vadd.f32 %v3171, %v3295
  %v3326 = vadd.f32 %v3172, %v3297
  %v3327 = vadd.f32 %v3173, %v3300
  %v3328 = vadd.f32 %v3174, %v3302
  %v3329 = vadd.f32 %v3175, %v3305
  %v3330 = vadd.f32 %v3176, %v3307
  %v3331 = vadd.f32 %v3177, %v3310
  %v3332 = vadd.f32 %v3178, %v3312
  %v3333 = vadd.f32 %v3179, %v3315
  %v3334 = vadd.f32 %v3180, %v3317
  %v3335 = vld [vmem:[#allocation2 + $0x28] sm:$0xff]
  %v3336 = vld [vmem:[#allocation2 + $0x30] sm:$0xff]
  %v3337 = vld [vmem:[#allocation2 + $0x38] sm:$0xff]
  %v3338 = vld [vmem:[#allocation2 + $0x40] sm:$0xff]
  %v3339 = vld [vmem:[#allocation2 + $0x48] sm:$0xff]
  %v3340 = vld [vmem:[#allocation2 + $0x50] sm:$0xff]
  %v3341 = vld [vmem:[#allocation2 + $0x58] sm:$0xff]
  %v3342 = vld [vmem:[#allocation2 + $0x60] sm:$0xff]
  %v3343 = vld [vmem:[#allocation2 + $0x68] sm:$0xff]
  %v3344 = vld [vmem:[#allocation2 + $0x70] sm:$0xff]
  %v3345 = vld [vmem:[#allocation2 + $0x78] sm:$0xff]
  %v3346 = vld [vmem:[#allocation2 + $0x80] sm:$0xff]
  %v3347 = vld [vmem:[#allocation2 + $0x88] sm:$0xff]
  %v3348 = vld [vmem:[#allocation2 + $0x90] sm:$0xff]
  %v3349 = vld [vmem:[#allocation2 + $0x98] sm:$0xff]
  %v3350 = vld [vmem:[#allocation2 + $0xa0] sm:$0xff]
  %v3351 = vpack.c.bf16 %v3336, %v3335
  %v3352 = vpack.c.bf16 %v3338, %v3337
  %v3353 = vpack.c.bf16 %v3340, %v3339
  %v3354 = vpack.c.bf16 %v3342, %v3341
  %v3355 = vpack.c.bf16 %v3344, %v3343
  %v3356 = vpack.c.bf16 %v3346, %v3345
  %v3357 = vpack.c.bf16 %v3348, %v3347
  %v3358 = vpack.c.bf16 %v3350, %v3349
  %s3359 = scalar_lea.vmem %s3, 448
  %v3360 = vld [vmem:[%s3359] sm:$0xf]
  %v3361 = vld [vmem:[%s3359 + $0x4] sm:$0xf]
  %v3362 = vld [vmem:[%s3359 + $0x8] sm:$0xf]
  %v3363 = vld [vmem:[%s3359 + $0xc] sm:$0xf]
  %v3364 = vld [vmem:[%s3359 + $0x10] sm:$0xf]
  %v3365 = vld [vmem:[%s3359 + $0x14] sm:$0xf]
  %v3366 = vld [vmem:[%s3359 + $0x18] sm:$0xf]
  %v3367 = vld [vmem:[%s3359 + $0x1c] sm:$0xf]
  %v3368 = vld [vmem:[%s3359 + $0x20] sm:$0xf]
  %v3369 = vld [vmem:[%s3359 + $0x24] sm:$0xf]
  %v3370 = vld [vmem:[%s3359 + $0x28] sm:$0xf]
  %v3371 = vld [vmem:[%s3359 + $0x2c] sm:$0xf]
  %v3372 = vld [vmem:[%s3359 + $0x30] sm:$0xf]
  %v3373 = vld [vmem:[%s3359 + $0x34] sm:$0xf]
  %v3374 = vld [vmem:[%s3359 + $0x38] sm:$0xf]
  %v3375 = vld [vmem:[%s3359 + $0x3c] sm:$0xf]
  %v3392 = vunpack.c.l.b16 %v3360
  %v3393 = vunpack.c.l.b16 %v3361
  %v3394 = vunpack.c.l.b16 %v3362
  %v3395 = vunpack.c.l.b16 %v3363
  %v3396 = vunpack.c.l.b16 %v3364
  %v3397 = vunpack.c.l.b16 %v3365
  %v3398 = vunpack.c.l.b16 %v3366
  %v3399 = vunpack.c.l.b16 %v3367
  %v3400 = vunpack.c.l.b16 %v3368
  %v3401 = vunpack.c.l.b16 %v3369
  %v3402 = vunpack.c.l.b16 %v3370
  %v3403 = vunpack.c.l.b16 %v3371
  %v3404 = vunpack.c.l.b16 %v3372
  %v3405 = vunpack.c.l.b16 %v3373
  %v3406 = vunpack.c.l.b16 %v3374
  %v3407 = vunpack.c.l.b16 %v3375
  %v3408 = vpack.c.b16 %v3393, %v3392
  %v3409 = vpack.c.b16 %v3395, %v3394
  %v3410 = vpack.c.b16 %v3397, %v3396
  %v3411 = vpack.c.b16 %v3399, %v3398
  %v3412 = vpack.c.b16 %v3401, %v3400
  %v3413 = vpack.c.b16 %v3403, %v3402
  %v3414 = vpack.c.b16 %v3405, %v3404
  %v3415 = vpack.c.b16 %v3407, %v3406
  %3424 = vmatpush.bf16.msra.mxu0 %v3415
  %3425 = vmatpush.bf16.msra.mxu0 %v3414
  %3426 = vmatpush.bf16.msra.mxu0 %v3413
  %3427 = vmatpush.bf16.msra.mxu0 %v3412
  %3428 = vmatpush.bf16.msra.mxu0 %v3411
  %3429 = vmatpush.bf16.msra.mxu0 %v3410
  %3430 = vmatpush.bf16.msra.mxu0 %v3409
  %3431 = vmatpush.bf16.msra.mxu0 %v3408
  %3432 = vmatmul.bf16.gmra.mxu0 %v3351
  %v3433 = vpop.f32.mrf.mxu0
  %v3434 = vadd.f32 0.0, %v3433
  %v3435 = vpop.f32.mrf.mxu0
  %v3436 = vadd.f32 0.0, %v3435
  %3437 = vmatmul.bf16.gmra.mxu0 %v3352
  %v3438 = vpop.f32.mrf.mxu0
  %v3439 = vadd.f32 0.0, %v3438
  %v3440 = vpop.f32.mrf.mxu0
  %v3441 = vadd.f32 0.0, %v3440
  %3442 = vmatmul.bf16.gmra.mxu0 %v3353
  %v3443 = vpop.f32.mrf.mxu0
  %v3444 = vadd.f32 0.0, %v3443
  %v3445 = vpop.f32.mrf.mxu0
  %v3446 = vadd.f32 0.0, %v3445
  %3447 = vmatmul.bf16.gmra.mxu0 %v3354
  %v3448 = vpop.f32.mrf.mxu0
  %v3449 = vadd.f32 0.0, %v3448
  %v3450 = vpop.f32.mrf.mxu0
  %v3451 = vadd.f32 0.0, %v3450
  %3452 = vmatmul.bf16.gmra.mxu0 %v3355
  %v3453 = vpop.f32.mrf.mxu0
  %v3454 = vadd.f32 0.0, %v3453
  %v3455 = vpop.f32.mrf.mxu0
  %v3456 = vadd.f32 0.0, %v3455
  %3457 = vmatmul.bf16.gmra.mxu0 %v3356
  %v3458 = vpop.f32.mrf.mxu0
  %v3459 = vadd.f32 0.0, %v3458
  %v3460 = vpop.f32.mrf.mxu0
  %v3461 = vadd.f32 0.0, %v3460
  %3462 = vmatmul.bf16.gmra.mxu0 %v3357
  %v3463 = vpop.f32.mrf.mxu0
  %v3464 = vadd.f32 0.0, %v3463
  %v3465 = vpop.f32.mrf.mxu0
  %v3466 = vadd.f32 0.0, %v3465
  %3467 = vmatmul.bf16.gmra.mxu0 %v3358
  %v3468 = vpop.f32.mrf.mxu0
  %v3469 = vadd.f32 0.0, %v3468
  %v3470 = vpop.f32.mrf.mxu0
  %v3471 = vadd.f32 0.0, %v3470
  %3472 = vdwg.mxu0
  %v3473 = vadd.f32 %v3319, %v3434
  %v3474 = vadd.f32 %v3320, %v3436
  %v3475 = vadd.f32 %v3321, %v3439
  %v3476 = vadd.f32 %v3322, %v3441
  %v3477 = vadd.f32 %v3323, %v3444
  %v3478 = vadd.f32 %v3324, %v3446
  %v3479 = vadd.f32 %v3325, %v3449
  %v3480 = vadd.f32 %v3326, %v3451
  %v3481 = vadd.f32 %v3327, %v3454
  %v3482 = vadd.f32 %v3328, %v3456
  %v3483 = vadd.f32 %v3329, %v3459
  %v3484 = vadd.f32 %v3330, %v3461
  %v3485 = vadd.f32 %v3331, %v3464
  %v3486 = vadd.f32 %v3332, %v3466
  %v3487 = vadd.f32 %v3333, %v3469
  %v3488 = vadd.f32 %v3334, %v3471
  %v3489 = vld [vmem:[#allocation2 + $0x29] sm:$0xff]
  %v3490 = vld [vmem:[#allocation2 + $0x31] sm:$0xff]
  %v3491 = vld [vmem:[#allocation2 + $0x39] sm:$0xff]
  %v3492 = vld [vmem:[#allocation2 + $0x41] sm:$0xff]
  %v3493 = vld [vmem:[#allocation2 + $0x49] sm:$0xff]
  %v3494 = vld [vmem:[#allocation2 + $0x51] sm:$0xff]
  %v3495 = vld [vmem:[#allocation2 + $0x59] sm:$0xff]
  %v3496 = vld [vmem:[#allocation2 + $0x61] sm:$0xff]
  %v3497 = vld [vmem:[#allocation2 + $0x69] sm:$0xff]
  %v3498 = vld [vmem:[#allocation2 + $0x71] sm:$0xff]
  %v3499 = vld [vmem:[#allocation2 + $0x79] sm:$0xff]
  %v3500 = vld [vmem:[#allocation2 + $0x81] sm:$0xff]
  %v3501 = vld [vmem:[#allocation2 + $0x89] sm:$0xff]
  %v3502 = vld [vmem:[#allocation2 + $0x91] sm:$0xff]
  %v3503 = vld [vmem:[#allocation2 + $0x99] sm:$0xff]
  %v3504 = vld [vmem:[#allocation2 + $0xa1] sm:$0xff]
  %v3505 = vpack.c.bf16 %v3490, %v3489
  %v3506 = vpack.c.bf16 %v3492, %v3491
  %v3507 = vpack.c.bf16 %v3494, %v3493
  %v3508 = vpack.c.bf16 %v3496, %v3495
  %v3509 = vpack.c.bf16 %v3498, %v3497
  %v3510 = vpack.c.bf16 %v3500, %v3499
  %v3511 = vpack.c.bf16 %v3502, %v3501
  %v3512 = vpack.c.bf16 %v3504, %v3503
  %s3513 = scalar_lea.vmem %s3, 512
  %v3514 = vld [vmem:[%s3513] sm:$0xf]
  %v3515 = vld [vmem:[%s3513 + $0x4] sm:$0xf]
  %v3516 = vld [vmem:[%s3513 + $0x8] sm:$0xf]
  %v3517 = vld [vmem:[%s3513 + $0xc] sm:$0xf]
  %v3518 = vld [vmem:[%s3513 + $0x10] sm:$0xf]
  %v3519 = vld [vmem:[%s3513 + $0x14] sm:$0xf]
  %v3520 = vld [vmem:[%s3513 + $0x18] sm:$0xf]
  %v3521 = vld [vmem:[%s3513 + $0x1c] sm:$0xf]
  %v3522 = vld [vmem:[%s3513 + $0x20] sm:$0xf]
  %v3523 = vld [vmem:[%s3513 + $0x24] sm:$0xf]
  %v3524 = vld [vmem:[%s3513 + $0x28] sm:$0xf]
  %v3525 = vld [vmem:[%s3513 + $0x2c] sm:$0xf]
  %v3526 = vld [vmem:[%s3513 + $0x30] sm:$0xf]
  %v3527 = vld [vmem:[%s3513 + $0x34] sm:$0xf]
  %v3528 = vld [vmem:[%s3513 + $0x38] sm:$0xf]
  %v3529 = vld [vmem:[%s3513 + $0x3c] sm:$0xf]
  %v3546 = vunpack.c.l.b16 %v3514
  %v3547 = vunpack.c.l.b16 %v3515
  %v3548 = vunpack.c.l.b16 %v3516
  %v3549 = vunpack.c.l.b16 %v3517
  %v3550 = vunpack.c.l.b16 %v3518
  %v3551 = vunpack.c.l.b16 %v3519
  %v3552 = vunpack.c.l.b16 %v3520
  %v3553 = vunpack.c.l.b16 %v3521
  %v3554 = vunpack.c.l.b16 %v3522
  %v3555 = vunpack.c.l.b16 %v3523
  %v3556 = vunpack.c.l.b16 %v3524
  %v3557 = vunpack.c.l.b16 %v3525
  %v3558 = vunpack.c.l.b16 %v3526
  %v3559 = vunpack.c.l.b16 %v3527
  %v3560 = vunpack.c.l.b16 %v3528
  %v3561 = vunpack.c.l.b16 %v3529
  %v3562 = vpack.c.b16 %v3547, %v3546
  %v3563 = vpack.c.b16 %v3549, %v3548
  %v3564 = vpack.c.b16 %v3551, %v3550
  %v3565 = vpack.c.b16 %v3553, %v3552
  %v3566 = vpack.c.b16 %v3555, %v3554
  %v3567 = vpack.c.b16 %v3557, %v3556
  %v3568 = vpack.c.b16 %v3559, %v3558
  %v3569 = vpack.c.b16 %v3561, %v3560
  %3578 = vmatpush.bf16.msra.mxu0 %v3569
  %3579 = vmatpush.bf16.msra.mxu0 %v3568
  %3580 = vmatpush.bf16.msra.mxu0 %v3567
  %3581 = vmatpush.bf16.msra.mxu0 %v3566
  %3582 = vmatpush.bf16.msra.mxu0 %v3565
  %3583 = vmatpush.bf16.msra.mxu0 %v3564
  %3584 = vmatpush.bf16.msra.mxu0 %v3563
  %3585 = vmatpush.bf16.msra.mxu0 %v3562
  %3586 = vmatmul.bf16.gmra.mxu0 %v3505
  %v3587 = vpop.f32.mrf.mxu0
  %v3588 = vadd.f32 0.0, %v3587
  %v3589 = vpop.f32.mrf.mxu0
  %v3590 = vadd.f32 0.0, %v3589
  %3591 = vmatmul.bf16.gmra.mxu0 %v3506
  %v3592 = vpop.f32.mrf.mxu0
  %v3593 = vadd.f32 0.0, %v3592
  %v3594 = vpop.f32.mrf.mxu0
  %v3595 = vadd.f32 0.0, %v3594
  %3596 = vmatmul.bf16.gmra.mxu0 %v3507
  %v3597 = vpop.f32.mrf.mxu0
  %v3598 = vadd.f32 0.0, %v3597
  %v3599 = vpop.f32.mrf.mxu0
  %v3600 = vadd.f32 0.0, %v3599
  %3601 = vmatmul.bf16.gmra.mxu0 %v3508
  %v3602 = vpop.f32.mrf.mxu0
  %v3603 = vadd.f32 0.0, %v3602
  %v3604 = vpop.f32.mrf.mxu0
  %v3605 = vadd.f32 0.0, %v3604
  %3606 = vmatmul.bf16.gmra.mxu0 %v3509
  %v3607 = vpop.f32.mrf.mxu0
  %v3608 = vadd.f32 0.0, %v3607
  %v3609 = vpop.f32.mrf.mxu0
  %v3610 = vadd.f32 0.0, %v3609
  %3611 = vmatmul.bf16.gmra.mxu0 %v3510
  %v3612 = vpop.f32.mrf.mxu0
  %v3613 = vadd.f32 0.0, %v3612
  %v3614 = vpop.f32.mrf.mxu0
  %v3615 = vadd.f32 0.0, %v3614
  %3616 = vmatmul.bf16.gmra.mxu0 %v3511
  %v3617 = vpop.f32.mrf.mxu0
  %v3618 = vadd.f32 0.0, %v3617
  %v3619 = vpop.f32.mrf.mxu0
  %v3620 = vadd.f32 0.0, %v3619
  %3621 = vmatmul.bf16.gmra.mxu0 %v3512
  %v3622 = vpop.f32.mrf.mxu0
  %v3623 = vadd.f32 0.0, %v3622
  %v3624 = vpop.f32.mrf.mxu0
  %v3625 = vadd.f32 0.0, %v3624
  %3626 = vdwg.mxu0
  %v3627 = vadd.f32 %v3473, %v3588
  %v3628 = vadd.f32 %v3474, %v3590
  %v3629 = vadd.f32 %v3475, %v3593
  %v3630 = vadd.f32 %v3476, %v3595
  %v3631 = vadd.f32 %v3477, %v3598
  %v3632 = vadd.f32 %v3478, %v3600
  %v3633 = vadd.f32 %v3479, %v3603
  %v3634 = vadd.f32 %v3480, %v3605
  %v3635 = vadd.f32 %v3481, %v3608
  %v3636 = vadd.f32 %v3482, %v3610
  %v3637 = vadd.f32 %v3483, %v3613
  %v3638 = vadd.f32 %v3484, %v3615
  %v3639 = vadd.f32 %v3485, %v3618
  %v3640 = vadd.f32 %v3486, %v3620
  %v3641 = vadd.f32 %v3487, %v3623
  %v3642 = vadd.f32 %v3488, %v3625
  %v3643 = vld [vmem:[%s4] sm:$0x1]
  %v3645 = vperm.slane %v3643, 0
  %v3647 = vadd.f32 %v3627, %v3645
  %v3648 = vadd.f32 %v3628, %v3645
  %v3649 = vadd.f32 %v3629, %v3645
  %v3650 = vadd.f32 %v3630, %v3645
  %v3651 = vadd.f32 %v3631, %v3645
  %v3652 = vadd.f32 %v3632, %v3645
  %v3653 = vadd.f32 %v3633, %v3645
  %v3654 = vadd.f32 %v3634, %v3645
  %v3655 = vadd.f32 %v3635, %v3645
  %v3656 = vadd.f32 %v3636, %v3645
  %v3657 = vadd.f32 %v3637, %v3645
  %v3658 = vadd.f32 %v3638, %v3645
  %v3659 = vadd.f32 %v3639, %v3645
  %v3660 = vadd.f32 %v3640, %v3645
  %v3661 = vadd.f32 %v3641, %v3645
  %v3662 = vadd.f32 %v3642, %v3645
  %v3663 = vld [vmem:[%s1069] sm:$0xf]
  %v3664 = vld [vmem:[%s1069 + $0x4] sm:$0xf]
  %v3665 = vld [vmem:[%s1069 + $0x8] sm:$0xf]
  %v3666 = vld [vmem:[%s1069 + $0xc] sm:$0xf]
  %v3667 = vld [vmem:[%s1069 + $0x10] sm:$0xf]
  %v3668 = vld [vmem:[%s1069 + $0x14] sm:$0xf]
  %v3669 = vld [vmem:[%s1069 + $0x18] sm:$0xf]
  %v3670 = vld [vmem:[%s1069 + $0x1c] sm:$0xf]
  %v3671 = vld [vmem:[%s1069 + $0x20] sm:$0xf]
  %v3672 = vld [vmem:[%s1069 + $0x24] sm:$0xf]
  %v3673 = vld [vmem:[%s1069 + $0x28] sm:$0xf]
  %v3674 = vld [vmem:[%s1069 + $0x2c] sm:$0xf]
  %v3675 = vld [vmem:[%s1069 + $0x30] sm:$0xf]
  %v3676 = vld [vmem:[%s1069 + $0x34] sm:$0xf]
  %v3677 = vld [vmem:[%s1069 + $0x38] sm:$0xf]
  %v3678 = vld [vmem:[%s1069 + $0x3c] sm:$0xf]
  %v3679 = vld [vmem:[%s5] sm:$0xf]
  %v3680 = vld [vmem:[%s5 + $0x4] sm:$0xf]
  %v3681 = vld [vmem:[%s5 + $0x8] sm:$0xf]
  %v3682 = vld [vmem:[%s5 + $0xc] sm:$0xf]
  %v3683 = vld [vmem:[%s5 + $0x10] sm:$0xf]
  %v3684 = vld [vmem:[%s5 + $0x14] sm:$0xf]
  %v3685 = vld [vmem:[%s5 + $0x18] sm:$0xf]
  %v3686 = vld [vmem:[%s5 + $0x1c] sm:$0xf]
  %v3687 = vld [vmem:[%s5 + $0x20] sm:$0xf]
  %v3688 = vld [vmem:[%s5 + $0x24] sm:$0xf]
  %v3689 = vld [vmem:[%s5 + $0x28] sm:$0xf]
  %v3690 = vld [vmem:[%s5 + $0x2c] sm:$0xf]
  %v3691 = vld [vmem:[%s5 + $0x30] sm:$0xf]
  %v3692 = vld [vmem:[%s5 + $0x34] sm:$0xf]
  %v3693 = vld [vmem:[%s5 + $0x38] sm:$0xf]
  %v3694 = vld [vmem:[%s5 + $0x3c] sm:$0xf]
  %v3695 = vld [vmem:[%s6] sm:$0x1]
  %v3697 = vperm.slane %v3695, 0
  %v3715 = vunpack.c.l.b16 %v3663
  %v3716 = vunpack.c.l.b16 %v3664
  %v3717 = vunpack.c.l.b16 %v3665
  %v3718 = vunpack.c.l.b16 %v3666
  %v3719 = vunpack.c.l.b16 %v3667
  %v3720 = vunpack.c.l.b16 %v3668
  %v3721 = vunpack.c.l.b16 %v3669
  %v3722 = vunpack.c.l.b16 %v3670
  %v3723 = vunpack.c.l.b16 %v3671
  %v3724 = vunpack.c.l.b16 %v3672
  %v3725 = vunpack.c.l.b16 %v3673
  %v3726 = vunpack.c.l.b16 %v3674
  %v3727 = vunpack.c.l.b16 %v3675
  %v3728 = vunpack.c.l.b16 %v3676
  %v3729 = vunpack.c.l.b16 %v3677
  %v3730 = vunpack.c.l.b16 %v3678
  %v3731 = vpack.c.b16 %v3716, %v3715
  %v3732 = vpack.c.b16 %v3718, %v3717
  %v3733 = vpack.c.b16 %v3720, %v3719
  %v3734 = vpack.c.b16 %v3722, %v3721
  %v3735 = vpack.c.b16 %v3724, %v3723
  %v3736 = vpack.c.b16 %v3726, %v3725
  %v3737 = vpack.c.b16 %v3728, %v3727
  %v3738 = vpack.c.b16 %v3730, %v3729
  %v3763 = vunpack.c.l.b16 %v3679
  %v3764 = vunpack.c.l.b16 %v3680
  %v3765 = vunpack.c.l.b16 %v3681
  %v3766 = vunpack.c.l.b16 %v3682
  %v3767 = vunpack.c.l.b16 %v3683
  %v3768 = vunpack.c.l.b16 %v3684
  %v3769 = vunpack.c.l.b16 %v3685
  %v3770 = vunpack.c.l.b16 %v3686
  %v3771 = vunpack.c.l.b16 %v3687
  %v3772 = vunpack.c.l.b16 %v3688
  %v3773 = vunpack.c.l.b16 %v3689
  %v3774 = vunpack.c.l.b16 %v3690
  %v3775 = vunpack.c.l.b16 %v3691
  %v3776 = vunpack.c.l.b16 %v3692
  %v3777 = vunpack.c.l.b16 %v3693
  %v3778 = vunpack.c.l.b16 %v3694
  %v3779 = vpack.c.b16 %v3764, %v3763
  %v3780 = vpack.c.b16 %v3766, %v3765
  %v3781 = vpack.c.b16 %v3768, %v3767
  %v3782 = vpack.c.b16 %v3770, %v3769
  %v3783 = vpack.c.b16 %v3772, %v3771
  %v3784 = vpack.c.b16 %v3774, %v3773
  %v3785 = vpack.c.b16 %v3776, %v3775
  %v3786 = vpack.c.b16 %v3778, %v3777
  %3795 = vmatpush.bf16.msra.mxu0 %v3786
  %3796 = vmatpush.bf16.msra.mxu0 %v3785
  %3797 = vmatpush.bf16.msra.mxu0 %v3784
  %3798 = vmatpush.bf16.msra.mxu0 %v3783
  %3799 = vmatpush.bf16.msra.mxu0 %v3782
  %3800 = vmatpush.bf16.msra.mxu0 %v3781
  %3801 = vmatpush.bf16.msra.mxu0 %v3780
  %3802 = vmatpush.bf16.msra.mxu0 %v3779
  %3803 = vmatmul.bf16.gmra.mxu0 %v3731
  %v3804 = vpop.f32.mrf.mxu0
  %v3805 = vadd.f32 %v3697, %v3804
  %v3806 = vpop.f32.mrf.mxu0
  %v3807 = vadd.f32 %v3697, %v3806
  %3808 = vmatmul.bf16.gmra.mxu0 %v3732
  %v3809 = vpop.f32.mrf.mxu0
  %v3810 = vadd.f32 %v3697, %v3809
  %v3811 = vpop.f32.mrf.mxu0
  %v3812 = vadd.f32 %v3697, %v3811
  %3813 = vmatmul.bf16.gmra.mxu0 %v3733
  %v3814 = vpop.f32.mrf.mxu0
  %v3815 = vadd.f32 %v3697, %v3814
  %v3816 = vpop.f32.mrf.mxu0
  %v3817 = vadd.f32 %v3697, %v3816
  %3818 = vmatmul.bf16.gmra.mxu0 %v3734
  %v3819 = vpop.f32.mrf.mxu0
  %v3820 = vadd.f32 %v3697, %v3819
  %v3821 = vpop.f32.mrf.mxu0
  %v3822 = vadd.f32 %v3697, %v3821
  %3823 = vmatmul.bf16.gmra.mxu0 %v3735
  %v3824 = vpop.f32.mrf.mxu0
  %v3825 = vadd.f32 %v3697, %v3824
  %v3826 = vpop.f32.mrf.mxu0
  %v3827 = vadd.f32 %v3697, %v3826
  %3828 = vmatmul.bf16.gmra.mxu0 %v3736
  %v3829 = vpop.f32.mrf.mxu0
  %v3830 = vadd.f32 %v3697, %v3829
  %v3831 = vpop.f32.mrf.mxu0
  %v3832 = vadd.f32 %v3697, %v3831
  %3833 = vmatmul.bf16.gmra.mxu0 %v3737
  %v3834 = vpop.f32.mrf.mxu0
  %v3835 = vadd.f32 %v3697, %v3834
  %v3836 = vpop.f32.mrf.mxu0
  %v3837 = vadd.f32 %v3697, %v3836
  %3838 = vmatmul.bf16.gmra.mxu0 %v3738
  %v3839 = vpop.f32.mrf.mxu0
  %v3840 = vadd.f32 %v3697, %v3839
  %v3841 = vpop.f32.mrf.mxu0
  %v3842 = vadd.f32 %v3697, %v3841
  %3843 = vdwg.mxu0
  %v3844 = vadd.f32 %v3647, %v3805
  %v3845 = vadd.f32 %v3648, %v3807
  %v3846 = vadd.f32 %v3649, %v3810
  %v3847 = vadd.f32 %v3650, %v3812
  %v3848 = vadd.f32 %v3651, %v3815
  %v3849 = vadd.f32 %v3652, %v3817
  %v3850 = vadd.f32 %v3653, %v3820
  %v3851 = vadd.f32 %v3654, %v3822
  %v3852 = vadd.f32 %v3655, %v3825
  %v3853 = vadd.f32 %v3656, %v3827
  %v3854 = vadd.f32 %v3657, %v3830
  %v3855 = vadd.f32 %v3658, %v3832
  %v3856 = vadd.f32 %v3659, %v3835
  %v3857 = vadd.f32 %v3660, %v3837
  %v3858 = vadd.f32 %v3661, %v3840
  %v3859 = vadd.f32 %v3662, %v3842
  %v3860 = vmax.f32 %v3844, 0.0
  %v3861 = vmax.f32 %v3845, 0.0
  %v3862 = vmax.f32 %v3846, 0.0
  %v3863 = vmax.f32 %v3847, 0.0
  %v3864 = vmax.f32 %v3848, 0.0
  %v3865 = vmax.f32 %v3849, 0.0
  %v3866 = vmax.f32 %v3850, 0.0
  %v3867 = vmax.f32 %v3851, 0.0
  %v3868 = vmax.f32 %v3852, 0.0
  %v3869 = vmax.f32 %v3853, 0.0
  %v3870 = vmax.f32 %v3854, 0.0
  %v3871 = vmax.f32 %v3855, 0.0
  %v3872 = vmax.f32 %v3856, 0.0
  %v3873 = vmax.f32 %v3857, 0.0
  %v3874 = vmax.f32 %v3858, 0.0
  %v3875 = vmax.f32 %v3859, 0.0
  %v3876 = vpack.c.bf16 %v3860, %v3860
  %v3877 = vpack.c.bf16 %v3861, %v3861
  %v3878 = vpack.c.bf16 %v3862, %v3862
  %v3879 = vpack.c.bf16 %v3863, %v3863
  %v3880 = vpack.c.bf16 %v3864, %v3864
  %v3881 = vpack.c.bf16 %v3865, %v3865
  %v3882 = vpack.c.bf16 %v3866, %v3866
  %v3883 = vpack.c.bf16 %v3867, %v3867
  %v3884 = vpack.c.bf16 %v3868, %v3868
  %v3885 = vpack.c.bf16 %v3869, %v3869
  %v3886 = vpack.c.bf16 %v3870, %v3870
  %v3887 = vpack.c.bf16 %v3871, %v3871
  %v3888 = vpack.c.bf16 %v3872, %v3872
  %v3889 = vpack.c.bf16 %v3873, %v3873
  %v3890 = vpack.c.bf16 %v3874, %v3874
  %v3891 = vpack.c.bf16 %v3875, %v3875
  %3892 = vst [vmem:[%s7] sm:$0xf] %v3876
  %3893 = vst [vmem:[%s7 + $0x4] sm:$0xf] %v3877
  %3894 = vst [vmem:[%s7 + $0x8] sm:$0xf] %v3878
  %3895 = vst [vmem:[%s7 + $0xc] sm:$0xf] %v3879
  %3896 = vst [vmem:[%s7 + $0x10] sm:$0xf] %v3880
  %3897 = vst [vmem:[%s7 + $0x14] sm:$0xf] %v3881
  %3898 = vst [vmem:[%s7 + $0x18] sm:$0xf] %v3882
  %3899 = vst [vmem:[%s7 + $0x1c] sm:$0xf] %v3883
  %3900 = vst [vmem:[%s7 + $0x20] sm:$0xf] %v3884
  %3901 = vst [vmem:[%s7 + $0x24] sm:$0xf] %v3885
  %3902 = vst [vmem:[%s7 + $0x28] sm:$0xf] %v3886
  %3903 = vst [vmem:[%s7 + $0x2c] sm:$0xf] %v3887
  %3904 = vst [vmem:[%s7 + $0x30] sm:$0xf] %v3888
  %3905 = vst [vmem:[%s7 + $0x34] sm:$0xf] %v3889
  %3906 = vst [vmem:[%s7 + $0x38] sm:$0xf] %v3890
  %3907 = vst [vmem:[%s7 + $0x3c] sm:$0xf] %v3891
  %s3908 = scalar_lea.vmem %s0, 352
  %v3909 = vld [vmem:[%s3908] sm:$0xf]
  %v3910 = vld [vmem:[%s3908 + $0x4] sm:$0xf]
  %v3911 = vld [vmem:[%s3908 + $0x8] sm:$0xf]
  %v3912 = vld [vmem:[%s3908 + $0xc] sm:$0xf]
  %v3913 = vld [vmem:[%s3908 + $0x10] sm:$0xf]
  %v3914 = vld [vmem:[%s3908 + $0x14] sm:$0xf]
  %v3915 = vld [vmem:[%s3908 + $0x18] sm:$0xf]
  %v3916 = vld [vmem:[%s3908 + $0x1c] sm:$0xf]
  %v3917 = vld [vmem:[%s3908 + $0x20] sm:$0xf]
  %v3918 = vld [vmem:[%s3908 + $0x24] sm:$0xf]
  %v3919 = vld [vmem:[%s3908 + $0x28] sm:$0xf]
  %v3920 = vld [vmem:[%s3908 + $0x2c] sm:$0xf]
  %v3921 = vld [vmem:[%s3908 + $0x30] sm:$0xf]
  %v3922 = vld [vmem:[%s3908 + $0x34] sm:$0xf]
  %v3923 = vld [vmem:[%s3908 + $0x38] sm:$0xf]
  %v3924 = vld [vmem:[%s3908 + $0x3c] sm:$0xf]
  %v3925 = vld [vmem:[%s1] sm:$0xf]
  %v3926 = vld [vmem:[%s1 + $0x4] sm:$0xf]
  %v3927 = vld [vmem:[%s1 + $0x8] sm:$0xf]
  %v3928 = vld [vmem:[%s1 + $0xc] sm:$0xf]
  %v3929 = vld [vmem:[%s1 + $0x10] sm:$0xf]
  %v3930 = vld [vmem:[%s1 + $0x14] sm:$0xf]
  %v3931 = vld [vmem:[%s1 + $0x18] sm:$0xf]
  %v3932 = vld [vmem:[%s1 + $0x1c] sm:$0xf]
  %v3933 = vld [vmem:[%s1 + $0x20] sm:$0xf]
  %v3934 = vld [vmem:[%s1 + $0x24] sm:$0xf]
  %v3935 = vld [vmem:[%s1 + $0x28] sm:$0xf]
  %v3936 = vld [vmem:[%s1 + $0x2c] sm:$0xf]
  %v3937 = vld [vmem:[%s1 + $0x30] sm:$0xf]
  %v3938 = vld [vmem:[%s1 + $0x34] sm:$0xf]
  %v3939 = vld [vmem:[%s1 + $0x38] sm:$0xf]
  %v3940 = vld [vmem:[%s1 + $0x3c] sm:$0xf]
  %s3941 = scalar_lea.vmem %s0, 440
  %v3942 = vld [vmem:[%s3941] sm:$0xf]
  %v3943 = vld [vmem:[%s3941 + $0x4] sm:$0xf]
  %v3944 = vld [vmem:[%s3941 + $0x8] sm:$0xf]
  %v3945 = vld [vmem:[%s3941 + $0xc] sm:$0xf]
  %v3946 = vld [vmem:[%s3941 + $0x10] sm:$0xf]
  %v3947 = vld [vmem:[%s3941 + $0x14] sm:$0xf]
  %v3948 = vld [vmem:[%s3941 + $0x18] sm:$0xf]
  %v3949 = vld [vmem:[%s3941 + $0x1c] sm:$0xf]
  %v3950 = vld [vmem:[%s3941 + $0x20] sm:$0xf]
  %v3951 = vld [vmem:[%s3941 + $0x24] sm:$0xf]
  %v3952 = vld [vmem:[%s3941 + $0x28] sm:$0xf]
  %v3953 = vld [vmem:[%s3941 + $0x2c] sm:$0xf]
  %v3954 = vld [vmem:[%s3941 + $0x30] sm:$0xf]
  %v3955 = vld [vmem:[%s3941 + $0x34] sm:$0xf]
  %v3956 = vld [vmem:[%s3941 + $0x38] sm:$0xf]
  %v3957 = vld [vmem:[%s3941 + $0x3c] sm:$0xf]
  %v3958 = vld [vmem:[%s300] sm:$0xf]
  %v3959 = vld [vmem:[%s300 + $0x4] sm:$0xf]
  %v3960 = vld [vmem:[%s300 + $0x8] sm:$0xf]
  %v3961 = vld [vmem:[%s300 + $0xc] sm:$0xf]
  %v3962 = vld [vmem:[%s300 + $0x10] sm:$0xf]
  %v3963 = vld [vmem:[%s300 + $0x14] sm:$0xf]
  %v3964 = vld [vmem:[%s300 + $0x18] sm:$0xf]
  %v3965 = vld [vmem:[%s300 + $0x1c] sm:$0xf]
  %v3966 = vld [vmem:[%s300 + $0x20] sm:$0xf]
  %v3967 = vld [vmem:[%s300 + $0x24] sm:$0xf]
  %v3968 = vld [vmem:[%s300 + $0x28] sm:$0xf]
  %v3969 = vld [vmem:[%s300 + $0x2c] sm:$0xf]
  %v3970 = vld [vmem:[%s300 + $0x30] sm:$0xf]
  %v3971 = vld [vmem:[%s300 + $0x34] sm:$0xf]
  %v3972 = vld [vmem:[%s300 + $0x38] sm:$0xf]
  %v3973 = vld [vmem:[%s300 + $0x3c] sm:$0xf]
  %v3990 = vunpack.c.l.b16 %v3942
  %v3991 = vunpack.c.l.b16 %v3943
  %v3992 = vunpack.c.l.b16 %v3944
  %v3993 = vunpack.c.l.b16 %v3945
  %v3994 = vunpack.c.l.b16 %v3946
  %v3995 = vunpack.c.l.b16 %v3947
  %v3996 = vunpack.c.l.b16 %v3948
  %v3997 = vunpack.c.l.b16 %v3949
  %v3998 = vunpack.c.l.b16 %v3950
  %v3999 = vunpack.c.l.b16 %v3951
  %v4000 = vunpack.c.l.b16 %v3952
  %v4001 = vunpack.c.l.b16 %v3953
  %v4002 = vunpack.c.l.b16 %v3954
  %v4003 = vunpack.c.l.b16 %v3955
  %v4004 = vunpack.c.l.b16 %v3956
  %v4005 = vunpack.c.l.b16 %v3957
  %v4006 = vpack.c.b16 %v3991, %v3990
  %v4007 = vpack.c.b16 %v3993, %v3992
  %v4008 = vpack.c.b16 %v3995, %v3994
  %v4009 = vpack.c.b16 %v3997, %v3996
  %v4010 = vpack.c.b16 %v3999, %v3998
  %v4011 = vpack.c.b16 %v4001, %v4000
  %v4012 = vpack.c.b16 %v4003, %v4002
  %v4013 = vpack.c.b16 %v4005, %v4004
  %v4038 = vunpack.c.l.b16 %v3958
  %v4039 = vunpack.c.l.b16 %v3959
  %v4040 = vunpack.c.l.b16 %v3960
  %v4041 = vunpack.c.l.b16 %v3961
  %v4042 = vunpack.c.l.b16 %v3962
  %v4043 = vunpack.c.l.b16 %v3963
  %v4044 = vunpack.c.l.b16 %v3964
  %v4045 = vunpack.c.l.b16 %v3965
  %v4046 = vunpack.c.l.b16 %v3966
  %v4047 = vunpack.c.l.b16 %v3967
  %v4048 = vunpack.c.l.b16 %v3968
  %v4049 = vunpack.c.l.b16 %v3969
  %v4050 = vunpack.c.l.b16 %v3970
  %v4051 = vunpack.c.l.b16 %v3971
  %v4052 = vunpack.c.l.b16 %v3972
  %v4053 = vunpack.c.l.b16 %v3973
  %v4054 = vpack.c.b16 %v4039, %v4038
  %v4055 = vpack.c.b16 %v4041, %v4040
  %v4056 = vpack.c.b16 %v4043, %v4042
  %v4057 = vpack.c.b16 %v4045, %v4044
  %v4058 = vpack.c.b16 %v4047, %v4046
  %v4059 = vpack.c.b16 %v4049, %v4048
  %v4060 = vpack.c.b16 %v4051, %v4050
  %v4061 = vpack.c.b16 %v4053, %v4052
  %4070 = vmatpush.bf16.msra.mxu0 %v4061
  %4071 = vmatpush.bf16.msra.mxu0 %v4060
  %4072 = vmatpush.bf16.msra.mxu0 %v4059
  %4073 = vmatpush.bf16.msra.mxu0 %v4058
  %4074 = vmatpush.bf16.msra.mxu0 %v4057
  %4075 = vmatpush.bf16.msra.mxu0 %v4056
  %4076 = vmatpush.bf16.msra.mxu0 %v4055
  %4077 = vmatpush.bf16.msra.mxu0 %v4054
  %4078 = vmatmul.bf16.gmra.mxu0 %v4006
  %v4079 = vpop.f32.mrf.mxu0
  %v4080 = vadd.f32 0.0, %v4079
  %v4081 = vpop.f32.mrf.mxu0
  %v4082 = vadd.f32 0.0, %v4081
  %4083 = vmatmul.bf16.gmra.mxu0 %v4007
  %v4084 = vpop.f32.mrf.mxu0
  %v4085 = vadd.f32 0.0, %v4084
  %v4086 = vpop.f32.mrf.mxu0
  %v4087 = vadd.f32 0.0, %v4086
  %4088 = vmatmul.bf16.gmra.mxu0 %v4008
  %v4089 = vpop.f32.mrf.mxu0
  %v4090 = vadd.f32 0.0, %v4089
  %v4091 = vpop.f32.mrf.mxu0
  %v4092 = vadd.f32 0.0, %v4091
  %4093 = vmatmul.bf16.gmra.mxu0 %v4009
  %v4094 = vpop.f32.mrf.mxu0
  %v4095 = vadd.f32 0.0, %v4094
  %v4096 = vpop.f32.mrf.mxu0
  %v4097 = vadd.f32 0.0, %v4096
  %4098 = vmatmul.bf16.gmra.mxu0 %v4010
  %v4099 = vpop.f32.mrf.mxu0
  %v4100 = vadd.f32 0.0, %v4099
  %v4101 = vpop.f32.mrf.mxu0
  %v4102 = vadd.f32 0.0, %v4101
  %4103 = vmatmul.bf16.gmra.mxu0 %v4011
  %v4104 = vpop.f32.mrf.mxu0
  %v4105 = vadd.f32 0.0, %v4104
  %v4106 = vpop.f32.mrf.mxu0
  %v4107 = vadd.f32 0.0, %v4106
  %4108 = vmatmul.bf16.gmra.mxu0 %v4012
  %v4109 = vpop.f32.mrf.mxu0
  %v4110 = vadd.f32 0.0, %v4109
  %v4111 = vpop.f32.mrf.mxu0
  %v4112 = vadd.f32 0.0, %v4111
  %4113 = vmatmul.bf16.gmra.mxu0 %v4013
  %v4114 = vpop.f32.mrf.mxu0
  %v4115 = vadd.f32 0.0, %v4114
  %v4116 = vpop.f32.mrf.mxu0
  %v4117 = vadd.f32 0.0, %v4116
  %4118 = vdwg.mxu0
  %v4135 = vunpack.c.l.b16 %v3909
  %v4136 = vunpack.c.l.b16 %v3910
  %v4137 = vunpack.c.l.b16 %v3911
  %v4138 = vunpack.c.l.b16 %v3912
  %v4139 = vunpack.c.l.b16 %v3913
  %v4140 = vunpack.c.l.b16 %v3914
  %v4141 = vunpack.c.l.b16 %v3915
  %v4142 = vunpack.c.l.b16 %v3916
  %v4143 = vunpack.c.l.b16 %v3917
  %v4144 = vunpack.c.l.b16 %v3918
  %v4145 = vunpack.c.l.b16 %v3919
  %v4146 = vunpack.c.l.b16 %v3920
  %v4147 = vunpack.c.l.b16 %v3921
  %v4148 = vunpack.c.l.b16 %v3922
  %v4149 = vunpack.c.l.b16 %v3923
  %v4150 = vunpack.c.l.b16 %v3924
  %v4151 = vpack.c.b16 %v4136, %v4135
  %v4152 = vpack.c.b16 %v4138, %v4137
  %v4153 = vpack.c.b16 %v4140, %v4139
  %v4154 = vpack.c.b16 %v4142, %v4141
  %v4155 = vpack.c.b16 %v4144, %v4143
  %v4156 = vpack.c.b16 %v4146, %v4145
  %v4157 = vpack.c.b16 %v4148, %v4147
  %v4158 = vpack.c.b16 %v4150, %v4149
  %v4183 = vunpack.c.l.b16 %v3925
  %v4184 = vunpack.c.l.b16 %v3926
  %v4185 = vunpack.c.l.b16 %v3927
  %v4186 = vunpack.c.l.b16 %v3928
  %v4187 = vunpack.c.l.b16 %v3929
  %v4188 = vunpack.c.l.b16 %v3930
  %v4189 = vunpack.c.l.b16 %v3931
  %v4190 = vunpack.c.l.b16 %v3932
  %v4191 = vunpack.c.l.b16 %v3933
  %v4192 = vunpack.c.l.b16 %v3934
  %v4193 = vunpack.c.l.b16 %v3935
  %v4194 = vunpack.c.l.b16 %v3936
  %v4195 = vunpack.c.l.b16 %v3937
  %v4196 = vunpack.c.l.b16 %v3938
  %v4197 = vunpack.c.l.b16 %v3939
  %v4198 = vunpack.c.l.b16 %v3940
  %v4199 = vpack.c.b16 %v4184, %v4183
  %v4200 = vpack.c.b16 %v4186, %v4185
  %v4201 = vpack.c.b16 %v4188, %v4187
  %v4202 = vpack.c.b16 %v4190, %v4189
  %v4203 = vpack.c.b16 %v4192, %v4191
  %v4204 = vpack.c.b16 %v4194, %v4193
  %v4205 = vpack.c.b16 %v4196, %v4195
  %v4206 = vpack.c.b16 %v4198, %v4197
  %4215 = vmatpush.bf16.msra.mxu0 %v4206
  %4216 = vmatpush.bf16.msra.mxu0 %v4205
  %4217 = vmatpush.bf16.msra.mxu0 %v4204
  %4218 = vmatpush.bf16.msra.mxu0 %v4203
  %4219 = vmatpush.bf16.msra.mxu0 %v4202
  %4220 = vmatpush.bf16.msra.mxu0 %v4201
  %4221 = vmatpush.bf16.msra.mxu0 %v4200
  %4222 = vmatpush.bf16.msra.mxu0 %v4199
  %4223 = vmatmul.bf16.gmra.mxu0 %v4151
  %v4224 = vpop.f32.mrf.mxu0
  %v4225 = vadd.f32 %v4080, %v4224
  %v4226 = vpop.f32.mrf.mxu0
  %v4227 = vadd.f32 %v4082, %v4226
  %4228 = vmatmul.bf16.gmra.mxu0 %v4152
  %v4229 = vpop.f32.mrf.mxu0
  %v4230 = vadd.f32 %v4085, %v4229
  %v4231 = vpop.f32.mrf.mxu0
  %v4232 = vadd.f32 %v4087, %v4231
  %4233 = vmatmul.bf16.gmra.mxu0 %v4153
  %v4234 = vpop.f32.mrf.mxu0
  %v4235 = vadd.f32 %v4090, %v4234
  %v4236 = vpop.f32.mrf.mxu0
  %v4237 = vadd.f32 %v4092, %v4236
  %4238 = vmatmul.bf16.gmra.mxu0 %v4154
  %v4239 = vpop.f32.mrf.mxu0
  %v4240 = vadd.f32 %v4095, %v4239
  %v4241 = vpop.f32.mrf.mxu0
  %v4242 = vadd.f32 %v4097, %v4241
  %4243 = vmatmul.bf16.gmra.mxu0 %v4155
  %v4244 = vpop.f32.mrf.mxu0
  %v4245 = vadd.f32 %v4100, %v4244
  %v4246 = vpop.f32.mrf.mxu0
  %v4247 = vadd.f32 %v4102, %v4246
  %4248 = vmatmul.bf16.gmra.mxu0 %v4156
  %v4249 = vpop.f32.mrf.mxu0
  %v4250 = vadd.f32 %v4105, %v4249
  %v4251 = vpop.f32.mrf.mxu0
  %v4252 = vadd.f32 %v4107, %v4251
  %4253 = vmatmul.bf16.gmra.mxu0 %v4157
  %v4254 = vpop.f32.mrf.mxu0
  %v4255 = vadd.f32 %v4110, %v4254
  %v4256 = vpop.f32.mrf.mxu0
  %v4257 = vadd.f32 %v4112, %v4256
  %4258 = vmatmul.bf16.gmra.mxu0 %v4158
  %v4259 = vpop.f32.mrf.mxu0
  %v4260 = vadd.f32 %v4115, %v4259
  %v4261 = vpop.f32.mrf.mxu0
  %v4262 = vadd.f32 %v4117, %v4261
  %4263 = vdwg.mxu0
  %v4264 = vld [vmem:[%s3908] sm:$0xf]
  %v4265 = vld [vmem:[%s3908 + $0x4] sm:$0xf]
  %v4266 = vld [vmem:[%s3908 + $0x8] sm:$0xf]
  %v4267 = vld [vmem:[%s3908 + $0xc] sm:$0xf]
  %v4268 = vld [vmem:[%s3908 + $0x10] sm:$0xf]
  %v4269 = vld [vmem:[%s3908 + $0x14] sm:$0xf]
  %v4270 = vld [vmem:[%s3908 + $0x18] sm:$0xf]
  %v4271 = vld [vmem:[%s3908 + $0x1c] sm:$0xf]
  %v4272 = vld [vmem:[%s3908 + $0x20] sm:$0xf]
  %v4273 = vld [vmem:[%s3908 + $0x24] sm:$0xf]
  %v4274 = vld [vmem:[%s3908 + $0x28] sm:$0xf]
  %v4275 = vld [vmem:[%s3908 + $0x2c] sm:$0xf]
  %v4276 = vld [vmem:[%s3908 + $0x30] sm:$0xf]
  %v4277 = vld [vmem:[%s3908 + $0x34] sm:$0xf]
  %v4278 = vld [vmem:[%s3908 + $0x38] sm:$0xf]
  %v4279 = vld [vmem:[%s3908 + $0x3c] sm:$0xf]
  %v4280 = vld [vmem:[%s3908 + $0x40] sm:$0x1]
  %v4281 = vld [vmem:[%s624] sm:$0xf]
  %v4282 = vld [vmem:[%s624 + $0x4] sm:$0xf]
  %v4283 = vld [vmem:[%s624 + $0x8] sm:$0xf]
  %v4284 = vld [vmem:[%s624 + $0xc] sm:$0xf]
  %v4285 = vld [vmem:[%s624 + $0x10] sm:$0xf]
  %v4286 = vld [vmem:[%s624 + $0x14] sm:$0xf]
  %v4287 = vld [vmem:[%s624 + $0x18] sm:$0xf]
  %v4288 = vld [vmem:[%s624 + $0x1c] sm:$0xf]
  %v4289 = vld [vmem:[%s624 + $0x20] sm:$0xf]
  %v4290 = vld [vmem:[%s624 + $0x24] sm:$0xf]
  %v4291 = vld [vmem:[%s624 + $0x28] sm:$0xf]
  %v4292 = vld [vmem:[%s624 + $0x2c] sm:$0xf]
  %v4293 = vld [vmem:[%s624 + $0x30] sm:$0xf]
  %v4294 = vld [vmem:[%s624 + $0x34] sm:$0xf]
  %v4295 = vld [vmem:[%s624 + $0x38] sm:$0xf]
  %v4296 = vld [vmem:[%s624 + $0x3c] sm:$0xf]
  %v4314 = vunpack.c.l.b16 %v4264
  %v4315 = vunpack.c.l.b16 %v4265
  %v4316 = vunpack.c.l.b16 %v4266
  %v4317 = vunpack.c.l.b16 %v4267
  %v4318 = vunpack.c.l.b16 %v4268
  %v4319 = vunpack.c.l.b16 %v4269
  %v4320 = vunpack.c.l.b16 %v4270
  %v4321 = vunpack.c.l.b16 %v4271
  %v4322 = vunpack.c.l.b16 %v4272
  %v4323 = vunpack.c.l.b16 %v4273
  %v4324 = vunpack.c.l.b16 %v4274
  %v4325 = vunpack.c.l.b16 %v4275
  %v4326 = vunpack.c.l.b16 %v4276
  %v4327 = vunpack.c.l.b16 %v4277
  %v4328 = vunpack.c.l.b16 %v4278
  %v4329 = vunpack.c.l.b16 %v4279
  %v4330 = vunpack.c.l.b16 %v4280
  %v4331 = vpack.c.b16 %v4315, %v4314
  %v4332 = vpack.c.b16 %v4317, %v4316
  %v4333 = vpack.c.b16 %v4319, %v4318
  %v4334 = vpack.c.b16 %v4321, %v4320
  %v4335 = vpack.c.b16 %v4323, %v4322
  %v4336 = vpack.c.b16 %v4325, %v4324
  %v4337 = vpack.c.b16 %v4327, %v4326
  %v4338 = vpack.c.b16 %v4329, %v4328
  %v4339 = vpack.c.b16 %v4330, %v4330
  %v4341 = vshrl.u32 %v4331, 16
  %v4343 = vshll.u32 %v4331, 16
  %v4345 = vrot.slane %v4343, 1
  %v4346 = vor.u32 %v4341, %v4345
  %v4348 = vshll.u32 %v4332, 16
  %v4350 = vrot.slane %v4348, 1
  %v4351 = vsel %vm684, %v4346, %v4350
  %v4352 = vshrl.u32 %v4332, 16
  %v4354 = vor.u32 %v4352, %v4350
  %v4356 = vshll.u32 %v4333, 16
  %v4358 = vrot.slane %v4356, 1
  %v4359 = vsel %vm684, %v4354, %v4358
  %v4360 = vshrl.u32 %v4333, 16
  %v4362 = vor.u32 %v4360, %v4358
  %v4364 = vshll.u32 %v4334, 16
  %v4366 = vrot.slane %v4364, 1
  %v4367 = vsel %vm684, %v4362, %v4366
  %v4368 = vshrl.u32 %v4334, 16
  %v4370 = vor.u32 %v4368, %v4366
  %v4372 = vshll.u32 %v4335, 16
  %v4374 = vrot.slane %v4372, 1
  %v4375 = vsel %vm684, %v4370, %v4374
  %v4376 = vshrl.u32 %v4335, 16
  %v4378 = vor.u32 %v4376, %v4374
  %v4380 = vshll.u32 %v4336, 16
  %v4382 = vrot.slane %v4380, 1
  %v4383 = vsel %vm684, %v4378, %v4382
  %v4384 = vshrl.u32 %v4336, 16
  %v4386 = vor.u32 %v4384, %v4382
  %v4388 = vshll.u32 %v4337, 16
  %v4390 = vrot.slane %v4388, 1
  %v4391 = vsel %vm684, %v4386, %v4390
  %v4392 = vshrl.u32 %v4337, 16
  %v4394 = vor.u32 %v4392, %v4390
  %v4396 = vshll.u32 %v4338, 16
  %v4398 = vrot.slane %v4396, 1
  %v4399 = vsel %vm684, %v4394, %v4398
  %v4400 = vshrl.u32 %v4338, 16
  %v4402 = vor.u32 %v4400, %v4398
  %v4404 = vshll.u32 %v4339, 16
  %v4406 = vrot.slane %v4404, 1
  %v4407 = vsel %vm684, %v4402, %v4406
  %v4432 = vunpack.c.l.b16 %v4281
  %v4433 = vunpack.c.l.b16 %v4282
  %v4434 = vunpack.c.l.b16 %v4283
  %v4435 = vunpack.c.l.b16 %v4284
  %v4436 = vunpack.c.l.b16 %v4285
  %v4437 = vunpack.c.l.b16 %v4286
  %v4438 = vunpack.c.l.b16 %v4287
  %v4439 = vunpack.c.l.b16 %v4288
  %v4440 = vunpack.c.l.b16 %v4289
  %v4441 = vunpack.c.l.b16 %v4290
  %v4442 = vunpack.c.l.b16 %v4291
  %v4443 = vunpack.c.l.b16 %v4292
  %v4444 = vunpack.c.l.b16 %v4293
  %v4445 = vunpack.c.l.b16 %v4294
  %v4446 = vunpack.c.l.b16 %v4295
  %v4447 = vunpack.c.l.b16 %v4296
  %v4448 = vpack.c.b16 %v4433, %v4432
  %v4449 = vpack.c.b16 %v4435, %v4434
  %v4450 = vpack.c.b16 %v4437, %v4436
  %v4451 = vpack.c.b16 %v4439, %v4438
  %v4452 = vpack.c.b16 %v4441, %v4440
  %v4453 = vpack.c.b16 %v4443, %v4442
  %v4454 = vpack.c.b16 %v4445, %v4444
  %v4455 = vpack.c.b16 %v4447, %v4446
  %4464 = vmatpush.bf16.msra.mxu0 %v4455
  %4465 = vmatpush.bf16.msra.mxu0 %v4454
  %4466 = vmatpush.bf16.msra.mxu0 %v4453
  %4467 = vmatpush.bf16.msra.mxu0 %v4452
  %4468 = vmatpush.bf16.msra.mxu0 %v4451
  %4469 = vmatpush.bf16.msra.mxu0 %v4450
  %4470 = vmatpush.bf16.msra.mxu0 %v4449
  %4471 = vmatpush.bf16.msra.mxu0 %v4448
  %4472 = vmatmul.bf16.gmra.mxu0 %v4351
  %v4473 = vpop.f32.mrf.mxu0
  %v4474 = vadd.f32 0.0, %v4473
  %v4475 = vpop.f32.mrf.mxu0
  %v4476 = vadd.f32 0.0, %v4475
  %4477 = vmatmul.bf16.gmra.mxu0 %v4359
  %v4478 = vpop.f32.mrf.mxu0
  %v4479 = vadd.f32 0.0, %v4478
  %v4480 = vpop.f32.mrf.mxu0
  %v4481 = vadd.f32 0.0, %v4480
  %4482 = vmatmul.bf16.gmra.mxu0 %v4367
  %v4483 = vpop.f32.mrf.mxu0
  %v4484 = vadd.f32 0.0, %v4483
  %v4485 = vpop.f32.mrf.mxu0
  %v4486 = vadd.f32 0.0, %v4485
  %4487 = vmatmul.bf16.gmra.mxu0 %v4375
  %v4488 = vpop.f32.mrf.mxu0
  %v4489 = vadd.f32 0.0, %v4488
  %v4490 = vpop.f32.mrf.mxu0
  %v4491 = vadd.f32 0.0, %v4490
  %4492 = vmatmul.bf16.gmra.mxu0 %v4383
  %v4493 = vpop.f32.mrf.mxu0
  %v4494 = vadd.f32 0.0, %v4493
  %v4495 = vpop.f32.mrf.mxu0
  %v4496 = vadd.f32 0.0, %v4495
  %4497 = vmatmul.bf16.gmra.mxu0 %v4391
  %v4498 = vpop.f32.mrf.mxu0
  %v4499 = vadd.f32 0.0, %v4498
  %v4500 = vpop.f32.mrf.mxu0
  %v4501 = vadd.f32 0.0, %v4500
  %4502 = vmatmul.bf16.gmra.mxu0 %v4399
  %v4503 = vpop.f32.mrf.mxu0
  %v4504 = vadd.f32 0.0, %v4503
  %v4505 = vpop.f32.mrf.mxu0
  %v4506 = vadd.f32 0.0, %v4505
  %4507 = vmatmul.bf16.gmra.mxu0 %v4407
  %v4508 = vpop.f32.mrf.mxu0
  %v4509 = vadd.f32 0.0, %v4508
  %v4510 = vpop.f32.mrf.mxu0
  %v4511 = vadd.f32 0.0, %v4510
  %4512 = vdwg.mxu0
  %v4513 = vadd.f32 %v4225, %v4474
  %v4514 = vadd.f32 %v4227, %v4476
  %v4515 = vadd.f32 %v4230, %v4479
  %v4516 = vadd.f32 %v4232, %v4481
  %v4517 = vadd.f32 %v4235, %v4484
  %v4518 = vadd.f32 %v4237, %v4486
  %v4519 = vadd.f32 %v4240, %v4489
  %v4520 = vadd.f32 %v4242, %v4491
  %v4521 = vadd.f32 %v4245, %v4494
  %v4522 = vadd.f32 %v4247, %v4496
  %v4523 = vadd.f32 %v4250, %v4499
  %v4524 = vadd.f32 %v4252, %v4501
  %v4525 = vadd.f32 %v4255, %v4504
  %v4526 = vadd.f32 %v4257, %v4506
  %v4527 = vadd.f32 %v4260, %v4509
  %v4528 = vadd.f32 %v4262, %v4511
  %s4529 = scalar_lea.vmem %s0, 528
  %v4530 = vld [vmem:[%s4529] sm:$0xf]
  %v4531 = vld [vmem:[%s4529 + $0x4] sm:$0xf]
  %v4532 = vld [vmem:[%s4529 + $0x8] sm:$0xf]
  %v4533 = vld [vmem:[%s4529 + $0xc] sm:$0xf]
  %v4534 = vld [vmem:[%s4529 + $0x10] sm:$0xf]
  %v4535 = vld [vmem:[%s4529 + $0x14] sm:$0xf]
  %v4536 = vld [vmem:[%s4529 + $0x18] sm:$0xf]
  %v4537 = vld [vmem:[%s4529 + $0x1c] sm:$0xf]
  %v4538 = vld [vmem:[%s4529 + $0x20] sm:$0xf]
  %v4539 = vld [vmem:[%s4529 + $0x24] sm:$0xf]
  %v4540 = vld [vmem:[%s4529 + $0x28] sm:$0xf]
  %v4541 = vld [vmem:[%s4529 + $0x2c] sm:$0xf]
  %v4542 = vld [vmem:[%s4529 + $0x30] sm:$0xf]
  %v4543 = vld [vmem:[%s4529 + $0x34] sm:$0xf]
  %v4544 = vld [vmem:[%s4529 + $0x38] sm:$0xf]
  %v4545 = vld [vmem:[%s4529 + $0x3c] sm:$0xf]
  %v4546 = vld [vmem:[%s891] sm:$0xf]
  %v4547 = vld [vmem:[%s891 + $0x4] sm:$0xf]
  %v4548 = vld [vmem:[%s891 + $0x8] sm:$0xf]
  %v4549 = vld [vmem:[%s891 + $0xc] sm:$0xf]
  %v4550 = vld [vmem:[%s891 + $0x10] sm:$0xf]
  %v4551 = vld [vmem:[%s891 + $0x14] sm:$0xf]
  %v4552 = vld [vmem:[%s891 + $0x18] sm:$0xf]
  %v4553 = vld [vmem:[%s891 + $0x1c] sm:$0xf]
  %v4554 = vld [vmem:[%s891 + $0x20] sm:$0xf]
  %v4555 = vld [vmem:[%s891 + $0x24] sm:$0xf]
  %v4556 = vld [vmem:[%s891 + $0x28] sm:$0xf]
  %v4557 = vld [vmem:[%s891 + $0x2c] sm:$0xf]
  %v4558 = vld [vmem:[%s891 + $0x30] sm:$0xf]
  %v4559 = vld [vmem:[%s891 + $0x34] sm:$0xf]
  %v4560 = vld [vmem:[%s891 + $0x38] sm:$0xf]
  %v4561 = vld [vmem:[%s891 + $0x3c] sm:$0xf]
  %v4578 = vunpack.c.l.b16 %v4530
  %v4579 = vunpack.c.l.b16 %v4531
  %v4580 = vunpack.c.l.b16 %v4532
  %v4581 = vunpack.c.l.b16 %v4533
  %v4582 = vunpack.c.l.b16 %v4534
  %v4583 = vunpack.c.l.b16 %v4535
  %v4584 = vunpack.c.l.b16 %v4536
  %v4585 = vunpack.c.l.b16 %v4537
  %v4586 = vunpack.c.l.b16 %v4538
  %v4587 = vunpack.c.l.b16 %v4539
  %v4588 = vunpack.c.l.b16 %v4540
  %v4589 = vunpack.c.l.b16 %v4541
  %v4590 = vunpack.c.l.b16 %v4542
  %v4591 = vunpack.c.l.b16 %v4543
  %v4592 = vunpack.c.l.b16 %v4544
  %v4593 = vunpack.c.l.b16 %v4545
  %v4594 = vpack.c.b16 %v4579, %v4578
  %v4595 = vpack.c.b16 %v4581, %v4580
  %v4596 = vpack.c.b16 %v4583, %v4582
  %v4597 = vpack.c.b16 %v4585, %v4584
  %v4598 = vpack.c.b16 %v4587, %v4586
  %v4599 = vpack.c.b16 %v4589, %v4588
  %v4600 = vpack.c.b16 %v4591, %v4590
  %v4601 = vpack.c.b16 %v4593, %v4592
  %v4626 = vunpack.c.l.b16 %v4546
  %v4627 = vunpack.c.l.b16 %v4547
  %v4628 = vunpack.c.l.b16 %v4548
  %v4629 = vunpack.c.l.b16 %v4549
  %v4630 = vunpack.c.l.b16 %v4550
  %v4631 = vunpack.c.l.b16 %v4551
  %v4632 = vunpack.c.l.b16 %v4552
  %v4633 = vunpack.c.l.b16 %v4553
  %v4634 = vunpack.c.l.b16 %v4554
  %v4635 = vunpack.c.l.b16 %v4555
  %v4636 = vunpack.c.l.b16 %v4556
  %v4637 = vunpack.c.l.b16 %v4557
  %v4638 = vunpack.c.l.b16 %v4558
  %v4639 = vunpack.c.l.b16 %v4559
  %v4640 = vunpack.c.l.b16 %v4560
  %v4641 = vunpack.c.l.b16 %v4561
  %v4642 = vpack.c.b16 %v4627, %v4626
  %v4643 = vpack.c.b16 %v4629, %v4628
  %v4644 = vpack.c.b16 %v4631, %v4630
  %v4645 = vpack.c.b16 %v4633, %v4632
  %v4646 = vpack.c.b16 %v4635, %v4634
  %v4647 = vpack.c.b16 %v4637, %v4636
  %v4648 = vpack.c.b16 %v4639, %v4638
  %v4649 = vpack.c.b16 %v4641, %v4640
  %4658 = vmatpush.bf16.msra.mxu0 %v4649
  %4659 = vmatpush.bf16.msra.mxu0 %v4648
  %4660 = vmatpush.bf16.msra.mxu0 %v4647
  %4661 = vmatpush.bf16.msra.mxu0 %v4646
  %4662 = vmatpush.bf16.msra.mxu0 %v4645
  %4663 = vmatpush.bf16.msra.mxu0 %v4644
  %4664 = vmatpush.bf16.msra.mxu0 %v4643
  %4665 = vmatpush.bf16.msra.mxu0 %v4642
  %4666 = vmatmul.bf16.gmra.mxu0 %v4594
  %v4667 = vpop.f32.mrf.mxu0
  %v4668 = vadd.f32 0.0, %v4667
  %v4669 = vpop.f32.mrf.mxu0
  %v4670 = vadd.f32 0.0, %v4669
  %4671 = vmatmul.bf16.gmra.mxu0 %v4595
  %v4672 = vpop.f32.mrf.mxu0
  %v4673 = vadd.f32 0.0, %v4672
  %v4674 = vpop.f32.mrf.mxu0
  %v4675 = vadd.f32 0.0, %v4674
  %4676 = vmatmul.bf16.gmra.mxu0 %v4596
  %v4677 = vpop.f32.mrf.mxu0
  %v4678 = vadd.f32 0.0, %v4677
  %v4679 = vpop.f32.mrf.mxu0
  %v4680 = vadd.f32 0.0, %v4679
  %4681 = vmatmul.bf16.gmra.mxu0 %v4597
  %v4682 = vpop.f32.mrf.mxu0
  %v4683 = vadd.f32 0.0, %v4682
  %v4684 = vpop.f32.mrf.mxu0
  %v4685 = vadd.f32 0.0, %v4684
  %4686 = vmatmul.bf16.gmra.mxu0 %v4598
  %v4687 = vpop.f32.mrf.mxu0
  %v4688 = vadd.f32 0.0, %v4687
  %v4689 = vpop.f32.mrf.mxu0
  %v4690 = vadd.f32 0.0, %v4689
  %4691 = vmatmul.bf16.gmra.mxu0 %v4599
  %v4692 = vpop.f32.mrf.mxu0
  %v4693 = vadd.f32 0.0, %v4692
  %v4694 = vpop.f32.mrf.mxu0
  %v4695 = vadd.f32 0.0, %v4694
  %4696 = vmatmul.bf16.gmra.mxu0 %v4600
  %v4697 = vpop.f32.mrf.mxu0
  %v4698 = vadd.f32 0.0, %v4697
  %v4699 = vpop.f32.mrf.mxu0
  %v4700 = vadd.f32 0.0, %v4699
  %4701 = vmatmul.bf16.gmra.mxu0 %v4601
  %v4702 = vpop.f32.mrf.mxu0
  %v4703 = vadd.f32 0.0, %v4702
  %v4704 = vpop.f32.mrf.mxu0
  %v4705 = vadd.f32 0.0, %v4704
  %4706 = vdwg.mxu0
  %v4707 = vadd.f32 %v4513, %v4668
  %v4708 = vadd.f32 %v4514, %v4670
  %v4709 = vadd.f32 %v4515, %v4673
  %v4710 = vadd.f32 %v4516, %v4675
  %v4711 = vadd.f32 %v4517, %v4678
  %v4712 = vadd.f32 %v4518, %v4680
  %v4713 = vadd.f32 %v4519, %v4683
  %v4714 = vadd.f32 %v4520, %v4685
  %v4715 = vadd.f32 %v4521, %v4688
  %v4716 = vadd.f32 %v4522, %v4690
  %v4717 = vadd.f32 %v4523, %v4693
  %v4718 = vadd.f32 %v4524, %v4695
  %v4719 = vadd.f32 %v4525, %v4698
  %v4720 = vadd.f32 %v4526, %v4700
  %v4721 = vadd.f32 %v4527, %v4703
  %v4722 = vadd.f32 %v4528, %v4705
  %s4723 = scalar_lea.vmem %s0, 616
  %v4724 = vld [vmem:[%s4723] sm:$0xf]
  %v4725 = vld [vmem:[%s4723 + $0x4] sm:$0xf]
  %v4726 = vld [vmem:[%s4723 + $0x8] sm:$0xf]
  %v4727 = vld [vmem:[%s4723 + $0xc] sm:$0xf]
  %v4728 = vld [vmem:[%s4723 + $0x10] sm:$0xf]
  %v4729 = vld [vmem:[%s4723 + $0x14] sm:$0xf]
  %v4730 = vld [vmem:[%s4723 + $0x18] sm:$0xf]
  %v4731 = vld [vmem:[%s4723 + $0x1c] sm:$0xf]
  %v4732 = vld [vmem:[%s4723 + $0x20] sm:$0xf]
  %v4733 = vld [vmem:[%s4723 + $0x24] sm:$0xf]
  %v4734 = vld [vmem:[%s4723 + $0x28] sm:$0xf]
  %v4735 = vld [vmem:[%s4723 + $0x2c] sm:$0xf]
  %v4736 = vld [vmem:[%s4723 + $0x30] sm:$0xf]
  %v4737 = vld [vmem:[%s4723 + $0x34] sm:$0xf]
  %v4738 = vld [vmem:[%s4723 + $0x38] sm:$0xf]
  %v4739 = vld [vmem:[%s4723 + $0x3c] sm:$0xf]
  %v4740 = vld [vmem:[%s1086] sm:$0xf]
  %v4741 = vld [vmem:[%s1086 + $0x4] sm:$0xf]
  %v4742 = vld [vmem:[%s1086 + $0x8] sm:$0xf]
  %v4743 = vld [vmem:[%s1086 + $0xc] sm:$0xf]
  %v4744 = vld [vmem:[%s1086 + $0x10] sm:$0xf]
  %v4745 = vld [vmem:[%s1086 + $0x14] sm:$0xf]
  %v4746 = vld [vmem:[%s1086 + $0x18] sm:$0xf]
  %v4747 = vld [vmem:[%s1086 + $0x1c] sm:$0xf]
  %v4748 = vld [vmem:[%s1086 + $0x20] sm:$0xf]
  %v4749 = vld [vmem:[%s1086 + $0x24] sm:$0xf]
  %v4750 = vld [vmem:[%s1086 + $0x28] sm:$0xf]
  %v4751 = vld [vmem:[%s1086 + $0x2c] sm:$0xf]
  %v4752 = vld [vmem:[%s1086 + $0x30] sm:$0xf]
  %v4753 = vld [vmem:[%s1086 + $0x34] sm:$0xf]
  %v4754 = vld [vmem:[%s1086 + $0x38] sm:$0xf]
  %v4755 = vld [vmem:[%s1086 + $0x3c] sm:$0xf]
  %v4772 = vunpack.c.l.b16 %v4724
  %v4773 = vunpack.c.l.b16 %v4725
  %v4774 = vunpack.c.l.b16 %v4726
  %v4775 = vunpack.c.l.b16 %v4727
  %v4776 = vunpack.c.l.b16 %v4728
  %v4777 = vunpack.c.l.b16 %v4729
  %v4778 = vunpack.c.l.b16 %v4730
  %v4779 = vunpack.c.l.b16 %v4731
  %v4780 = vunpack.c.l.b16 %v4732
  %v4781 = vunpack.c.l.b16 %v4733
  %v4782 = vunpack.c.l.b16 %v4734
  %v4783 = vunpack.c.l.b16 %v4735
  %v4784 = vunpack.c.l.b16 %v4736
  %v4785 = vunpack.c.l.b16 %v4737
  %v4786 = vunpack.c.l.b16 %v4738
  %v4787 = vunpack.c.l.b16 %v4739
  %v4788 = vpack.c.b16 %v4773, %v4772
  %v4789 = vpack.c.b16 %v4775, %v4774
  %v4790 = vpack.c.b16 %v4777, %v4776
  %v4791 = vpack.c.b16 %v4779, %v4778
  %v4792 = vpack.c.b16 %v4781, %v4780
  %v4793 = vpack.c.b16 %v4783, %v4782
  %v4794 = vpack.c.b16 %v4785, %v4784
  %v4795 = vpack.c.b16 %v4787, %v4786
  %v4820 = vunpack.c.l.b16 %v4740
  %v4821 = vunpack.c.l.b16 %v4741
  %v4822 = vunpack.c.l.b16 %v4742
  %v4823 = vunpack.c.l.b16 %v4743
  %v4824 = vunpack.c.l.b16 %v4744
  %v4825 = vunpack.c.l.b16 %v4745
  %v4826 = vunpack.c.l.b16 %v4746
  %v4827 = vunpack.c.l.b16 %v4747
  %v4828 = vunpack.c.l.b16 %v4748
  %v4829 = vunpack.c.l.b16 %v4749
  %v4830 = vunpack.c.l.b16 %v4750
  %v4831 = vunpack.c.l.b16 %v4751
  %v4832 = vunpack.c.l.b16 %v4752
  %v4833 = vunpack.c.l.b16 %v4753
  %v4834 = vunpack.c.l.b16 %v4754
  %v4835 = vunpack.c.l.b16 %v4755
  %v4836 = vpack.c.b16 %v4821, %v4820
  %v4837 = vpack.c.b16 %v4823, %v4822
  %v4838 = vpack.c.b16 %v4825, %v4824
  %v4839 = vpack.c.b16 %v4827, %v4826
  %v4840 = vpack.c.b16 %v4829, %v4828
  %v4841 = vpack.c.b16 %v4831, %v4830
  %v4842 = vpack.c.b16 %v4833, %v4832
  %v4843 = vpack.c.b16 %v4835, %v4834
  %4852 = vmatpush.bf16.msra.mxu0 %v4843
  %4853 = vmatpush.bf16.msra.mxu0 %v4842
  %4854 = vmatpush.bf16.msra.mxu0 %v4841
  %4855 = vmatpush.bf16.msra.mxu0 %v4840
  %4856 = vmatpush.bf16.msra.mxu0 %v4839
  %4857 = vmatpush.bf16.msra.mxu0 %v4838
  %4858 = vmatpush.bf16.msra.mxu0 %v4837
  %4859 = vmatpush.bf16.msra.mxu0 %v4836
  %4860 = vmatmul.bf16.gmra.mxu0 %v4788
  %v4861 = vpop.f32.mrf.mxu0
  %v4862 = vadd.f32 0.0, %v4861
  %v4863 = vpop.f32.mrf.mxu0
  %v4864 = vadd.f32 0.0, %v4863
  %4865 = vmatmul.bf16.gmra.mxu0 %v4789
  %v4866 = vpop.f32.mrf.mxu0
  %v4867 = vadd.f32 0.0, %v4866
  %v4868 = vpop.f32.mrf.mxu0
  %v4869 = vadd.f32 0.0, %v4868
  %4870 = vmatmul.bf16.gmra.mxu0 %v4790
  %v4871 = vpop.f32.mrf.mxu0
  %v4872 = vadd.f32 0.0, %v4871
  %v4873 = vpop.f32.mrf.mxu0
  %v4874 = vadd.f32 0.0, %v4873
  %4875 = vmatmul.bf16.gmra.mxu0 %v4791
  %v4876 = vpop.f32.mrf.mxu0
  %v4877 = vadd.f32 0.0, %v4876
  %v4878 = vpop.f32.mrf.mxu0
  %v4879 = vadd.f32 0.0, %v4878
  %4880 = vmatmul.bf16.gmra.mxu0 %v4792
  %v4881 = vpop.f32.mrf.mxu0
  %v4882 = vadd.f32 0.0, %v4881
  %v4883 = vpop.f32.mrf.mxu0
  %v4884 = vadd.f32 0.0, %v4883
  %4885 = vmatmul.bf16.gmra.mxu0 %v4793
  %v4886 = vpop.f32.mrf.mxu0
  %v4887 = vadd.f32 0.0, %v4886
  %v4888 = vpop.f32.mrf.mxu0
  %v4889 = vadd.f32 0.0, %v4888
  %4890 = vmatmul.bf16.gmra.mxu0 %v4794
  %v4891 = vpop.f32.mrf.mxu0
  %v4892 = vadd.f32 0.0, %v4891
  %v4893 = vpop.f32.mrf.mxu0
  %v4894 = vadd.f32 0.0, %v4893
  %4895 = vmatmul.bf16.gmra.mxu0 %v4795
  %v4896 = vpop.f32.mrf.mxu0
  %v4897 = vadd.f32 0.0, %v4896
  %v4898 = vpop.f32.mrf.mxu0
  %v4899 = vadd.f32 0.0, %v4898
  %4900 = vdwg.mxu0
  %v4901 = vadd.f32 %v4707, %v4862
  %v4902 = vadd.f32 %v4708, %v4864
  %v4903 = vadd.f32 %v4709, %v4867
  %v4904 = vadd.f32 %v4710, %v4869
  %v4905 = vadd.f32 %v4711, %v4872
  %v4906 = vadd.f32 %v4712, %v4874
  %v4907 = vadd.f32 %v4713, %v4877
  %v4908 = vadd.f32 %v4714, %v4879
  %v4909 = vadd.f32 %v4715, %v4882
  %v4910 = vadd.f32 %v4716, %v4884
  %v4911 = vadd.f32 %v4717, %v4887
  %v4912 = vadd.f32 %v4718, %v4889
  %v4913 = vadd.f32 %v4719, %v4892
  %v4914 = vadd.f32 %v4720, %v4894
  %v4915 = vadd.f32 %v4721, %v4897
  %v4916 = vadd.f32 %v4722, %v4899
  %v4917 = vld [vmem:[%s4529] sm:$0xf]
  %v4918 = vld [vmem:[%s4529 + $0x4] sm:$0xf]
  %v4919 = vld [vmem:[%s4529 + $0x8] sm:$0xf]
  %v4920 = vld [vmem:[%s4529 + $0xc] sm:$0xf]
  %v4921 = vld [vmem:[%s4529 + $0x10] sm:$0xf]
  %v4922 = vld [vmem:[%s4529 + $0x14] sm:$0xf]
  %v4923 = vld [vmem:[%s4529 + $0x18] sm:$0xf]
  %v4924 = vld [vmem:[%s4529 + $0x1c] sm:$0xf]
  %v4925 = vld [vmem:[%s4529 + $0x20] sm:$0xf]
  %v4926 = vld [vmem:[%s4529 + $0x24] sm:$0xf]
  %v4927 = vld [vmem:[%s4529 + $0x28] sm:$0xf]
  %v4928 = vld [vmem:[%s4529 + $0x2c] sm:$0xf]
  %v4929 = vld [vmem:[%s4529 + $0x30] sm:$0xf]
  %v4930 = vld [vmem:[%s4529 + $0x34] sm:$0xf]
  %v4931 = vld [vmem:[%s4529 + $0x38] sm:$0xf]
  %v4932 = vld [vmem:[%s4529 + $0x3c] sm:$0xf]
  %v4933 = vld [vmem:[%s4529 + $0x40] sm:$0x1]
  %v4934 = vld [vmem:[%s1281] sm:$0xf]
  %v4935 = vld [vmem:[%s1281 + $0x4] sm:$0xf]
  %v4936 = vld [vmem:[%s1281 + $0x8] sm:$0xf]
  %v4937 = vld [vmem:[%s1281 + $0xc] sm:$0xf]
  %v4938 = vld [vmem:[%s1281 + $0x10] sm:$0xf]
  %v4939 = vld [vmem:[%s1281 + $0x14] sm:$0xf]
  %v4940 = vld [vmem:[%s1281 + $0x18] sm:$0xf]
  %v4941 = vld [vmem:[%s1281 + $0x1c] sm:$0xf]
  %v4942 = vld [vmem:[%s1281 + $0x20] sm:$0xf]
  %v4943 = vld [vmem:[%s1281 + $0x24] sm:$0xf]
  %v4944 = vld [vmem:[%s1281 + $0x28] sm:$0xf]
  %v4945 = vld [vmem:[%s1281 + $0x2c] sm:$0xf]
  %v4946 = vld [vmem:[%s1281 + $0x30] sm:$0xf]
  %v4947 = vld [vmem:[%s1281 + $0x34] sm:$0xf]
  %v4948 = vld [vmem:[%s1281 + $0x38] sm:$0xf]
  %v4949 = vld [vmem:[%s1281 + $0x3c] sm:$0xf]
  %v4967 = vunpack.c.l.b16 %v4917
  %v4968 = vunpack.c.l.b16 %v4918
  %v4969 = vunpack.c.l.b16 %v4919
  %v4970 = vunpack.c.l.b16 %v4920
  %v4971 = vunpack.c.l.b16 %v4921
  %v4972 = vunpack.c.l.b16 %v4922
  %v4973 = vunpack.c.l.b16 %v4923
  %v4974 = vunpack.c.l.b16 %v4924
  %v4975 = vunpack.c.l.b16 %v4925
  %v4976 = vunpack.c.l.b16 %v4926
  %v4977 = vunpack.c.l.b16 %v4927
  %v4978 = vunpack.c.l.b16 %v4928
  %v4979 = vunpack.c.l.b16 %v4929
  %v4980 = vunpack.c.l.b16 %v4930
  %v4981 = vunpack.c.l.b16 %v4931
  %v4982 = vunpack.c.l.b16 %v4932
  %v4983 = vunpack.c.l.b16 %v4933
  %v4984 = vpack.c.b16 %v4968, %v4967
  %v4985 = vpack.c.b16 %v4970, %v4969
  %v4986 = vpack.c.b16 %v4972, %v4971
  %v4987 = vpack.c.b16 %v4974, %v4973
  %v4988 = vpack.c.b16 %v4976, %v4975
  %v4989 = vpack.c.b16 %v4978, %v4977
  %v4990 = vpack.c.b16 %v4980, %v4979
  %v4991 = vpack.c.b16 %v4982, %v4981
  %v4992 = vpack.c.b16 %v4983, %v4983
  %v4994 = vshrl.u32 %v4984, 16
  %v4996 = vshll.u32 %v4984, 16
  %v4998 = vrot.slane %v4996, 1
  %v4999 = vor.u32 %v4994, %v4998
  %v5001 = vshll.u32 %v4985, 16
  %v5003 = vrot.slane %v5001, 1
  %v5004 = vsel %vm684, %v4999, %v5003
  %v5005 = vshrl.u32 %v4985, 16
  %v5007 = vor.u32 %v5005, %v5003
  %v5009 = vshll.u32 %v4986, 16
  %v5011 = vrot.slane %v5009, 1
  %v5012 = vsel %vm684, %v5007, %v5011
  %v5013 = vshrl.u32 %v4986, 16
  %v5015 = vor.u32 %v5013, %v5011
  %v5017 = vshll.u32 %v4987, 16
  %v5019 = vrot.slane %v5017, 1
  %v5020 = vsel %vm684, %v5015, %v5019
  %v5021 = vshrl.u32 %v4987, 16
  %v5023 = vor.u32 %v5021, %v5019
  %v5025 = vshll.u32 %v4988, 16
  %v5027 = vrot.slane %v5025, 1
  %v5028 = vsel %vm684, %v5023, %v5027
  %v5029 = vshrl.u32 %v4988, 16
  %v5031 = vor.u32 %v5029, %v5027
  %v5033 = vshll.u32 %v4989, 16
  %v5035 = vrot.slane %v5033, 1
  %v5036 = vsel %vm684, %v5031, %v5035
  %v5037 = vshrl.u32 %v4989, 16
  %v5039 = vor.u32 %v5037, %v5035
  %v5041 = vshll.u32 %v4990, 16
  %v5043 = vrot.slane %v5041, 1
  %v5044 = vsel %vm684, %v5039, %v5043
  %v5045 = vshrl.u32 %v4990, 16
  %v5047 = vor.u32 %v5045, %v5043
  %v5049 = vshll.u32 %v4991, 16
  %v5051 = vrot.slane %v5049, 1
  %v5052 = vsel %vm684, %v5047, %v5051
  %v5053 = vshrl.u32 %v4991, 16
  %v5055 = vor.u32 %v5053, %v5051
  %v5057 = vshll.u32 %v4992, 16
  %v5059 = vrot.slane %v5057, 1
  %v5060 = vsel %vm684, %v5055, %v5059
  %v5085 = vunpack.c.l.b16 %v4934
  %v5086 = vunpack.c.l.b16 %v4935
  %v5087 = vunpack.c.l.b16 %v4936
  %v5088 = vunpack.c.l.b16 %v4937
  %v5089 = vunpack.c.l.b16 %v4938
  %v5090 = vunpack.c.l.b16 %v4939
  %v5091 = vunpack.c.l.b16 %v4940
  %v5092 = vunpack.c.l.b16 %v4941
  %v5093 = vunpack.c.l.b16 %v4942
  %v5094 = vunpack.c.l.b16 %v4943
  %v5095 = vunpack.c.l.b16 %v4944
  %v5096 = vunpack.c.l.b16 %v4945
  %v5097 = vunpack.c.l.b16 %v4946
  %v5098 = vunpack.c.l.b16 %v4947
  %v5099 = vunpack.c.l.b16 %v4948
  %v5100 = vunpack.c.l.b16 %v4949
  %v5101 = vpack.c.b16 %v5086, %v5085
  %v5102 = vpack.c.b16 %v5088, %v5087
  %v5103 = vpack.c.b16 %v5090, %v5089
  %v5104 = vpack.c.b16 %v5092, %v5091
  %v5105 = vpack.c.b16 %v5094, %v5093
  %v5106 = vpack.c.b16 %v5096, %v5095
  %v5107 = vpack.c.b16 %v5098, %v5097
  %v5108 = vpack.c.b16 %v5100, %v5099
  %5117 = vmatpush.bf16.msra.mxu0 %v5108
  %5118 = vmatpush.bf16.msra.mxu0 %v5107
  %5119 = vmatpush.bf16.msra.mxu0 %v5106
  %5120 = vmatpush.bf16.msra.mxu0 %v5105
  %5121 = vmatpush.bf16.msra.mxu0 %v5104
  %5122 = vmatpush.bf16.msra.mxu0 %v5103
  %5123 = vmatpush.bf16.msra.mxu0 %v5102
  %5124 = vmatpush.bf16.msra.mxu0 %v5101
  %5125 = vmatmul.bf16.gmra.mxu0 %v5004
  %v5126 = vpop.f32.mrf.mxu0
  %v5127 = vadd.f32 0.0, %v5126
  %v5128 = vpop.f32.mrf.mxu0
  %v5129 = vadd.f32 0.0, %v5128
  %5130 = vmatmul.bf16.gmra.mxu0 %v5012
  %v5131 = vpop.f32.mrf.mxu0
  %v5132 = vadd.f32 0.0, %v5131
  %v5133 = vpop.f32.mrf.mxu0
  %v5134 = vadd.f32 0.0, %v5133
  %5135 = vmatmul.bf16.gmra.mxu0 %v5020
  %v5136 = vpop.f32.mrf.mxu0
  %v5137 = vadd.f32 0.0, %v5136
  %v5138 = vpop.f32.mrf.mxu0
  %v5139 = vadd.f32 0.0, %v5138
  %5140 = vmatmul.bf16.gmra.mxu0 %v5028
  %v5141 = vpop.f32.mrf.mxu0
  %v5142 = vadd.f32 0.0, %v5141
  %v5143 = vpop.f32.mrf.mxu0
  %v5144 = vadd.f32 0.0, %v5143
  %5145 = vmatmul.bf16.gmra.mxu0 %v5036
  %v5146 = vpop.f32.mrf.mxu0
  %v5147 = vadd.f32 0.0, %v5146
  %v5148 = vpop.f32.mrf.mxu0
  %v5149 = vadd.f32 0.0, %v5148
  %5150 = vmatmul.bf16.gmra.mxu0 %v5044
  %v5151 = vpop.f32.mrf.mxu0
  %v5152 = vadd.f32 0.0, %v5151
  %v5153 = vpop.f32.mrf.mxu0
  %v5154 = vadd.f32 0.0, %v5153
  %5155 = vmatmul.bf16.gmra.mxu0 %v5052
  %v5156 = vpop.f32.mrf.mxu0
  %v5157 = vadd.f32 0.0, %v5156
  %v5158 = vpop.f32.mrf.mxu0
  %v5159 = vadd.f32 0.0, %v5158
  %5160 = vmatmul.bf16.gmra.mxu0 %v5060
  %v5161 = vpop.f32.mrf.mxu0
  %v5162 = vadd.f32 0.0, %v5161
  %v5163 = vpop.f32.mrf.mxu0
  %v5164 = vadd.f32 0.0, %v5163
  %5165 = vdwg.mxu0
  %v5166 = vadd.f32 %v4901, %v5127
  %v5167 = vadd.f32 %v4902, %v5129
  %v5168 = vadd.f32 %v4903, %v5132
  %v5169 = vadd.f32 %v4904, %v5134
  %v5170 = vadd.f32 %v4905, %v5137
  %v5171 = vadd.f32 %v4906, %v5139
  %v5172 = vadd.f32 %v4907, %v5142
  %v5173 = vadd.f32 %v4908, %v5144
  %v5174 = vadd.f32 %v4909, %v5147
  %v5175 = vadd.f32 %v4910, %v5149
  %v5176 = vadd.f32 %v4911, %v5152
  %v5177 = vadd.f32 %v4912, %v5154
  %v5178 = vadd.f32 %v4913, %v5157
  %v5179 = vadd.f32 %v4914, %v5159
  %v5180 = vadd.f32 %v4915, %v5162
  %v5181 = vadd.f32 %v4916, %v5164
  %v5182 = vld [vmem:[%s3908 + $0x8] sm:$0xf]
  %v5183 = vld [vmem:[%s3908 + $0xc] sm:$0xf]
  %v5184 = vld [vmem:[%s3908 + $0x10] sm:$0xf]
  %v5185 = vld [vmem:[%s3908 + $0x14] sm:$0xf]
  %v5186 = vld [vmem:[%s3908 + $0x18] sm:$0xf]
  %v5187 = vld [vmem:[%s3908 + $0x1c] sm:$0xf]
  %v5188 = vld [vmem:[%s3908 + $0x20] sm:$0xf]
  %v5189 = vld [vmem:[%s3908 + $0x24] sm:$0xf]
  %v5190 = vld [vmem:[%s3908 + $0x28] sm:$0xf]
  %v5191 = vld [vmem:[%s3908 + $0x2c] sm:$0xf]
  %v5192 = vld [vmem:[%s3908 + $0x30] sm:$0xf]
  %v5193 = vld [vmem:[%s3908 + $0x34] sm:$0xf]
  %v5194 = vld [vmem:[%s3908 + $0x38] sm:$0xf]
  %v5195 = vld [vmem:[%s3908 + $0x3c] sm:$0xf]
  %v5196 = vld [vmem:[%s3908 + $0x40] sm:$0xf]
  %v5197 = vld [vmem:[%s3908 + $0x44] sm:$0xf]
  %v5198 = vld [vmem:[%s1546] sm:$0xf]
  %v5199 = vld [vmem:[%s1546 + $0x4] sm:$0xf]
  %v5200 = vld [vmem:[%s1546 + $0x8] sm:$0xf]
  %v5201 = vld [vmem:[%s1546 + $0xc] sm:$0xf]
  %v5202 = vld [vmem:[%s1546 + $0x10] sm:$0xf]
  %v5203 = vld [vmem:[%s1546 + $0x14] sm:$0xf]
  %v5204 = vld [vmem:[%s1546 + $0x18] sm:$0xf]
  %v5205 = vld [vmem:[%s1546 + $0x1c] sm:$0xf]
  %v5206 = vld [vmem:[%s1546 + $0x20] sm:$0xf]
  %v5207 = vld [vmem:[%s1546 + $0x24] sm:$0xf]
  %v5208 = vld [vmem:[%s1546 + $0x28] sm:$0xf]
  %v5209 = vld [vmem:[%s1546 + $0x2c] sm:$0xf]
  %v5210 = vld [vmem:[%s1546 + $0x30] sm:$0xf]
  %v5211 = vld [vmem:[%s1546 + $0x34] sm:$0xf]
  %v5212 = vld [vmem:[%s1546 + $0x38] sm:$0xf]
  %v5213 = vld [vmem:[%s1546 + $0x3c] sm:$0xf]
  %v5230 = vunpack.c.l.b16 %v5182
  %v5231 = vunpack.c.l.b16 %v5183
  %v5232 = vunpack.c.l.b16 %v5184
  %v5233 = vunpack.c.l.b16 %v5185
  %v5234 = vunpack.c.l.b16 %v5186
  %v5235 = vunpack.c.l.b16 %v5187
  %v5236 = vunpack.c.l.b16 %v5188
  %v5237 = vunpack.c.l.b16 %v5189
  %v5238 = vunpack.c.l.b16 %v5190
  %v5239 = vunpack.c.l.b16 %v5191
  %v5240 = vunpack.c.l.b16 %v5192
  %v5241 = vunpack.c.l.b16 %v5193
  %v5242 = vunpack.c.l.b16 %v5194
  %v5243 = vunpack.c.l.b16 %v5195
  %v5244 = vunpack.c.l.b16 %v5196
  %v5245 = vunpack.c.l.b16 %v5197
  %v5246 = vpack.c.b16 %v5231, %v5230
  %v5247 = vpack.c.b16 %v5233, %v5232
  %v5248 = vpack.c.b16 %v5235, %v5234
  %v5249 = vpack.c.b16 %v5237, %v5236
  %v5250 = vpack.c.b16 %v5239, %v5238
  %v5251 = vpack.c.b16 %v5241, %v5240
  %v5252 = vpack.c.b16 %v5243, %v5242
  %v5253 = vpack.c.b16 %v5245, %v5244
  %v5278 = vunpack.c.l.b16 %v5198
  %v5279 = vunpack.c.l.b16 %v5199
  %v5280 = vunpack.c.l.b16 %v5200
  %v5281 = vunpack.c.l.b16 %v5201
  %v5282 = vunpack.c.l.b16 %v5202
  %v5283 = vunpack.c.l.b16 %v5203
  %v5284 = vunpack.c.l.b16 %v5204
  %v5285 = vunpack.c.l.b16 %v5205
  %v5286 = vunpack.c.l.b16 %v5206
  %v5287 = vunpack.c.l.b16 %v5207
  %v5288 = vunpack.c.l.b16 %v5208
  %v5289 = vunpack.c.l.b16 %v5209
  %v5290 = vunpack.c.l.b16 %v5210
  %v5291 = vunpack.c.l.b16 %v5211
  %v5292 = vunpack.c.l.b16 %v5212
  %v5293 = vunpack.c.l.b16 %v5213
  %v5294 = vpack.c.b16 %v5279, %v5278
  %v5295 = vpack.c.b16 %v5281, %v5280
  %v5296 = vpack.c.b16 %v5283, %v5282
  %v5297 = vpack.c.b16 %v5285, %v5284
  %v5298 = vpack.c.b16 %v5287, %v5286
  %v5299 = vpack.c.b16 %v5289, %v5288
  %v5300 = vpack.c.b16 %v5291, %v5290
  %v5301 = vpack.c.b16 %v5293, %v5292
  %5310 = vmatpush.bf16.msra.mxu0 %v5301
  %5311 = vmatpush.bf16.msra.mxu0 %v5300
  %5312 = vmatpush.bf16.msra.mxu0 %v5299
  %5313 = vmatpush.bf16.msra.mxu0 %v5298
  %5314 = vmatpush.bf16.msra.mxu0 %v5297
  %5315 = vmatpush.bf16.msra.mxu0 %v5296
  %5316 = vmatpush.bf16.msra.mxu0 %v5295
  %5317 = vmatpush.bf16.msra.mxu0 %v5294
  %5318 = vmatmul.bf16.gmra.mxu0 %v5246
  %v5319 = vpop.f32.mrf.mxu0
  %v5320 = vadd.f32 0.0, %v5319
  %v5321 = vpop.f32.mrf.mxu0
  %v5322 = vadd.f32 0.0, %v5321
  %5323 = vmatmul.bf16.gmra.mxu0 %v5247
  %v5324 = vpop.f32.mrf.mxu0
  %v5325 = vadd.f32 0.0, %v5324
  %v5326 = vpop.f32.mrf.mxu0
  %v5327 = vadd.f32 0.0, %v5326
  %5328 = vmatmul.bf16.gmra.mxu0 %v5248
  %v5329 = vpop.f32.mrf.mxu0
  %v5330 = vadd.f32 0.0, %v5329
  %v5331 = vpop.f32.mrf.mxu0
  %v5332 = vadd.f32 0.0, %v5331
  %5333 = vmatmul.bf16.gmra.mxu0 %v5249
  %v5334 = vpop.f32.mrf.mxu0
  %v5335 = vadd.f32 0.0, %v5334
  %v5336 = vpop.f32.mrf.mxu0
  %v5337 = vadd.f32 0.0, %v5336
  %5338 = vmatmul.bf16.gmra.mxu0 %v5250
  %v5339 = vpop.f32.mrf.mxu0
  %v5340 = vadd.f32 0.0, %v5339
  %v5341 = vpop.f32.mrf.mxu0
  %v5342 = vadd.f32 0.0, %v5341
  %5343 = vmatmul.bf16.gmra.mxu0 %v5251
  %v5344 = vpop.f32.mrf.mxu0
  %v5345 = vadd.f32 0.0, %v5344
  %v5346 = vpop.f32.mrf.mxu0
  %v5347 = vadd.f32 0.0, %v5346
  %5348 = vmatmul.bf16.gmra.mxu0 %v5252
  %v5349 = vpop.f32.mrf.mxu0
  %v5350 = vadd.f32 0.0, %v5349
  %v5351 = vpop.f32.mrf.mxu0
  %v5352 = vadd.f32 0.0, %v5351
  %5353 = vmatmul.bf16.gmra.mxu0 %v5253
  %v5354 = vpop.f32.mrf.mxu0
  %v5355 = vadd.f32 0.0, %v5354
  %v5356 = vpop.f32.mrf.mxu0
  %v5357 = vadd.f32 0.0, %v5356
  %5358 = vdwg.mxu0
  %v5359 = vadd.f32 %v5166, %v5320
  %v5360 = vadd.f32 %v5167, %v5322
  %v5361 = vadd.f32 %v5168, %v5325
  %v5362 = vadd.f32 %v5169, %v5327
  %v5363 = vadd.f32 %v5170, %v5330
  %v5364 = vadd.f32 %v5171, %v5332
  %v5365 = vadd.f32 %v5172, %v5335
  %v5366 = vadd.f32 %v5173, %v5337
  %v5367 = vadd.f32 %v5174, %v5340
  %v5368 = vadd.f32 %v5175, %v5342
  %v5369 = vadd.f32 %v5176, %v5345
  %v5370 = vadd.f32 %v5177, %v5347
  %v5371 = vadd.f32 %v5178, %v5350
  %v5372 = vadd.f32 %v5179, %v5352
  %v5373 = vadd.f32 %v5180, %v5355
  %v5374 = vadd.f32 %v5181, %v5357
  %v5375 = vld [vmem:[%s3941 + $0x8] sm:$0xf]
  %v5376 = vld [vmem:[%s3941 + $0xc] sm:$0xf]
  %v5377 = vld [vmem:[%s3941 + $0x10] sm:$0xf]
  %v5378 = vld [vmem:[%s3941 + $0x14] sm:$0xf]
  %v5379 = vld [vmem:[%s3941 + $0x18] sm:$0xf]
  %v5380 = vld [vmem:[%s3941 + $0x1c] sm:$0xf]
  %v5381 = vld [vmem:[%s3941 + $0x20] sm:$0xf]
  %v5382 = vld [vmem:[%s3941 + $0x24] sm:$0xf]
  %v5383 = vld [vmem:[%s3941 + $0x28] sm:$0xf]
  %v5384 = vld [vmem:[%s3941 + $0x2c] sm:$0xf]
  %v5385 = vld [vmem:[%s3941 + $0x30] sm:$0xf]
  %v5386 = vld [vmem:[%s3941 + $0x34] sm:$0xf]
  %v5387 = vld [vmem:[%s3941 + $0x38] sm:$0xf]
  %v5388 = vld [vmem:[%s3941 + $0x3c] sm:$0xf]
  %v5389 = vld [vmem:[%s3941 + $0x40] sm:$0xf]
  %v5390 = vld [vmem:[%s3941 + $0x44] sm:$0xf]
  %v5391 = vld [vmem:[%s1740] sm:$0xf]
  %v5392 = vld [vmem:[%s1740 + $0x4] sm:$0xf]
  %v5393 = vld [vmem:[%s1740 + $0x8] sm:$0xf]
  %v5394 = vld [vmem:[%s1740 + $0xc] sm:$0xf]
  %v5395 = vld [vmem:[%s1740 + $0x10] sm:$0xf]
  %v5396 = vld [vmem:[%s1740 + $0x14] sm:$0xf]
  %v5397 = vld [vmem:[%s1740 + $0x18] sm:$0xf]
  %v5398 = vld [vmem:[%s1740 + $0x1c] sm:$0xf]
  %v5399 = vld [vmem:[%s1740 + $0x20] sm:$0xf]
  %v5400 = vld [vmem:[%s1740 + $0x24] sm:$0xf]
  %v5401 = vld [vmem:[%s1740 + $0x28] sm:$0xf]
  %v5402 = vld [vmem:[%s1740 + $0x2c] sm:$0xf]
  %v5403 = vld [vmem:[%s1740 + $0x30] sm:$0xf]
  %v5404 = vld [vmem:[%s1740 + $0x34] sm:$0xf]
  %v5405 = vld [vmem:[%s1740 + $0x38] sm:$0xf]
  %v5406 = vld [vmem:[%s1740 + $0x3c] sm:$0xf]
  %v5423 = vunpack.c.l.b16 %v5375
  %v5424 = vunpack.c.l.b16 %v5376
  %v5425 = vunpack.c.l.b16 %v5377
  %v5426 = vunpack.c.l.b16 %v5378
  %v5427 = vunpack.c.l.b16 %v5379
  %v5428 = vunpack.c.l.b16 %v5380
  %v5429 = vunpack.c.l.b16 %v5381
  %v5430 = vunpack.c.l.b16 %v5382
  %v5431 = vunpack.c.l.b16 %v5383
  %v5432 = vunpack.c.l.b16 %v5384
  %v5433 = vunpack.c.l.b16 %v5385
  %v5434 = vunpack.c.l.b16 %v5386
  %v5435 = vunpack.c.l.b16 %v5387
  %v5436 = vunpack.c.l.b16 %v5388
  %v5437 = vunpack.c.l.b16 %v5389
  %v5438 = vunpack.c.l.b16 %v5390
  %v5439 = vpack.c.b16 %v5424, %v5423
  %v5440 = vpack.c.b16 %v5426, %v5425
  %v5441 = vpack.c.b16 %v5428, %v5427
  %v5442 = vpack.c.b16 %v5430, %v5429
  %v5443 = vpack.c.b16 %v5432, %v5431
  %v5444 = vpack.c.b16 %v5434, %v5433
  %v5445 = vpack.c.b16 %v5436, %v5435
  %v5446 = vpack.c.b16 %v5438, %v5437
  %v5471 = vunpack.c.l.b16 %v5391
  %v5472 = vunpack.c.l.b16 %v5392
  %v5473 = vunpack.c.l.b16 %v5393
  %v5474 = vunpack.c.l.b16 %v5394
  %v5475 = vunpack.c.l.b16 %v5395
  %v5476 = vunpack.c.l.b16 %v5396
  %v5477 = vunpack.c.l.b16 %v5397
  %v5478 = vunpack.c.l.b16 %v5398
  %v5479 = vunpack.c.l.b16 %v5399
  %v5480 = vunpack.c.l.b16 %v5400
  %v5481 = vunpack.c.l.b16 %v5401
  %v5482 = vunpack.c.l.b16 %v5402
  %v5483 = vunpack.c.l.b16 %v5403
  %v5484 = vunpack.c.l.b16 %v5404
  %v5485 = vunpack.c.l.b16 %v5405
  %v5486 = vunpack.c.l.b16 %v5406
  %v5487 = vpack.c.b16 %v5472, %v5471
  %v5488 = vpack.c.b16 %v5474, %v5473
  %v5489 = vpack.c.b16 %v5476, %v5475
  %v5490 = vpack.c.b16 %v5478, %v5477
  %v5491 = vpack.c.b16 %v5480, %v5479
  %v5492 = vpack.c.b16 %v5482, %v5481
  %v5493 = vpack.c.b16 %v5484, %v5483
  %v5494 = vpack.c.b16 %v5486, %v5485
  %5503 = vmatpush.bf16.msra.mxu0 %v5494
  %5504 = vmatpush.bf16.msra.mxu0 %v5493
  %5505 = vmatpush.bf16.msra.mxu0 %v5492
  %5506 = vmatpush.bf16.msra.mxu0 %v5491
  %5507 = vmatpush.bf16.msra.mxu0 %v5490
  %5508 = vmatpush.bf16.msra.mxu0 %v5489
  %5509 = vmatpush.bf16.msra.mxu0 %v5488
  %5510 = vmatpush.bf16.msra.mxu0 %v5487
  %5511 = vmatmul.bf16.gmra.mxu0 %v5439
  %v5512 = vpop.f32.mrf.mxu0
  %v5513 = vadd.f32 0.0, %v5512
  %v5514 = vpop.f32.mrf.mxu0
  %v5515 = vadd.f32 0.0, %v5514
  %5516 = vmatmul.bf16.gmra.mxu0 %v5440
  %v5517 = vpop.f32.mrf.mxu0
  %v5518 = vadd.f32 0.0, %v5517
  %v5519 = vpop.f32.mrf.mxu0
  %v5520 = vadd.f32 0.0, %v5519
  %5521 = vmatmul.bf16.gmra.mxu0 %v5441
  %v5522 = vpop.f32.mrf.mxu0
  %v5523 = vadd.f32 0.0, %v5522
  %v5524 = vpop.f32.mrf.mxu0
  %v5525 = vadd.f32 0.0, %v5524
  %5526 = vmatmul.bf16.gmra.mxu0 %v5442
  %v5527 = vpop.f32.mrf.mxu0
  %v5528 = vadd.f32 0.0, %v5527
  %v5529 = vpop.f32.mrf.mxu0
  %v5530 = vadd.f32 0.0, %v5529
  %5531 = vmatmul.bf16.gmra.mxu0 %v5443
  %v5532 = vpop.f32.mrf.mxu0
  %v5533 = vadd.f32 0.0, %v5532
  %v5534 = vpop.f32.mrf.mxu0
  %v5535 = vadd.f32 0.0, %v5534
  %5536 = vmatmul.bf16.gmra.mxu0 %v5444
  %v5537 = vpop.f32.mrf.mxu0
  %v5538 = vadd.f32 0.0, %v5537
  %v5539 = vpop.f32.mrf.mxu0
  %v5540 = vadd.f32 0.0, %v5539
  %5541 = vmatmul.bf16.gmra.mxu0 %v5445
  %v5542 = vpop.f32.mrf.mxu0
  %v5543 = vadd.f32 0.0, %v5542
  %v5544 = vpop.f32.mrf.mxu0
  %v5545 = vadd.f32 0.0, %v5544
  %5546 = vmatmul.bf16.gmra.mxu0 %v5446
  %v5547 = vpop.f32.mrf.mxu0
  %v5548 = vadd.f32 0.0, %v5547
  %v5549 = vpop.f32.mrf.mxu0
  %v5550 = vadd.f32 0.0, %v5549
  %5551 = vdwg.mxu0
  %v5552 = vadd.f32 %v5359, %v5513
  %v5553 = vadd.f32 %v5360, %v5515
  %v5554 = vadd.f32 %v5361, %v5518
  %v5555 = vadd.f32 %v5362, %v5520
  %v5556 = vadd.f32 %v5363, %v5523
  %v5557 = vadd.f32 %v5364, %v5525
  %v5558 = vadd.f32 %v5365, %v5528
  %v5559 = vadd.f32 %v5366, %v5530
  %v5560 = vadd.f32 %v5367, %v5533
  %v5561 = vadd.f32 %v5368, %v5535
  %v5562 = vadd.f32 %v5369, %v5538
  %v5563 = vadd.f32 %v5370, %v5540
  %v5564 = vadd.f32 %v5371, %v5543
  %v5565 = vadd.f32 %v5372, %v5545
  %v5566 = vadd.f32 %v5373, %v5548
  %v5567 = vadd.f32 %v5374, %v5550
  %v5568 = vld [vmem:[%s3908 + $0x8] sm:$0xf]
  %v5569 = vld [vmem:[%s3908 + $0xc] sm:$0xf]
  %v5570 = vld [vmem:[%s3908 + $0x10] sm:$0xf]
  %v5571 = vld [vmem:[%s3908 + $0x14] sm:$0xf]
  %v5572 = vld [vmem:[%s3908 + $0x18] sm:$0xf]
  %v5573 = vld [vmem:[%s3908 + $0x1c] sm:$0xf]
  %v5574 = vld [vmem:[%s3908 + $0x20] sm:$0xf]
  %v5575 = vld [vmem:[%s3908 + $0x24] sm:$0xf]
  %v5576 = vld [vmem:[%s3908 + $0x28] sm:$0xf]
  %v5577 = vld [vmem:[%s3908 + $0x2c] sm:$0xf]
  %v5578 = vld [vmem:[%s3908 + $0x30] sm:$0xf]
  %v5579 = vld [vmem:[%s3908 + $0x34] sm:$0xf]
  %v5580 = vld [vmem:[%s3908 + $0x38] sm:$0xf]
  %v5581 = vld [vmem:[%s3908 + $0x3c] sm:$0xf]
  %v5582 = vld [vmem:[%s3908 + $0x40] sm:$0xf]
  %v5583 = vld [vmem:[%s3908 + $0x44] sm:$0xf]
  %v5584 = vld [vmem:[%s3908 + $0x48] sm:$0x1]
  %v5585 = vld [vmem:[%s1935] sm:$0xf]
  %v5586 = vld [vmem:[%s1935 + $0x4] sm:$0xf]
  %v5587 = vld [vmem:[%s1935 + $0x8] sm:$0xf]
  %v5588 = vld [vmem:[%s1935 + $0xc] sm:$0xf]
  %v5589 = vld [vmem:[%s1935 + $0x10] sm:$0xf]
  %v5590 = vld [vmem:[%s1935 + $0x14] sm:$0xf]
  %v5591 = vld [vmem:[%s1935 + $0x18] sm:$0xf]
  %v5592 = vld [vmem:[%s1935 + $0x1c] sm:$0xf]
  %v5593 = vld [vmem:[%s1935 + $0x20] sm:$0xf]
  %v5594 = vld [vmem:[%s1935 + $0x24] sm:$0xf]
  %v5595 = vld [vmem:[%s1935 + $0x28] sm:$0xf]
  %v5596 = vld [vmem:[%s1935 + $0x2c] sm:$0xf]
  %v5597 = vld [vmem:[%s1935 + $0x30] sm:$0xf]
  %v5598 = vld [vmem:[%s1935 + $0x34] sm:$0xf]
  %v5599 = vld [vmem:[%s1935 + $0x38] sm:$0xf]
  %v5600 = vld [vmem:[%s1935 + $0x3c] sm:$0xf]
  %v5618 = vunpack.c.l.b16 %v5568
  %v5619 = vunpack.c.l.b16 %v5569
  %v5620 = vunpack.c.l.b16 %v5570
  %v5621 = vunpack.c.l.b16 %v5571
  %v5622 = vunpack.c.l.b16 %v5572
  %v5623 = vunpack.c.l.b16 %v5573
  %v5624 = vunpack.c.l.b16 %v5574
  %v5625 = vunpack.c.l.b16 %v5575
  %v5626 = vunpack.c.l.b16 %v5576
  %v5627 = vunpack.c.l.b16 %v5577
  %v5628 = vunpack.c.l.b16 %v5578
  %v5629 = vunpack.c.l.b16 %v5579
  %v5630 = vunpack.c.l.b16 %v5580
  %v5631 = vunpack.c.l.b16 %v5581
  %v5632 = vunpack.c.l.b16 %v5582
  %v5633 = vunpack.c.l.b16 %v5583
  %v5634 = vunpack.c.l.b16 %v5584
  %v5635 = vpack.c.b16 %v5619, %v5618
  %v5636 = vpack.c.b16 %v5621, %v5620
  %v5637 = vpack.c.b16 %v5623, %v5622
  %v5638 = vpack.c.b16 %v5625, %v5624
  %v5639 = vpack.c.b16 %v5627, %v5626
  %v5640 = vpack.c.b16 %v5629, %v5628
  %v5641 = vpack.c.b16 %v5631, %v5630
  %v5642 = vpack.c.b16 %v5633, %v5632
  %v5643 = vpack.c.b16 %v5634, %v5634
  %v5645 = vshrl.u32 %v5635, 16
  %v5647 = vshll.u32 %v5635, 16
  %v5649 = vrot.slane %v5647, 1
  %v5650 = vor.u32 %v5645, %v5649
  %v5652 = vshll.u32 %v5636, 16
  %v5654 = vrot.slane %v5652, 1
  %v5655 = vsel %vm684, %v5650, %v5654
  %v5656 = vshrl.u32 %v5636, 16
  %v5658 = vor.u32 %v5656, %v5654
  %v5660 = vshll.u32 %v5637, 16
  %v5662 = vrot.slane %v5660, 1
  %v5663 = vsel %vm684, %v5658, %v5662
  %v5664 = vshrl.u32 %v5637, 16
  %v5666 = vor.u32 %v5664, %v5662
  %v5668 = vshll.u32 %v5638, 16
  %v5670 = vrot.slane %v5668, 1
  %v5671 = vsel %vm684, %v5666, %v5670
  %v5672 = vshrl.u32 %v5638, 16
  %v5674 = vor.u32 %v5672, %v5670
  %v5676 = vshll.u32 %v5639, 16
  %v5678 = vrot.slane %v5676, 1
  %v5679 = vsel %vm684, %v5674, %v5678
  %v5680 = vshrl.u32 %v5639, 16
  %v5682 = vor.u32 %v5680, %v5678
  %v5684 = vshll.u32 %v5640, 16
  %v5686 = vrot.slane %v5684, 1
  %v5687 = vsel %vm684, %v5682, %v5686
  %v5688 = vshrl.u32 %v5640, 16
  %v5690 = vor.u32 %v5688, %v5686
  %v5692 = vshll.u32 %v5641, 16
  %v5694 = vrot.slane %v5692, 1
  %v5695 = vsel %vm684, %v5690, %v5694
  %v5696 = vshrl.u32 %v5641, 16
  %v5698 = vor.u32 %v5696, %v5694
  %v5700 = vshll.u32 %v5642, 16
  %v5702 = vrot.slane %v5700, 1
  %v5703 = vsel %vm684, %v5698, %v5702
  %v5704 = vshrl.u32 %v5642, 16
  %v5706 = vor.u32 %v5704, %v5702
  %v5708 = vshll.u32 %v5643, 16
  %v5710 = vrot.slane %v5708, 1
  %v5711 = vsel %vm684, %v5706, %v5710
  %v5736 = vunpack.c.l.b16 %v5585
  %v5737 = vunpack.c.l.b16 %v5586
  %v5738 = vunpack.c.l.b16 %v5587
  %v5739 = vunpack.c.l.b16 %v5588
  %v5740 = vunpack.c.l.b16 %v5589
  %v5741 = vunpack.c.l.b16 %v5590
  %v5742 = vunpack.c.l.b16 %v5591
  %v5743 = vunpack.c.l.b16 %v5592
  %v5744 = vunpack.c.l.b16 %v5593
  %v5745 = vunpack.c.l.b16 %v5594
  %v5746 = vunpack.c.l.b16 %v5595
  %v5747 = vunpack.c.l.b16 %v5596
  %v5748 = vunpack.c.l.b16 %v5597
  %v5749 = vunpack.c.l.b16 %v5598
  %v5750 = vunpack.c.l.b16 %v5599
  %v5751 = vunpack.c.l.b16 %v5600
  %v5752 = vpack.c.b16 %v5737, %v5736
  %v5753 = vpack.c.b16 %v5739, %v5738
  %v5754 = vpack.c.b16 %v5741, %v5740
  %v5755 = vpack.c.b16 %v5743, %v5742
  %v5756 = vpack.c.b16 %v5745, %v5744
  %v5757 = vpack.c.b16 %v5747, %v5746
  %v5758 = vpack.c.b16 %v5749, %v5748
  %v5759 = vpack.c.b16 %v5751, %v5750
  %5768 = vmatpush.bf16.msra.mxu0 %v5759
  %5769 = vmatpush.bf16.msra.mxu0 %v5758
  %5770 = vmatpush.bf16.msra.mxu0 %v5757
  %5771 = vmatpush.bf16.msra.mxu0 %v5756
  %5772 = vmatpush.bf16.msra.mxu0 %v5755
  %5773 = vmatpush.bf16.msra.mxu0 %v5754
  %5774 = vmatpush.bf16.msra.mxu0 %v5753
  %5775 = vmatpush.bf16.msra.mxu0 %v5752
  %5776 = vmatmul.bf16.gmra.mxu0 %v5655
  %v5777 = vpop.f32.mrf.mxu0
  %v5778 = vadd.f32 0.0, %v5777
  %v5779 = vpop.f32.mrf.mxu0
  %v5780 = vadd.f32 0.0, %v5779
  %5781 = vmatmul.bf16.gmra.mxu0 %v5663
  %v5782 = vpop.f32.mrf.mxu0
  %v5783 = vadd.f32 0.0, %v5782
  %v5784 = vpop.f32.mrf.mxu0
  %v5785 = vadd.f32 0.0, %v5784
  %5786 = vmatmul.bf16.gmra.mxu0 %v5671
  %v5787 = vpop.f32.mrf.mxu0
  %v5788 = vadd.f32 0.0, %v5787
  %v5789 = vpop.f32.mrf.mxu0
  %v5790 = vadd.f32 0.0, %v5789
  %5791 = vmatmul.bf16.gmra.mxu0 %v5679
  %v5792 = vpop.f32.mrf.mxu0
  %v5793 = vadd.f32 0.0, %v5792
  %v5794 = vpop.f32.mrf.mxu0
  %v5795 = vadd.f32 0.0, %v5794
  %5796 = vmatmul.bf16.gmra.mxu0 %v5687
  %v5797 = vpop.f32.mrf.mxu0
  %v5798 = vadd.f32 0.0, %v5797
  %v5799 = vpop.f32.mrf.mxu0
  %v5800 = vadd.f32 0.0, %v5799
  %5801 = vmatmul.bf16.gmra.mxu0 %v5695
  %v5802 = vpop.f32.mrf.mxu0
  %v5803 = vadd.f32 0.0, %v5802
  %v5804 = vpop.f32.mrf.mxu0
  %v5805 = vadd.f32 0.0, %v5804
  %5806 = vmatmul.bf16.gmra.mxu0 %v5703
  %v5807 = vpop.f32.mrf.mxu0
  %v5808 = vadd.f32 0.0, %v5807
  %v5809 = vpop.f32.mrf.mxu0
  %v5810 = vadd.f32 0.0, %v5809
  %5811 = vmatmul.bf16.gmra.mxu0 %v5711
  %v5812 = vpop.f32.mrf.mxu0
  %v5813 = vadd.f32 0.0, %v5812
  %v5814 = vpop.f32.mrf.mxu0
  %v5815 = vadd.f32 0.0, %v5814
  %5816 = vdwg.mxu0
  %v5817 = vadd.f32 %v5552, %v5778
  %v5818 = vadd.f32 %v5553, %v5780
  %v5819 = vadd.f32 %v5554, %v5783
  %v5820 = vadd.f32 %v5555, %v5785
  %v5821 = vadd.f32 %v5556, %v5788
  %v5822 = vadd.f32 %v5557, %v5790
  %v5823 = vadd.f32 %v5558, %v5793
  %v5824 = vadd.f32 %v5559, %v5795
  %v5825 = vadd.f32 %v5560, %v5798
  %v5826 = vadd.f32 %v5561, %v5800
  %v5827 = vadd.f32 %v5562, %v5803
  %v5828 = vadd.f32 %v5563, %v5805
  %v5829 = vadd.f32 %v5564, %v5808
  %v5830 = vadd.f32 %v5565, %v5810
  %v5831 = vadd.f32 %v5566, %v5813
  %v5832 = vadd.f32 %v5567, %v5815
  %v5833 = vld [vmem:[%s2] sm:$0x1]
  %v5835 = vperm.slane %v5833, 0
  %v5837 = vadd.f32 %v5817, %v5835
  %v5838 = vadd.f32 %v5818, %v5835
  %v5839 = vadd.f32 %v5819, %v5835
  %v5840 = vadd.f32 %v5820, %v5835
  %v5841 = vadd.f32 %v5821, %v5835
  %v5842 = vadd.f32 %v5822, %v5835
  %v5843 = vadd.f32 %v5823, %v5835
  %v5844 = vadd.f32 %v5824, %v5835
  %v5845 = vadd.f32 %v5825, %v5835
  %v5846 = vadd.f32 %v5826, %v5835
  %v5847 = vadd.f32 %v5827, %v5835
  %v5848 = vadd.f32 %v5828, %v5835
  %v5849 = vadd.f32 %v5829, %v5835
  %v5850 = vadd.f32 %v5830, %v5835
  %v5851 = vadd.f32 %v5831, %v5835
  %v5852 = vadd.f32 %v5832, %v5835
  %v5853 = vmax.f32 %v5837, 0.0
  %v5854 = vmax.f32 %v5838, 0.0
  %v5855 = vmax.f32 %v5839, 0.0
  %v5856 = vmax.f32 %v5840, 0.0
  %v5857 = vmax.f32 %v5841, 0.0
  %v5858 = vmax.f32 %v5842, 0.0
  %v5859 = vmax.f32 %v5843, 0.0
  %v5860 = vmax.f32 %v5844, 0.0
  %v5861 = vmax.f32 %v5845, 0.0
  %v5862 = vmax.f32 %v5846, 0.0
  %v5863 = vmax.f32 %v5847, 0.0
  %v5864 = vmax.f32 %v5848, 0.0
  %v5865 = vmax.f32 %v5849, 0.0
  %v5866 = vmax.f32 %v5850, 0.0
  %v5867 = vmax.f32 %v5851, 0.0
  %v5868 = vmax.f32 %v5852, 0.0
  %v5869 = vsel %vm2236, %v5853, 0.0
  %v5870 = vsel %vm2237, %v5854, 0.0
  %v5871 = vsel %vm2238, %v5855, 0.0
  %v5872 = vsel %vm2239, %v5856, 0.0
  %v5873 = vsel %vm2240, %v5857, 0.0
  %v5874 = vsel %vm2241, %v5858, 0.0
  %v5875 = vsel %vm2242, %v5859, 0.0
  %v5876 = vsel %vm2243, %v5860, 0.0
  %v5877 = vsel %vm2244, %v5861, 0.0
  %v5878 = vsel %vm2245, %v5862, 0.0
  %v5879 = vsel %vm2246, %v5863, 0.0
  %v5880 = vsel %vm2247, %v5864, 0.0
  %v5881 = vsel %vm2248, %v5865, 0.0
  %v5882 = vsel %vm2249, %v5866, 0.0
  %v5883 = vsel %vm2250, %v5867, 0.0
  %v5884 = vsel %vm2251, %v5868, 0.0
  %s5885 = scalar_lea.vmem [#allocation2], 176
  %5886 = vst [vmem:[%s5885] sm:$0xff] 0.0
  %5887 = vst [vmem:[%s5885 + $0x8] sm:$0xff] 0.0
  %5888 = vst [vmem:[%s5885 + $0x10] sm:$0xff] 0.0
  %5889 = vst [vmem:[%s5885 + $0x98] sm:$0xff] 0.0
  %5890 = vst [vmem:[%s5885 + $0xa0] sm:$0xff] 0.0
  %5891 = vst [vmem:[%s5885 + $0xa8] sm:$0xff] 0.0
  %5892 = vst [vmem:[%s5885 + $0x18] sm:$0xff] %v5869
  %5893 = vst [vmem:[%s5885 + $0x20] sm:$0xff] %v5870
  %5894 = vst [vmem:[%s5885 + $0x28] sm:$0xff] %v5871
  %5895 = vst [vmem:[%s5885 + $0x30] sm:$0xff] %v5872
  %5896 = vst [vmem:[%s5885 + $0x38] sm:$0xff] %v5873
  %5897 = vst [vmem:[%s5885 + $0x40] sm:$0xff] %v5874
  %5898 = vst [vmem:[%s5885 + $0x48] sm:$0xff] %v5875
  %5899 = vst [vmem:[%s5885 + $0x50] sm:$0xff] %v5876
  %5900 = vst [vmem:[%s5885 + $0x58] sm:$0xff] %v5877
  %5901 = vst [vmem:[%s5885 + $0x60] sm:$0xff] %v5878
  %5902 = vst [vmem:[%s5885 + $0x68] sm:$0xff] %v5879
  %5903 = vst [vmem:[%s5885 + $0x70] sm:$0xff] %v5880
  %5904 = vst [vmem:[%s5885 + $0x78] sm:$0xff] %v5881
  %5905 = vst [vmem:[%s5885 + $0x80] sm:$0xff] %v5882
  %5906 = vst [vmem:[%s5885 + $0x88] sm:$0xff] %v5883
  %5907 = vst [vmem:[%s5885 + $0x90] sm:$0xff] %v5884
  %v5908 = vld [vmem:[%s5885 + $0x7] sm:$0xff]
  %v5909 = vld [vmem:[%s5885 + $0xf] sm:$0xff]
  %v5910 = vld [vmem:[%s5885 + $0x17] sm:$0xff]
  %v5911 = vld [vmem:[%s5885 + $0x1f] sm:$0xff]
  %v5912 = vld [vmem:[%s5885 + $0x27] sm:$0xff]
  %v5913 = vld [vmem:[%s5885 + $0x2f] sm:$0xff]
  %v5914 = vld [vmem:[%s5885 + $0x37] sm:$0xff]
  %v5915 = vld [vmem:[%s5885 + $0x3f] sm:$0xff]
  %v5916 = vld [vmem:[%s5885 + $0x47] sm:$0xff]
  %v5917 = vld [vmem:[%s5885 + $0x4f] sm:$0xff]
  %v5918 = vld [vmem:[%s5885 + $0x57] sm:$0xff]
  %v5919 = vld [vmem:[%s5885 + $0x5f] sm:$0xff]
  %v5920 = vld [vmem:[%s5885 + $0x67] sm:$0xff]
  %v5921 = vld [vmem:[%s5885 + $0x6f] sm:$0xff]
  %v5922 = vld [vmem:[%s5885 + $0x77] sm:$0xff]
  %v5923 = vld [vmem:[%s5885 + $0x7f] sm:$0xff]
  %v5924 = vpack.c.bf16 %v5909, %v5908
  %v5925 = vpack.c.bf16 %v5911, %v5910
  %v5926 = vpack.c.bf16 %v5913, %v5912
  %v5927 = vpack.c.bf16 %v5915, %v5914
  %v5928 = vpack.c.bf16 %v5917, %v5916
  %v5929 = vpack.c.bf16 %v5919, %v5918
  %v5930 = vpack.c.bf16 %v5921, %v5920
  %v5931 = vpack.c.bf16 %v5923, %v5922
  %v5932 = vld [vmem:[%s3] sm:$0xf]
  %v5933 = vld [vmem:[%s3 + $0x4] sm:$0xf]
  %v5934 = vld [vmem:[%s3 + $0x8] sm:$0xf]
  %v5935 = vld [vmem:[%s3 + $0xc] sm:$0xf]
  %v5936 = vld [vmem:[%s3 + $0x10] sm:$0xf]
  %v5937 = vld [vmem:[%s3 + $0x14] sm:$0xf]
  %v5938 = vld [vmem:[%s3 + $0x18] sm:$0xf]
  %v5939 = vld [vmem:[%s3 + $0x1c] sm:$0xf]
  %v5940 = vld [vmem:[%s3 + $0x20] sm:$0xf]
  %v5941 = vld [vmem:[%s3 + $0x24] sm:$0xf]
  %v5942 = vld [vmem:[%s3 + $0x28] sm:$0xf]
  %v5943 = vld [vmem:[%s3 + $0x2c] sm:$0xf]
  %v5944 = vld [vmem:[%s3 + $0x30] sm:$0xf]
  %v5945 = vld [vmem:[%s3 + $0x34] sm:$0xf]
  %v5946 = vld [vmem:[%s3 + $0x38] sm:$0xf]
  %v5947 = vld [vmem:[%s3 + $0x3c] sm:$0xf]
  %v5948 = vld [vmem:[%s5885 + $0x8] sm:$0xff]
  %v5949 = vld [vmem:[%s5885 + $0x10] sm:$0xff]
  %v5950 = vld [vmem:[%s5885 + $0x18] sm:$0xff]
  %v5951 = vld [vmem:[%s5885 + $0x20] sm:$0xff]
  %v5952 = vld [vmem:[%s5885 + $0x28] sm:$0xff]
  %v5953 = vld [vmem:[%s5885 + $0x30] sm:$0xff]
  %v5954 = vld [vmem:[%s5885 + $0x38] sm:$0xff]
  %v5955 = vld [vmem:[%s5885 + $0x40] sm:$0xff]
  %v5956 = vld [vmem:[%s5885 + $0x48] sm:$0xff]
  %v5957 = vld [vmem:[%s5885 + $0x50] sm:$0xff]
  %v5958 = vld [vmem:[%s5885 + $0x58] sm:$0xff]
  %v5959 = vld [vmem:[%s5885 + $0x60] sm:$0xff]
  %v5960 = vld [vmem:[%s5885 + $0x68] sm:$0xff]
  %v5961 = vld [vmem:[%s5885 + $0x70] sm:$0xff]
  %v5962 = vld [vmem:[%s5885 + $0x78] sm:$0xff]
  %v5963 = vld [vmem:[%s5885 + $0x80] sm:$0xff]
  %v5964 = vpack.c.bf16 %v5949, %v5948
  %v5965 = vpack.c.bf16 %v5951, %v5950
  %v5966 = vpack.c.bf16 %v5953, %v5952
  %v5967 = vpack.c.bf16 %v5955, %v5954
  %v5968 = vpack.c.bf16 %v5957, %v5956
  %v5969 = vpack.c.bf16 %v5959, %v5958
  %v5970 = vpack.c.bf16 %v5961, %v5960
  %v5971 = vpack.c.bf16 %v5963, %v5962
  %v5972 = vld [vmem:[%s2354] sm:$0xf]
  %v5973 = vld [vmem:[%s2354 + $0x4] sm:$0xf]
  %v5974 = vld [vmem:[%s2354 + $0x8] sm:$0xf]
  %v5975 = vld [vmem:[%s2354 + $0xc] sm:$0xf]
  %v5976 = vld [vmem:[%s2354 + $0x10] sm:$0xf]
  %v5977 = vld [vmem:[%s2354 + $0x14] sm:$0xf]
  %v5978 = vld [vmem:[%s2354 + $0x18] sm:$0xf]
  %v5979 = vld [vmem:[%s2354 + $0x1c] sm:$0xf]
  %v5980 = vld [vmem:[%s2354 + $0x20] sm:$0xf]
  %v5981 = vld [vmem:[%s2354 + $0x24] sm:$0xf]
  %v5982 = vld [vmem:[%s2354 + $0x28] sm:$0xf]
  %v5983 = vld [vmem:[%s2354 + $0x2c] sm:$0xf]
  %v5984 = vld [vmem:[%s2354 + $0x30] sm:$0xf]
  %v5985 = vld [vmem:[%s2354 + $0x34] sm:$0xf]
  %v5986 = vld [vmem:[%s2354 + $0x38] sm:$0xf]
  %v5987 = vld [vmem:[%s2354 + $0x3c] sm:$0xf]
  %v6004 = vunpack.c.l.b16 %v5972
  %v6005 = vunpack.c.l.b16 %v5973
  %v6006 = vunpack.c.l.b16 %v5974
  %v6007 = vunpack.c.l.b16 %v5975
  %v6008 = vunpack.c.l.b16 %v5976
  %v6009 = vunpack.c.l.b16 %v5977
  %v6010 = vunpack.c.l.b16 %v5978
  %v6011 = vunpack.c.l.b16 %v5979
  %v6012 = vunpack.c.l.b16 %v5980
  %v6013 = vunpack.c.l.b16 %v5981
  %v6014 = vunpack.c.l.b16 %v5982
  %v6015 = vunpack.c.l.b16 %v5983
  %v6016 = vunpack.c.l.b16 %v5984
  %v6017 = vunpack.c.l.b16 %v5985
  %v6018 = vunpack.c.l.b16 %v5986
  %v6019 = vunpack.c.l.b16 %v5987
  %v6020 = vpack.c.b16 %v6005, %v6004
  %v6021 = vpack.c.b16 %v6007, %v6006
  %v6022 = vpack.c.b16 %v6009, %v6008
  %v6023 = vpack.c.b16 %v6011, %v6010
  %v6024 = vpack.c.b16 %v6013, %v6012
  %v6025 = vpack.c.b16 %v6015, %v6014
  %v6026 = vpack.c.b16 %v6017, %v6016
  %v6027 = vpack.c.b16 %v6019, %v6018
  %6036 = vmatpush.bf16.msra.mxu0 %v6027
  %6037 = vmatpush.bf16.msra.mxu0 %v6026
  %6038 = vmatpush.bf16.msra.mxu0 %v6025
  %6039 = vmatpush.bf16.msra.mxu0 %v6024
  %6040 = vmatpush.bf16.msra.mxu0 %v6023
  %6041 = vmatpush.bf16.msra.mxu0 %v6022
  %6042 = vmatpush.bf16.msra.mxu0 %v6021
  %6043 = vmatpush.bf16.msra.mxu0 %v6020
  %6044 = vmatmul.bf16.gmra.mxu0 %v5964
  %v6045 = vpop.f32.mrf.mxu0
  %v6046 = vadd.f32 0.0, %v6045
  %v6047 = vpop.f32.mrf.mxu0
  %v6048 = vadd.f32 0.0, %v6047
  %6049 = vmatmul.bf16.gmra.mxu0 %v5965
  %v6050 = vpop.f32.mrf.mxu0
  %v6051 = vadd.f32 0.0, %v6050
  %v6052 = vpop.f32.mrf.mxu0
  %v6053 = vadd.f32 0.0, %v6052
  %6054 = vmatmul.bf16.gmra.mxu0 %v5966
  %v6055 = vpop.f32.mrf.mxu0
  %v6056 = vadd.f32 0.0, %v6055
  %v6057 = vpop.f32.mrf.mxu0
  %v6058 = vadd.f32 0.0, %v6057
  %6059 = vmatmul.bf16.gmra.mxu0 %v5967
  %v6060 = vpop.f32.mrf.mxu0
  %v6061 = vadd.f32 0.0, %v6060
  %v6062 = vpop.f32.mrf.mxu0
  %v6063 = vadd.f32 0.0, %v6062
  %6064 = vmatmul.bf16.gmra.mxu0 %v5968
  %v6065 = vpop.f32.mrf.mxu0
  %v6066 = vadd.f32 0.0, %v6065
  %v6067 = vpop.f32.mrf.mxu0
  %v6068 = vadd.f32 0.0, %v6067
  %6069 = vmatmul.bf16.gmra.mxu0 %v5969
  %v6070 = vpop.f32.mrf.mxu0
  %v6071 = vadd.f32 0.0, %v6070
  %v6072 = vpop.f32.mrf.mxu0
  %v6073 = vadd.f32 0.0, %v6072
  %6074 = vmatmul.bf16.gmra.mxu0 %v5970
  %v6075 = vpop.f32.mrf.mxu0
  %v6076 = vadd.f32 0.0, %v6075
  %v6077 = vpop.f32.mrf.mxu0
  %v6078 = vadd.f32 0.0, %v6077
  %6079 = vmatmul.bf16.gmra.mxu0 %v5971
  %v6080 = vpop.f32.mrf.mxu0
  %v6081 = vadd.f32 0.0, %v6080
  %v6082 = vpop.f32.mrf.mxu0
  %v6083 = vadd.f32 0.0, %v6082
  %6084 = vdwg.mxu0
  %v6101 = vunpack.c.l.b16 %v5932
  %v6102 = vunpack.c.l.b16 %v5933
  %v6103 = vunpack.c.l.b16 %v5934
  %v6104 = vunpack.c.l.b16 %v5935
  %v6105 = vunpack.c.l.b16 %v5936
  %v6106 = vunpack.c.l.b16 %v5937
  %v6107 = vunpack.c.l.b16 %v5938
  %v6108 = vunpack.c.l.b16 %v5939
  %v6109 = vunpack.c.l.b16 %v5940
  %v6110 = vunpack.c.l.b16 %v5941
  %v6111 = vunpack.c.l.b16 %v5942
  %v6112 = vunpack.c.l.b16 %v5943
  %v6113 = vunpack.c.l.b16 %v5944
  %v6114 = vunpack.c.l.b16 %v5945
  %v6115 = vunpack.c.l.b16 %v5946
  %v6116 = vunpack.c.l.b16 %v5947
  %v6117 = vpack.c.b16 %v6102, %v6101
  %v6118 = vpack.c.b16 %v6104, %v6103
  %v6119 = vpack.c.b16 %v6106, %v6105
  %v6120 = vpack.c.b16 %v6108, %v6107
  %v6121 = vpack.c.b16 %v6110, %v6109
  %v6122 = vpack.c.b16 %v6112, %v6111
  %v6123 = vpack.c.b16 %v6114, %v6113
  %v6124 = vpack.c.b16 %v6116, %v6115
  %6133 = vmatpush.bf16.msra.mxu0 %v6124
  %6134 = vmatpush.bf16.msra.mxu0 %v6123
  %6135 = vmatpush.bf16.msra.mxu0 %v6122
  %6136 = vmatpush.bf16.msra.mxu0 %v6121
  %6137 = vmatpush.bf16.msra.mxu0 %v6120
  %6138 = vmatpush.bf16.msra.mxu0 %v6119
  %6139 = vmatpush.bf16.msra.mxu0 %v6118
  %6140 = vmatpush.bf16.msra.mxu0 %v6117
  %6141 = vmatmul.bf16.gmra.mxu0 %v5924
  %v6142 = vpop.f32.mrf.mxu0
  %v6143 = vadd.f32 %v6046, %v6142
  %v6144 = vpop.f32.mrf.mxu0
  %v6145 = vadd.f32 %v6048, %v6144
  %6146 = vmatmul.bf16.gmra.mxu0 %v5925
  %v6147 = vpop.f32.mrf.mxu0
  %v6148 = vadd.f32 %v6051, %v6147
  %v6149 = vpop.f32.mrf.mxu0
  %v6150 = vadd.f32 %v6053, %v6149
  %6151 = vmatmul.bf16.gmra.mxu0 %v5926
  %v6152 = vpop.f32.mrf.mxu0
  %v6153 = vadd.f32 %v6056, %v6152
  %v6154 = vpop.f32.mrf.mxu0
  %v6155 = vadd.f32 %v6058, %v6154
  %6156 = vmatmul.bf16.gmra.mxu0 %v5927
  %v6157 = vpop.f32.mrf.mxu0
  %v6158 = vadd.f32 %v6061, %v6157
  %v6159 = vpop.f32.mrf.mxu0
  %v6160 = vadd.f32 %v6063, %v6159
  %6161 = vmatmul.bf16.gmra.mxu0 %v5928
  %v6162 = vpop.f32.mrf.mxu0
  %v6163 = vadd.f32 %v6066, %v6162
  %v6164 = vpop.f32.mrf.mxu0
  %v6165 = vadd.f32 %v6068, %v6164
  %6166 = vmatmul.bf16.gmra.mxu0 %v5929
  %v6167 = vpop.f32.mrf.mxu0
  %v6168 = vadd.f32 %v6071, %v6167
  %v6169 = vpop.f32.mrf.mxu0
  %v6170 = vadd.f32 %v6073, %v6169
  %6171 = vmatmul.bf16.gmra.mxu0 %v5930
  %v6172 = vpop.f32.mrf.mxu0
  %v6173 = vadd.f32 %v6076, %v6172
  %v6174 = vpop.f32.mrf.mxu0
  %v6175 = vadd.f32 %v6078, %v6174
  %6176 = vmatmul.bf16.gmra.mxu0 %v5931
  %v6177 = vpop.f32.mrf.mxu0
  %v6178 = vadd.f32 %v6081, %v6177
  %v6179 = vpop.f32.mrf.mxu0
  %v6180 = vadd.f32 %v6083, %v6179
  %6181 = vdwg.mxu0
  %v6182 = vld [vmem:[%s5885 + $0x9] sm:$0xff]
  %v6183 = vld [vmem:[%s5885 + $0x11] sm:$0xff]
  %v6184 = vld [vmem:[%s5885 + $0x19] sm:$0xff]
  %v6185 = vld [vmem:[%s5885 + $0x21] sm:$0xff]
  %v6186 = vld [vmem:[%s5885 + $0x29] sm:$0xff]
  %v6187 = vld [vmem:[%s5885 + $0x31] sm:$0xff]
  %v6188 = vld [vmem:[%s5885 + $0x39] sm:$0xff]
  %v6189 = vld [vmem:[%s5885 + $0x41] sm:$0xff]
  %v6190 = vld [vmem:[%s5885 + $0x49] sm:$0xff]
  %v6191 = vld [vmem:[%s5885 + $0x51] sm:$0xff]
  %v6192 = vld [vmem:[%s5885 + $0x59] sm:$0xff]
  %v6193 = vld [vmem:[%s5885 + $0x61] sm:$0xff]
  %v6194 = vld [vmem:[%s5885 + $0x69] sm:$0xff]
  %v6195 = vld [vmem:[%s5885 + $0x71] sm:$0xff]
  %v6196 = vld [vmem:[%s5885 + $0x79] sm:$0xff]
  %v6197 = vld [vmem:[%s5885 + $0x81] sm:$0xff]
  %v6198 = vpack.c.bf16 %v6183, %v6182
  %v6199 = vpack.c.bf16 %v6185, %v6184
  %v6200 = vpack.c.bf16 %v6187, %v6186
  %v6201 = vpack.c.bf16 %v6189, %v6188
  %v6202 = vpack.c.bf16 %v6191, %v6190
  %v6203 = vpack.c.bf16 %v6193, %v6192
  %v6204 = vpack.c.bf16 %v6195, %v6194
  %v6205 = vpack.c.bf16 %v6197, %v6196
  %v6206 = vld [vmem:[%s2589] sm:$0xf]
  %v6207 = vld [vmem:[%s2589 + $0x4] sm:$0xf]
  %v6208 = vld [vmem:[%s2589 + $0x8] sm:$0xf]
  %v6209 = vld [vmem:[%s2589 + $0xc] sm:$0xf]
  %v6210 = vld [vmem:[%s2589 + $0x10] sm:$0xf]
  %v6211 = vld [vmem:[%s2589 + $0x14] sm:$0xf]
  %v6212 = vld [vmem:[%s2589 + $0x18] sm:$0xf]
  %v6213 = vld [vmem:[%s2589 + $0x1c] sm:$0xf]
  %v6214 = vld [vmem:[%s2589 + $0x20] sm:$0xf]
  %v6215 = vld [vmem:[%s2589 + $0x24] sm:$0xf]
  %v6216 = vld [vmem:[%s2589 + $0x28] sm:$0xf]
  %v6217 = vld [vmem:[%s2589 + $0x2c] sm:$0xf]
  %v6218 = vld [vmem:[%s2589 + $0x30] sm:$0xf]
  %v6219 = vld [vmem:[%s2589 + $0x34] sm:$0xf]
  %v6220 = vld [vmem:[%s2589 + $0x38] sm:$0xf]
  %v6221 = vld [vmem:[%s2589 + $0x3c] sm:$0xf]
  %v6238 = vunpack.c.l.b16 %v6206
  %v6239 = vunpack.c.l.b16 %v6207
  %v6240 = vunpack.c.l.b16 %v6208
  %v6241 = vunpack.c.l.b16 %v6209
  %v6242 = vunpack.c.l.b16 %v6210
  %v6243 = vunpack.c.l.b16 %v6211
  %v6244 = vunpack.c.l.b16 %v6212
  %v6245 = vunpack.c.l.b16 %v6213
  %v6246 = vunpack.c.l.b16 %v6214
  %v6247 = vunpack.c.l.b16 %v6215
  %v6248 = vunpack.c.l.b16 %v6216
  %v6249 = vunpack.c.l.b16 %v6217
  %v6250 = vunpack.c.l.b16 %v6218
  %v6251 = vunpack.c.l.b16 %v6219
  %v6252 = vunpack.c.l.b16 %v6220
  %v6253 = vunpack.c.l.b16 %v6221
  %v6254 = vpack.c.b16 %v6239, %v6238
  %v6255 = vpack.c.b16 %v6241, %v6240
  %v6256 = vpack.c.b16 %v6243, %v6242
  %v6257 = vpack.c.b16 %v6245, %v6244
  %v6258 = vpack.c.b16 %v6247, %v6246
  %v6259 = vpack.c.b16 %v6249, %v6248
  %v6260 = vpack.c.b16 %v6251, %v6250
  %v6261 = vpack.c.b16 %v6253, %v6252
  %6270 = vmatpush.bf16.msra.mxu0 %v6261
  %6271 = vmatpush.bf16.msra.mxu0 %v6260
  %6272 = vmatpush.bf16.msra.mxu0 %v6259
  %6273 = vmatpush.bf16.msra.mxu0 %v6258
  %6274 = vmatpush.bf16.msra.mxu0 %v6257
  %6275 = vmatpush.bf16.msra.mxu0 %v6256
  %6276 = vmatpush.bf16.msra.mxu0 %v6255
  %6277 = vmatpush.bf16.msra.mxu0 %v6254
  %6278 = vmatmul.bf16.gmra.mxu0 %v6198
  %v6279 = vpop.f32.mrf.mxu0
  %v6280 = vadd.f32 0.0, %v6279
  %v6281 = vpop.f32.mrf.mxu0
  %v6282 = vadd.f32 0.0, %v6281
  %6283 = vmatmul.bf16.gmra.mxu0 %v6199
  %v6284 = vpop.f32.mrf.mxu0
  %v6285 = vadd.f32 0.0, %v6284
  %v6286 = vpop.f32.mrf.mxu0
  %v6287 = vadd.f32 0.0, %v6286
  %6288 = vmatmul.bf16.gmra.mxu0 %v6200
  %v6289 = vpop.f32.mrf.mxu0
  %v6290 = vadd.f32 0.0, %v6289
  %v6291 = vpop.f32.mrf.mxu0
  %v6292 = vadd.f32 0.0, %v6291
  %6293 = vmatmul.bf16.gmra.mxu0 %v6201
  %v6294 = vpop.f32.mrf.mxu0
  %v6295 = vadd.f32 0.0, %v6294
  %v6296 = vpop.f32.mrf.mxu0
  %v6297 = vadd.f32 0.0, %v6296
  %6298 = vmatmul.bf16.gmra.mxu0 %v6202
  %v6299 = vpop.f32.mrf.mxu0
  %v6300 = vadd.f32 0.0, %v6299
  %v6301 = vpop.f32.mrf.mxu0
  %v6302 = vadd.f32 0.0, %v6301
  %6303 = vmatmul.bf16.gmra.mxu0 %v6203
  %v6304 = vpop.f32.mrf.mxu0
  %v6305 = vadd.f32 0.0, %v6304
  %v6306 = vpop.f32.mrf.mxu0
  %v6307 = vadd.f32 0.0, %v6306
  %6308 = vmatmul.bf16.gmra.mxu0 %v6204
  %v6309 = vpop.f32.mrf.mxu0
  %v6310 = vadd.f32 0.0, %v6309
  %v6311 = vpop.f32.mrf.mxu0
  %v6312 = vadd.f32 0.0, %v6311
  %6313 = vmatmul.bf16.gmra.mxu0 %v6205
  %v6314 = vpop.f32.mrf.mxu0
  %v6315 = vadd.f32 0.0, %v6314
  %v6316 = vpop.f32.mrf.mxu0
  %v6317 = vadd.f32 0.0, %v6316
  %6318 = vdwg.mxu0
  %v6319 = vadd.f32 %v6143, %v6280
  %v6320 = vadd.f32 %v6145, %v6282
  %v6321 = vadd.f32 %v6148, %v6285
  %v6322 = vadd.f32 %v6150, %v6287
  %v6323 = vadd.f32 %v6153, %v6290
  %v6324 = vadd.f32 %v6155, %v6292
  %v6325 = vadd.f32 %v6158, %v6295
  %v6326 = vadd.f32 %v6160, %v6297
  %v6327 = vadd.f32 %v6163, %v6300
  %v6328 = vadd.f32 %v6165, %v6302
  %v6329 = vadd.f32 %v6168, %v6305
  %v6330 = vadd.f32 %v6170, %v6307
  %v6331 = vadd.f32 %v6173, %v6310
  %v6332 = vadd.f32 %v6175, %v6312
  %v6333 = vadd.f32 %v6178, %v6315
  %v6334 = vadd.f32 %v6180, %v6317
  %v6335 = vld [vmem:[%s5885 + $0x17] sm:$0xff]
  %v6336 = vld [vmem:[%s5885 + $0x1f] sm:$0xff]
  %v6337 = vld [vmem:[%s5885 + $0x27] sm:$0xff]
  %v6338 = vld [vmem:[%s5885 + $0x2f] sm:$0xff]
  %v6339 = vld [vmem:[%s5885 + $0x37] sm:$0xff]
  %v6340 = vld [vmem:[%s5885 + $0x3f] sm:$0xff]
  %v6341 = vld [vmem:[%s5885 + $0x47] sm:$0xff]
  %v6342 = vld [vmem:[%s5885 + $0x4f] sm:$0xff]
  %v6343 = vld [vmem:[%s5885 + $0x57] sm:$0xff]
  %v6344 = vld [vmem:[%s5885 + $0x5f] sm:$0xff]
  %v6345 = vld [vmem:[%s5885 + $0x67] sm:$0xff]
  %v6346 = vld [vmem:[%s5885 + $0x6f] sm:$0xff]
  %v6347 = vld [vmem:[%s5885 + $0x77] sm:$0xff]
  %v6348 = vld [vmem:[%s5885 + $0x7f] sm:$0xff]
  %v6349 = vld [vmem:[%s5885 + $0x87] sm:$0xff]
  %v6350 = vld [vmem:[%s5885 + $0x8f] sm:$0xff]
  %v6351 = vpack.c.bf16 %v6336, %v6335
  %v6352 = vpack.c.bf16 %v6338, %v6337
  %v6353 = vpack.c.bf16 %v6340, %v6339
  %v6354 = vpack.c.bf16 %v6342, %v6341
  %v6355 = vpack.c.bf16 %v6344, %v6343
  %v6356 = vpack.c.bf16 %v6346, %v6345
  %v6357 = vpack.c.bf16 %v6348, %v6347
  %v6358 = vpack.c.bf16 %v6350, %v6349
  %v6359 = vld [vmem:[%s2743] sm:$0xf]
  %v6360 = vld [vmem:[%s2743 + $0x4] sm:$0xf]
  %v6361 = vld [vmem:[%s2743 + $0x8] sm:$0xf]
  %v6362 = vld [vmem:[%s2743 + $0xc] sm:$0xf]
  %v6363 = vld [vmem:[%s2743 + $0x10] sm:$0xf]
  %v6364 = vld [vmem:[%s2743 + $0x14] sm:$0xf]
  %v6365 = vld [vmem:[%s2743 + $0x18] sm:$0xf]
  %v6366 = vld [vmem:[%s2743 + $0x1c] sm:$0xf]
  %v6367 = vld [vmem:[%s2743 + $0x20] sm:$0xf]
  %v6368 = vld [vmem:[%s2743 + $0x24] sm:$0xf]
  %v6369 = vld [vmem:[%s2743 + $0x28] sm:$0xf]
  %v6370 = vld [vmem:[%s2743 + $0x2c] sm:$0xf]
  %v6371 = vld [vmem:[%s2743 + $0x30] sm:$0xf]
  %v6372 = vld [vmem:[%s2743 + $0x34] sm:$0xf]
  %v6373 = vld [vmem:[%s2743 + $0x38] sm:$0xf]
  %v6374 = vld [vmem:[%s2743 + $0x3c] sm:$0xf]
  %v6391 = vunpack.c.l.b16 %v6359
  %v6392 = vunpack.c.l.b16 %v6360
  %v6393 = vunpack.c.l.b16 %v6361
  %v6394 = vunpack.c.l.b16 %v6362
  %v6395 = vunpack.c.l.b16 %v6363
  %v6396 = vunpack.c.l.b16 %v6364
  %v6397 = vunpack.c.l.b16 %v6365
  %v6398 = vunpack.c.l.b16 %v6366
  %v6399 = vunpack.c.l.b16 %v6367
  %v6400 = vunpack.c.l.b16 %v6368
  %v6401 = vunpack.c.l.b16 %v6369
  %v6402 = vunpack.c.l.b16 %v6370
  %v6403 = vunpack.c.l.b16 %v6371
  %v6404 = vunpack.c.l.b16 %v6372
  %v6405 = vunpack.c.l.b16 %v6373
  %v6406 = vunpack.c.l.b16 %v6374
  %v6407 = vpack.c.b16 %v6392, %v6391
  %v6408 = vpack.c.b16 %v6394, %v6393
  %v6409 = vpack.c.b16 %v6396, %v6395
  %v6410 = vpack.c.b16 %v6398, %v6397
  %v6411 = vpack.c.b16 %v6400, %v6399
  %v6412 = vpack.c.b16 %v6402, %v6401
  %v6413 = vpack.c.b16 %v6404, %v6403
  %v6414 = vpack.c.b16 %v6406, %v6405
  %6423 = vmatpush.bf16.msra.mxu0 %v6414
  %6424 = vmatpush.bf16.msra.mxu0 %v6413
  %6425 = vmatpush.bf16.msra.mxu0 %v6412
  %6426 = vmatpush.bf16.msra.mxu0 %v6411
  %6427 = vmatpush.bf16.msra.mxu0 %v6410
  %6428 = vmatpush.bf16.msra.mxu0 %v6409
  %6429 = vmatpush.bf16.msra.mxu0 %v6408
  %6430 = vmatpush.bf16.msra.mxu0 %v6407
  %6431 = vmatmul.bf16.gmra.mxu0 %v6351
  %v6432 = vpop.f32.mrf.mxu0
  %v6433 = vadd.f32 0.0, %v6432
  %v6434 = vpop.f32.mrf.mxu0
  %v6435 = vadd.f32 0.0, %v6434
  %6436 = vmatmul.bf16.gmra.mxu0 %v6352
  %v6437 = vpop.f32.mrf.mxu0
  %v6438 = vadd.f32 0.0, %v6437
  %v6439 = vpop.f32.mrf.mxu0
  %v6440 = vadd.f32 0.0, %v6439
  %6441 = vmatmul.bf16.gmra.mxu0 %v6353
  %v6442 = vpop.f32.mrf.mxu0
  %v6443 = vadd.f32 0.0, %v6442
  %v6444 = vpop.f32.mrf.mxu0
  %v6445 = vadd.f32 0.0, %v6444
  %6446 = vmatmul.bf16.gmra.mxu0 %v6354
  %v6447 = vpop.f32.mrf.mxu0
  %v6448 = vadd.f32 0.0, %v6447
  %v6449 = vpop.f32.mrf.mxu0
  %v6450 = vadd.f32 0.0, %v6449
  %6451 = vmatmul.bf16.gmra.mxu0 %v6355
  %v6452 = vpop.f32.mrf.mxu0
  %v6453 = vadd.f32 0.0, %v6452
  %v6454 = vpop.f32.mrf.mxu0
  %v6455 = vadd.f32 0.0, %v6454
  %6456 = vmatmul.bf16.gmra.mxu0 %v6356
  %v6457 = vpop.f32.mrf.mxu0
  %v6458 = vadd.f32 0.0, %v6457
  %v6459 = vpop.f32.mrf.mxu0
  %v6460 = vadd.f32 0.0, %v6459
  %6461 = vmatmul.bf16.gmra.mxu0 %v6357
  %v6462 = vpop.f32.mrf.mxu0
  %v6463 = vadd.f32 0.0, %v6462
  %v6464 = vpop.f32.mrf.mxu0
  %v6465 = vadd.f32 0.0, %v6464
  %6466 = vmatmul.bf16.gmra.mxu0 %v6358
  %v6467 = vpop.f32.mrf.mxu0
  %v6468 = vadd.f32 0.0, %v6467
  %v6469 = vpop.f32.mrf.mxu0
  %v6470 = vadd.f32 0.0, %v6469
  %6471 = vdwg.mxu0
  %v6472 = vadd.f32 %v6319, %v6433
  %v6473 = vadd.f32 %v6320, %v6435
  %v6474 = vadd.f32 %v6321, %v6438
  %v6475 = vadd.f32 %v6322, %v6440
  %v6476 = vadd.f32 %v6323, %v6443
  %v6477 = vadd.f32 %v6324, %v6445
  %v6478 = vadd.f32 %v6325, %v6448
  %v6479 = vadd.f32 %v6326, %v6450
  %v6480 = vadd.f32 %v6327, %v6453
  %v6481 = vadd.f32 %v6328, %v6455
  %v6482 = vadd.f32 %v6329, %v6458
  %v6483 = vadd.f32 %v6330, %v6460
  %v6484 = vadd.f32 %v6331, %v6463
  %v6485 = vadd.f32 %v6332, %v6465
  %v6486 = vadd.f32 %v6333, %v6468
  %v6487 = vadd.f32 %v6334, %v6470
  %v6488 = vld [vmem:[%s5885 + $0x18] sm:$0xff]
  %v6489 = vld [vmem:[%s5885 + $0x20] sm:$0xff]
  %v6490 = vld [vmem:[%s5885 + $0x28] sm:$0xff]
  %v6491 = vld [vmem:[%s5885 + $0x30] sm:$0xff]
  %v6492 = vld [vmem:[%s5885 + $0x38] sm:$0xff]
  %v6493 = vld [vmem:[%s5885 + $0x40] sm:$0xff]
  %v6494 = vld [vmem:[%s5885 + $0x48] sm:$0xff]
  %v6495 = vld [vmem:[%s5885 + $0x50] sm:$0xff]
  %v6496 = vld [vmem:[%s5885 + $0x58] sm:$0xff]
  %v6497 = vld [vmem:[%s5885 + $0x60] sm:$0xff]
  %v6498 = vld [vmem:[%s5885 + $0x68] sm:$0xff]
  %v6499 = vld [vmem:[%s5885 + $0x70] sm:$0xff]
  %v6500 = vld [vmem:[%s5885 + $0x78] sm:$0xff]
  %v6501 = vld [vmem:[%s5885 + $0x80] sm:$0xff]
  %v6502 = vld [vmem:[%s5885 + $0x88] sm:$0xff]
  %v6503 = vld [vmem:[%s5885 + $0x90] sm:$0xff]
  %v6504 = vpack.c.bf16 %v6489, %v6488
  %v6505 = vpack.c.bf16 %v6491, %v6490
  %v6506 = vpack.c.bf16 %v6493, %v6492
  %v6507 = vpack.c.bf16 %v6495, %v6494
  %v6508 = vpack.c.bf16 %v6497, %v6496
  %v6509 = vpack.c.bf16 %v6499, %v6498
  %v6510 = vpack.c.bf16 %v6501, %v6500
  %v6511 = vpack.c.bf16 %v6503, %v6502
  %v6512 = vld [vmem:[%s2897] sm:$0xf]
  %v6513 = vld [vmem:[%s2897 + $0x4] sm:$0xf]
  %v6514 = vld [vmem:[%s2897 + $0x8] sm:$0xf]
  %v6515 = vld [vmem:[%s2897 + $0xc] sm:$0xf]
  %v6516 = vld [vmem:[%s2897 + $0x10] sm:$0xf]
  %v6517 = vld [vmem:[%s2897 + $0x14] sm:$0xf]
  %v6518 = vld [vmem:[%s2897 + $0x18] sm:$0xf]
  %v6519 = vld [vmem:[%s2897 + $0x1c] sm:$0xf]
  %v6520 = vld [vmem:[%s2897 + $0x20] sm:$0xf]
  %v6521 = vld [vmem:[%s2897 + $0x24] sm:$0xf]
  %v6522 = vld [vmem:[%s2897 + $0x28] sm:$0xf]
  %v6523 = vld [vmem:[%s2897 + $0x2c] sm:$0xf]
  %v6524 = vld [vmem:[%s2897 + $0x30] sm:$0xf]
  %v6525 = vld [vmem:[%s2897 + $0x34] sm:$0xf]
  %v6526 = vld [vmem:[%s2897 + $0x38] sm:$0xf]
  %v6527 = vld [vmem:[%s2897 + $0x3c] sm:$0xf]
  %v6544 = vunpack.c.l.b16 %v6512
  %v6545 = vunpack.c.l.b16 %v6513
  %v6546 = vunpack.c.l.b16 %v6514
  %v6547 = vunpack.c.l.b16 %v6515
  %v6548 = vunpack.c.l.b16 %v6516
  %v6549 = vunpack.c.l.b16 %v6517
  %v6550 = vunpack.c.l.b16 %v6518
  %v6551 = vunpack.c.l.b16 %v6519
  %v6552 = vunpack.c.l.b16 %v6520
  %v6553 = vunpack.c.l.b16 %v6521
  %v6554 = vunpack.c.l.b16 %v6522
  %v6555 = vunpack.c.l.b16 %v6523
  %v6556 = vunpack.c.l.b16 %v6524
  %v6557 = vunpack.c.l.b16 %v6525
  %v6558 = vunpack.c.l.b16 %v6526
  %v6559 = vunpack.c.l.b16 %v6527
  %v6560 = vpack.c.b16 %v6545, %v6544
  %v6561 = vpack.c.b16 %v6547, %v6546
  %v6562 = vpack.c.b16 %v6549, %v6548
  %v6563 = vpack.c.b16 %v6551, %v6550
  %v6564 = vpack.c.b16 %v6553, %v6552
  %v6565 = vpack.c.b16 %v6555, %v6554
  %v6566 = vpack.c.b16 %v6557, %v6556
  %v6567 = vpack.c.b16 %v6559, %v6558
  %6576 = vmatpush.bf16.msra.mxu0 %v6567
  %6577 = vmatpush.bf16.msra.mxu0 %v6566
  %6578 = vmatpush.bf16.msra.mxu0 %v6565
  %6579 = vmatpush.bf16.msra.mxu0 %v6564
  %6580 = vmatpush.bf16.msra.mxu0 %v6563
  %6581 = vmatpush.bf16.msra.mxu0 %v6562
  %6582 = vmatpush.bf16.msra.mxu0 %v6561
  %6583 = vmatpush.bf16.msra.mxu0 %v6560
  %6584 = vmatmul.bf16.gmra.mxu0 %v6504
  %v6585 = vpop.f32.mrf.mxu0
  %v6586 = vadd.f32 0.0, %v6585
  %v6587 = vpop.f32.mrf.mxu0
  %v6588 = vadd.f32 0.0, %v6587
  %6589 = vmatmul.bf16.gmra.mxu0 %v6505
  %v6590 = vpop.f32.mrf.mxu0
  %v6591 = vadd.f32 0.0, %v6590
  %v6592 = vpop.f32.mrf.mxu0
  %v6593 = vadd.f32 0.0, %v6592
  %6594 = vmatmul.bf16.gmra.mxu0 %v6506
  %v6595 = vpop.f32.mrf.mxu0
  %v6596 = vadd.f32 0.0, %v6595
  %v6597 = vpop.f32.mrf.mxu0
  %v6598 = vadd.f32 0.0, %v6597
  %6599 = vmatmul.bf16.gmra.mxu0 %v6507
  %v6600 = vpop.f32.mrf.mxu0
  %v6601 = vadd.f32 0.0, %v6600
  %v6602 = vpop.f32.mrf.mxu0
  %v6603 = vadd.f32 0.0, %v6602
  %6604 = vmatmul.bf16.gmra.mxu0 %v6508
  %v6605 = vpop.f32.mrf.mxu0
  %v6606 = vadd.f32 0.0, %v6605
  %v6607 = vpop.f32.mrf.mxu0
  %v6608 = vadd.f32 0.0, %v6607
  %6609 = vmatmul.bf16.gmra.mxu0 %v6509
  %v6610 = vpop.f32.mrf.mxu0
  %v6611 = vadd.f32 0.0, %v6610
  %v6612 = vpop.f32.mrf.mxu0
  %v6613 = vadd.f32 0.0, %v6612
  %6614 = vmatmul.bf16.gmra.mxu0 %v6510
  %v6615 = vpop.f32.mrf.mxu0
  %v6616 = vadd.f32 0.0, %v6615
  %v6617 = vpop.f32.mrf.mxu0
  %v6618 = vadd.f32 0.0, %v6617
  %6619 = vmatmul.bf16.gmra.mxu0 %v6511
  %v6620 = vpop.f32.mrf.mxu0
  %v6621 = vadd.f32 0.0, %v6620
  %v6622 = vpop.f32.mrf.mxu0
  %v6623 = vadd.f32 0.0, %v6622
  %6624 = vdwg.mxu0
  %v6625 = vadd.f32 %v6472, %v6586
  %v6626 = vadd.f32 %v6473, %v6588
  %v6627 = vadd.f32 %v6474, %v6591
  %v6628 = vadd.f32 %v6475, %v6593
  %v6629 = vadd.f32 %v6476, %v6596
  %v6630 = vadd.f32 %v6477, %v6598
  %v6631 = vadd.f32 %v6478, %v6601
  %v6632 = vadd.f32 %v6479, %v6603
  %v6633 = vadd.f32 %v6480, %v6606
  %v6634 = vadd.f32 %v6481, %v6608
  %v6635 = vadd.f32 %v6482, %v6611
  %v6636 = vadd.f32 %v6483, %v6613
  %v6637 = vadd.f32 %v6484, %v6616
  %v6638 = vadd.f32 %v6485, %v6618
  %v6639 = vadd.f32 %v6486, %v6621
  %v6640 = vadd.f32 %v6487, %v6623
  %v6641 = vld [vmem:[%s5885 + $0x19] sm:$0xff]
  %v6642 = vld [vmem:[%s5885 + $0x21] sm:$0xff]
  %v6643 = vld [vmem:[%s5885 + $0x29] sm:$0xff]
  %v6644 = vld [vmem:[%s5885 + $0x31] sm:$0xff]
  %v6645 = vld [vmem:[%s5885 + $0x39] sm:$0xff]
  %v6646 = vld [vmem:[%s5885 + $0x41] sm:$0xff]
  %v6647 = vld [vmem:[%s5885 + $0x49] sm:$0xff]
  %v6648 = vld [vmem:[%s5885 + $0x51] sm:$0xff]
  %v6649 = vld [vmem:[%s5885 + $0x59] sm:$0xff]
  %v6650 = vld [vmem:[%s5885 + $0x61] sm:$0xff]
  %v6651 = vld [vmem:[%s5885 + $0x69] sm:$0xff]
  %v6652 = vld [vmem:[%s5885 + $0x71] sm:$0xff]
  %v6653 = vld [vmem:[%s5885 + $0x79] sm:$0xff]
  %v6654 = vld [vmem:[%s5885 + $0x81] sm:$0xff]
  %v6655 = vld [vmem:[%s5885 + $0x89] sm:$0xff]
  %v6656 = vld [vmem:[%s5885 + $0x91] sm:$0xff]
  %v6657 = vpack.c.bf16 %v6642, %v6641
  %v6658 = vpack.c.bf16 %v6644, %v6643
  %v6659 = vpack.c.bf16 %v6646, %v6645
  %v6660 = vpack.c.bf16 %v6648, %v6647
  %v6661 = vpack.c.bf16 %v6650, %v6649
  %v6662 = vpack.c.bf16 %v6652, %v6651
  %v6663 = vpack.c.bf16 %v6654, %v6653
  %v6664 = vpack.c.bf16 %v6656, %v6655
  %v6665 = vld [vmem:[%s3051] sm:$0xf]
  %v6666 = vld [vmem:[%s3051 + $0x4] sm:$0xf]
  %v6667 = vld [vmem:[%s3051 + $0x8] sm:$0xf]
  %v6668 = vld [vmem:[%s3051 + $0xc] sm:$0xf]
  %v6669 = vld [vmem:[%s3051 + $0x10] sm:$0xf]
  %v6670 = vld [vmem:[%s3051 + $0x14] sm:$0xf]
  %v6671 = vld [vmem:[%s3051 + $0x18] sm:$0xf]
  %v6672 = vld [vmem:[%s3051 + $0x1c] sm:$0xf]
  %v6673 = vld [vmem:[%s3051 + $0x20] sm:$0xf]
  %v6674 = vld [vmem:[%s3051 + $0x24] sm:$0xf]
  %v6675 = vld [vmem:[%s3051 + $0x28] sm:$0xf]
  %v6676 = vld [vmem:[%s3051 + $0x2c] sm:$0xf]
  %v6677 = vld [vmem:[%s3051 + $0x30] sm:$0xf]
  %v6678 = vld [vmem:[%s3051 + $0x34] sm:$0xf]
  %v6679 = vld [vmem:[%s3051 + $0x38] sm:$0xf]
  %v6680 = vld [vmem:[%s3051 + $0x3c] sm:$0xf]
  %v6697 = vunpack.c.l.b16 %v6665
  %v6698 = vunpack.c.l.b16 %v6666
  %v6699 = vunpack.c.l.b16 %v6667
  %v6700 = vunpack.c.l.b16 %v6668
  %v6701 = vunpack.c.l.b16 %v6669
  %v6702 = vunpack.c.l.b16 %v6670
  %v6703 = vunpack.c.l.b16 %v6671
  %v6704 = vunpack.c.l.b16 %v6672
  %v6705 = vunpack.c.l.b16 %v6673
  %v6706 = vunpack.c.l.b16 %v6674
  %v6707 = vunpack.c.l.b16 %v6675
  %v6708 = vunpack.c.l.b16 %v6676
  %v6709 = vunpack.c.l.b16 %v6677
  %v6710 = vunpack.c.l.b16 %v6678
  %v6711 = vunpack.c.l.b16 %v6679
  %v6712 = vunpack.c.l.b16 %v6680
  %v6713 = vpack.c.b16 %v6698, %v6697
  %v6714 = vpack.c.b16 %v6700, %v6699
  %v6715 = vpack.c.b16 %v6702, %v6701
  %v6716 = vpack.c.b16 %v6704, %v6703
  %v6717 = vpack.c.b16 %v6706, %v6705
  %v6718 = vpack.c.b16 %v6708, %v6707
  %v6719 = vpack.c.b16 %v6710, %v6709
  %v6720 = vpack.c.b16 %v6712, %v6711
  %6729 = vmatpush.bf16.msra.mxu0 %v6720
  %6730 = vmatpush.bf16.msra.mxu0 %v6719
  %6731 = vmatpush.bf16.msra.mxu0 %v6718
  %6732 = vmatpush.bf16.msra.mxu0 %v6717
  %6733 = vmatpush.bf16.msra.mxu0 %v6716
  %6734 = vmatpush.bf16.msra.mxu0 %v6715
  %6735 = vmatpush.bf16.msra.mxu0 %v6714
  %6736 = vmatpush.bf16.msra.mxu0 %v6713
  %6737 = vmatmul.bf16.gmra.mxu0 %v6657
  %v6738 = vpop.f32.mrf.mxu0
  %v6739 = vadd.f32 0.0, %v6738
  %v6740 = vpop.f32.mrf.mxu0
  %v6741 = vadd.f32 0.0, %v6740
  %6742 = vmatmul.bf16.gmra.mxu0 %v6658
  %v6743 = vpop.f32.mrf.mxu0
  %v6744 = vadd.f32 0.0, %v6743
  %v6745 = vpop.f32.mrf.mxu0
  %v6746 = vadd.f32 0.0, %v6745
  %6747 = vmatmul.bf16.gmra.mxu0 %v6659
  %v6748 = vpop.f32.mrf.mxu0
  %v6749 = vadd.f32 0.0, %v6748
  %v6750 = vpop.f32.mrf.mxu0
  %v6751 = vadd.f32 0.0, %v6750
  %6752 = vmatmul.bf16.gmra.mxu0 %v6660
  %v6753 = vpop.f32.mrf.mxu0
  %v6754 = vadd.f32 0.0, %v6753
  %v6755 = vpop.f32.mrf.mxu0
  %v6756 = vadd.f32 0.0, %v6755
  %6757 = vmatmul.bf16.gmra.mxu0 %v6661
  %v6758 = vpop.f32.mrf.mxu0
  %v6759 = vadd.f32 0.0, %v6758
  %v6760 = vpop.f32.mrf.mxu0
  %v6761 = vadd.f32 0.0, %v6760
  %6762 = vmatmul.bf16.gmra.mxu0 %v6662
  %v6763 = vpop.f32.mrf.mxu0
  %v6764 = vadd.f32 0.0, %v6763
  %v6765 = vpop.f32.mrf.mxu0
  %v6766 = vadd.f32 0.0, %v6765
  %6767 = vmatmul.bf16.gmra.mxu0 %v6663
  %v6768 = vpop.f32.mrf.mxu0
  %v6769 = vadd.f32 0.0, %v6768
  %v6770 = vpop.f32.mrf.mxu0
  %v6771 = vadd.f32 0.0, %v6770
  %6772 = vmatmul.bf16.gmra.mxu0 %v6664
  %v6773 = vpop.f32.mrf.mxu0
  %v6774 = vadd.f32 0.0, %v6773
  %v6775 = vpop.f32.mrf.mxu0
  %v6776 = vadd.f32 0.0, %v6775
  %6777 = vdwg.mxu0
  %v6778 = vadd.f32 %v6625, %v6739
  %v6779 = vadd.f32 %v6626, %v6741
  %v6780 = vadd.f32 %v6627, %v6744
  %v6781 = vadd.f32 %v6628, %v6746
  %v6782 = vadd.f32 %v6629, %v6749
  %v6783 = vadd.f32 %v6630, %v6751
  %v6784 = vadd.f32 %v6631, %v6754
  %v6785 = vadd.f32 %v6632, %v6756
  %v6786 = vadd.f32 %v6633, %v6759
  %v6787 = vadd.f32 %v6634, %v6761
  %v6788 = vadd.f32 %v6635, %v6764
  %v6789 = vadd.f32 %v6636, %v6766
  %v6790 = vadd.f32 %v6637, %v6769
  %v6791 = vadd.f32 %v6638, %v6771
  %v6792 = vadd.f32 %v6639, %v6774
  %v6793 = vadd.f32 %v6640, %v6776
  %v6794 = vld [vmem:[%s5885 + $0x27] sm:$0xff]
  %v6795 = vld [vmem:[%s5885 + $0x2f] sm:$0xff]
  %v6796 = vld [vmem:[%s5885 + $0x37] sm:$0xff]
  %v6797 = vld [vmem:[%s5885 + $0x3f] sm:$0xff]
  %v6798 = vld [vmem:[%s5885 + $0x47] sm:$0xff]
  %v6799 = vld [vmem:[%s5885 + $0x4f] sm:$0xff]
  %v6800 = vld [vmem:[%s5885 + $0x57] sm:$0xff]
  %v6801 = vld [vmem:[%s5885 + $0x5f] sm:$0xff]
  %v6802 = vld [vmem:[%s5885 + $0x67] sm:$0xff]
  %v6803 = vld [vmem:[%s5885 + $0x6f] sm:$0xff]
  %v6804 = vld [vmem:[%s5885 + $0x77] sm:$0xff]
  %v6805 = vld [vmem:[%s5885 + $0x7f] sm:$0xff]
  %v6806 = vld [vmem:[%s5885 + $0x87] sm:$0xff]
  %v6807 = vld [vmem:[%s5885 + $0x8f] sm:$0xff]
  %v6808 = vld [vmem:[%s5885 + $0x97] sm:$0xff]
  %v6809 = vld [vmem:[%s5885 + $0x9f] sm:$0xff]
  %v6810 = vpack.c.bf16 %v6795, %v6794
  %v6811 = vpack.c.bf16 %v6797, %v6796
  %v6812 = vpack.c.bf16 %v6799, %v6798
  %v6813 = vpack.c.bf16 %v6801, %v6800
  %v6814 = vpack.c.bf16 %v6803, %v6802
  %v6815 = vpack.c.bf16 %v6805, %v6804
  %v6816 = vpack.c.bf16 %v6807, %v6806
  %v6817 = vpack.c.bf16 %v6809, %v6808
  %v6818 = vld [vmem:[%s3205] sm:$0xf]
  %v6819 = vld [vmem:[%s3205 + $0x4] sm:$0xf]
  %v6820 = vld [vmem:[%s3205 + $0x8] sm:$0xf]
  %v6821 = vld [vmem:[%s3205 + $0xc] sm:$0xf]
  %v6822 = vld [vmem:[%s3205 + $0x10] sm:$0xf]
  %v6823 = vld [vmem:[%s3205 + $0x14] sm:$0xf]
  %v6824 = vld [vmem:[%s3205 + $0x18] sm:$0xf]
  %v6825 = vld [vmem:[%s3205 + $0x1c] sm:$0xf]
  %v6826 = vld [vmem:[%s3205 + $0x20] sm:$0xf]
  %v6827 = vld [vmem:[%s3205 + $0x24] sm:$0xf]
  %v6828 = vld [vmem:[%s3205 + $0x28] sm:$0xf]
  %v6829 = vld [vmem:[%s3205 + $0x2c] sm:$0xf]
  %v6830 = vld [vmem:[%s3205 + $0x30] sm:$0xf]
  %v6831 = vld [vmem:[%s3205 + $0x34] sm:$0xf]
  %v6832 = vld [vmem:[%s3205 + $0x38] sm:$0xf]
  %v6833 = vld [vmem:[%s3205 + $0x3c] sm:$0xf]
  %v6850 = vunpack.c.l.b16 %v6818
  %v6851 = vunpack.c.l.b16 %v6819
  %v6852 = vunpack.c.l.b16 %v6820
  %v6853 = vunpack.c.l.b16 %v6821
  %v6854 = vunpack.c.l.b16 %v6822
  %v6855 = vunpack.c.l.b16 %v6823
  %v6856 = vunpack.c.l.b16 %v6824
  %v6857 = vunpack.c.l.b16 %v6825
  %v6858 = vunpack.c.l.b16 %v6826
  %v6859 = vunpack.c.l.b16 %v6827
  %v6860 = vunpack.c.l.b16 %v6828
  %v6861 = vunpack.c.l.b16 %v6829
  %v6862 = vunpack.c.l.b16 %v6830
  %v6863 = vunpack.c.l.b16 %v6831
  %v6864 = vunpack.c.l.b16 %v6832
  %v6865 = vunpack.c.l.b16 %v6833
  %v6866 = vpack.c.b16 %v6851, %v6850
  %v6867 = vpack.c.b16 %v6853, %v6852
  %v6868 = vpack.c.b16 %v6855, %v6854
  %v6869 = vpack.c.b16 %v6857, %v6856
  %v6870 = vpack.c.b16 %v6859, %v6858
  %v6871 = vpack.c.b16 %v6861, %v6860
  %v6872 = vpack.c.b16 %v6863, %v6862
  %v6873 = vpack.c.b16 %v6865, %v6864
  %6882 = vmatpush.bf16.msra.mxu0 %v6873
  %6883 = vmatpush.bf16.msra.mxu0 %v6872
  %6884 = vmatpush.bf16.msra.mxu0 %v6871
  %6885 = vmatpush.bf16.msra.mxu0 %v6870
  %6886 = vmatpush.bf16.msra.mxu0 %v6869
  %6887 = vmatpush.bf16.msra.mxu0 %v6868
  %6888 = vmatpush.bf16.msra.mxu0 %v6867
  %6889 = vmatpush.bf16.msra.mxu0 %v6866
  %6890 = vmatmul.bf16.gmra.mxu0 %v6810
  %v6891 = vpop.f32.mrf.mxu0
  %v6892 = vadd.f32 0.0, %v6891
  %v6893 = vpop.f32.mrf.mxu0
  %v6894 = vadd.f32 0.0, %v6893
  %6895 = vmatmul.bf16.gmra.mxu0 %v6811
  %v6896 = vpop.f32.mrf.mxu0
  %v6897 = vadd.f32 0.0, %v6896
  %v6898 = vpop.f32.mrf.mxu0
  %v6899 = vadd.f32 0.0, %v6898
  %6900 = vmatmul.bf16.gmra.mxu0 %v6812
  %v6901 = vpop.f32.mrf.mxu0
  %v6902 = vadd.f32 0.0, %v6901
  %v6903 = vpop.f32.mrf.mxu0
  %v6904 = vadd.f32 0.0, %v6903
  %6905 = vmatmul.bf16.gmra.mxu0 %v6813
  %v6906 = vpop.f32.mrf.mxu0
  %v6907 = vadd.f32 0.0, %v6906
  %v6908 = vpop.f32.mrf.mxu0
  %v6909 = vadd.f32 0.0, %v6908
  %6910 = vmatmul.bf16.gmra.mxu0 %v6814
  %v6911 = vpop.f32.mrf.mxu0
  %v6912 = vadd.f32 0.0, %v6911
  %v6913 = vpop.f32.mrf.mxu0
  %v6914 = vadd.f32 0.0, %v6913
  %6915 = vmatmul.bf16.gmra.mxu0 %v6815
  %v6916 = vpop.f32.mrf.mxu0
  %v6917 = vadd.f32 0.0, %v6916
  %v6918 = vpop.f32.mrf.mxu0
  %v6919 = vadd.f32 0.0, %v6918
  %6920 = vmatmul.bf16.gmra.mxu0 %v6816
  %v6921 = vpop.f32.mrf.mxu0
  %v6922 = vadd.f32 0.0, %v6921
  %v6923 = vpop.f32.mrf.mxu0
  %v6924 = vadd.f32 0.0, %v6923
  %6925 = vmatmul.bf16.gmra.mxu0 %v6817
  %v6926 = vpop.f32.mrf.mxu0
  %v6927 = vadd.f32 0.0, %v6926
  %v6928 = vpop.f32.mrf.mxu0
  %v6929 = vadd.f32 0.0, %v6928
  %6930 = vdwg.mxu0
  %v6931 = vadd.f32 %v6778, %v6892
  %v6932 = vadd.f32 %v6779, %v6894
  %v6933 = vadd.f32 %v6780, %v6897
  %v6934 = vadd.f32 %v6781, %v6899
  %v6935 = vadd.f32 %v6782, %v6902
  %v6936 = vadd.f32 %v6783, %v6904
  %v6937 = vadd.f32 %v6784, %v6907
  %v6938 = vadd.f32 %v6785, %v6909
  %v6939 = vadd.f32 %v6786, %v6912
  %v6940 = vadd.f32 %v6787, %v6914
  %v6941 = vadd.f32 %v6788, %v6917
  %v6942 = vadd.f32 %v6789, %v6919
  %v6943 = vadd.f32 %v6790, %v6922
  %v6944 = vadd.f32 %v6791, %v6924
  %v6945 = vadd.f32 %v6792, %v6927
  %v6946 = vadd.f32 %v6793, %v6929
  %v6947 = vld [vmem:[%s5885 + $0x28] sm:$0xff]
  %v6948 = vld [vmem:[%s5885 + $0x30] sm:$0xff]
  %v6949 = vld [vmem:[%s5885 + $0x38] sm:$0xff]
  %v6950 = vld [vmem:[%s5885 + $0x40] sm:$0xff]
  %v6951 = vld [vmem:[%s5885 + $0x48] sm:$0xff]
  %v6952 = vld [vmem:[%s5885 + $0x50] sm:$0xff]
  %v6953 = vld [vmem:[%s5885 + $0x58] sm:$0xff]
  %v6954 = vld [vmem:[%s5885 + $0x60] sm:$0xff]
  %v6955 = vld [vmem:[%s5885 + $0x68] sm:$0xff]
  %v6956 = vld [vmem:[%s5885 + $0x70] sm:$0xff]
  %v6957 = vld [vmem:[%s5885 + $0x78] sm:$0xff]
  %v6958 = vld [vmem:[%s5885 + $0x80] sm:$0xff]
  %v6959 = vld [vmem:[%s5885 + $0x88] sm:$0xff]
  %v6960 = vld [vmem:[%s5885 + $0x90] sm:$0xff]
  %v6961 = vld [vmem:[%s5885 + $0x98] sm:$0xff]
  %v6962 = vld [vmem:[%s5885 + $0xa0] sm:$0xff]
  %v6963 = vpack.c.bf16 %v6948, %v6947
  %v6964 = vpack.c.bf16 %v6950, %v6949
  %v6965 = vpack.c.bf16 %v6952, %v6951
  %v6966 = vpack.c.bf16 %v6954, %v6953
  %v6967 = vpack.c.bf16 %v6956, %v6955
  %v6968 = vpack.c.bf16 %v6958, %v6957
  %v6969 = vpack.c.bf16 %v6960, %v6959
  %v6970 = vpack.c.bf16 %v6962, %v6961
  %v6971 = vld [vmem:[%s3359] sm:$0xf]
  %v6972 = vld [vmem:[%s3359 + $0x4] sm:$0xf]
  %v6973 = vld [vmem:[%s3359 + $0x8] sm:$0xf]
  %v6974 = vld [vmem:[%s3359 + $0xc] sm:$0xf]
  %v6975 = vld [vmem:[%s3359 + $0x10] sm:$0xf]
  %v6976 = vld [vmem:[%s3359 + $0x14] sm:$0xf]
  %v6977 = vld [vmem:[%s3359 + $0x18] sm:$0xf]
  %v6978 = vld [vmem:[%s3359 + $0x1c] sm:$0xf]
  %v6979 = vld [vmem:[%s3359 + $0x20] sm:$0xf]
  %v6980 = vld [vmem:[%s3359 + $0x24] sm:$0xf]
  %v6981 = vld [vmem:[%s3359 + $0x28] sm:$0xf]
  %v6982 = vld [vmem:[%s3359 + $0x2c] sm:$0xf]
  %v6983 = vld [vmem:[%s3359 + $0x30] sm:$0xf]
  %v6984 = vld [vmem:[%s3359 + $0x34] sm:$0xf]
  %v6985 = vld [vmem:[%s3359 + $0x38] sm:$0xf]
  %v6986 = vld [vmem:[%s3359 + $0x3c] sm:$0xf]
  %v7003 = vunpack.c.l.b16 %v6971
  %v7004 = vunpack.c.l.b16 %v6972
  %v7005 = vunpack.c.l.b16 %v6973
  %v7006 = vunpack.c.l.b16 %v6974
  %v7007 = vunpack.c.l.b16 %v6975
  %v7008 = vunpack.c.l.b16 %v6976
  %v7009 = vunpack.c.l.b16 %v6977
  %v7010 = vunpack.c.l.b16 %v6978
  %v7011 = vunpack.c.l.b16 %v6979
  %v7012 = vunpack.c.l.b16 %v6980
  %v7013 = vunpack.c.l.b16 %v6981
  %v7014 = vunpack.c.l.b16 %v6982
  %v7015 = vunpack.c.l.b16 %v6983
  %v7016 = vunpack.c.l.b16 %v6984
  %v7017 = vunpack.c.l.b16 %v6985
  %v7018 = vunpack.c.l.b16 %v6986
  %v7019 = vpack.c.b16 %v7004, %v7003
  %v7020 = vpack.c.b16 %v7006, %v7005
  %v7021 = vpack.c.b16 %v7008, %v7007
  %v7022 = vpack.c.b16 %v7010, %v7009
  %v7023 = vpack.c.b16 %v7012, %v7011
  %v7024 = vpack.c.b16 %v7014, %v7013
  %v7025 = vpack.c.b16 %v7016, %v7015
  %v7026 = vpack.c.b16 %v7018, %v7017
  %7035 = vmatpush.bf16.msra.mxu0 %v7026
  %7036 = vmatpush.bf16.msra.mxu0 %v7025
  %7037 = vmatpush.bf16.msra.mxu0 %v7024
  %7038 = vmatpush.bf16.msra.mxu0 %v7023
  %7039 = vmatpush.bf16.msra.mxu0 %v7022
  %7040 = vmatpush.bf16.msra.mxu0 %v7021
  %7041 = vmatpush.bf16.msra.mxu0 %v7020
  %7042 = vmatpush.bf16.msra.mxu0 %v7019
  %7043 = vmatmul.bf16.gmra.mxu0 %v6963
  %v7044 = vpop.f32.mrf.mxu0
  %v7045 = vadd.f32 0.0, %v7044
  %v7046 = vpop.f32.mrf.mxu0
  %v7047 = vadd.f32 0.0, %v7046
  %7048 = vmatmul.bf16.gmra.mxu0 %v6964
  %v7049 = vpop.f32.mrf.mxu0
  %v7050 = vadd.f32 0.0, %v7049
  %v7051 = vpop.f32.mrf.mxu0
  %v7052 = vadd.f32 0.0, %v7051
  %7053 = vmatmul.bf16.gmra.mxu0 %v6965
  %v7054 = vpop.f32.mrf.mxu0
  %v7055 = vadd.f32 0.0, %v7054
  %v7056 = vpop.f32.mrf.mxu0
  %v7057 = vadd.f32 0.0, %v7056
  %7058 = vmatmul.bf16.gmra.mxu0 %v6966
  %v7059 = vpop.f32.mrf.mxu0
  %v7060 = vadd.f32 0.0, %v7059
  %v7061 = vpop.f32.mrf.mxu0
  %v7062 = vadd.f32 0.0, %v7061
  %7063 = vmatmul.bf16.gmra.mxu0 %v6967
  %v7064 = vpop.f32.mrf.mxu0
  %v7065 = vadd.f32 0.0, %v7064
  %v7066 = vpop.f32.mrf.mxu0
  %v7067 = vadd.f32 0.0, %v7066
  %7068 = vmatmul.bf16.gmra.mxu0 %v6968
  %v7069 = vpop.f32.mrf.mxu0
  %v7070 = vadd.f32 0.0, %v7069
  %v7071 = vpop.f32.mrf.mxu0
  %v7072 = vadd.f32 0.0, %v7071
  %7073 = vmatmul.bf16.gmra.mxu0 %v6969
  %v7074 = vpop.f32.mrf.mxu0
  %v7075 = vadd.f32 0.0, %v7074
  %v7076 = vpop.f32.mrf.mxu0
  %v7077 = vadd.f32 0.0, %v7076
  %7078 = vmatmul.bf16.gmra.mxu0 %v6970
  %v7079 = vpop.f32.mrf.mxu0
  %v7080 = vadd.f32 0.0, %v7079
  %v7081 = vpop.f32.mrf.mxu0
  %v7082 = vadd.f32 0.0, %v7081
  %7083 = vdwg.mxu0
  %v7084 = vadd.f32 %v6931, %v7045
  %v7085 = vadd.f32 %v6932, %v7047
  %v7086 = vadd.f32 %v6933, %v7050
  %v7087 = vadd.f32 %v6934, %v7052
  %v7088 = vadd.f32 %v6935, %v7055
  %v7089 = vadd.f32 %v6936, %v7057
  %v7090 = vadd.f32 %v6937, %v7060
  %v7091 = vadd.f32 %v6938, %v7062
  %v7092 = vadd.f32 %v6939, %v7065
  %v7093 = vadd.f32 %v6940, %v7067
  %v7094 = vadd.f32 %v6941, %v7070
  %v7095 = vadd.f32 %v6942, %v7072
  %v7096 = vadd.f32 %v6943, %v7075
  %v7097 = vadd.f32 %v6944, %v7077
  %v7098 = vadd.f32 %v6945, %v7080
  %v7099 = vadd.f32 %v6946, %v7082
  %v7100 = vld [vmem:[%s5885 + $0x29] sm:$0xff]
  %v7101 = vld [vmem:[%s5885 + $0x31] sm:$0xff]
  %v7102 = vld [vmem:[%s5885 + $0x39] sm:$0xff]
  %v7103 = vld [vmem:[%s5885 + $0x41] sm:$0xff]
  %v7104 = vld [vmem:[%s5885 + $0x49] sm:$0xff]
  %v7105 = vld [vmem:[%s5885 + $0x51] sm:$0xff]
  %v7106 = vld [vmem:[%s5885 + $0x59] sm:$0xff]
  %v7107 = vld [vmem:[%s5885 + $0x61] sm:$0xff]
  %v7108 = vld [vmem:[%s5885 + $0x69] sm:$0xff]
  %v7109 = vld [vmem:[%s5885 + $0x71] sm:$0xff]
  %v7110 = vld [vmem:[%s5885 + $0x79] sm:$0xff]
  %v7111 = vld [vmem:[%s5885 + $0x81] sm:$0xff]
  %v7112 = vld [vmem:[%s5885 + $0x89] sm:$0xff]
  %v7113 = vld [vmem:[%s5885 + $0x91] sm:$0xff]
  %v7114 = vld [vmem:[%s5885 + $0x99] sm:$0xff]
  %v7115 = vld [vmem:[%s5885 + $0xa1] sm:$0xff]
  %v7116 = vpack.c.bf16 %v7101, %v7100
  %v7117 = vpack.c.bf16 %v7103, %v7102
  %v7118 = vpack.c.bf16 %v7105, %v7104
  %v7119 = vpack.c.bf16 %v7107, %v7106
  %v7120 = vpack.c.bf16 %v7109, %v7108
  %v7121 = vpack.c.bf16 %v7111, %v7110
  %v7122 = vpack.c.bf16 %v7113, %v7112
  %v7123 = vpack.c.bf16 %v7115, %v7114
  %v7124 = vld [vmem:[%s3513] sm:$0xf]
  %v7125 = vld [vmem:[%s3513 + $0x4] sm:$0xf]
  %v7126 = vld [vmem:[%s3513 + $0x8] sm:$0xf]
  %v7127 = vld [vmem:[%s3513 + $0xc] sm:$0xf]
  %v7128 = vld [vmem:[%s3513 + $0x10] sm:$0xf]
  %v7129 = vld [vmem:[%s3513 + $0x14] sm:$0xf]
  %v7130 = vld [vmem:[%s3513 + $0x18] sm:$0xf]
  %v7131 = vld [vmem:[%s3513 + $0x1c] sm:$0xf]
  %v7132 = vld [vmem:[%s3513 + $0x20] sm:$0xf]
  %v7133 = vld [vmem:[%s3513 + $0x24] sm:$0xf]
  %v7134 = vld [vmem:[%s3513 + $0x28] sm:$0xf]
  %v7135 = vld [vmem:[%s3513 + $0x2c] sm:$0xf]
  %v7136 = vld [vmem:[%s3513 + $0x30] sm:$0xf]
  %v7137 = vld [vmem:[%s3513 + $0x34] sm:$0xf]
  %v7138 = vld [vmem:[%s3513 + $0x38] sm:$0xf]
  %v7139 = vld [vmem:[%s3513 + $0x3c] sm:$0xf]
  %v7156 = vunpack.c.l.b16 %v7124
  %v7157 = vunpack.c.l.b16 %v7125
  %v7158 = vunpack.c.l.b16 %v7126
  %v7159 = vunpack.c.l.b16 %v7127
  %v7160 = vunpack.c.l.b16 %v7128
  %v7161 = vunpack.c.l.b16 %v7129
  %v7162 = vunpack.c.l.b16 %v7130
  %v7163 = vunpack.c.l.b16 %v7131
  %v7164 = vunpack.c.l.b16 %v7132
  %v7165 = vunpack.c.l.b16 %v7133
  %v7166 = vunpack.c.l.b16 %v7134
  %v7167 = vunpack.c.l.b16 %v7135
  %v7168 = vunpack.c.l.b16 %v7136
  %v7169 = vunpack.c.l.b16 %v7137
  %v7170 = vunpack.c.l.b16 %v7138
  %v7171 = vunpack.c.l.b16 %v7139
  %v7172 = vpack.c.b16 %v7157, %v7156
  %v7173 = vpack.c.b16 %v7159, %v7158
  %v7174 = vpack.c.b16 %v7161, %v7160
  %v7175 = vpack.c.b16 %v7163, %v7162
  %v7176 = vpack.c.b16 %v7165, %v7164
  %v7177 = vpack.c.b16 %v7167, %v7166
  %v7178 = vpack.c.b16 %v7169, %v7168
  %v7179 = vpack.c.b16 %v7171, %v7170
  %7188 = vmatpush.bf16.msra.mxu0 %v7179
  %7189 = vmatpush.bf16.msra.mxu0 %v7178
  %7190 = vmatpush.bf16.msra.mxu0 %v7177
  %7191 = vmatpush.bf16.msra.mxu0 %v7176
  %7192 = vmatpush.bf16.msra.mxu0 %v7175
  %7193 = vmatpush.bf16.msra.mxu0 %v7174
  %7194 = vmatpush.bf16.msra.mxu0 %v7173
  %7195 = vmatpush.bf16.msra.mxu0 %v7172
  %7196 = vmatmul.bf16.gmra.mxu0 %v7116
  %v7197 = vpop.f32.mrf.mxu0
  %v7198 = vadd.f32 0.0, %v7197
  %v7199 = vpop.f32.mrf.mxu0
  %v7200 = vadd.f32 0.0, %v7199
  %7201 = vmatmul.bf16.gmra.mxu0 %v7117
  %v7202 = vpop.f32.mrf.mxu0
  %v7203 = vadd.f32 0.0, %v7202
  %v7204 = vpop.f32.mrf.mxu0
  %v7205 = vadd.f32 0.0, %v7204
  %7206 = vmatmul.bf16.gmra.mxu0 %v7118
  %v7207 = vpop.f32.mrf.mxu0
  %v7208 = vadd.f32 0.0, %v7207
  %v7209 = vpop.f32.mrf.mxu0
  %v7210 = vadd.f32 0.0, %v7209
  %7211 = vmatmul.bf16.gmra.mxu0 %v7119
  %v7212 = vpop.f32.mrf.mxu0
  %v7213 = vadd.f32 0.0, %v7212
  %v7214 = vpop.f32.mrf.mxu0
  %v7215 = vadd.f32 0.0, %v7214
  %7216 = vmatmul.bf16.gmra.mxu0 %v7120
  %v7217 = vpop.f32.mrf.mxu0
  %v7218 = vadd.f32 0.0, %v7217
  %v7219 = vpop.f32.mrf.mxu0
  %v7220 = vadd.f32 0.0, %v7219
  %7221 = vmatmul.bf16.gmra.mxu0 %v7121
  %v7222 = vpop.f32.mrf.mxu0
  %v7223 = vadd.f32 0.0, %v7222
  %v7224 = vpop.f32.mrf.mxu0
  %v7225 = vadd.f32 0.0, %v7224
  %7226 = vmatmul.bf16.gmra.mxu0 %v7122
  %v7227 = vpop.f32.mrf.mxu0
  %v7228 = vadd.f32 0.0, %v7227
  %v7229 = vpop.f32.mrf.mxu0
  %v7230 = vadd.f32 0.0, %v7229
  %7231 = vmatmul.bf16.gmra.mxu0 %v7123
  %v7232 = vpop.f32.mrf.mxu0
  %v7233 = vadd.f32 0.0, %v7232
  %v7234 = vpop.f32.mrf.mxu0
  %v7235 = vadd.f32 0.0, %v7234
  %7236 = vdwg.mxu0
  %v7237 = vadd.f32 %v7084, %v7198
  %v7238 = vadd.f32 %v7085, %v7200
  %v7239 = vadd.f32 %v7086, %v7203
  %v7240 = vadd.f32 %v7087, %v7205
  %v7241 = vadd.f32 %v7088, %v7208
  %v7242 = vadd.f32 %v7089, %v7210
  %v7243 = vadd.f32 %v7090, %v7213
  %v7244 = vadd.f32 %v7091, %v7215
  %v7245 = vadd.f32 %v7092, %v7218
  %v7246 = vadd.f32 %v7093, %v7220
  %v7247 = vadd.f32 %v7094, %v7223
  %v7248 = vadd.f32 %v7095, %v7225
  %v7249 = vadd.f32 %v7096, %v7228
  %v7250 = vadd.f32 %v7097, %v7230
  %v7251 = vadd.f32 %v7098, %v7233
  %v7252 = vadd.f32 %v7099, %v7235
  %v7253 = vld [vmem:[%s4] sm:$0x1]
  %v7255 = vperm.slane %v7253, 0
  %v7257 = vadd.f32 %v7237, %v7255
  %v7258 = vadd.f32 %v7238, %v7255
  %v7259 = vadd.f32 %v7239, %v7255
  %v7260 = vadd.f32 %v7240, %v7255
  %v7261 = vadd.f32 %v7241, %v7255
  %v7262 = vadd.f32 %v7242, %v7255
  %v7263 = vadd.f32 %v7243, %v7255
  %v7264 = vadd.f32 %v7244, %v7255
  %v7265 = vadd.f32 %v7245, %v7255
  %v7266 = vadd.f32 %v7246, %v7255
  %v7267 = vadd.f32 %v7247, %v7255
  %v7268 = vadd.f32 %v7248, %v7255
  %v7269 = vadd.f32 %v7249, %v7255
  %v7270 = vadd.f32 %v7250, %v7255
  %v7271 = vadd.f32 %v7251, %v7255
  %v7272 = vadd.f32 %v7252, %v7255
  %v7273 = vld [vmem:[%s4723] sm:$0xf]
  %v7274 = vld [vmem:[%s4723 + $0x4] sm:$0xf]
  %v7275 = vld [vmem:[%s4723 + $0x8] sm:$0xf]
  %v7276 = vld [vmem:[%s4723 + $0xc] sm:$0xf]
  %v7277 = vld [vmem:[%s4723 + $0x10] sm:$0xf]
  %v7278 = vld [vmem:[%s4723 + $0x14] sm:$0xf]
  %v7279 = vld [vmem:[%s4723 + $0x18] sm:$0xf]
  %v7280 = vld [vmem:[%s4723 + $0x1c] sm:$0xf]
  %v7281 = vld [vmem:[%s4723 + $0x20] sm:$0xf]
  %v7282 = vld [vmem:[%s4723 + $0x24] sm:$0xf]
  %v7283 = vld [vmem:[%s4723 + $0x28] sm:$0xf]
  %v7284 = vld [vmem:[%s4723 + $0x2c] sm:$0xf]
  %v7285 = vld [vmem:[%s4723 + $0x30] sm:$0xf]
  %v7286 = vld [vmem:[%s4723 + $0x34] sm:$0xf]
  %v7287 = vld [vmem:[%s4723 + $0x38] sm:$0xf]
  %v7288 = vld [vmem:[%s4723 + $0x3c] sm:$0xf]
  %v7289 = vld [vmem:[%s5] sm:$0xf]
  %v7290 = vld [vmem:[%s5 + $0x4] sm:$0xf]
  %v7291 = vld [vmem:[%s5 + $0x8] sm:$0xf]
  %v7292 = vld [vmem:[%s5 + $0xc] sm:$0xf]
  %v7293 = vld [vmem:[%s5 + $0x10] sm:$0xf]
  %v7294 = vld [vmem:[%s5 + $0x14] sm:$0xf]
  %v7295 = vld [vmem:[%s5 + $0x18] sm:$0xf]
  %v7296 = vld [vmem:[%s5 + $0x1c] sm:$0xf]
  %v7297 = vld [vmem:[%s5 + $0x20] sm:$0xf]
  %v7298 = vld [vmem:[%s5 + $0x24] sm:$0xf]
  %v7299 = vld [vmem:[%s5 + $0x28] sm:$0xf]
  %v7300 = vld [vmem:[%s5 + $0x2c] sm:$0xf]
  %v7301 = vld [vmem:[%s5 + $0x30] sm:$0xf]
  %v7302 = vld [vmem:[%s5 + $0x34] sm:$0xf]
  %v7303 = vld [vmem:[%s5 + $0x38] sm:$0xf]
  %v7304 = vld [vmem:[%s5 + $0x3c] sm:$0xf]
  %v7305 = vld [vmem:[%s6] sm:$0x1]
  %v7307 = vperm.slane %v7305, 0
  %v7325 = vunpack.c.l.b16 %v7273
  %v7326 = vunpack.c.l.b16 %v7274
  %v7327 = vunpack.c.l.b16 %v7275
  %v7328 = vunpack.c.l.b16 %v7276
  %v7329 = vunpack.c.l.b16 %v7277
  %v7330 = vunpack.c.l.b16 %v7278
  %v7331 = vunpack.c.l.b16 %v7279
  %v7332 = vunpack.c.l.b16 %v7280
  %v7333 = vunpack.c.l.b16 %v7281
  %v7334 = vunpack.c.l.b16 %v7282
  %v7335 = vunpack.c.l.b16 %v7283
  %v7336 = vunpack.c.l.b16 %v7284
  %v7337 = vunpack.c.l.b16 %v7285
  %v7338 = vunpack.c.l.b16 %v7286
  %v7339 = vunpack.c.l.b16 %v7287
  %v7340 = vunpack.c.l.b16 %v7288
  %v7341 = vpack.c.b16 %v7326, %v7325
  %v7342 = vpack.c.b16 %v7328, %v7327
  %v7343 = vpack.c.b16 %v7330, %v7329
  %v7344 = vpack.c.b16 %v7332, %v7331
  %v7345 = vpack.c.b16 %v7334, %v7333
  %v7346 = vpack.c.b16 %v7336, %v7335
  %v7347 = vpack.c.b16 %v7338, %v7337
  %v7348 = vpack.c.b16 %v7340, %v7339
  %v7373 = vunpack.c.l.b16 %v7289
  %v7374 = vunpack.c.l.b16 %v7290
  %v7375 = vunpack.c.l.b16 %v7291
  %v7376 = vunpack.c.l.b16 %v7292
  %v7377 = vunpack.c.l.b16 %v7293
  %v7378 = vunpack.c.l.b16 %v7294
  %v7379 = vunpack.c.l.b16 %v7295
  %v7380 = vunpack.c.l.b16 %v7296
  %v7381 = vunpack.c.l.b16 %v7297
  %v7382 = vunpack.c.l.b16 %v7298
  %v7383 = vunpack.c.l.b16 %v7299
  %v7384 = vunpack.c.l.b16 %v7300
  %v7385 = vunpack.c.l.b16 %v7301
  %v7386 = vunpack.c.l.b16 %v7302
  %v7387 = vunpack.c.l.b16 %v7303
  %v7388 = vunpack.c.l.b16 %v7304
  %v7389 = vpack.c.b16 %v7374, %v7373
  %v7390 = vpack.c.b16 %v7376, %v7375
  %v7391 = vpack.c.b16 %v7378, %v7377
  %v7392 = vpack.c.b16 %v7380, %v7379
  %v7393 = vpack.c.b16 %v7382, %v7381
  %v7394 = vpack.c.b16 %v7384, %v7383
  %v7395 = vpack.c.b16 %v7386, %v7385
  %v7396 = vpack.c.b16 %v7388, %v7387
  %7405 = vmatpush.bf16.msra.mxu0 %v7396
  %7406 = vmatpush.bf16.msra.mxu0 %v7395
  %7407 = vmatpush.bf16.msra.mxu0 %v7394
  %7408 = vmatpush.bf16.msra.mxu0 %v7393
  %7409 = vmatpush.bf16.msra.mxu0 %v7392
  %7410 = vmatpush.bf16.msra.mxu0 %v7391
  %7411 = vmatpush.bf16.msra.mxu0 %v7390
  %7412 = vmatpush.bf16.msra.mxu0 %v7389
  %7413 = vmatmul.bf16.gmra.mxu0 %v7341
  %v7414 = vpop.f32.mrf.mxu0
  %v7415 = vadd.f32 %v7307, %v7414
  %v7416 = vpop.f32.mrf.mxu0
  %v7417 = vadd.f32 %v7307, %v7416
  %7418 = vmatmul.bf16.gmra.mxu0 %v7342
  %v7419 = vpop.f32.mrf.mxu0
  %v7420 = vadd.f32 %v7307, %v7419
  %v7421 = vpop.f32.mrf.mxu0
  %v7422 = vadd.f32 %v7307, %v7421
  %7423 = vmatmul.bf16.gmra.mxu0 %v7343
  %v7424 = vpop.f32.mrf.mxu0
  %v7425 = vadd.f32 %v7307, %v7424
  %v7426 = vpop.f32.mrf.mxu0
  %v7427 = vadd.f32 %v7307, %v7426
  %7428 = vmatmul.bf16.gmra.mxu0 %v7344
  %v7429 = vpop.f32.mrf.mxu0
  %v7430 = vadd.f32 %v7307, %v7429
  %v7431 = vpop.f32.mrf.mxu0
  %v7432 = vadd.f32 %v7307, %v7431
  %7433 = vmatmul.bf16.gmra.mxu0 %v7345
  %v7434 = vpop.f32.mrf.mxu0
  %v7435 = vadd.f32 %v7307, %v7434
  %v7436 = vpop.f32.mrf.mxu0
  %v7437 = vadd.f32 %v7307, %v7436
  %7438 = vmatmul.bf16.gmra.mxu0 %v7346
  %v7439 = vpop.f32.mrf.mxu0
  %v7440 = vadd.f32 %v7307, %v7439
  %v7441 = vpop.f32.mrf.mxu0
  %v7442 = vadd.f32 %v7307, %v7441
  %7443 = vmatmul.bf16.gmra.mxu0 %v7347
  %v7444 = vpop.f32.mrf.mxu0
  %v7445 = vadd.f32 %v7307, %v7444
  %v7446 = vpop.f32.mrf.mxu0
  %v7447 = vadd.f32 %v7307, %v7446
  %7448 = vmatmul.bf16.gmra.mxu0 %v7348
  %v7449 = vpop.f32.mrf.mxu0
  %v7450 = vadd.f32 %v7307, %v7449
  %v7451 = vpop.f32.mrf.mxu0
  %v7452 = vadd.f32 %v7307, %v7451
  %7453 = vdwg.mxu0
  %v7454 = vadd.f32 %v7257, %v7415
  %v7455 = vadd.f32 %v7258, %v7417
  %v7456 = vadd.f32 %v7259, %v7420
  %v7457 = vadd.f32 %v7260, %v7422
  %v7458 = vadd.f32 %v7261, %v7425
  %v7459 = vadd.f32 %v7262, %v7427
  %v7460 = vadd.f32 %v7263, %v7430
  %v7461 = vadd.f32 %v7264, %v7432
  %v7462 = vadd.f32 %v7265, %v7435
  %v7463 = vadd.f32 %v7266, %v7437
  %v7464 = vadd.f32 %v7267, %v7440
  %v7465 = vadd.f32 %v7268, %v7442
  %v7466 = vadd.f32 %v7269, %v7445
  %v7467 = vadd.f32 %v7270, %v7447
  %v7468 = vadd.f32 %v7271, %v7450
  %v7469 = vadd.f32 %v7272, %v7452
  %v7470 = vmax.f32 %v7454, 0.0
  %v7471 = vmax.f32 %v7455, 0.0
  %v7472 = vmax.f32 %v7456, 0.0
  %v7473 = vmax.f32 %v7457, 0.0
  %v7474 = vmax.f32 %v7458, 0.0
  %v7475 = vmax.f32 %v7459, 0.0
  %v7476 = vmax.f32 %v7460, 0.0
  %v7477 = vmax.f32 %v7461, 0.0
  %v7478 = vmax.f32 %v7462, 0.0
  %v7479 = vmax.f32 %v7463, 0.0
  %v7480 = vmax.f32 %v7464, 0.0
  %v7481 = vmax.f32 %v7465, 0.0
  %v7482 = vmax.f32 %v7466, 0.0
  %v7483 = vmax.f32 %v7467, 0.0
  %v7484 = vmax.f32 %v7468, 0.0
  %v7485 = vmax.f32 %v7469, 0.0
  %v7486 = vpack.c.bf16 %v7470, %v7470
  %v7487 = vpack.c.bf16 %v7471, %v7471
  %v7488 = vpack.c.bf16 %v7472, %v7472
  %v7489 = vpack.c.bf16 %v7473, %v7473
  %v7490 = vpack.c.bf16 %v7474, %v7474
  %v7491 = vpack.c.bf16 %v7475, %v7475
  %v7492 = vpack.c.bf16 %v7476, %v7476
  %v7493 = vpack.c.bf16 %v7477, %v7477
  %v7494 = vpack.c.bf16 %v7478, %v7478
  %v7495 = vpack.c.bf16 %v7479, %v7479
  %v7496 = vpack.c.bf16 %v7480, %v7480
  %v7497 = vpack.c.bf16 %v7481, %v7481
  %v7498 = vpack.c.bf16 %v7482, %v7482
  %v7499 = vpack.c.bf16 %v7483, %v7483
  %v7500 = vpack.c.bf16 %v7484, %v7484
  %v7501 = vpack.c.bf16 %v7485, %v7485
  %s7502 = scalar_lea.vmem %s7, 64
  %7503 = vst [vmem:[%s7502] sm:$0xf] %v7486
  %7504 = vst [vmem:[%s7502 + $0x4] sm:$0xf] %v7487
  %7505 = vst [vmem:[%s7502 + $0x8] sm:$0xf] %v7488
  %7506 = vst [vmem:[%s7502 + $0xc] sm:$0xf] %v7489
  %7507 = vst [vmem:[%s7502 + $0x10] sm:$0xf] %v7490
  %7508 = vst [vmem:[%s7502 + $0x14] sm:$0xf] %v7491
  %7509 = vst [vmem:[%s7502 + $0x18] sm:$0xf] %v7492
  %7510 = vst [vmem:[%s7502 + $0x1c] sm:$0xf] %v7493
  %7511 = vst [vmem:[%s7502 + $0x20] sm:$0xf] %v7494
  %7512 = vst [vmem:[%s7502 + $0x24] sm:$0xf] %v7495
  %7513 = vst [vmem:[%s7502 + $0x28] sm:$0xf] %v7496
  %7514 = vst [vmem:[%s7502 + $0x2c] sm:$0xf] %v7497
  %7515 = vst [vmem:[%s7502 + $0x30] sm:$0xf] %v7498
  %7516 = vst [vmem:[%s7502 + $0x34] sm:$0xf] %v7499
  %7517 = vst [vmem:[%s7502 + $0x38] sm:$0xf] %v7500
  %7518 = vst [vmem:[%s7502 + $0x3c] sm:$0xf] %v7501
  // Predicated region
  $region30: #{basic_block_forward.1} parent=0 // pred_check
    _
  $region31: #{basic_block_forward.1} parent=0 // pred_check_branch
    %7520 = sbr.rel (0) target = $region33
  $region32: #{basic_block_forward.1} parent=0 // pred_region
    _
  $region33: #{basic_block_forward.1} parent=0 // pred_fallthru
    _
  // Predicated region
  $region34: #{basic_block_forward.1} parent=0 // pred_check
    _
  $region35: #{basic_block_forward.1} parent=0 // pred_check_branch
    %7522 = sbr.rel (0) target = $region37
  $region36: #{basic_block_forward.1} parent=0 // pred_region
    _
  $region37: #{basic_block_forward.1} parent=0 // pred_fallthru
    _

</llo_original>
